<compile_context>
chip_gen: v7x
topology: tpu7x:2x2x1
jax: 0.10.0
libtpu: 0.0.40
codegen_flags: <defaults>
</compile_context>

<pallas_src>
import math
import jax
import jax.numpy as jnp
from jax.experimental import pallas as pl
from jax.experimental.pallas import tpu as pltpu

UNITS = [64, 128, 256]
IN_DIM = 256
HIDDEN4 = 4096
OUT_DIM = 10


def _round_up(x, m):
    return ((x + m - 1) // m) * m


def fcnet_kernel(x_ref,
                 w1_ref, b1_ref,
                 w2_ref, b2_ref,
                 w3_ref, b3_ref,
                 w4t_ref, b4_ref,
                 w5t_ref, b5_ref,
                 o_ref):
    # Layers 1-3: small matmuls, bf16 operands, f32 MXU accumulation.
    x = x_ref[...].astype(jnp.bfloat16)                       # (TM, 256)
    h = jnp.maximum(
        jnp.dot(x, w1_ref[...], preferred_element_type=jnp.float32) + b1_ref[...],
        0.0).astype(jnp.bfloat16)                             # (TM, 64)
    h = jnp.maximum(
        jnp.dot(h, w2_ref[...], preferred_element_type=jnp.float32) + b2_ref[...],
        0.0).astype(jnp.bfloat16)                             # (TM, 128)
    h = jnp.maximum(
        jnp.dot(h, w3_ref[...], preferred_element_type=jnp.float32) + b3_ref[...],
        0.0).astype(jnp.bfloat16)                             # (TM, 256)

    # Transpose once at the layer-4 boundary (small: TM*256 bf16, XLU).
    h_t = h.T                                                 # (256, TM) bf16

    # Layer 4 (transposed): W4_T(4096,256) @ h_T(256,TM) + b4 column.
    h4_t = jnp.dot(w4t_ref[...], h_t,
                   preferred_element_type=jnp.float32) + b4_ref[...]   # (4096, TM) f32

    # tanh in bf16 (EUP bf16 path; also the operand dtype layer 5 needs anyway).
    t_t = jnp.tanh(h4_t.astype(jnp.bfloat16))                 # (4096, TM) bf16

    # Layer 5 (transposed): W5_T(10,4096) @ t_T(4096,TM) + b5 column.
    logits_t = jnp.dot(w5t_ref[...], t_t,
                       preferred_element_type=jnp.float32) + b5_ref[...]  # (10, TM) f32

    # log_softmax over the feature axis (axis 0 in the transposed layout).
    m = jnp.max(logits_t, axis=0, keepdims=True)
    shifted = logits_t - m
    lse = jnp.log(jnp.sum(jnp.exp(shifted), axis=0, keepdims=True))
    o_ref[...] = shifted - lse                                # (10, TM) lane-dense store


def fcnet_forward(x, params, *, block_rows=None):
    """Fused forward pass.

    All matmul operands run in bf16 with f32 MXU accumulation. Layers 4/5 are
    computed in transposed form inside the kernel; the wrapper pre-transposes
    W4/W5 and transposes the (10, B) result back to (B, 10).
    """
    (w1, b1, w2, b2, w3, b3, w4, b4, w5, b5) = params

    # Weight prep (one-time, outside the kernel).
    w1b = w1.astype(jnp.bfloat16)
    w2b = w2.astype(jnp.bfloat16)
    w3b = w3.astype(jnp.bfloat16)
    w4t = w4.T.astype(jnp.bfloat16)            # (4096, 256)
    w5t = w5.T.astype(jnp.bfloat16)            # (10, 4096)
    b4c = b4.reshape(HIDDEN4, 1)               # column bias for transposed layer 4
    b5c = b5.reshape(OUT_DIM, 1)               # column bias for transposed layer 5

    B = x.shape[0]
    if block_rows is None:
        if B <= 256:
            # Single grid step: block == full (padded) array, so only 8-row
            # sublane alignment is needed.
            block_rows = _round_up(max(B, 1), 8)
        else:
            # >= 2 grid steps so the "parallel" batch axis can shard across
            # v7x's two TensorCores; multiples of 128 keep the transposed
            # (10, TM) output lane-dense. Cap at 512 rows (~18 MiB VMEM).
            block_rows = min(512, _round_up((B + 1) // 2, 128))

    Bp = _round_up(B, block_rows)
    if Bp != block_rows and block_rows % 128 != 0:
        raise ValueError("block_rows must be a multiple of 128 when the grid has "
                         "more than one step (lane-dense transposed output).")
    xp = x if Bp == B else jnp.pad(x, ((0, Bp - B), (0, 0)))

    grid = (Bp // block_rows,)
    const = lambda i: (0, 0)   # weights/biases: same block every step -> resident in VMEM

    out_t = pl.pallas_call(
        fcnet_kernel,
        out_shape=jax.ShapeDtypeStruct((OUT_DIM, Bp), jnp.float32),
        grid=grid,
        in_specs=[
            pl.BlockSpec((block_rows, IN_DIM), lambda i: (i, 0)),
            pl.BlockSpec((IN_DIM, UNITS[0]), const),
            pl.BlockSpec((1, UNITS[0]), const),
            pl.BlockSpec((UNITS[0], UNITS[1]), const),
            pl.BlockSpec((1, UNITS[1]), const),
            pl.BlockSpec((UNITS[1], UNITS[2]), const),
            pl.BlockSpec((1, UNITS[2]), const),
            pl.BlockSpec((HIDDEN4, UNITS[2]), const),   # W4^T
            pl.BlockSpec((HIDDEN4, 1), const),          # b4 column
            pl.BlockSpec((OUT_DIM, HIDDEN4), const),    # W5^T
            pl.BlockSpec((OUT_DIM, 1), const),          # b5 column
        ],
        out_specs=pl.BlockSpec((OUT_DIM, block_rows), lambda i: (0, i)),
        compiler_params=pltpu.CompilerParams(
            dimension_semantics=("parallel",),   # megacore split on v7x
            vmem_limit_bytes=32 << 20,           # ~18 MiB footprint at TM=512 + headroom
        ),
    )(xp, w1b, b1, w2b, b2, w3b, b3, w4t, b4c, w5t, b5c)

    out = out_t.T                               # (Bp, 10)
    return out[:B] if Bp != B else out


def init_params(key, init_mode=1):
    """Deterministic init mimicking FCNet.__init__ (init != 4 path).

    Layers 1-4: weights ~ U(init_range(fan_in)), bias = 0.1.
    Layer 5: PyTorch default Linear init (U(-1/sqrt(fan_in), 1/sqrt(fan_in))).
    Weights stored as (in_features, out_features).
    """
    def init_range(fan_in):
        ranges = {
            1: (-1.0 / math.sqrt(fan_in), 1.0 / math.sqrt(fan_in)),
            2: (0.2, 0.8),
            3: (-0.03, 0.03),
        }
        return ranges[init_mode]

    dims = [(IN_DIM, UNITS[0]), (UNITS[0], UNITS[1]), (UNITS[1], UNITS[2]),
            (UNITS[2], HIDDEN4), (HIDDEN4, OUT_DIM)]
    keys = jax.random.split(key, 2 * len(dims))
    params = []
    for i, (fan_in, fan_out) in enumerate(dims):
        kw, kb = keys[2 * i], keys[2 * i + 1]
        if i < 4:
            lo, hi = init_range(fan_in)
            w = jax.random.uniform(kw, (fan_in, fan_out), jnp.float32, lo, hi)
            b = jnp.full((1, fan_out), 0.1, dtype=jnp.float32)
        else:
            bound = 1.0 / math.sqrt(fan_in)
            w = jax.random.uniform(kw, (fan_in, fan_out), jnp.float32, -bound, bound)
            b = jax.random.uniform(kb, (1, fan_out), jnp.float32, -bound, bound)
        params.extend([w, b])
    return tuple(params)


def reference_forward(x, params):
    """Pure-JAX reference mirroring the kernel's mixed precision and the
    transposed layer-4/5 formulation."""
    (w1, b1, w2, b2, w3, b3, w4, b4, w5, b5) = params
    xb = x.astype(jnp.bfloat16)
    h = jnp.maximum(
        jnp.dot(xb, w1.astype(jnp.bfloat16), preferred_element_type=jnp.float32) + b1,
        0.0).astype(jnp.bfloat16)
    h = jnp.maximum(
        jnp.dot(h, w2.astype(jnp.bfloat16), preferred_element_type=jnp.float32) + b2,
        0.0).astype(jnp.bfloat16)
    h = jnp.maximum(
        jnp.dot(h, w3.astype(jnp.bfloat16), preferred_element_type=jnp.float32) + b3,
        0.0).astype(jnp.bfloat16)
    h4_t = jnp.dot(w4.T.astype(jnp.bfloat16), h.T,
                   preferred_element_type=jnp.float32) + b4.reshape(-1, 1)
    t_t = jnp.tanh(h4_t.astype(jnp.bfloat16))
    logits_t = jnp.dot(w5.T.astype(jnp.bfloat16), t_t,
                       preferred_element_type=jnp.float32) + b5.reshape(-1, 1)
    return jax.nn.log_softmax(logits_t, axis=0).T


if __name__ == "__main__":
    key = jax.random.PRNGKey(0)
    k_params, k_x1, k_x2 = jax.random.split(key, 3)
    params = init_params(k_params, init_mode=1)

    # Small latency-style batch (single grid step, padded-free).
    B1 = 8
    x1 = jax.random.normal(k_x1, (B1, IN_DIM), dtype=jnp.float32)
    out1 = jax.block_until_ready(fcnet_forward(x1, params))
    ref1 = reference_forward(x1, params)
    assert out1.shape == (B1, OUT_DIM)
    assert jnp.allclose(out1, ref1, atol=5e-3, rtol=5e-3)

    # Larger batch that exercises multiple grid steps + batch padding.
    B2 = 300
    x2 = jax.random.normal(k_x2, (B2, IN_DIM), dtype=jnp.float32)
    out2 = jax.block_until_ready(fcnet_forward(x2, params, block_rows=128))
    ref2 = reference_forward(x2, params)
    assert out2.shape == (B2, OUT_DIM)
    assert jnp.allclose(out2, ref2, atol=5e-3, rtol=5e-3)

    # Default tile policy on a batch large enough for >=2 grid steps.
    out3 = jax.block_until_ready(fcnet_forward(x2, params))
    assert out3.shape == (B2, OUT_DIM)
    assert jnp.allclose(out3, ref2, atol=5e-3, rtol=5e-3)

    print("KERNEL_OK")
</pallas_src>

<mosaic_0001>
module attributes {stable_mosaic.version = 11 : i64} {
  func.func @fcnet_kernel(%arg0: i32, %arg1: memref<8x256xf32, #tpu.memory_space<vmem>>, %arg2: memref<256x64xbf16, #tpu.memory_space<vmem>>, %arg3: memref<1x64xf32, #tpu.memory_space<vmem>>, %arg4: memref<64x128xbf16, #tpu.memory_space<vmem>>, %arg5: memref<1x128xf32, #tpu.memory_space<vmem>>, %arg6: memref<128x256xbf16, #tpu.memory_space<vmem>>, %arg7: memref<1x256xf32, #tpu.memory_space<vmem>>, %arg8: memref<4096x256xbf16, #tpu.memory_space<vmem>>, %arg9: memref<4096x1xf32, #tpu.memory_space<vmem>>, %arg10: memref<10x4096xbf16, #tpu.memory_space<vmem>>, %arg11: memref<10x1xf32, #tpu.memory_space<vmem>>, %arg12: memref<10x8xf32, #tpu.memory_space<vmem>>) attributes {dimension_semantics = [#tpu.dimension_semantics<parallel>], iteration_bounds = array<i64: 1>, scalar_prefetch = 0 : i64, scratch_operands = 0 : i64, tpu.core_type = #tpu.core_type<tc>, window_params = [{transform_indices = @transform_0, window_bounds = array<i64: 8, 256>}, {pipeline_mode = #tpu.pipeline_mode<synchronous>, transform_indices = @transform_1, window_bounds = array<i64: 256, 64>}, {pipeline_mode = #tpu.pipeline_mode<synchronous>, transform_indices = @transform_2, window_bounds = array<i64: 1, 64>}, {pipeline_mode = #tpu.pipeline_mode<synchronous>, transform_indices = @transform_3, window_bounds = array<i64: 64, 128>}, {pipeline_mode = #tpu.pipeline_mode<synchronous>, transform_indices = @transform_4, window_bounds = array<i64: 1, 128>}, {pipeline_mode = #tpu.pipeline_mode<synchronous>, transform_indices = @transform_5, window_bounds = array<i64: 128, 256>}, {pipeline_mode = #tpu.pipeline_mode<synchronous>, transform_indices = @transform_6, window_bounds = array<i64: 1, 256>}, {pipeline_mode = #tpu.pipeline_mode<synchronous>, transform_indices = @transform_7, window_bounds = array<i64: 4096, 256>}, {pipeline_mode = #tpu.pipeline_mode<synchronous>, transform_indices = @transform_8, window_bounds = array<i64: 4096, 1>}, {pipeline_mode = #tpu.pipeline_mode<synchronous>, transform_indices = @transform_9, window_bounds = array<i64: 10, 4096>}, {pipeline_mode = #tpu.pipeline_mode<synchronous>, transform_indices = @transform_10, window_bounds = array<i64: 10, 1>}, {transform_indices = @transform_11, window_bounds = array<i64: 10, 8>}]} {
    %c0 = arith.constant 0 : index
    %c0_0 = arith.constant 0 : index
    %0 = vector.load %arg1[%c0, %c0_0] : memref<8x256xf32, #tpu.memory_space<vmem>>, vector<8x256xf32>
    %1 = arith.truncf %0 : vector<8x256xf32> to vector<8x256xbf16>
    %c0_1 = arith.constant 0 : index
    %c0_2 = arith.constant 0 : index
    %2 = vector.load %arg2[%c0_1, %c0_2] : memref<256x64xbf16, #tpu.memory_space<vmem>>, vector<256x64xbf16>
    %cst = arith.constant dense<0.000000e+00> : vector<8x64xf32>
    %3 = tpu.matmul %1, %2, %cst {dimension_numbers = #tpu.dot_dimension_numbers<[1], [0], [0], [1], [0, 0, 1, 1], [], []>} : vector<8x256xbf16>, vector<256x64xbf16>, vector<8x64xf32> -> vector<8x64xf32>
    %c0_3 = arith.constant 0 : index
    %c0_4 = arith.constant 0 : index
    %4 = vector.load %arg3[%c0_3, %c0_4] : memref<1x64xf32, #tpu.memory_space<vmem>>, vector<1x64xf32>
    %5 = vector.broadcast %4 : vector<1x64xf32> to vector<8x64xf32>
    %6 = arith.addf %3, %5 : vector<8x64xf32>
    %cst_5 = arith.constant 0.000000e+00 : f32
    %7 = vector.broadcast %cst_5 : f32 to vector<8x64xf32>
    %8 = arith.maximumf %6, %7 : vector<8x64xf32>
    %9 = arith.truncf %8 : vector<8x64xf32> to vector<8x64xbf16>
    %c0_6 = arith.constant 0 : index
    %c0_7 = arith.constant 0 : index
    %10 = vector.load %arg4[%c0_6, %c0_7] : memref<64x128xbf16, #tpu.memory_space<vmem>>, vector<64x128xbf16>
    %cst_8 = arith.constant dense<0.000000e+00> : vector<8x128xf32>
    %11 = tpu.matmul %9, %10, %cst_8 {dimension_numbers = #tpu.dot_dimension_numbers<[1], [0], [0], [1], [0, 0, 1, 1], [], []>} : vector<8x64xbf16>, vector<64x128xbf16>, vector<8x128xf32> -> vector<8x128xf32>
    %c0_9 = arith.constant 0 : index
    %c0_10 = arith.constant 0 : index
    %12 = vector.load %arg5[%c0_9, %c0_10] : memref<1x128xf32, #tpu.memory_space<vmem>>, vector<1x128xf32>
    %13 = vector.broadcast %12 : vector<1x128xf32> to vector<8x128xf32>
    %14 = arith.addf %11, %13 : vector<8x128xf32>
    %cst_11 = arith.constant 0.000000e+00 : f32
    %15 = vector.broadcast %cst_11 : f32 to vector<8x128xf32>
    %16 = arith.maximumf %14, %15 : vector<8x128xf32>
    %17 = arith.truncf %16 : vector<8x128xf32> to vector<8x128xbf16>
    %c0_12 = arith.constant 0 : index
    %c0_13 = arith.constant 0 : index
    %18 = vector.load %arg6[%c0_12, %c0_13] : memref<128x256xbf16, #tpu.memory_space<vmem>>, vector<128x256xbf16>
    %cst_14 = arith.constant dense<0.000000e+00> : vector<8x256xf32>
    %19 = tpu.matmul %17, %18, %cst_14 {dimension_numbers = #tpu.dot_dimension_numbers<[1], [0], [0], [1], [0, 0, 1, 1], [], []>} : vector<8x128xbf16>, vector<128x256xbf16>, vector<8x256xf32> -> vector<8x256xf32>
    %c0_15 = arith.constant 0 : index
    %c0_16 = arith.constant 0 : index
    %20 = vector.load %arg7[%c0_15, %c0_16] : memref<1x256xf32, #tpu.memory_space<vmem>>, vector<1x256xf32>
    %21 = vector.broadcast %20 : vector<1x256xf32> to vector<8x256xf32>
    %22 = arith.addf %19, %21 : vector<8x256xf32>
    %cst_17 = arith.constant 0.000000e+00 : f32
    %23 = vector.broadcast %cst_17 : f32 to vector<8x256xf32>
    %24 = arith.maximumf %22, %23 : vector<8x256xf32>
    %25 = arith.truncf %24 : vector<8x256xf32> to vector<8x256xbf16>
    %26 = tpu.transpose %25, [1, 0] : vector<8x256xbf16> -> vector<256x8xbf16>
    %c0_18 = arith.constant 0 : index
    %c0_19 = arith.constant 0 : index
    %27 = vector.load %arg8[%c0_18, %c0_19] : memref<4096x256xbf16, #tpu.memory_space<vmem>>, vector<4096x256xbf16>
    %cst_20 = arith.constant dense<0.000000e+00> : vector<4096x8xf32>
    %28 = tpu.matmul %27, %26, %cst_20 {dimension_numbers = #tpu.dot_dimension_numbers<[1], [0], [0], [1], [0, 0, 1, 1], [], []>} : vector<4096x256xbf16>, vector<256x8xbf16>, vector<4096x8xf32> -> vector<4096x8xf32>
    %c0_21 = arith.constant 0 : index
    %c0_22 = arith.constant 0 : index
    %29 = vector.load %arg9[%c0_21, %c0_22] : memref<4096x1xf32, #tpu.memory_space<vmem>>, vector<4096x1xf32>
    %30 = vector.broadcast %29 : vector<4096x1xf32> to vector<4096x8xf32>
    %31 = arith.addf %28, %30 : vector<4096x8xf32>
    %32 = arith.truncf %31 : vector<4096x8xf32> to vector<4096x8xbf16>
    %33 = math.tanh %32 : vector<4096x8xbf16>
    %c0_23 = arith.constant 0 : index
    %c0_24 = arith.constant 0 : index
    %34 = vector.load %arg10[%c0_23, %c0_24] : memref<10x4096xbf16, #tpu.memory_space<vmem>>, vector<10x4096xbf16>
    %cst_25 = arith.constant dense<0.000000e+00> : vector<10x8xf32>
    %35 = tpu.matmul %34, %33, %cst_25 {dimension_numbers = #tpu.dot_dimension_numbers<[1], [0], [0], [1], [0, 0, 1, 1], [], []>} : vector<10x4096xbf16>, vector<4096x8xbf16>, vector<10x8xf32> -> vector<10x8xf32>
    %c0_26 = arith.constant 0 : index
    %c0_27 = arith.constant 0 : index
    %36 = vector.load %arg11[%c0_26, %c0_27] : memref<10x1xf32, #tpu.memory_space<vmem>>, vector<10x1xf32>
    %37 = vector.broadcast %36 : vector<10x1xf32> to vector<10x8xf32>
    %38 = arith.addf %35, %37 : vector<10x8xf32>
    %cst_28 = arith.constant dense<0xFF800000> : vector<8xf32>
    %39 = vector.multi_reduction <maximumf>, %38, %cst_28 [0] : vector<10x8xf32> to vector<8xf32>
    %40 = vector.shape_cast %39 : vector<8xf32> to vector<1x8xf32>
    %41 = vector.broadcast %40 : vector<1x8xf32> to vector<10x8xf32>
    %42 = arith.subf %38, %41 : vector<10x8xf32>
    %43 = math.exp %42 : vector<10x8xf32>
    %cst_29 = arith.constant dense<0.000000e+00> : vector<8xf32>
    %44 = vector.multi_reduction <add>, %43, %cst_29 [0] : vector<10x8xf32> to vector<8xf32>
    %45 = vector.shape_cast %44 : vector<8xf32> to vector<1x8xf32>
    %46 = math.log %45 : vector<1x8xf32>
    %47 = vector.broadcast %46 : vector<1x8xf32> to vector<10x8xf32>
    %48 = arith.subf %42, %47 : vector<10x8xf32>
    %c0_30 = arith.constant 0 : index
    %c0_31 = arith.constant 0 : index
    %49 = vector.load %arg12[%c0_30, %c0_31] : memref<10x8xf32, #tpu.memory_space<vmem>>, vector<10x8xf32>
    tpu.vector_store %arg12[%c0_30, %c0_31], %48 {strides = array<i32>} : memref<10x8xf32, #tpu.memory_space<vmem>>, vector<10x8xf32>,
    return
  }
  func.func @transform_0(%arg0: i32) -> (i32, i32) {
    %c0_i32 = arith.constant 0 : i32
    %c0_i32_0 = arith.constant 0 : i32
    return %arg0, %c0_i32 : i32, i32
  }
  func.func @transform_1(%arg0: i32) -> (i32, i32) {
    %c0_i32 = arith.constant 0 : i32
    %c0_i32_0 = arith.constant 0 : i32
    %c0_i32_1 = arith.constant 0 : i32
    return %c0_i32, %c0_i32_0 : i32, i32
  }
  func.func @transform_2(%arg0: i32) -> (i32, i32) {
    %c0_i32 = arith.constant 0 : i32
    %c0_i32_0 = arith.constant 0 : i32
    %c0_i32_1 = arith.constant 0 : i32
    return %c0_i32, %c0_i32_0 : i32, i32
  }
  func.func @transform_3(%arg0: i32) -> (i32, i32) {
    %c0_i32 = arith.constant 0 : i32
    %c0_i32_0 = arith.constant 0 : i32
    %c0_i32_1 = arith.constant 0 : i32
    return %c0_i32, %c0_i32_0 : i32, i32
  }
  func.func @transform_4(%arg0: i32) -> (i32, i32) {
    %c0_i32 = arith.constant 0 : i32
    %c0_i32_0 = arith.constant 0 : i32
    %c0_i32_1 = arith.constant 0 : i32
    return %c0_i32, %c0_i32_0 : i32, i32
  }
  func.func @transform_5(%arg0: i32) -> (i32, i32) {
    %c0_i32 = arith.constant 0 : i32
    %c0_i32_0 = arith.constant 0 : i32
    %c0_i32_1 = arith.constant 0 : i32
    return %c0_i32, %c0_i32_0 : i32, i32
  }
  func.func @transform_6(%arg0: i32) -> (i32, i32) {
    %c0_i32 = arith.constant 0 : i32
    %c0_i32_0 = arith.constant 0 : i32
    %c0_i32_1 = arith.constant 0 : i32
    return %c0_i32, %c0_i32_0 : i32, i32
  }
  func.func @transform_7(%arg0: i32) -> (i32, i32) {
    %c0_i32 = arith.constant 0 : i32
    %c0_i32_0 = arith.constant 0 : i32
    %c0_i32_1 = arith.constant 0 : i32
    return %c0_i32, %c0_i32_0 : i32, i32
  }
  func.func @transform_8(%arg0: i32) -> (i32, i32) {
    %c0_i32 = arith.constant 0 : i32
    %c0_i32_0 = arith.constant 0 : i32
    %c0_i32_1 = arith.constant 0 : i32
    return %c0_i32, %c0_i32_0 : i32, i32
  }
  func.func @transform_9(%arg0: i32) -> (i32, i32) {
    %c0_i32 = arith.constant 0 : i32
    %c0_i32_0 = arith.constant 0 : i32
    %c0_i32_1 = arith.constant 0 : i32
    return %c0_i32, %c0_i32_0 : i32, i32
  }
  func.func @transform_10(%arg0: i32) -> (i32, i32) {
    %c0_i32 = arith.constant 0 : i32
    %c0_i32_0 = arith.constant 0 : i32
    %c0_i32_1 = arith.constant 0 : i32
    return %c0_i32, %c0_i32_0 : i32, i32
  }
  func.func @transform_11(%arg0: i32) -> (i32, i32) {
    %c0_i32 = arith.constant 0 : i32
    %c0_i32_0 = arith.constant 0 : i32
    return %c0_i32, %arg0 : i32, i32
  }
}

</mosaic_0001>

<llo_original>
// kernel: tpu_custom_call.1
$region0: #{tpu_custom_call.1}
  #allocation0 [shape = 'u32[]', space=smem, size = 0x4, offset = 0x4, fixed_abs, tag = 'smem constant byte address 0x4 - core index']
  #allocation1 [shape = 'u32[144,128]{1,0:T(1,128)}', space=vmem, size = 0x12000, scoped, tag = 'internal scratch']
  %s0 = inlined_call_operand.vmem [shape: f32[8,256], index: 0, kind: input, shape index: {}]
  %s1 = inlined_call_operand.vmem [shape: bf16[256,64], index: 1, kind: input, shape index: {}]
  %s2 = inlined_call_operand.vmem [shape: f32[1,64], index: 2, kind: input, shape index: {}]
  %s3 = inlined_call_operand.hbm [shape: bf16[64,128], index: 3, kind: input, shape index: {}]
  %s4 = inlined_call_operand.hbm [shape: f32[1,128], index: 4, kind: input, shape index: {}]
  %s5 = inlined_call_operand.hbm [shape: bf16[128,256], index: 5, kind: input, shape index: {}]
  %s6 = inlined_call_operand.vmem [shape: f32[1,256], index: 6, kind: input, shape index: {}]
  %s7 = inlined_call_operand.vmem [shape: bf16[4096,256], index: 7, kind: input, shape index: {}]
  %s8 = inlined_call_operand.vmem [shape: f32[4096,1], index: 8, kind: input, shape index: {}]
  %s9 = inlined_call_operand.vmem [shape: bf16[10,4096], index: 9, kind: input, shape index: {}]
  %s10 = inlined_call_operand.vmem [shape: f32[10,1], index: 10, kind: input, shape index: {}]
  %s11 = inlined_call_operand.vmem [shape: f32[10,8], index: 11, kind: output, shape index: {}]
  %s12 = sld [smem:[#allocation0]]
  $region66: #{tpu_custom_call.1} parent=0
    _
  %s14 = ssub.s32 1, %s12
  %s15 = scalar_select 0, %s14, %s12
  $region1: #{tpu_custom_call.1} parent=0
    #allocation2 [shape = 'u8[16384]{0}', space=vmem, size = 0x4000, scoped, tag = 'input window, operand 3, single buffered']
    #allocation3 [shape = 's32[1]{0}', space=sflag, size = 0x4, scoped, tag = 'scoped memory for tpu_custom_call.1']
    #allocation4 [shape = 'u8[512]{0}', space=vmem, size = 0x400, scoped, tag = 'input window, operand 4, single buffered']
    #allocation5 [shape = 's32[1]{0}', space=sflag, size = 0x4, scoped, tag = 'scoped memory for tpu_custom_call.1']
    #allocation6 [shape = 'u8[65536]{0}', space=vmem, size = 0x10000, scoped, tag = 'input window, operand 5, single buffered']
    %16 = vsyncpa [#allocation3], 0
    %17 = vsyncpa [#allocation5], 0
    // Predicated region
    $region2: #{tpu_custom_call.1} parent=1 // pred_check
      _
    $region3: #{tpu_custom_call.1} parent=1 // pred_check_branch
      %19 = sbr.rel (0) target = $region5
    $region4: #{tpu_custom_call.1} parent=1 // pred_region
      _
    $region5: #{tpu_custom_call.1} parent=1 // pred_fallthru
      _
    // Predicated region
    $region6: #{tpu_custom_call.1} parent=1 // pred_check
      _
    $region7: #{tpu_custom_call.1} parent=1 // pred_check_branch
      %21 = sbr.rel (0) target = $region9
    $region8: #{tpu_custom_call.1} parent=1 // pred_region
      _
    $region9: #{tpu_custom_call.1} parent=1 // pred_fallthru
      _
    // Predicated region
    $region10: #{tpu_custom_call.1} parent=1 // pred_check
      _
    $region11: #{tpu_custom_call.1} parent=1 // pred_check_branch
      %23 = sbr.rel (0) target = $region13
    $region12: #{tpu_custom_call.1} parent=1 // pred_region
      _
    $region13: #{tpu_custom_call.1} parent=1 // pred_fallthru
      _
    // Predicated region
    $region14: #{tpu_custom_call.1} parent=1 // pred_check
      _
    $region15: #{tpu_custom_call.1} parent=1 // pred_check_branch
      %25 = sbr.rel (0) target = $region17
    $region16: #{tpu_custom_call.1} parent=1 // pred_region
      %s27 = ssub.s32 512, 512
      %28 = vsyncadd [#allocation3], %s27
      %s29 = sshll.u32 [#allocation2], 4
      %s30 = int_to_ptr.vmem [resolvable:$true] %s29
      %35 = dma.hbm_to_vmem [thread:$0]  %s3, 512, %s30, [#allocation3], 64, 64, 4
    $region17: #{tpu_custom_call.1} parent=1 // pred_fallthru
      _
    // Predicated region
    $region18: #{tpu_custom_call.1} parent=1 // pred_check
      _
    $region19: #{tpu_custom_call.1} parent=1 // pred_check_branch
      %37 = sbr.rel (0) target = $region21
    $region20: #{tpu_custom_call.1} parent=1 // pred_region
      %s39 = ssub.s32 16, 16
      %40 = vsyncadd [#allocation5], %s39
      %s42 = sshll.u32 [#allocation4], 4
      %s43 = int_to_ptr.vmem [resolvable:$true] %s42
      %45 = dma.hbm_to_vmem [thread:$0]  %s4, 16, %s43, [#allocation5]
    $region21: #{tpu_custom_call.1} parent=1 // pred_fallthru
      _
    // Predicated region
    $region22: #{tpu_custom_call.1} parent=1 // pred_check
      _
    $region23: #{tpu_custom_call.1} parent=1 // pred_check_branch
      %47 = sbr.rel (0) target = $region25
    $region24: #{tpu_custom_call.1} parent=1 // pred_region
      %s49 = ssub.s32 2048, 2048
      %50 = vsyncadd [#allocation5], %s49
      %s51 = sshll.u32 [#allocation6], 4
      %s52 = int_to_ptr.vmem [resolvable:$true] %s51
      %57 = dma.hbm_to_vmem [thread:$0]  %s5, 2048, %s52, [#allocation5], 128, 128, 8
    $region25: #{tpu_custom_call.1} parent=1 // pred_fallthru
      _
    // Predicated region
    $region26: #{tpu_custom_call.1} parent=1 // pred_check
      _
    $region27: #{tpu_custom_call.1} parent=1 // pred_check_branch
      %59 = sbr.rel (0) target = $region29
    $region28: #{tpu_custom_call.1} parent=1 // pred_region
      _
    $region29: #{tpu_custom_call.1} parent=1 // pred_fallthru
      _
    // Predicated region
    $region30: #{tpu_custom_call.1} parent=1 // pred_check
      _
    $region31: #{tpu_custom_call.1} parent=1 // pred_check_branch
      %61 = sbr.rel (0) target = $region33
    $region32: #{tpu_custom_call.1} parent=1 // pred_region
      _
    $region33: #{tpu_custom_call.1} parent=1 // pred_fallthru
      _
    // Predicated region
    $region34: #{tpu_custom_call.1} parent=1 // pred_check
      _
    $region35: #{tpu_custom_call.1} parent=1 // pred_check_branch
      %63 = sbr.rel (0) target = $region37
    $region36: #{tpu_custom_call.1} parent=1 // pred_region
      _
    $region37: #{tpu_custom_call.1} parent=1 // pred_fallthru
      _
    // Predicated region
    $region38: #{tpu_custom_call.1} parent=1 // pred_check
      _
    $region39: #{tpu_custom_call.1} parent=1 // pred_check_branch
      %65 = sbr.rel (0) target = $region41
    $region40: #{tpu_custom_call.1} parent=1 // pred_region
      _
    $region41: #{tpu_custom_call.1} parent=1 // pred_fallthru
      _
    // Predicated region
    $region42: #{tpu_custom_call.1} parent=1 // pred_check
      _
    $region43: #{tpu_custom_call.1} parent=1 // pred_check_branch
      %67 = sbr.rel (0) target = $region45
    $region44: #{tpu_custom_call.1} parent=1 // pred_region
      _
    $region45: #{tpu_custom_call.1} parent=1 // pred_fallthru
      _
    // Predicated region
    $region46: #{tpu_custom_call.1} parent=1 // pred_check
      _
    $region47: #{tpu_custom_call.1} parent=1 // pred_check_branch
      %69 = sbr.rel (0) target = $region49
    $region48: #{tpu_custom_call.1} parent=1 // pred_region
      %70 = dma.done [#allocation3], 512
    $region49: #{tpu_custom_call.1} parent=1 // pred_fallthru
      _
    // Predicated region
    $region50: #{tpu_custom_call.1} parent=1 // pred_check
      _
    $region51: #{tpu_custom_call.1} parent=1 // pred_check_branch
      %72 = sbr.rel (0) target = $region53
    $region52: #{tpu_custom_call.1} parent=1 // pred_region
      %73 = dma.done [#allocation5], 16
    $region53: #{tpu_custom_call.1} parent=1 // pred_fallthru
      _
    // Predicated region
    $region54: #{tpu_custom_call.1} parent=1 // pred_check
      _
    $region55: #{tpu_custom_call.1} parent=1 // pred_check_branch
      %75 = sbr.rel (0) target = $region57
    $region56: #{tpu_custom_call.1} parent=1 // pred_region
      %76 = dma.done [#allocation5], 2048
    $region57: #{tpu_custom_call.1} parent=1 // pred_fallthru
      _
    %v78 = vld [vmem:[%s0] sm:$0xff]
    %v79 = vld [vmem:[%s0 + $0x8] sm:$0xff]
    %v80 = vpack.c.bf16 %v78, %v78
    %v81 = vpack.c.bf16 %v79, %v79
    %v82 = vld [vmem:[%s1] sm:$0xf]
    %v83 = vld [vmem:[%s1 + $0x4] sm:$0xf]
    %v84 = vld [vmem:[%s1 + $0x8] sm:$0xf]
    %v85 = vld [vmem:[%s1 + $0xc] sm:$0xf]
    %v86 = vld [vmem:[%s1 + $0x10] sm:$0xf]
    %v87 = vld [vmem:[%s1 + $0x14] sm:$0xf]
    %v88 = vld [vmem:[%s1 + $0x18] sm:$0xf]
    %v89 = vld [vmem:[%s1 + $0x1c] sm:$0xf]
    %v90 = vld [vmem:[%s1 + $0x20] sm:$0xf]
    %v91 = vld [vmem:[%s1 + $0x24] sm:$0xf]
    %v92 = vld [vmem:[%s1 + $0x28] sm:$0xf]
    %v93 = vld [vmem:[%s1 + $0x2c] sm:$0xf]
    %v94 = vld [vmem:[%s1 + $0x30] sm:$0xf]
    %v95 = vld [vmem:[%s1 + $0x34] sm:$0xf]
    %v96 = vld [vmem:[%s1 + $0x38] sm:$0xf]
    %v97 = vld [vmem:[%s1 + $0x3c] sm:$0xf]
    %v98 = vld [vmem:[%s1 + $0x40] sm:$0xf]
    %v99 = vld [vmem:[%s1 + $0x44] sm:$0xf]
    %v100 = vld [vmem:[%s1 + $0x48] sm:$0xf]
    %v101 = vld [vmem:[%s1 + $0x4c] sm:$0xf]
    %v102 = vld [vmem:[%s1 + $0x50] sm:$0xf]
    %v103 = vld [vmem:[%s1 + $0x54] sm:$0xf]
    %v104 = vld [vmem:[%s1 + $0x58] sm:$0xf]
    %v105 = vld [vmem:[%s1 + $0x5c] sm:$0xf]
    %v106 = vld [vmem:[%s1 + $0x60] sm:$0xf]
    %v107 = vld [vmem:[%s1 + $0x64] sm:$0xf]
    %v108 = vld [vmem:[%s1 + $0x68] sm:$0xf]
    %v109 = vld [vmem:[%s1 + $0x6c] sm:$0xf]
    %v110 = vld [vmem:[%s1 + $0x70] sm:$0xf]
    %v111 = vld [vmem:[%s1 + $0x74] sm:$0xf]
    %v112 = vld [vmem:[%s1 + $0x78] sm:$0xf]
    %v113 = vld [vmem:[%s1 + $0x7c] sm:$0xf]
    %v114 = vld [vmem:[%s2] sm:$0x1]
    %v116 = vlaneseq
    %v117 = vshrl.u32 %v116, 7
    %v118 = vsub.s32 0, %v117
    %v119 = vrot.slane %v114, %v118
    %v153 = vunpack.c.l.b16 %v82
    %v154 = vunpack.c.l.b16 %v83
    %v155 = vunpack.c.l.b16 %v84
    %v156 = vunpack.c.l.b16 %v85
    %v157 = vunpack.c.l.b16 %v86
    %v158 = vunpack.c.l.b16 %v87
    %v159 = vunpack.c.l.b16 %v88
    %v160 = vunpack.c.l.b16 %v89
    %v161 = vunpack.c.l.b16 %v90
    %v162 = vunpack.c.l.b16 %v91
    %v163 = vunpack.c.l.b16 %v92
    %v164 = vunpack.c.l.b16 %v93
    %v165 = vunpack.c.l.b16 %v94
    %v166 = vunpack.c.l.b16 %v95
    %v167 = vunpack.c.l.b16 %v96
    %v168 = vunpack.c.l.b16 %v97
    %v169 = vunpack.c.l.b16 %v98
    %v170 = vunpack.c.l.b16 %v99
    %v171 = vunpack.c.l.b16 %v100
    %v172 = vunpack.c.l.b16 %v101
    %v173 = vunpack.c.l.b16 %v102
    %v174 = vunpack.c.l.b16 %v103
    %v175 = vunpack.c.l.b16 %v104
    %v176 = vunpack.c.l.b16 %v105
    %v177 = vunpack.c.l.b16 %v106
    %v178 = vunpack.c.l.b16 %v107
    %v179 = vunpack.c.l.b16 %v108
    %v180 = vunpack.c.l.b16 %v109
    %v181 = vunpack.c.l.b16 %v110
    %v182 = vunpack.c.l.b16 %v111
    %v183 = vunpack.c.l.b16 %v112
    %v184 = vunpack.c.l.b16 %v113
    %v185 = vpack.c.b16 %v154, %v153
    %v186 = vpack.c.b16 %v156, %v155
    %v187 = vpack.c.b16 %v158, %v157
    %v188 = vpack.c.b16 %v160, %v159
    %v189 = vpack.c.b16 %v162, %v161
    %v190 = vpack.c.b16 %v164, %v163
    %v191 = vpack.c.b16 %v166, %v165
    %v192 = vpack.c.b16 %v168, %v167
    %v193 = vpack.c.b16 %v170, %v169
    %v194 = vpack.c.b16 %v172, %v171
    %v195 = vpack.c.b16 %v174, %v173
    %v196 = vpack.c.b16 %v176, %v175
    %v197 = vpack.c.b16 %v178, %v177
    %v198 = vpack.c.b16 %v180, %v179
    %v199 = vpack.c.b16 %v182, %v181
    %v200 = vpack.c.b16 %v184, %v183
    %217 = vmatprep.subr.bf16.mxu0 0
    %218 = vmatpush1.bf16.msra.mxu0 %v185
    %219 = vmatprep.subr.bf16.mxu0 0
    %220 = vmatpush1.bf16.msra.mxu0 %v186
    %221 = vmatprep.subr.bf16.mxu0 0
    %222 = vmatpush1.bf16.msra.mxu0 %v187
    %223 = vmatprep.subr.bf16.mxu0 0
    %224 = vmatpush1.bf16.msra.mxu0 %v188
    %225 = vmatprep.subr.bf16.mxu0 0
    %226 = vmatpush1.bf16.msra.mxu0 %v189
    %227 = vmatprep.subr.bf16.mxu0 0
    %228 = vmatpush1.bf16.msra.mxu0 %v190
    %229 = vmatprep.subr.bf16.mxu0 0
    %230 = vmatpush1.bf16.msra.mxu0 %v191
    %231 = vmatprep.subr.bf16.mxu0 0
    %232 = vmatpush1.bf16.msra.mxu0 %v192
    %233 = vmatprep.subr.bf16.mxu0 0
    %234 = vmatpush1.bf16.msra.mxu0 %v193
    %235 = vmatprep.subr.bf16.mxu0 0
    %236 = vmatpush1.bf16.msra.mxu0 %v194
    %237 = vmatprep.subr.bf16.mxu0 0
    %238 = vmatpush1.bf16.msra.mxu0 %v195
    %239 = vmatprep.subr.bf16.mxu0 0
    %240 = vmatpush1.bf16.msra.mxu0 %v196
    %241 = vmatprep.subr.bf16.mxu0 0
    %242 = vmatpush1.bf16.msra.mxu0 %v197
    %243 = vmatprep.subr.bf16.mxu0 0
    %244 = vmatpush1.bf16.msra.mxu0 %v198
    %245 = vmatprep.subr.bf16.mxu0 0
    %246 = vmatpush1.bf16.msra.mxu0 %v199
    %247 = vmatprep.subr.bf16.mxu0 0
    %248 = vmatpush1.bf16.msra.mxu0 %v200
    %249 = vmatprep.mubr.bf16.mxu0 %v81
    %250 = vmatmul.mubr.bf16.gmra.mrb[0].mxu0 %v80
    %v251 = vpop.f32.mrb[0].mxu0
    %v252 = vadd.f32 %v119, %v251
    %v253 = vpop.f32.mrb[0].mxu0
    %v254 = vpop.f32.mrb[0].mxu0
    %v255 = vpop.f32.mrb[0].mxu0
    %256 = vdwg.mxu0
    %v257 = vmax.f32 %v252, 0.0
    %v258 = vpack.c.bf16 %v257, %v257
    %v259 = vld [vmem:[#allocation2] sm:$0xf]
    %v260 = vld [vmem:[#allocation2 + $0x4] sm:$0xf]
    %v261 = vld [vmem:[#allocation2 + $0x8] sm:$0xf]
    %v262 = vld [vmem:[#allocation2 + $0xc] sm:$0xf]
    %v263 = vld [vmem:[#allocation2 + $0x10] sm:$0xf]
    %v264 = vld [vmem:[#allocation2 + $0x14] sm:$0xf]
    %v265 = vld [vmem:[#allocation2 + $0x18] sm:$0xf]
    %v266 = vld [vmem:[#allocation2 + $0x1c] sm:$0xf]
    %v267 = vld [vmem:[#allocation4] sm:$0x1]
    %v269 = vlaneseq
    %v270 = vshrl.u32 %v269, 7
    %v271 = vsub.s32 0, %v270
    %v272 = vrot.slane %v267, %v271
    %v282 = vunpack.c.l.b16 %v259
    %v283 = vunpack.c.l.b16 %v260
    %v284 = vunpack.c.l.b16 %v261
    %v285 = vunpack.c.l.b16 %v262
    %v286 = vunpack.c.l.b16 %v263
    %v287 = vunpack.c.l.b16 %v264
    %v288 = vunpack.c.l.b16 %v265
    %v289 = vunpack.c.l.b16 %v266
    %v290 = vpack.c.b16 %v283, %v282
    %v291 = vpack.c.b16 %v285, %v284
    %v292 = vpack.c.b16 %v287, %v286
    %v293 = vpack.c.b16 %v289, %v288
    %vm298 = vcmask 523264
    %v300 = vsel %vm298, %v258, 0
    %302 = vmatprep.subr.bf16.mxu0 0
    %303 = vmatpush1.bf16.msra.mxu0 %v290
    %304 = vmatprep.subr.bf16.mxu0 0
    %305 = vmatpush1.bf16.msra.mxu0 %v291
    %306 = vmatprep.subr.bf16.mxu0 0
    %307 = vmatpush1.bf16.msra.mxu0 %v292
    %308 = vmatprep.subr.bf16.mxu0 0
    %309 = vmatpush1.bf16.msra.mxu0 %v293
    %310 = vmatprep.subr.bf16.mxu0 0
    %311 = vmatpush1.bf16.msra.mxu0 0
    %312 = vmatprep.subr.bf16.mxu0 0
    %313 = vmatpush1.bf16.msra.mxu0 0
    %314 = vmatprep.subr.bf16.mxu0 0
    %315 = vmatpush1.bf16.msra.mxu0 0
    %316 = vmatprep.subr.bf16.mxu0 0
    %317 = vmatpush1.bf16.msra.mxu0 0
    %318 = vmatprep.subr.bf16.mxu0 0
    %319 = vmatpush1.bf16.msra.mxu0 0
    %320 = vmatprep.subr.bf16.mxu0 0
    %321 = vmatpush1.bf16.msra.mxu0 0
    %322 = vmatprep.subr.bf16.mxu0 0
    %323 = vmatpush1.bf16.msra.mxu0 0
    %324 = vmatprep.subr.bf16.mxu0 0
    %325 = vmatpush1.bf16.msra.mxu0 0
    %326 = vmatprep.subr.bf16.mxu0 0
    %327 = vmatpush1.bf16.msra.mxu0 0
    %328 = vmatprep.subr.bf16.mxu0 0
    %329 = vmatpush1.bf16.msra.mxu0 0
    %330 = vmatprep.subr.bf16.mxu0 0
    %331 = vmatpush1.bf16.msra.mxu0 0
    %332 = vmatprep.subr.bf16.mxu0 0
    %333 = vmatpush1.bf16.msra.mxu0 0
    %334 = vmatprep.mubr.bf16.mxu0 0
    %335 = vmatmul.mubr.bf16.gmra.mrb[0].mxu0 %v300
    %v336 = vpop.f32.mrb[0].mxu0
    %v337 = vadd.f32 %v272, %v336
    %v338 = vpop.f32.mrb[0].mxu0
    %v339 = vpop.f32.mrb[0].mxu0
    %v340 = vpop.f32.mrb[0].mxu0
    %341 = vdwg.mxu0
    %v342 = vmax.f32 %v337, 0.0
    %v343 = vpack.c.bf16 %v342, %v342
    %v344 = vld [vmem:[#allocation6] sm:$0xff]
    %v345 = vld [vmem:[#allocation6 + $0x8] sm:$0xff]
    %v346 = vld [vmem:[#allocation6 + $0x10] sm:$0xff]
    %v347 = vld [vmem:[#allocation6 + $0x18] sm:$0xff]
    %v348 = vld [vmem:[#allocation6 + $0x20] sm:$0xff]
    %v349 = vld [vmem:[#allocation6 + $0x28] sm:$0xff]
    %v350 = vld [vmem:[#allocation6 + $0x30] sm:$0xff]
    %v351 = vld [vmem:[#allocation6 + $0x38] sm:$0xff]
    %v352 = vld [vmem:[#allocation6 + $0x40] sm:$0xff]
    %v353 = vld [vmem:[#allocation6 + $0x48] sm:$0xff]
    %v354 = vld [vmem:[#allocation6 + $0x50] sm:$0xff]
    %v355 = vld [vmem:[#allocation6 + $0x58] sm:$0xff]
    %v356 = vld [vmem:[#allocation6 + $0x60] sm:$0xff]
    %v357 = vld [vmem:[#allocation6 + $0x68] sm:$0xff]
    %v358 = vld [vmem:[#allocation6 + $0x70] sm:$0xff]
    %v359 = vld [vmem:[#allocation6 + $0x78] sm:$0xff]
    %v360 = vld [vmem:[%s6] sm:$0x3]
    %v362 = vlaneseq
    %v363 = vshrl.u32 %v362, 7
    %v364 = vsub.s32 0, %v363
    %v365 = vrot.slane %v360, %v364
    %v366 = vlaneseq
    %v367 = vshrl.u32 %v366, 7
    %v368 = vsub.s32 1, %v367
    %v369 = vrot.slane %v360, %v368
    %v388 = vunpack.c.l.b16 %v344
    %v389 = vunpack.c.h.b16 %v344
    %v390 = vunpack.c.l.b16 %v345
    %v391 = vunpack.c.h.b16 %v345
    %v392 = vunpack.c.l.b16 %v346
    %v393 = vunpack.c.h.b16 %v346
    %v394 = vunpack.c.l.b16 %v347
    %v395 = vunpack.c.h.b16 %v347
    %v396 = vunpack.c.l.b16 %v348
    %v397 = vunpack.c.h.b16 %v348
    %v398 = vunpack.c.l.b16 %v349
    %v399 = vunpack.c.h.b16 %v349
    %v400 = vunpack.c.l.b16 %v350
    %v401 = vunpack.c.h.b16 %v350
    %v402 = vunpack.c.l.b16 %v351
    %v403 = vunpack.c.h.b16 %v351
    %v404 = vunpack.c.l.b16 %v352
    %v405 = vunpack.c.h.b16 %v352
    %v406 = vunpack.c.l.b16 %v353
    %v407 = vunpack.c.h.b16 %v353
    %v408 = vunpack.c.l.b16 %v354
    %v409 = vunpack.c.h.b16 %v354
    %v410 = vunpack.c.l.b16 %v355
    %v411 = vunpack.c.h.b16 %v355
    %v412 = vunpack.c.l.b16 %v356
    %v413 = vunpack.c.h.b16 %v356
    %v414 = vunpack.c.l.b16 %v357
    %v415 = vunpack.c.h.b16 %v357
    %v416 = vunpack.c.l.b16 %v358
    %v417 = vunpack.c.h.b16 %v358
    %v418 = vunpack.c.l.b16 %v359
    %v419 = vunpack.c.h.b16 %v359
    %v420 = vpack.c.b16 %v390, %v388
    %v421 = vpack.c.b16 %v391, %v389
    %v422 = vpack.c.b16 %v394, %v392
    %v423 = vpack.c.b16 %v395, %v393
    %v424 = vpack.c.b16 %v398, %v396
    %v425 = vpack.c.b16 %v399, %v397
    %v426 = vpack.c.b16 %v402, %v400
    %v427 = vpack.c.b16 %v403, %v401
    %v428 = vpack.c.b16 %v406, %v404
    %v429 = vpack.c.b16 %v407, %v405
    %v430 = vpack.c.b16 %v410, %v408
    %v431 = vpack.c.b16 %v411, %v409
    %v432 = vpack.c.b16 %v414, %v412
    %v433 = vpack.c.b16 %v415, %v413
    %v434 = vpack.c.b16 %v418, %v416
    %v435 = vpack.c.b16 %v419, %v417
    %452 = vmatprep.subr.bf16.mxu0 %v421
    %453 = vmatpush1.bf16.msra.mxu0 %v420
    %454 = vmatprep.subr.bf16.mxu0 %v423
    %455 = vmatpush1.bf16.msra.mxu0 %v422
    %456 = vmatprep.subr.bf16.mxu0 %v425
    %457 = vmatpush1.bf16.msra.mxu0 %v424
    %458 = vmatprep.subr.bf16.mxu0 %v427
    %459 = vmatpush1.bf16.msra.mxu0 %v426
    %460 = vmatprep.subr.bf16.mxu0 %v429
    %461 = vmatpush1.bf16.msra.mxu0 %v428
    %462 = vmatprep.subr.bf16.mxu0 %v431
    %463 = vmatpush1.bf16.msra.mxu0 %v430
    %464 = vmatprep.subr.bf16.mxu0 %v433
    %465 = vmatpush1.bf16.msra.mxu0 %v432
    %466 = vmatprep.subr.bf16.mxu0 %v435
    %467 = vmatpush1.bf16.msra.mxu0 %v434
    %468 = vmatprep.subr.bf16.mxu0 0
    %469 = vmatpush1.bf16.msra.mxu0 0
    %470 = vmatprep.subr.bf16.mxu0 0
    %471 = vmatpush1.bf16.msra.mxu0 0
    %472 = vmatprep.subr.bf16.mxu0 0
    %473 = vmatpush1.bf16.msra.mxu0 0
    %474 = vmatprep.subr.bf16.mxu0 0
    %475 = vmatpush1.bf16.msra.mxu0 0
    %476 = vmatprep.subr.bf16.mxu0 0
    %477 = vmatpush1.bf16.msra.mxu0 0
    %478 = vmatprep.subr.bf16.mxu0 0
    %479 = vmatpush1.bf16.msra.mxu0 0
    %480 = vmatprep.subr.bf16.mxu0 0
    %481 = vmatpush1.bf16.msra.mxu0 0
    %482 = vmatprep.subr.bf16.mxu0 0
    %483 = vmatpush1.bf16.msra.mxu0 0
    %484 = vmatprep.mubr.bf16.mxu0 0
    %485 = vmatmul.mubr.bf16.gmra.mrb[0].mxu0 %v343
    %v486 = vpop.f32.mrb[0].mxu0
    %v487 = vadd.f32 %v365, %v486
    %v488 = vpop.f32.mrb[0].mxu0
    %v489 = vadd.f32 %v369, %v488
    %v490 = vpop.f32.mrb[0].mxu0
    %v491 = vpop.f32.mrb[0].mxu0
    %492 = vdwg.mxu0
    %v493 = vmax.f32 %v487, 0.0
    %v494 = vmax.f32 %v489, 0.0
    %v495 = vpack.c.bf16 %v493, %v493
    %v496 = vpack.c.bf16 %v494, %v494
    %v497 = vld [vmem:[%s7] sm:$0xff]
    %v498 = vld [vmem:[%s7 + $0x8] sm:$0xff]
    %v499 = vld [vmem:[%s7 + $0x10] sm:$0xff]
    %v500 = vld [vmem:[%s7 + $0x18] sm:$0xff]
    %v501 = vld [vmem:[%s7 + $0x20] sm:$0xff]
    %v502 = vld [vmem:[%s7 + $0x28] sm:$0xff]
    %v503 = vld [vmem:[%s7 + $0x30] sm:$0xff]
    %v504 = vld [vmem:[%s7 + $0x38] sm:$0xff]
    %v505 = vld [vmem:[%s7 + $0x40] sm:$0xff]
    %v506 = vld [vmem:[%s7 + $0x48] sm:$0xff]
    %v507 = vld [vmem:[%s7 + $0x50] sm:$0xff]
    %v508 = vld [vmem:[%s7 + $0x58] sm:$0xff]
    %v509 = vld [vmem:[%s7 + $0x60] sm:$0xff]
    %v510 = vld [vmem:[%s7 + $0x68] sm:$0xff]
    %v511 = vld [vmem:[%s7 + $0x70] sm:$0xff]
    %v512 = vld [vmem:[%s7 + $0x78] sm:$0xff]
    %v513 = vld [vmem:[%s7 + $0x80] sm:$0xff]
    %v514 = vld [vmem:[%s7 + $0x88] sm:$0xff]
    %v515 = vld [vmem:[%s7 + $0x90] sm:$0xff]
    %v516 = vld [vmem:[%s7 + $0x98] sm:$0xff]
    %v517 = vld [vmem:[%s7 + $0xa0] sm:$0xff]
    %v518 = vld [vmem:[%s7 + $0xa8] sm:$0xff]
    %v519 = vld [vmem:[%s7 + $0xb0] sm:$0xff]
    %v520 = vld [vmem:[%s7 + $0xb8] sm:$0xff]
    %v521 = vld [vmem:[%s7 + $0xc0] sm:$0xff]
    %v522 = vld [vmem:[%s7 + $0xc8] sm:$0xff]
    %v523 = vld [vmem:[%s7 + $0xd0] sm:$0xff]
    %v524 = vld [vmem:[%s7 + $0xd8] sm:$0xff]
    %v525 = vld [vmem:[%s7 + $0xe0] sm:$0xff]
    %v526 = vld [vmem:[%s7 + $0xe8] sm:$0xff]
    %v527 = vld [vmem:[%s7 + $0xf0] sm:$0xff]
    %v528 = vld [vmem:[%s7 + $0xf8] sm:$0xff]
    %v529 = vld [vmem:[%s7 + $0x100] sm:$0xff]
    %v530 = vld [vmem:[%s7 + $0x108] sm:$0xff]
    %v531 = vld [vmem:[%s7 + $0x110] sm:$0xff]
    %v532 = vld [vmem:[%s7 + $0x118] sm:$0xff]
    %v533 = vld [vmem:[%s7 + $0x120] sm:$0xff]
    %v534 = vld [vmem:[%s7 + $0x128] sm:$0xff]
    %v535 = vld [vmem:[%s7 + $0x130] sm:$0xff]
    %v536 = vld [vmem:[%s7 + $0x138] sm:$0xff]
    %v537 = vld [vmem:[%s7 + $0x140] sm:$0xff]
    %v538 = vld [vmem:[%s7 + $0x148] sm:$0xff]
    %v539 = vld [vmem:[%s7 + $0x150] sm:$0xff]
    %v540 = vld [vmem:[%s7 + $0x158] sm:$0xff]
    %v541 = vld [vmem:[%s7 + $0x160] sm:$0xff]
    %v542 = vld [vmem:[%s7 + $0x168] sm:$0xff]
    %v543 = vld [vmem:[%s7 + $0x170] sm:$0xff]
    %v544 = vld [vmem:[%s7 + $0x178] sm:$0xff]
    %v545 = vld [vmem:[%s7 + $0x180] sm:$0xff]
    %v546 = vld [vmem:[%s7 + $0x188] sm:$0xff]
    %v547 = vld [vmem:[%s7 + $0x190] sm:$0xff]
    %v548 = vld [vmem:[%s7 + $0x198] sm:$0xff]
    %v549 = vld [vmem:[%s7 + $0x1a0] sm:$0xff]
    %v550 = vld [vmem:[%s7 + $0x1a8] sm:$0xff]
    %v551 = vld [vmem:[%s7 + $0x1b0] sm:$0xff]
    %v552 = vld [vmem:[%s7 + $0x1b8] sm:$0xff]
    %v553 = vld [vmem:[%s7 + $0x1c0] sm:$0xff]
    %v554 = vld [vmem:[%s7 + $0x1c8] sm:$0xff]
    %v555 = vld [vmem:[%s7 + $0x1d0] sm:$0xff]
    %v556 = vld [vmem:[%s7 + $0x1d8] sm:$0xff]
    %v557 = vld [vmem:[%s7 + $0x1e0] sm:$0xff]
    %v558 = vld [vmem:[%s7 + $0x1e8] sm:$0xff]
    %v559 = vld [vmem:[%s7 + $0x1f0] sm:$0xff]
    %v560 = vld [vmem:[%s7 + $0x1f8] sm:$0xff]
    %v561 = vld [vmem:[%s7 + $0x200] sm:$0xff]
    %v562 = vld [vmem:[%s7 + $0x208] sm:$0xff]
    %v563 = vld [vmem:[%s7 + $0x210] sm:$0xff]
    %v564 = vld [vmem:[%s7 + $0x218] sm:$0xff]
    %v565 = vld [vmem:[%s7 + $0x220] sm:$0xff]
    %v566 = vld [vmem:[%s7 + $0x228] sm:$0xff]
    %v567 = vld [vmem:[%s7 + $0x230] sm:$0xff]
    %v568 = vld [vmem:[%s7 + $0x238] sm:$0xff]
    %v569 = vld [vmem:[%s7 + $0x240] sm:$0xff]
    %v570 = vld [vmem:[%s7 + $0x248] sm:$0xff]
    %v571 = vld [vmem:[%s7 + $0x250] sm:$0xff]
    %v572 = vld [vmem:[%s7 + $0x258] sm:$0xff]
    %v573 = vld [vmem:[%s7 + $0x260] sm:$0xff]
    %v574 = vld [vmem:[%s7 + $0x268] sm:$0xff]
    %v575 = vld [vmem:[%s7 + $0x270] sm:$0xff]
    %v576 = vld [vmem:[%s7 + $0x278] sm:$0xff]
    %v577 = vld [vmem:[%s7 + $0x280] sm:$0xff]
    %v578 = vld [vmem:[%s7 + $0x288] sm:$0xff]
    %v579 = vld [vmem:[%s7 + $0x290] sm:$0xff]
    %v580 = vld [vmem:[%s7 + $0x298] sm:$0xff]
    %v581 = vld [vmem:[%s7 + $0x2a0] sm:$0xff]
    %v582 = vld [vmem:[%s7 + $0x2a8] sm:$0xff]
    %v583 = vld [vmem:[%s7 + $0x2b0] sm:$0xff]
    %v584 = vld [vmem:[%s7 + $0x2b8] sm:$0xff]
    %v585 = vld [vmem:[%s7 + $0x2c0] sm:$0xff]
    %v586 = vld [vmem:[%s7 + $0x2c8] sm:$0xff]
    %v587 = vld [vmem:[%s7 + $0x2d0] sm:$0xff]
    %v588 = vld [vmem:[%s7 + $0x2d8] sm:$0xff]
    %v589 = vld [vmem:[%s7 + $0x2e0] sm:$0xff]
    %v590 = vld [vmem:[%s7 + $0x2e8] sm:$0xff]
    %v591 = vld [vmem:[%s7 + $0x2f0] sm:$0xff]
    %v592 = vld [vmem:[%s7 + $0x2f8] sm:$0xff]
    %v593 = vld [vmem:[%s7 + $0x300] sm:$0xff]
    %v594 = vld [vmem:[%s7 + $0x308] sm:$0xff]
    %v595 = vld [vmem:[%s7 + $0x310] sm:$0xff]
    %v596 = vld [vmem:[%s7 + $0x318] sm:$0xff]
    %v597 = vld [vmem:[%s7 + $0x320] sm:$0xff]
    %v598 = vld [vmem:[%s7 + $0x328] sm:$0xff]
    %v599 = vld [vmem:[%s7 + $0x330] sm:$0xff]
    %v600 = vld [vmem:[%s7 + $0x338] sm:$0xff]
    %v601 = vld [vmem:[%s7 + $0x340] sm:$0xff]
    %v602 = vld [vmem:[%s7 + $0x348] sm:$0xff]
    %v603 = vld [vmem:[%s7 + $0x350] sm:$0xff]
    %v604 = vld [vmem:[%s7 + $0x358] sm:$0xff]
    %v605 = vld [vmem:[%s7 + $0x360] sm:$0xff]
    %v606 = vld [vmem:[%s7 + $0x368] sm:$0xff]
    %v607 = vld [vmem:[%s7 + $0x370] sm:$0xff]
    %v608 = vld [vmem:[%s7 + $0x378] sm:$0xff]
    %v609 = vld [vmem:[%s7 + $0x380] sm:$0xff]
    %v610 = vld [vmem:[%s7 + $0x388] sm:$0xff]
    %v611 = vld [vmem:[%s7 + $0x390] sm:$0xff]
    %v612 = vld [vmem:[%s7 + $0x398] sm:$0xff]
    %v613 = vld [vmem:[%s7 + $0x3a0] sm:$0xff]
    %v614 = vld [vmem:[%s7 + $0x3a8] sm:$0xff]
    %v615 = vld [vmem:[%s7 + $0x3b0] sm:$0xff]
    %v616 = vld [vmem:[%s7 + $0x3b8] sm:$0xff]
    %v617 = vld [vmem:[%s7 + $0x3c0] sm:$0xff]
    %v618 = vld [vmem:[%s7 + $0x3c8] sm:$0xff]
    %v619 = vld [vmem:[%s7 + $0x3d0] sm:$0xff]
    %v620 = vld [vmem:[%s7 + $0x3d8] sm:$0xff]
    %v621 = vld [vmem:[%s7 + $0x3e0] sm:$0xff]
    %v622 = vld [vmem:[%s7 + $0x3e8] sm:$0xff]
    %v623 = vld [vmem:[%s7 + $0x3f0] sm:$0xff]
    %v624 = vld [vmem:[%s7 + $0x3f8] sm:$0xff]
    %v625 = vld [vmem:[%s7 + $0x400] sm:$0xff]
    %v626 = vld [vmem:[%s7 + $0x408] sm:$0xff]
    %v627 = vld [vmem:[%s7 + $0x410] sm:$0xff]
    %v628 = vld [vmem:[%s7 + $0x418] sm:$0xff]
    %v629 = vld [vmem:[%s7 + $0x420] sm:$0xff]
    %v630 = vld [vmem:[%s7 + $0x428] sm:$0xff]
    %v631 = vld [vmem:[%s7 + $0x430] sm:$0xff]
    %v632 = vld [vmem:[%s7 + $0x438] sm:$0xff]
    %v633 = vld [vmem:[%s7 + $0x440] sm:$0xff]
    %v634 = vld [vmem:[%s7 + $0x448] sm:$0xff]
    %v635 = vld [vmem:[%s7 + $0x450] sm:$0xff]
    %v636 = vld [vmem:[%s7 + $0x458] sm:$0xff]
    %v637 = vld [vmem:[%s7 + $0x460] sm:$0xff]
    %v638 = vld [vmem:[%s7 + $0x468] sm:$0xff]
    %v639 = vld [vmem:[%s7 + $0x470] sm:$0xff]
    %v640 = vld [vmem:[%s7 + $0x478] sm:$0xff]
    %v641 = vld [vmem:[%s7 + $0x480] sm:$0xff]
    %v642 = vld [vmem:[%s7 + $0x488] sm:$0xff]
    %v643 = vld [vmem:[%s7 + $0x490] sm:$0xff]
    %v644 = vld [vmem:[%s7 + $0x498] sm:$0xff]
    %v645 = vld [vmem:[%s7 + $0x4a0] sm:$0xff]
    %v646 = vld [vmem:[%s7 + $0x4a8] sm:$0xff]
    %v647 = vld [vmem:[%s7 + $0x4b0] sm:$0xff]
    %v648 = vld [vmem:[%s7 + $0x4b8] sm:$0xff]
    %v649 = vld [vmem:[%s7 + $0x4c0] sm:$0xff]
    %v650 = vld [vmem:[%s7 + $0x4c8] sm:$0xff]
    %v651 = vld [vmem:[%s7 + $0x4d0] sm:$0xff]
    %v652 = vld [vmem:[%s7 + $0x4d8] sm:$0xff]
    %v653 = vld [vmem:[%s7 + $0x4e0] sm:$0xff]
    %v654 = vld [vmem:[%s7 + $0x4e8] sm:$0xff]
    %v655 = vld [vmem:[%s7 + $0x4f0] sm:$0xff]
    %v656 = vld [vmem:[%s7 + $0x4f8] sm:$0xff]
    %v657 = vld [vmem:[%s7 + $0x500] sm:$0xff]
    %v658 = vld [vmem:[%s7 + $0x508] sm:$0xff]
    %v659 = vld [vmem:[%s7 + $0x510] sm:$0xff]
    %v660 = vld [vmem:[%s7 + $0x518] sm:$0xff]
    %v661 = vld [vmem:[%s7 + $0x520] sm:$0xff]
    %v662 = vld [vmem:[%s7 + $0x528] sm:$0xff]
    %v663 = vld [vmem:[%s7 + $0x530] sm:$0xff]
    %v664 = vld [vmem:[%s7 + $0x538] sm:$0xff]
    %v665 = vld [vmem:[%s7 + $0x540] sm:$0xff]
    %v666 = vld [vmem:[%s7 + $0x548] sm:$0xff]
    %v667 = vld [vmem:[%s7 + $0x550] sm:$0xff]
    %v668 = vld [vmem:[%s7 + $0x558] sm:$0xff]
    %v669 = vld [vmem:[%s7 + $0x560] sm:$0xff]
    %v670 = vld [vmem:[%s7 + $0x568] sm:$0xff]
    %v671 = vld [vmem:[%s7 + $0x570] sm:$0xff]
    %v672 = vld [vmem:[%s7 + $0x578] sm:$0xff]
    %v673 = vld [vmem:[%s7 + $0x580] sm:$0xff]
    %v674 = vld [vmem:[%s7 + $0x588] sm:$0xff]
    %v675 = vld [vmem:[%s7 + $0x590] sm:$0xff]
    %v676 = vld [vmem:[%s7 + $0x598] sm:$0xff]
    %v677 = vld [vmem:[%s7 + $0x5a0] sm:$0xff]
    %v678 = vld [vmem:[%s7 + $0x5a8] sm:$0xff]
    %v679 = vld [vmem:[%s7 + $0x5b0] sm:$0xff]
    %v680 = vld [vmem:[%s7 + $0x5b8] sm:$0xff]
    %v681 = vld [vmem:[%s7 + $0x5c0] sm:$0xff]
    %v682 = vld [vmem:[%s7 + $0x5c8] sm:$0xff]
    %v683 = vld [vmem:[%s7 + $0x5d0] sm:$0xff]
    %v684 = vld [vmem:[%s7 + $0x5d8] sm:$0xff]
    %v685 = vld [vmem:[%s7 + $0x5e0] sm:$0xff]
    %v686 = vld [vmem:[%s7 + $0x5e8] sm:$0xff]
    %v687 = vld [vmem:[%s7 + $0x5f0] sm:$0xff]
    %v688 = vld [vmem:[%s7 + $0x5f8] sm:$0xff]
    %v689 = vld [vmem:[%s7 + $0x600] sm:$0xff]
    %v690 = vld [vmem:[%s7 + $0x608] sm:$0xff]
    %v691 = vld [vmem:[%s7 + $0x610] sm:$0xff]
    %v692 = vld [vmem:[%s7 + $0x618] sm:$0xff]
    %v693 = vld [vmem:[%s7 + $0x620] sm:$0xff]
    %v694 = vld [vmem:[%s7 + $0x628] sm:$0xff]
    %v695 = vld [vmem:[%s7 + $0x630] sm:$0xff]
    %v696 = vld [vmem:[%s7 + $0x638] sm:$0xff]
    %v697 = vld [vmem:[%s7 + $0x640] sm:$0xff]
    %v698 = vld [vmem:[%s7 + $0x648] sm:$0xff]
    %v699 = vld [vmem:[%s7 + $0x650] sm:$0xff]
    %v700 = vld [vmem:[%s7 + $0x658] sm:$0xff]
    %v701 = vld [vmem:[%s7 + $0x660] sm:$0xff]
    %v702 = vld [vmem:[%s7 + $0x668] sm:$0xff]
    %v703 = vld [vmem:[%s7 + $0x670] sm:$0xff]
    %v704 = vld [vmem:[%s7 + $0x678] sm:$0xff]
    %v705 = vld [vmem:[%s7 + $0x680] sm:$0xff]
    %v706 = vld [vmem:[%s7 + $0x688] sm:$0xff]
    %v707 = vld [vmem:[%s7 + $0x690] sm:$0xff]
    %v708 = vld [vmem:[%s7 + $0x698] sm:$0xff]
    %v709 = vld [vmem:[%s7 + $0x6a0] sm:$0xff]
    %v710 = vld [vmem:[%s7 + $0x6a8] sm:$0xff]
    %v711 = vld [vmem:[%s7 + $0x6b0] sm:$0xff]
    %v712 = vld [vmem:[%s7 + $0x6b8] sm:$0xff]
    %v713 = vld [vmem:[%s7 + $0x6c0] sm:$0xff]
    %v714 = vld [vmem:[%s7 + $0x6c8] sm:$0xff]
    %v715 = vld [vmem:[%s7 + $0x6d0] sm:$0xff]
    %v716 = vld [vmem:[%s7 + $0x6d8] sm:$0xff]
    %v717 = vld [vmem:[%s7 + $0x6e0] sm:$0xff]
    %v718 = vld [vmem:[%s7 + $0x6e8] sm:$0xff]
    %v719 = vld [vmem:[%s7 + $0x6f0] sm:$0xff]
    %v720 = vld [vmem:[%s7 + $0x6f8] sm:$0xff]
    %v721 = vld [vmem:[%s7 + $0x700] sm:$0xff]
    %v722 = vld [vmem:[%s7 + $0x708] sm:$0xff]
    %v723 = vld [vmem:[%s7 + $0x710] sm:$0xff]
    %v724 = vld [vmem:[%s7 + $0x718] sm:$0xff]
    %v725 = vld [vmem:[%s7 + $0x720] sm:$0xff]
    %v726 = vld [vmem:[%s7 + $0x728] sm:$0xff]
    %v727 = vld [vmem:[%s7 + $0x730] sm:$0xff]
    %v728 = vld [vmem:[%s7 + $0x738] sm:$0xff]
    %v729 = vld [vmem:[%s7 + $0x740] sm:$0xff]
    %v730 = vld [vmem:[%s7 + $0x748] sm:$0xff]
    %v731 = vld [vmem:[%s7 + $0x750] sm:$0xff]
    %v732 = vld [vmem:[%s7 + $0x758] sm:$0xff]
    %v733 = vld [vmem:[%s7 + $0x760] sm:$0xff]
    %v734 = vld [vmem:[%s7 + $0x768] sm:$0xff]
    %v735 = vld [vmem:[%s7 + $0x770] sm:$0xff]
    %v736 = vld [vmem:[%s7 + $0x778] sm:$0xff]
    %v737 = vld [vmem:[%s7 + $0x780] sm:$0xff]
    %v738 = vld [vmem:[%s7 + $0x788] sm:$0xff]
    %v739 = vld [vmem:[%s7 + $0x790] sm:$0xff]
    %v740 = vld [vmem:[%s7 + $0x798] sm:$0xff]
    %v741 = vld [vmem:[%s7 + $0x7a0] sm:$0xff]
    %v742 = vld [vmem:[%s7 + $0x7a8] sm:$0xff]
    %v743 = vld [vmem:[%s7 + $0x7b0] sm:$0xff]
    %v744 = vld [vmem:[%s7 + $0x7b8] sm:$0xff]
    %v745 = vld [vmem:[%s7 + $0x7c0] sm:$0xff]
    %v746 = vld [vmem:[%s7 + $0x7c8] sm:$0xff]
    %v747 = vld [vmem:[%s7 + $0x7d0] sm:$0xff]
    %v748 = vld [vmem:[%s7 + $0x7d8] sm:$0xff]
    %v749 = vld [vmem:[%s7 + $0x7e0] sm:$0xff]
    %v750 = vld [vmem:[%s7 + $0x7e8] sm:$0xff]
    %v751 = vld [vmem:[%s7 + $0x7f0] sm:$0xff]
    %v752 = vld [vmem:[%s7 + $0x7f8] sm:$0xff]
    %v753 = vld [vmem:[%s7 + $0x800] sm:$0xff]
    %v754 = vld [vmem:[%s7 + $0x808] sm:$0xff]
    %v755 = vld [vmem:[%s7 + $0x810] sm:$0xff]
    %v756 = vld [vmem:[%s7 + $0x818] sm:$0xff]
    %v757 = vld [vmem:[%s7 + $0x820] sm:$0xff]
    %v758 = vld [vmem:[%s7 + $0x828] sm:$0xff]
    %v759 = vld [vmem:[%s7 + $0x830] sm:$0xff]
    %v760 = vld [vmem:[%s7 + $0x838] sm:$0xff]
    %v761 = vld [vmem:[%s7 + $0x840] sm:$0xff]
    %v762 = vld [vmem:[%s7 + $0x848] sm:$0xff]
    %v763 = vld [vmem:[%s7 + $0x850] sm:$0xff]
    %v764 = vld [vmem:[%s7 + $0x858] sm:$0xff]
    %v765 = vld [vmem:[%s7 + $0x860] sm:$0xff]
    %v766 = vld [vmem:[%s7 + $0x868] sm:$0xff]
    %v767 = vld [vmem:[%s7 + $0x870] sm:$0xff]
    %v768 = vld [vmem:[%s7 + $0x878] sm:$0xff]
    %v769 = vld [vmem:[%s7 + $0x880] sm:$0xff]
    %v770 = vld [vmem:[%s7 + $0x888] sm:$0xff]
    %v771 = vld [vmem:[%s7 + $0x890] sm:$0xff]
    %v772 = vld [vmem:[%s7 + $0x898] sm:$0xff]
    %v773 = vld [vmem:[%s7 + $0x8a0] sm:$0xff]
    %v774 = vld [vmem:[%s7 + $0x8a8] sm:$0xff]
    %v775 = vld [vmem:[%s7 + $0x8b0] sm:$0xff]
    %v776 = vld [vmem:[%s7 + $0x8b8] sm:$0xff]
    %v777 = vld [vmem:[%s7 + $0x8c0] sm:$0xff]
    %v778 = vld [vmem:[%s7 + $0x8c8] sm:$0xff]
    %v779 = vld [vmem:[%s7 + $0x8d0] sm:$0xff]
    %v780 = vld [vmem:[%s7 + $0x8d8] sm:$0xff]
    %v781 = vld [vmem:[%s7 + $0x8e0] sm:$0xff]
    %v782 = vld [vmem:[%s7 + $0x8e8] sm:$0xff]
    %v783 = vld [vmem:[%s7 + $0x8f0] sm:$0xff]
    %v784 = vld [vmem:[%s7 + $0x8f8] sm:$0xff]
    %v785 = vld [vmem:[%s7 + $0x900] sm:$0xff]
    %v786 = vld [vmem:[%s7 + $0x908] sm:$0xff]
    %v787 = vld [vmem:[%s7 + $0x910] sm:$0xff]
    %v788 = vld [vmem:[%s7 + $0x918] sm:$0xff]
    %v789 = vld [vmem:[%s7 + $0x920] sm:$0xff]
    %v790 = vld [vmem:[%s7 + $0x928] sm:$0xff]
    %v791 = vld [vmem:[%s7 + $0x930] sm:$0xff]
    %v792 = vld [vmem:[%s7 + $0x938] sm:$0xff]
    %v793 = vld [vmem:[%s7 + $0x940] sm:$0xff]
    %v794 = vld [vmem:[%s7 + $0x948] sm:$0xff]
    %v795 = vld [vmem:[%s7 + $0x950] sm:$0xff]
    %v796 = vld [vmem:[%s7 + $0x958] sm:$0xff]
    %v797 = vld [vmem:[%s7 + $0x960] sm:$0xff]
    %v798 = vld [vmem:[%s7 + $0x968] sm:$0xff]
    %v799 = vld [vmem:[%s7 + $0x970] sm:$0xff]
    %v800 = vld [vmem:[%s7 + $0x978] sm:$0xff]
    %v801 = vld [vmem:[%s7 + $0x980] sm:$0xff]
    %v802 = vld [vmem:[%s7 + $0x988] sm:$0xff]
    %v803 = vld [vmem:[%s7 + $0x990] sm:$0xff]
    %v804 = vld [vmem:[%s7 + $0x998] sm:$0xff]
    %v805 = vld [vmem:[%s7 + $0x9a0] sm:$0xff]
    %v806 = vld [vmem:[%s7 + $0x9a8] sm:$0xff]
    %v807 = vld [vmem:[%s7 + $0x9b0] sm:$0xff]
    %v808 = vld [vmem:[%s7 + $0x9b8] sm:$0xff]
    %v809 = vld [vmem:[%s7 + $0x9c0] sm:$0xff]
    %v810 = vld [vmem:[%s7 + $0x9c8] sm:$0xff]
    %v811 = vld [vmem:[%s7 + $0x9d0] sm:$0xff]
    %v812 = vld [vmem:[%s7 + $0x9d8] sm:$0xff]
    %v813 = vld [vmem:[%s7 + $0x9e0] sm:$0xff]
    %v814 = vld [vmem:[%s7 + $0x9e8] sm:$0xff]
    %v815 = vld [vmem:[%s7 + $0x9f0] sm:$0xff]
    %v816 = vld [vmem:[%s7 + $0x9f8] sm:$0xff]
    %v817 = vld [vmem:[%s7 + $0xa00] sm:$0xff]
    %v818 = vld [vmem:[%s7 + $0xa08] sm:$0xff]
    %v819 = vld [vmem:[%s7 + $0xa10] sm:$0xff]
    %v820 = vld [vmem:[%s7 + $0xa18] sm:$0xff]
    %v821 = vld [vmem:[%s7 + $0xa20] sm:$0xff]
    %v822 = vld [vmem:[%s7 + $0xa28] sm:$0xff]
    %v823 = vld [vmem:[%s7 + $0xa30] sm:$0xff]
    %v824 = vld [vmem:[%s7 + $0xa38] sm:$0xff]
    %v825 = vld [vmem:[%s7 + $0xa40] sm:$0xff]
    %v826 = vld [vmem:[%s7 + $0xa48] sm:$0xff]
    %v827 = vld [vmem:[%s7 + $0xa50] sm:$0xff]
    %v828 = vld [vmem:[%s7 + $0xa58] sm:$0xff]
    %v829 = vld [vmem:[%s7 + $0xa60] sm:$0xff]
    %v830 = vld [vmem:[%s7 + $0xa68] sm:$0xff]
    %v831 = vld [vmem:[%s7 + $0xa70] sm:$0xff]
    %v832 = vld [vmem:[%s7 + $0xa78] sm:$0xff]
    %v833 = vld [vmem:[%s7 + $0xa80] sm:$0xff]
    %v834 = vld [vmem:[%s7 + $0xa88] sm:$0xff]
    %v835 = vld [vmem:[%s7 + $0xa90] sm:$0xff]
    %v836 = vld [vmem:[%s7 + $0xa98] sm:$0xff]
    %v837 = vld [vmem:[%s7 + $0xaa0] sm:$0xff]
    %v838 = vld [vmem:[%s7 + $0xaa8] sm:$0xff]
    %v839 = vld [vmem:[%s7 + $0xab0] sm:$0xff]
    %v840 = vld [vmem:[%s7 + $0xab8] sm:$0xff]
    %v841 = vld [vmem:[%s7 + $0xac0] sm:$0xff]
    %v842 = vld [vmem:[%s7 + $0xac8] sm:$0xff]
    %v843 = vld [vmem:[%s7 + $0xad0] sm:$0xff]
    %v844 = vld [vmem:[%s7 + $0xad8] sm:$0xff]
    %v845 = vld [vmem:[%s7 + $0xae0] sm:$0xff]
    %v846 = vld [vmem:[%s7 + $0xae8] sm:$0xff]
    %v847 = vld [vmem:[%s7 + $0xaf0] sm:$0xff]
    %v848 = vld [vmem:[%s7 + $0xaf8] sm:$0xff]
    %v849 = vld [vmem:[%s7 + $0xb00] sm:$0xff]
    %v850 = vld [vmem:[%s7 + $0xb08] sm:$0xff]
    %v851 = vld [vmem:[%s7 + $0xb10] sm:$0xff]
    %v852 = vld [vmem:[%s7 + $0xb18] sm:$0xff]
    %v853 = vld [vmem:[%s7 + $0xb20] sm:$0xff]
    %v854 = vld [vmem:[%s7 + $0xb28] sm:$0xff]
    %v855 = vld [vmem:[%s7 + $0xb30] sm:$0xff]
    %v856 = vld [vmem:[%s7 + $0xb38] sm:$0xff]
    %v857 = vld [vmem:[%s7 + $0xb40] sm:$0xff]
    %v858 = vld [vmem:[%s7 + $0xb48] sm:$0xff]
    %v859 = vld [vmem:[%s7 + $0xb50] sm:$0xff]
    %v860 = vld [vmem:[%s7 + $0xb58] sm:$0xff]
    %v861 = vld [vmem:[%s7 + $0xb60] sm:$0xff]
    %v862 = vld [vmem:[%s7 + $0xb68] sm:$0xff]
    %v863 = vld [vmem:[%s7 + $0xb70] sm:$0xff]
    %v864 = vld [vmem:[%s7 + $0xb78] sm:$0xff]
    %v865 = vld [vmem:[%s7 + $0xb80] sm:$0xff]
    %v866 = vld [vmem:[%s7 + $0xb88] sm:$0xff]
    %v867 = vld [vmem:[%s7 + $0xb90] sm:$0xff]
    %v868 = vld [vmem:[%s7 + $0xb98] sm:$0xff]
    %v869 = vld [vmem:[%s7 + $0xba0] sm:$0xff]
    %v870 = vld [vmem:[%s7 + $0xba8] sm:$0xff]
    %v871 = vld [vmem:[%s7 + $0xbb0] sm:$0xff]
    %v872 = vld [vmem:[%s7 + $0xbb8] sm:$0xff]
    %v873 = vld [vmem:[%s7 + $0xbc0] sm:$0xff]
    %v874 = vld [vmem:[%s7 + $0xbc8] sm:$0xff]
    %v875 = vld [vmem:[%s7 + $0xbd0] sm:$0xff]
    %v876 = vld [vmem:[%s7 + $0xbd8] sm:$0xff]
    %v877 = vld [vmem:[%s7 + $0xbe0] sm:$0xff]
    %v878 = vld [vmem:[%s7 + $0xbe8] sm:$0xff]
    %v879 = vld [vmem:[%s7 + $0xbf0] sm:$0xff]
    %v880 = vld [vmem:[%s7 + $0xbf8] sm:$0xff]
    %v881 = vld [vmem:[%s7 + $0xc00] sm:$0xff]
    %v882 = vld [vmem:[%s7 + $0xc08] sm:$0xff]
    %v883 = vld [vmem:[%s7 + $0xc10] sm:$0xff]
    %v884 = vld [vmem:[%s7 + $0xc18] sm:$0xff]
    %v885 = vld [vmem:[%s7 + $0xc20] sm:$0xff]
    %v886 = vld [vmem:[%s7 + $0xc28] sm:$0xff]
    %v887 = vld [vmem:[%s7 + $0xc30] sm:$0xff]
    %v888 = vld [vmem:[%s7 + $0xc38] sm:$0xff]
    %v889 = vld [vmem:[%s7 + $0xc40] sm:$0xff]
    %v890 = vld [vmem:[%s7 + $0xc48] sm:$0xff]
    %v891 = vld [vmem:[%s7 + $0xc50] sm:$0xff]
    %v892 = vld [vmem:[%s7 + $0xc58] sm:$0xff]
    %v893 = vld [vmem:[%s7 + $0xc60] sm:$0xff]
    %v894 = vld [vmem:[%s7 + $0xc68] sm:$0xff]
    %v895 = vld [vmem:[%s7 + $0xc70] sm:$0xff]
    %v896 = vld [vmem:[%s7 + $0xc78] sm:$0xff]
    %v897 = vld [vmem:[%s7 + $0xc80] sm:$0xff]
    %v898 = vld [vmem:[%s7 + $0xc88] sm:$0xff]
    %v899 = vld [vmem:[%s7 + $0xc90] sm:$0xff]
    %v900 = vld [vmem:[%s7 + $0xc98] sm:$0xff]
    %v901 = vld [vmem:[%s7 + $0xca0] sm:$0xff]
    %v902 = vld [vmem:[%s7 + $0xca8] sm:$0xff]
    %v903 = vld [vmem:[%s7 + $0xcb0] sm:$0xff]
    %v904 = vld [vmem:[%s7 + $0xcb8] sm:$0xff]
    %v905 = vld [vmem:[%s7 + $0xcc0] sm:$0xff]
    %v906 = vld [vmem:[%s7 + $0xcc8] sm:$0xff]
    %v907 = vld [vmem:[%s7 + $0xcd0] sm:$0xff]
    %v908 = vld [vmem:[%s7 + $0xcd8] sm:$0xff]
    %v909 = vld [vmem:[%s7 + $0xce0] sm:$0xff]
    %v910 = vld [vmem:[%s7 + $0xce8] sm:$0xff]
    %v911 = vld [vmem:[%s7 + $0xcf0] sm:$0xff]
    %v912 = vld [vmem:[%s7 + $0xcf8] sm:$0xff]
    %v913 = vld [vmem:[%s7 + $0xd00] sm:$0xff]
    %v914 = vld [vmem:[%s7 + $0xd08] sm:$0xff]
    %v915 = vld [vmem:[%s7 + $0xd10] sm:$0xff]
    %v916 = vld [vmem:[%s7 + $0xd18] sm:$0xff]
    %v917 = vld [vmem:[%s7 + $0xd20] sm:$0xff]
    %v918 = vld [vmem:[%s7 + $0xd28] sm:$0xff]
    %v919 = vld [vmem:[%s7 + $0xd30] sm:$0xff]
    %v920 = vld [vmem:[%s7 + $0xd38] sm:$0xff]
    %v921 = vld [vmem:[%s7 + $0xd40] sm:$0xff]
    %v922 = vld [vmem:[%s7 + $0xd48] sm:$0xff]
    %v923 = vld [vmem:[%s7 + $0xd50] sm:$0xff]
    %v924 = vld [vmem:[%s7 + $0xd58] sm:$0xff]
    %v925 = vld [vmem:[%s7 + $0xd60] sm:$0xff]
    %v926 = vld [vmem:[%s7 + $0xd68] sm:$0xff]
    %v927 = vld [vmem:[%s7 + $0xd70] sm:$0xff]
    %v928 = vld [vmem:[%s7 + $0xd78] sm:$0xff]
    %v929 = vld [vmem:[%s7 + $0xd80] sm:$0xff]
    %v930 = vld [vmem:[%s7 + $0xd88] sm:$0xff]
    %v931 = vld [vmem:[%s7 + $0xd90] sm:$0xff]
    %v932 = vld [vmem:[%s7 + $0xd98] sm:$0xff]
    %v933 = vld [vmem:[%s7 + $0xda0] sm:$0xff]
    %v934 = vld [vmem:[%s7 + $0xda8] sm:$0xff]
    %v935 = vld [vmem:[%s7 + $0xdb0] sm:$0xff]
    %v936 = vld [vmem:[%s7 + $0xdb8] sm:$0xff]
    %v937 = vld [vmem:[%s7 + $0xdc0] sm:$0xff]
    %v938 = vld [vmem:[%s7 + $0xdc8] sm:$0xff]
    %v939 = vld [vmem:[%s7 + $0xdd0] sm:$0xff]
    %v940 = vld [vmem:[%s7 + $0xdd8] sm:$0xff]
    %v941 = vld [vmem:[%s7 + $0xde0] sm:$0xff]
    %v942 = vld [vmem:[%s7 + $0xde8] sm:$0xff]
    %v943 = vld [vmem:[%s7 + $0xdf0] sm:$0xff]
    %v944 = vld [vmem:[%s7 + $0xdf8] sm:$0xff]
    %v945 = vld [vmem:[%s7 + $0xe00] sm:$0xff]
    %v946 = vld [vmem:[%s7 + $0xe08] sm:$0xff]
    %v947 = vld [vmem:[%s7 + $0xe10] sm:$0xff]
    %v948 = vld [vmem:[%s7 + $0xe18] sm:$0xff]
    %v949 = vld [vmem:[%s7 + $0xe20] sm:$0xff]
    %v950 = vld [vmem:[%s7 + $0xe28] sm:$0xff]
    %v951 = vld [vmem:[%s7 + $0xe30] sm:$0xff]
    %v952 = vld [vmem:[%s7 + $0xe38] sm:$0xff]
    %v953 = vld [vmem:[%s7 + $0xe40] sm:$0xff]
    %v954 = vld [vmem:[%s7 + $0xe48] sm:$0xff]
    %v955 = vld [vmem:[%s7 + $0xe50] sm:$0xff]
    %v956 = vld [vmem:[%s7 + $0xe58] sm:$0xff]
    %v957 = vld [vmem:[%s7 + $0xe60] sm:$0xff]
    %v958 = vld [vmem:[%s7 + $0xe68] sm:$0xff]
    %v959 = vld [vmem:[%s7 + $0xe70] sm:$0xff]
    %v960 = vld [vmem:[%s7 + $0xe78] sm:$0xff]
    %v961 = vld [vmem:[%s7 + $0xe80] sm:$0xff]
    %v962 = vld [vmem:[%s7 + $0xe88] sm:$0xff]
    %v963 = vld [vmem:[%s7 + $0xe90] sm:$0xff]
    %v964 = vld [vmem:[%s7 + $0xe98] sm:$0xff]
    %v965 = vld [vmem:[%s7 + $0xea0] sm:$0xff]
    %v966 = vld [vmem:[%s7 + $0xea8] sm:$0xff]
    %v967 = vld [vmem:[%s7 + $0xeb0] sm:$0xff]
    %v968 = vld [vmem:[%s7 + $0xeb8] sm:$0xff]
    %v969 = vld [vmem:[%s7 + $0xec0] sm:$0xff]
    %v970 = vld [vmem:[%s7 + $0xec8] sm:$0xff]
    %v971 = vld [vmem:[%s7 + $0xed0] sm:$0xff]
    %v972 = vld [vmem:[%s7 + $0xed8] sm:$0xff]
    %v973 = vld [vmem:[%s7 + $0xee0] sm:$0xff]
    %v974 = vld [vmem:[%s7 + $0xee8] sm:$0xff]
    %v975 = vld [vmem:[%s7 + $0xef0] sm:$0xff]
    %v976 = vld [vmem:[%s7 + $0xef8] sm:$0xff]
    %v977 = vld [vmem:[%s7 + $0xf00] sm:$0xff]
    %v978 = vld [vmem:[%s7 + $0xf08] sm:$0xff]
    %v979 = vld [vmem:[%s7 + $0xf10] sm:$0xff]
    %v980 = vld [vmem:[%s7 + $0xf18] sm:$0xff]
    %v981 = vld [vmem:[%s7 + $0xf20] sm:$0xff]
    %v982 = vld [vmem:[%s7 + $0xf28] sm:$0xff]
    %v983 = vld [vmem:[%s7 + $0xf30] sm:$0xff]
    %v984 = vld [vmem:[%s7 + $0xf38] sm:$0xff]
    %v985 = vld [vmem:[%s7 + $0xf40] sm:$0xff]
    %v986 = vld [vmem:[%s7 + $0xf48] sm:$0xff]
    %v987 = vld [vmem:[%s7 + $0xf50] sm:$0xff]
    %v988 = vld [vmem:[%s7 + $0xf58] sm:$0xff]
    %v989 = vld [vmem:[%s7 + $0xf60] sm:$0xff]
    %v990 = vld [vmem:[%s7 + $0xf68] sm:$0xff]
    %v991 = vld [vmem:[%s7 + $0xf70] sm:$0xff]
    %v992 = vld [vmem:[%s7 + $0xf78] sm:$0xff]
    %v993 = vld [vmem:[%s7 + $0xf80] sm:$0xff]
    %v994 = vld [vmem:[%s7 + $0xf88] sm:$0xff]
    %v995 = vld [vmem:[%s7 + $0xf90] sm:$0xff]
    %v996 = vld [vmem:[%s7 + $0xf98] sm:$0xff]
    %v997 = vld [vmem:[%s7 + $0xfa0] sm:$0xff]
    %v998 = vld [vmem:[%s7 + $0xfa8] sm:$0xff]
    %v999 = vld [vmem:[%s7 + $0xfb0] sm:$0xff]
    %v1000 = vld [vmem:[%s7 + $0xfb8] sm:$0xff]
    %v1001 = vld [vmem:[%s7 + $0xfc0] sm:$0xff]
    %v1002 = vld [vmem:[%s7 + $0xfc8] sm:$0xff]
    %v1003 = vld [vmem:[%s7 + $0xfd0] sm:$0xff]
    %v1004 = vld [vmem:[%s7 + $0xfd8] sm:$0xff]
    %v1005 = vld [vmem:[%s7 + $0xfe0] sm:$0xff]
    %v1006 = vld [vmem:[%s7 + $0xfe8] sm:$0xff]
    %v1007 = vld [vmem:[%s7 + $0xff0] sm:$0xff]
    %v1008 = vld [vmem:[%s7 + $0xff8] sm:$0xff]
    %v1009 = vld [vmem:[%s8] sm:$0xff]
    %v1010 = vld [vmem:[%s8 + $0x8] sm:$0xff]
    %v1011 = vld [vmem:[%s8 + $0x10] sm:$0xff]
    %v1012 = vld [vmem:[%s8 + $0x18] sm:$0xff]
    %v1013 = vld [vmem:[%s8 + $0x20] sm:$0xff]
    %v1014 = vld [vmem:[%s8 + $0x28] sm:$0xff]
    %v1015 = vld [vmem:[%s8 + $0x30] sm:$0xff]
    %v1016 = vld [vmem:[%s8 + $0x38] sm:$0xff]
    %v1017 = vld [vmem:[%s8 + $0x40] sm:$0xff]
    %v1018 = vld [vmem:[%s8 + $0x48] sm:$0xff]
    %v1019 = vld [vmem:[%s8 + $0x50] sm:$0xff]
    %v1020 = vld [vmem:[%s8 + $0x58] sm:$0xff]
    %v1021 = vld [vmem:[%s8 + $0x60] sm:$0xff]
    %v1022 = vld [vmem:[%s8 + $0x68] sm:$0xff]
    %v1023 = vld [vmem:[%s8 + $0x70] sm:$0xff]
    %v1024 = vld [vmem:[%s8 + $0x78] sm:$0xff]
    %v1025 = vld [vmem:[%s8 + $0x80] sm:$0xff]
    %v1026 = vld [vmem:[%s8 + $0x88] sm:$0xff]
    %v1027 = vld [vmem:[%s8 + $0x90] sm:$0xff]
    %v1028 = vld [vmem:[%s8 + $0x98] sm:$0xff]
    %v1029 = vld [vmem:[%s8 + $0xa0] sm:$0xff]
    %v1030 = vld [vmem:[%s8 + $0xa8] sm:$0xff]
    %v1031 = vld [vmem:[%s8 + $0xb0] sm:$0xff]
    %v1032 = vld [vmem:[%s8 + $0xb8] sm:$0xff]
    %v1033 = vld [vmem:[%s8 + $0xc0] sm:$0xff]
    %v1034 = vld [vmem:[%s8 + $0xc8] sm:$0xff]
    %v1035 = vld [vmem:[%s8 + $0xd0] sm:$0xff]
    %v1036 = vld [vmem:[%s8 + $0xd8] sm:$0xff]
    %v1037 = vld [vmem:[%s8 + $0xe0] sm:$0xff]
    %v1038 = vld [vmem:[%s8 + $0xe8] sm:$0xff]
    %v1039 = vld [vmem:[%s8 + $0xf0] sm:$0xff]
    %v1040 = vld [vmem:[%s8 + $0xf8] sm:$0xff]
    %v1041 = vld [vmem:[%s8 + $0x100] sm:$0xff]
    %v1042 = vld [vmem:[%s8 + $0x108] sm:$0xff]
    %v1043 = vld [vmem:[%s8 + $0x110] sm:$0xff]
    %v1044 = vld [vmem:[%s8 + $0x118] sm:$0xff]
    %v1045 = vld [vmem:[%s8 + $0x120] sm:$0xff]
    %v1046 = vld [vmem:[%s8 + $0x128] sm:$0xff]
    %v1047 = vld [vmem:[%s8 + $0x130] sm:$0xff]
    %v1048 = vld [vmem:[%s8 + $0x138] sm:$0xff]
    %v1049 = vld [vmem:[%s8 + $0x140] sm:$0xff]
    %v1050 = vld [vmem:[%s8 + $0x148] sm:$0xff]
    %v1051 = vld [vmem:[%s8 + $0x150] sm:$0xff]
    %v1052 = vld [vmem:[%s8 + $0x158] sm:$0xff]
    %v1053 = vld [vmem:[%s8 + $0x160] sm:$0xff]
    %v1054 = vld [vmem:[%s8 + $0x168] sm:$0xff]
    %v1055 = vld [vmem:[%s8 + $0x170] sm:$0xff]
    %v1056 = vld [vmem:[%s8 + $0x178] sm:$0xff]
    %v1057 = vld [vmem:[%s8 + $0x180] sm:$0xff]
    %v1058 = vld [vmem:[%s8 + $0x188] sm:$0xff]
    %v1059 = vld [vmem:[%s8 + $0x190] sm:$0xff]
    %v1060 = vld [vmem:[%s8 + $0x198] sm:$0xff]
    %v1061 = vld [vmem:[%s8 + $0x1a0] sm:$0xff]
    %v1062 = vld [vmem:[%s8 + $0x1a8] sm:$0xff]
    %v1063 = vld [vmem:[%s8 + $0x1b0] sm:$0xff]
    %v1064 = vld [vmem:[%s8 + $0x1b8] sm:$0xff]
    %v1065 = vld [vmem:[%s8 + $0x1c0] sm:$0xff]
    %v1066 = vld [vmem:[%s8 + $0x1c8] sm:$0xff]
    %v1067 = vld [vmem:[%s8 + $0x1d0] sm:$0xff]
    %v1068 = vld [vmem:[%s8 + $0x1d8] sm:$0xff]
    %v1069 = vld [vmem:[%s8 + $0x1e0] sm:$0xff]
    %v1070 = vld [vmem:[%s8 + $0x1e8] sm:$0xff]
    %v1071 = vld [vmem:[%s8 + $0x1f0] sm:$0xff]
    %v1072 = vld [vmem:[%s8 + $0x1f8] sm:$0xff]
    %v1073 = vld [vmem:[%s8 + $0x200] sm:$0xff]
    %v1074 = vld [vmem:[%s8 + $0x208] sm:$0xff]
    %v1075 = vld [vmem:[%s8 + $0x210] sm:$0xff]
    %v1076 = vld [vmem:[%s8 + $0x218] sm:$0xff]
    %v1077 = vld [vmem:[%s8 + $0x220] sm:$0xff]
    %v1078 = vld [vmem:[%s8 + $0x228] sm:$0xff]
    %v1079 = vld [vmem:[%s8 + $0x230] sm:$0xff]
    %v1080 = vld [vmem:[%s8 + $0x238] sm:$0xff]
    %v1081 = vld [vmem:[%s8 + $0x240] sm:$0xff]
    %v1082 = vld [vmem:[%s8 + $0x248] sm:$0xff]
    %v1083 = vld [vmem:[%s8 + $0x250] sm:$0xff]
    %v1084 = vld [vmem:[%s8 + $0x258] sm:$0xff]
    %v1085 = vld [vmem:[%s8 + $0x260] sm:$0xff]
    %v1086 = vld [vmem:[%s8 + $0x268] sm:$0xff]
    %v1087 = vld [vmem:[%s8 + $0x270] sm:$0xff]
    %v1088 = vld [vmem:[%s8 + $0x278] sm:$0xff]
    %v1089 = vld [vmem:[%s8 + $0x280] sm:$0xff]
    %v1090 = vld [vmem:[%s8 + $0x288] sm:$0xff]
    %v1091 = vld [vmem:[%s8 + $0x290] sm:$0xff]
    %v1092 = vld [vmem:[%s8 + $0x298] sm:$0xff]
    %v1093 = vld [vmem:[%s8 + $0x2a0] sm:$0xff]
    %v1094 = vld [vmem:[%s8 + $0x2a8] sm:$0xff]
    %v1095 = vld [vmem:[%s8 + $0x2b0] sm:$0xff]
    %v1096 = vld [vmem:[%s8 + $0x2b8] sm:$0xff]
    %v1097 = vld [vmem:[%s8 + $0x2c0] sm:$0xff]
    %v1098 = vld [vmem:[%s8 + $0x2c8] sm:$0xff]
    %v1099 = vld [vmem:[%s8 + $0x2d0] sm:$0xff]
    %v1100 = vld [vmem:[%s8 + $0x2d8] sm:$0xff]
    %v1101 = vld [vmem:[%s8 + $0x2e0] sm:$0xff]
    %v1102 = vld [vmem:[%s8 + $0x2e8] sm:$0xff]
    %v1103 = vld [vmem:[%s8 + $0x2f0] sm:$0xff]
    %v1104 = vld [vmem:[%s8 + $0x2f8] sm:$0xff]
    %v1105 = vld [vmem:[%s8 + $0x300] sm:$0xff]
    %v1106 = vld [vmem:[%s8 + $0x308] sm:$0xff]
    %v1107 = vld [vmem:[%s8 + $0x310] sm:$0xff]
    %v1108 = vld [vmem:[%s8 + $0x318] sm:$0xff]
    %v1109 = vld [vmem:[%s8 + $0x320] sm:$0xff]
    %v1110 = vld [vmem:[%s8 + $0x328] sm:$0xff]
    %v1111 = vld [vmem:[%s8 + $0x330] sm:$0xff]
    %v1112 = vld [vmem:[%s8 + $0x338] sm:$0xff]
    %v1113 = vld [vmem:[%s8 + $0x340] sm:$0xff]
    %v1114 = vld [vmem:[%s8 + $0x348] sm:$0xff]
    %v1115 = vld [vmem:[%s8 + $0x350] sm:$0xff]
    %v1116 = vld [vmem:[%s8 + $0x358] sm:$0xff]
    %v1117 = vld [vmem:[%s8 + $0x360] sm:$0xff]
    %v1118 = vld [vmem:[%s8 + $0x368] sm:$0xff]
    %v1119 = vld [vmem:[%s8 + $0x370] sm:$0xff]
    %v1120 = vld [vmem:[%s8 + $0x378] sm:$0xff]
    %v1121 = vld [vmem:[%s8 + $0x380] sm:$0xff]
    %v1122 = vld [vmem:[%s8 + $0x388] sm:$0xff]
    %v1123 = vld [vmem:[%s8 + $0x390] sm:$0xff]
    %v1124 = vld [vmem:[%s8 + $0x398] sm:$0xff]
    %v1125 = vld [vmem:[%s8 + $0x3a0] sm:$0xff]
    %v1126 = vld [vmem:[%s8 + $0x3a8] sm:$0xff]
    %v1127 = vld [vmem:[%s8 + $0x3b0] sm:$0xff]
    %v1128 = vld [vmem:[%s8 + $0x3b8] sm:$0xff]
    %v1129 = vld [vmem:[%s8 + $0x3c0] sm:$0xff]
    %v1130 = vld [vmem:[%s8 + $0x3c8] sm:$0xff]
    %v1131 = vld [vmem:[%s8 + $0x3d0] sm:$0xff]
    %v1132 = vld [vmem:[%s8 + $0x3d8] sm:$0xff]
    %v1133 = vld [vmem:[%s8 + $0x3e0] sm:$0xff]
    %v1134 = vld [vmem:[%s8 + $0x3e8] sm:$0xff]
    %v1135 = vld [vmem:[%s8 + $0x3f0] sm:$0xff]
    %v1136 = vld [vmem:[%s8 + $0x3f8] sm:$0xff]
    %v1137 = vld [vmem:[%s8 + $0x400] sm:$0xff]
    %v1138 = vld [vmem:[%s8 + $0x408] sm:$0xff]
    %v1139 = vld [vmem:[%s8 + $0x410] sm:$0xff]
    %v1140 = vld [vmem:[%s8 + $0x418] sm:$0xff]
    %v1141 = vld [vmem:[%s8 + $0x420] sm:$0xff]
    %v1142 = vld [vmem:[%s8 + $0x428] sm:$0xff]
    %v1143 = vld [vmem:[%s8 + $0x430] sm:$0xff]
    %v1144 = vld [vmem:[%s8 + $0x438] sm:$0xff]
    %v1145 = vld [vmem:[%s8 + $0x440] sm:$0xff]
    %v1146 = vld [vmem:[%s8 + $0x448] sm:$0xff]
    %v1147 = vld [vmem:[%s8 + $0x450] sm:$0xff]
    %v1148 = vld [vmem:[%s8 + $0x458] sm:$0xff]
    %v1149 = vld [vmem:[%s8 + $0x460] sm:$0xff]
    %v1150 = vld [vmem:[%s8 + $0x468] sm:$0xff]
    %v1151 = vld [vmem:[%s8 + $0x470] sm:$0xff]
    %v1152 = vld [vmem:[%s8 + $0x478] sm:$0xff]
    %v1153 = vld [vmem:[%s8 + $0x480] sm:$0xff]
    %v1154 = vld [vmem:[%s8 + $0x488] sm:$0xff]
    %v1155 = vld [vmem:[%s8 + $0x490] sm:$0xff]
    %v1156 = vld [vmem:[%s8 + $0x498] sm:$0xff]
    %v1157 = vld [vmem:[%s8 + $0x4a0] sm:$0xff]
    %v1158 = vld [vmem:[%s8 + $0x4a8] sm:$0xff]
    %v1159 = vld [vmem:[%s8 + $0x4b0] sm:$0xff]
    %v1160 = vld [vmem:[%s8 + $0x4b8] sm:$0xff]
    %v1161 = vld [vmem:[%s8 + $0x4c0] sm:$0xff]
    %v1162 = vld [vmem:[%s8 + $0x4c8] sm:$0xff]
    %v1163 = vld [vmem:[%s8 + $0x4d0] sm:$0xff]
    %v1164 = vld [vmem:[%s8 + $0x4d8] sm:$0xff]
    %v1165 = vld [vmem:[%s8 + $0x4e0] sm:$0xff]
    %v1166 = vld [vmem:[%s8 + $0x4e8] sm:$0xff]
    %v1167 = vld [vmem:[%s8 + $0x4f0] sm:$0xff]
    %v1168 = vld [vmem:[%s8 + $0x4f8] sm:$0xff]
    %v1169 = vld [vmem:[%s8 + $0x500] sm:$0xff]
    %v1170 = vld [vmem:[%s8 + $0x508] sm:$0xff]
    %v1171 = vld [vmem:[%s8 + $0x510] sm:$0xff]
    %v1172 = vld [vmem:[%s8 + $0x518] sm:$0xff]
    %v1173 = vld [vmem:[%s8 + $0x520] sm:$0xff]
    %v1174 = vld [vmem:[%s8 + $0x528] sm:$0xff]
    %v1175 = vld [vmem:[%s8 + $0x530] sm:$0xff]
    %v1176 = vld [vmem:[%s8 + $0x538] sm:$0xff]
    %v1177 = vld [vmem:[%s8 + $0x540] sm:$0xff]
    %v1178 = vld [vmem:[%s8 + $0x548] sm:$0xff]
    %v1179 = vld [vmem:[%s8 + $0x550] sm:$0xff]
    %v1180 = vld [vmem:[%s8 + $0x558] sm:$0xff]
    %v1181 = vld [vmem:[%s8 + $0x560] sm:$0xff]
    %v1182 = vld [vmem:[%s8 + $0x568] sm:$0xff]
    %v1183 = vld [vmem:[%s8 + $0x570] sm:$0xff]
    %v1184 = vld [vmem:[%s8 + $0x578] sm:$0xff]
    %v1185 = vld [vmem:[%s8 + $0x580] sm:$0xff]
    %v1186 = vld [vmem:[%s8 + $0x588] sm:$0xff]
    %v1187 = vld [vmem:[%s8 + $0x590] sm:$0xff]
    %v1188 = vld [vmem:[%s8 + $0x598] sm:$0xff]
    %v1189 = vld [vmem:[%s8 + $0x5a0] sm:$0xff]
    %v1190 = vld [vmem:[%s8 + $0x5a8] sm:$0xff]
    %v1191 = vld [vmem:[%s8 + $0x5b0] sm:$0xff]
    %v1192 = vld [vmem:[%s8 + $0x5b8] sm:$0xff]
    %v1193 = vld [vmem:[%s8 + $0x5c0] sm:$0xff]
    %v1194 = vld [vmem:[%s8 + $0x5c8] sm:$0xff]
    %v1195 = vld [vmem:[%s8 + $0x5d0] sm:$0xff]
    %v1196 = vld [vmem:[%s8 + $0x5d8] sm:$0xff]
    %v1197 = vld [vmem:[%s8 + $0x5e0] sm:$0xff]
    %v1198 = vld [vmem:[%s8 + $0x5e8] sm:$0xff]
    %v1199 = vld [vmem:[%s8 + $0x5f0] sm:$0xff]
    %v1200 = vld [vmem:[%s8 + $0x5f8] sm:$0xff]
    %v1201 = vld [vmem:[%s8 + $0x600] sm:$0xff]
    %v1202 = vld [vmem:[%s8 + $0x608] sm:$0xff]
    %v1203 = vld [vmem:[%s8 + $0x610] sm:$0xff]
    %v1204 = vld [vmem:[%s8 + $0x618] sm:$0xff]
    %v1205 = vld [vmem:[%s8 + $0x620] sm:$0xff]
    %v1206 = vld [vmem:[%s8 + $0x628] sm:$0xff]
    %v1207 = vld [vmem:[%s8 + $0x630] sm:$0xff]
    %v1208 = vld [vmem:[%s8 + $0x638] sm:$0xff]
    %v1209 = vld [vmem:[%s8 + $0x640] sm:$0xff]
    %v1210 = vld [vmem:[%s8 + $0x648] sm:$0xff]
    %v1211 = vld [vmem:[%s8 + $0x650] sm:$0xff]
    %v1212 = vld [vmem:[%s8 + $0x658] sm:$0xff]
    %v1213 = vld [vmem:[%s8 + $0x660] sm:$0xff]
    %v1214 = vld [vmem:[%s8 + $0x668] sm:$0xff]
    %v1215 = vld [vmem:[%s8 + $0x670] sm:$0xff]
    %v1216 = vld [vmem:[%s8 + $0x678] sm:$0xff]
    %v1217 = vld [vmem:[%s8 + $0x680] sm:$0xff]
    %v1218 = vld [vmem:[%s8 + $0x688] sm:$0xff]
    %v1219 = vld [vmem:[%s8 + $0x690] sm:$0xff]
    %v1220 = vld [vmem:[%s8 + $0x698] sm:$0xff]
    %v1221 = vld [vmem:[%s8 + $0x6a0] sm:$0xff]
    %v1222 = vld [vmem:[%s8 + $0x6a8] sm:$0xff]
    %v1223 = vld [vmem:[%s8 + $0x6b0] sm:$0xff]
    %v1224 = vld [vmem:[%s8 + $0x6b8] sm:$0xff]
    %v1225 = vld [vmem:[%s8 + $0x6c0] sm:$0xff]
    %v1226 = vld [vmem:[%s8 + $0x6c8] sm:$0xff]
    %v1227 = vld [vmem:[%s8 + $0x6d0] sm:$0xff]
    %v1228 = vld [vmem:[%s8 + $0x6d8] sm:$0xff]
    %v1229 = vld [vmem:[%s8 + $0x6e0] sm:$0xff]
    %v1230 = vld [vmem:[%s8 + $0x6e8] sm:$0xff]
    %v1231 = vld [vmem:[%s8 + $0x6f0] sm:$0xff]
    %v1232 = vld [vmem:[%s8 + $0x6f8] sm:$0xff]
    %v1233 = vld [vmem:[%s8 + $0x700] sm:$0xff]
    %v1234 = vld [vmem:[%s8 + $0x708] sm:$0xff]
    %v1235 = vld [vmem:[%s8 + $0x710] sm:$0xff]
    %v1236 = vld [vmem:[%s8 + $0x718] sm:$0xff]
    %v1237 = vld [vmem:[%s8 + $0x720] sm:$0xff]
    %v1238 = vld [vmem:[%s8 + $0x728] sm:$0xff]
    %v1239 = vld [vmem:[%s8 + $0x730] sm:$0xff]
    %v1240 = vld [vmem:[%s8 + $0x738] sm:$0xff]
    %v1241 = vld [vmem:[%s8 + $0x740] sm:$0xff]
    %v1242 = vld [vmem:[%s8 + $0x748] sm:$0xff]
    %v1243 = vld [vmem:[%s8 + $0x750] sm:$0xff]
    %v1244 = vld [vmem:[%s8 + $0x758] sm:$0xff]
    %v1245 = vld [vmem:[%s8 + $0x760] sm:$0xff]
    %v1246 = vld [vmem:[%s8 + $0x768] sm:$0xff]
    %v1247 = vld [vmem:[%s8 + $0x770] sm:$0xff]
    %v1248 = vld [vmem:[%s8 + $0x778] sm:$0xff]
    %v1249 = vld [vmem:[%s8 + $0x780] sm:$0xff]
    %v1250 = vld [vmem:[%s8 + $0x788] sm:$0xff]
    %v1251 = vld [vmem:[%s8 + $0x790] sm:$0xff]
    %v1252 = vld [vmem:[%s8 + $0x798] sm:$0xff]
    %v1253 = vld [vmem:[%s8 + $0x7a0] sm:$0xff]
    %v1254 = vld [vmem:[%s8 + $0x7a8] sm:$0xff]
    %v1255 = vld [vmem:[%s8 + $0x7b0] sm:$0xff]
    %v1256 = vld [vmem:[%s8 + $0x7b8] sm:$0xff]
    %v1257 = vld [vmem:[%s8 + $0x7c0] sm:$0xff]
    %v1258 = vld [vmem:[%s8 + $0x7c8] sm:$0xff]
    %v1259 = vld [vmem:[%s8 + $0x7d0] sm:$0xff]
    %v1260 = vld [vmem:[%s8 + $0x7d8] sm:$0xff]
    %v1261 = vld [vmem:[%s8 + $0x7e0] sm:$0xff]
    %v1262 = vld [vmem:[%s8 + $0x7e8] sm:$0xff]
    %v1263 = vld [vmem:[%s8 + $0x7f0] sm:$0xff]
    %v1264 = vld [vmem:[%s8 + $0x7f8] sm:$0xff]
    %v1265 = vld [vmem:[%s8 + $0x800] sm:$0xff]
    %v1266 = vld [vmem:[%s8 + $0x808] sm:$0xff]
    %v1267 = vld [vmem:[%s8 + $0x810] sm:$0xff]
    %v1268 = vld [vmem:[%s8 + $0x818] sm:$0xff]
    %v1269 = vld [vmem:[%s8 + $0x820] sm:$0xff]
    %v1270 = vld [vmem:[%s8 + $0x828] sm:$0xff]
    %v1271 = vld [vmem:[%s8 + $0x830] sm:$0xff]
    %v1272 = vld [vmem:[%s8 + $0x838] sm:$0xff]
    %v1273 = vld [vmem:[%s8 + $0x840] sm:$0xff]
    %v1274 = vld [vmem:[%s8 + $0x848] sm:$0xff]
    %v1275 = vld [vmem:[%s8 + $0x850] sm:$0xff]
    %v1276 = vld [vmem:[%s8 + $0x858] sm:$0xff]
    %v1277 = vld [vmem:[%s8 + $0x860] sm:$0xff]
    %v1278 = vld [vmem:[%s8 + $0x868] sm:$0xff]
    %v1279 = vld [vmem:[%s8 + $0x870] sm:$0xff]
    %v1280 = vld [vmem:[%s8 + $0x878] sm:$0xff]
    %v1281 = vld [vmem:[%s8 + $0x880] sm:$0xff]
    %v1282 = vld [vmem:[%s8 + $0x888] sm:$0xff]
    %v1283 = vld [vmem:[%s8 + $0x890] sm:$0xff]
    %v1284 = vld [vmem:[%s8 + $0x898] sm:$0xff]
    %v1285 = vld [vmem:[%s8 + $0x8a0] sm:$0xff]
    %v1286 = vld [vmem:[%s8 + $0x8a8] sm:$0xff]
    %v1287 = vld [vmem:[%s8 + $0x8b0] sm:$0xff]
    %v1288 = vld [vmem:[%s8 + $0x8b8] sm:$0xff]
    %v1289 = vld [vmem:[%s8 + $0x8c0] sm:$0xff]
    %v1290 = vld [vmem:[%s8 + $0x8c8] sm:$0xff]
    %v1291 = vld [vmem:[%s8 + $0x8d0] sm:$0xff]
    %v1292 = vld [vmem:[%s8 + $0x8d8] sm:$0xff]
    %v1293 = vld [vmem:[%s8 + $0x8e0] sm:$0xff]
    %v1294 = vld [vmem:[%s8 + $0x8e8] sm:$0xff]
    %v1295 = vld [vmem:[%s8 + $0x8f0] sm:$0xff]
    %v1296 = vld [vmem:[%s8 + $0x8f8] sm:$0xff]
    %v1297 = vld [vmem:[%s8 + $0x900] sm:$0xff]
    %v1298 = vld [vmem:[%s8 + $0x908] sm:$0xff]
    %v1299 = vld [vmem:[%s8 + $0x910] sm:$0xff]
    %v1300 = vld [vmem:[%s8 + $0x918] sm:$0xff]
    %v1301 = vld [vmem:[%s8 + $0x920] sm:$0xff]
    %v1302 = vld [vmem:[%s8 + $0x928] sm:$0xff]
    %v1303 = vld [vmem:[%s8 + $0x930] sm:$0xff]
    %v1304 = vld [vmem:[%s8 + $0x938] sm:$0xff]
    %v1305 = vld [vmem:[%s8 + $0x940] sm:$0xff]
    %v1306 = vld [vmem:[%s8 + $0x948] sm:$0xff]
    %v1307 = vld [vmem:[%s8 + $0x950] sm:$0xff]
    %v1308 = vld [vmem:[%s8 + $0x958] sm:$0xff]
    %v1309 = vld [vmem:[%s8 + $0x960] sm:$0xff]
    %v1310 = vld [vmem:[%s8 + $0x968] sm:$0xff]
    %v1311 = vld [vmem:[%s8 + $0x970] sm:$0xff]
    %v1312 = vld [vmem:[%s8 + $0x978] sm:$0xff]
    %v1313 = vld [vmem:[%s8 + $0x980] sm:$0xff]
    %v1314 = vld [vmem:[%s8 + $0x988] sm:$0xff]
    %v1315 = vld [vmem:[%s8 + $0x990] sm:$0xff]
    %v1316 = vld [vmem:[%s8 + $0x998] sm:$0xff]
    %v1317 = vld [vmem:[%s8 + $0x9a0] sm:$0xff]
    %v1318 = vld [vmem:[%s8 + $0x9a8] sm:$0xff]
    %v1319 = vld [vmem:[%s8 + $0x9b0] sm:$0xff]
    %v1320 = vld [vmem:[%s8 + $0x9b8] sm:$0xff]
    %v1321 = vld [vmem:[%s8 + $0x9c0] sm:$0xff]
    %v1322 = vld [vmem:[%s8 + $0x9c8] sm:$0xff]
    %v1323 = vld [vmem:[%s8 + $0x9d0] sm:$0xff]
    %v1324 = vld [vmem:[%s8 + $0x9d8] sm:$0xff]
    %v1325 = vld [vmem:[%s8 + $0x9e0] sm:$0xff]
    %v1326 = vld [vmem:[%s8 + $0x9e8] sm:$0xff]
    %v1327 = vld [vmem:[%s8 + $0x9f0] sm:$0xff]
    %v1328 = vld [vmem:[%s8 + $0x9f8] sm:$0xff]
    %v1329 = vld [vmem:[%s8 + $0xa00] sm:$0xff]
    %v1330 = vld [vmem:[%s8 + $0xa08] sm:$0xff]
    %v1331 = vld [vmem:[%s8 + $0xa10] sm:$0xff]
    %v1332 = vld [vmem:[%s8 + $0xa18] sm:$0xff]
    %v1333 = vld [vmem:[%s8 + $0xa20] sm:$0xff]
    %v1334 = vld [vmem:[%s8 + $0xa28] sm:$0xff]
    %v1335 = vld [vmem:[%s8 + $0xa30] sm:$0xff]
    %v1336 = vld [vmem:[%s8 + $0xa38] sm:$0xff]
    %v1337 = vld [vmem:[%s8 + $0xa40] sm:$0xff]
    %v1338 = vld [vmem:[%s8 + $0xa48] sm:$0xff]
    %v1339 = vld [vmem:[%s8 + $0xa50] sm:$0xff]
    %v1340 = vld [vmem:[%s8 + $0xa58] sm:$0xff]
    %v1341 = vld [vmem:[%s8 + $0xa60] sm:$0xff]
    %v1342 = vld [vmem:[%s8 + $0xa68] sm:$0xff]
    %v1343 = vld [vmem:[%s8 + $0xa70] sm:$0xff]
    %v1344 = vld [vmem:[%s8 + $0xa78] sm:$0xff]
    %v1345 = vld [vmem:[%s8 + $0xa80] sm:$0xff]
    %v1346 = vld [vmem:[%s8 + $0xa88] sm:$0xff]
    %v1347 = vld [vmem:[%s8 + $0xa90] sm:$0xff]
    %v1348 = vld [vmem:[%s8 + $0xa98] sm:$0xff]
    %v1349 = vld [vmem:[%s8 + $0xaa0] sm:$0xff]
    %v1350 = vld [vmem:[%s8 + $0xaa8] sm:$0xff]
    %v1351 = vld [vmem:[%s8 + $0xab0] sm:$0xff]
    %v1352 = vld [vmem:[%s8 + $0xab8] sm:$0xff]
    %v1353 = vld [vmem:[%s8 + $0xac0] sm:$0xff]
    %v1354 = vld [vmem:[%s8 + $0xac8] sm:$0xff]
    %v1355 = vld [vmem:[%s8 + $0xad0] sm:$0xff]
    %v1356 = vld [vmem:[%s8 + $0xad8] sm:$0xff]
    %v1357 = vld [vmem:[%s8 + $0xae0] sm:$0xff]
    %v1358 = vld [vmem:[%s8 + $0xae8] sm:$0xff]
    %v1359 = vld [vmem:[%s8 + $0xaf0] sm:$0xff]
    %v1360 = vld [vmem:[%s8 + $0xaf8] sm:$0xff]
    %v1361 = vld [vmem:[%s8 + $0xb00] sm:$0xff]
    %v1362 = vld [vmem:[%s8 + $0xb08] sm:$0xff]
    %v1363 = vld [vmem:[%s8 + $0xb10] sm:$0xff]
    %v1364 = vld [vmem:[%s8 + $0xb18] sm:$0xff]
    %v1365 = vld [vmem:[%s8 + $0xb20] sm:$0xff]
    %v1366 = vld [vmem:[%s8 + $0xb28] sm:$0xff]
    %v1367 = vld [vmem:[%s8 + $0xb30] sm:$0xff]
    %v1368 = vld [vmem:[%s8 + $0xb38] sm:$0xff]
    %v1369 = vld [vmem:[%s8 + $0xb40] sm:$0xff]
    %v1370 = vld [vmem:[%s8 + $0xb48] sm:$0xff]
    %v1371 = vld [vmem:[%s8 + $0xb50] sm:$0xff]
    %v1372 = vld [vmem:[%s8 + $0xb58] sm:$0xff]
    %v1373 = vld [vmem:[%s8 + $0xb60] sm:$0xff]
    %v1374 = vld [vmem:[%s8 + $0xb68] sm:$0xff]
    %v1375 = vld [vmem:[%s8 + $0xb70] sm:$0xff]
    %v1376 = vld [vmem:[%s8 + $0xb78] sm:$0xff]
    %v1377 = vld [vmem:[%s8 + $0xb80] sm:$0xff]
    %v1378 = vld [vmem:[%s8 + $0xb88] sm:$0xff]
    %v1379 = vld [vmem:[%s8 + $0xb90] sm:$0xff]
    %v1380 = vld [vmem:[%s8 + $0xb98] sm:$0xff]
    %v1381 = vld [vmem:[%s8 + $0xba0] sm:$0xff]
    %v1382 = vld [vmem:[%s8 + $0xba8] sm:$0xff]
    %v1383 = vld [vmem:[%s8 + $0xbb0] sm:$0xff]
    %v1384 = vld [vmem:[%s8 + $0xbb8] sm:$0xff]
    %v1385 = vld [vmem:[%s8 + $0xbc0] sm:$0xff]
    %v1386 = vld [vmem:[%s8 + $0xbc8] sm:$0xff]
    %v1387 = vld [vmem:[%s8 + $0xbd0] sm:$0xff]
    %v1388 = vld [vmem:[%s8 + $0xbd8] sm:$0xff]
    %v1389 = vld [vmem:[%s8 + $0xbe0] sm:$0xff]
    %v1390 = vld [vmem:[%s8 + $0xbe8] sm:$0xff]
    %v1391 = vld [vmem:[%s8 + $0xbf0] sm:$0xff]
    %v1392 = vld [vmem:[%s8 + $0xbf8] sm:$0xff]
    %v1393 = vld [vmem:[%s8 + $0xc00] sm:$0xff]
    %v1394 = vld [vmem:[%s8 + $0xc08] sm:$0xff]
    %v1395 = vld [vmem:[%s8 + $0xc10] sm:$0xff]
    %v1396 = vld [vmem:[%s8 + $0xc18] sm:$0xff]
    %v1397 = vld [vmem:[%s8 + $0xc20] sm:$0xff]
    %v1398 = vld [vmem:[%s8 + $0xc28] sm:$0xff]
    %v1399 = vld [vmem:[%s8 + $0xc30] sm:$0xff]
    %v1400 = vld [vmem:[%s8 + $0xc38] sm:$0xff]
    %v1401 = vld [vmem:[%s8 + $0xc40] sm:$0xff]
    %v1402 = vld [vmem:[%s8 + $0xc48] sm:$0xff]
    %v1403 = vld [vmem:[%s8 + $0xc50] sm:$0xff]
    %v1404 = vld [vmem:[%s8 + $0xc58] sm:$0xff]
    %v1405 = vld [vmem:[%s8 + $0xc60] sm:$0xff]
    %v1406 = vld [vmem:[%s8 + $0xc68] sm:$0xff]
    %v1407 = vld [vmem:[%s8 + $0xc70] sm:$0xff]
    %v1408 = vld [vmem:[%s8 + $0xc78] sm:$0xff]
    %v1409 = vld [vmem:[%s8 + $0xc80] sm:$0xff]
    %v1410 = vld [vmem:[%s8 + $0xc88] sm:$0xff]
    %v1411 = vld [vmem:[%s8 + $0xc90] sm:$0xff]
    %v1412 = vld [vmem:[%s8 + $0xc98] sm:$0xff]
    %v1413 = vld [vmem:[%s8 + $0xca0] sm:$0xff]
    %v1414 = vld [vmem:[%s8 + $0xca8] sm:$0xff]
    %v1415 = vld [vmem:[%s8 + $0xcb0] sm:$0xff]
    %v1416 = vld [vmem:[%s8 + $0xcb8] sm:$0xff]
    %v1417 = vld [vmem:[%s8 + $0xcc0] sm:$0xff]
    %v1418 = vld [vmem:[%s8 + $0xcc8] sm:$0xff]
    %v1419 = vld [vmem:[%s8 + $0xcd0] sm:$0xff]
    %v1420 = vld [vmem:[%s8 + $0xcd8] sm:$0xff]
    %v1421 = vld [vmem:[%s8 + $0xce0] sm:$0xff]
    %v1422 = vld [vmem:[%s8 + $0xce8] sm:$0xff]
    %v1423 = vld [vmem:[%s8 + $0xcf0] sm:$0xff]
    %v1424 = vld [vmem:[%s8 + $0xcf8] sm:$0xff]
    %v1425 = vld [vmem:[%s8 + $0xd00] sm:$0xff]
    %v1426 = vld [vmem:[%s8 + $0xd08] sm:$0xff]
    %v1427 = vld [vmem:[%s8 + $0xd10] sm:$0xff]
    %v1428 = vld [vmem:[%s8 + $0xd18] sm:$0xff]
    %v1429 = vld [vmem:[%s8 + $0xd20] sm:$0xff]
    %v1430 = vld [vmem:[%s8 + $0xd28] sm:$0xff]
    %v1431 = vld [vmem:[%s8 + $0xd30] sm:$0xff]
    %v1432 = vld [vmem:[%s8 + $0xd38] sm:$0xff]
    %v1433 = vld [vmem:[%s8 + $0xd40] sm:$0xff]
    %v1434 = vld [vmem:[%s8 + $0xd48] sm:$0xff]
    %v1435 = vld [vmem:[%s8 + $0xd50] sm:$0xff]
    %v1436 = vld [vmem:[%s8 + $0xd58] sm:$0xff]
    %v1437 = vld [vmem:[%s8 + $0xd60] sm:$0xff]
    %v1438 = vld [vmem:[%s8 + $0xd68] sm:$0xff]
    %v1439 = vld [vmem:[%s8 + $0xd70] sm:$0xff]
    %v1440 = vld [vmem:[%s8 + $0xd78] sm:$0xff]
    %v1441 = vld [vmem:[%s8 + $0xd80] sm:$0xff]
    %v1442 = vld [vmem:[%s8 + $0xd88] sm:$0xff]
    %v1443 = vld [vmem:[%s8 + $0xd90] sm:$0xff]
    %v1444 = vld [vmem:[%s8 + $0xd98] sm:$0xff]
    %v1445 = vld [vmem:[%s8 + $0xda0] sm:$0xff]
    %v1446 = vld [vmem:[%s8 + $0xda8] sm:$0xff]
    %v1447 = vld [vmem:[%s8 + $0xdb0] sm:$0xff]
    %v1448 = vld [vmem:[%s8 + $0xdb8] sm:$0xff]
    %v1449 = vld [vmem:[%s8 + $0xdc0] sm:$0xff]
    %v1450 = vld [vmem:[%s8 + $0xdc8] sm:$0xff]
    %v1451 = vld [vmem:[%s8 + $0xdd0] sm:$0xff]
    %v1452 = vld [vmem:[%s8 + $0xdd8] sm:$0xff]
    %v1453 = vld [vmem:[%s8 + $0xde0] sm:$0xff]
    %v1454 = vld [vmem:[%s8 + $0xde8] sm:$0xff]
    %v1455 = vld [vmem:[%s8 + $0xdf0] sm:$0xff]
    %v1456 = vld [vmem:[%s8 + $0xdf8] sm:$0xff]
    %v1457 = vld [vmem:[%s8 + $0xe00] sm:$0xff]
    %v1458 = vld [vmem:[%s8 + $0xe08] sm:$0xff]
    %v1459 = vld [vmem:[%s8 + $0xe10] sm:$0xff]
    %v1460 = vld [vmem:[%s8 + $0xe18] sm:$0xff]
    %v1461 = vld [vmem:[%s8 + $0xe20] sm:$0xff]
    %v1462 = vld [vmem:[%s8 + $0xe28] sm:$0xff]
    %v1463 = vld [vmem:[%s8 + $0xe30] sm:$0xff]
    %v1464 = vld [vmem:[%s8 + $0xe38] sm:$0xff]
    %v1465 = vld [vmem:[%s8 + $0xe40] sm:$0xff]
    %v1466 = vld [vmem:[%s8 + $0xe48] sm:$0xff]
    %v1467 = vld [vmem:[%s8 + $0xe50] sm:$0xff]
    %v1468 = vld [vmem:[%s8 + $0xe58] sm:$0xff]
    %v1469 = vld [vmem:[%s8 + $0xe60] sm:$0xff]
    %v1470 = vld [vmem:[%s8 + $0xe68] sm:$0xff]
    %v1471 = vld [vmem:[%s8 + $0xe70] sm:$0xff]
    %v1472 = vld [vmem:[%s8 + $0xe78] sm:$0xff]
    %v1473 = vld [vmem:[%s8 + $0xe80] sm:$0xff]
    %v1474 = vld [vmem:[%s8 + $0xe88] sm:$0xff]
    %v1475 = vld [vmem:[%s8 + $0xe90] sm:$0xff]
    %v1476 = vld [vmem:[%s8 + $0xe98] sm:$0xff]
    %v1477 = vld [vmem:[%s8 + $0xea0] sm:$0xff]
    %v1478 = vld [vmem:[%s8 + $0xea8] sm:$0xff]
    %v1479 = vld [vmem:[%s8 + $0xeb0] sm:$0xff]
    %v1480 = vld [vmem:[%s8 + $0xeb8] sm:$0xff]
    %v1481 = vld [vmem:[%s8 + $0xec0] sm:$0xff]
    %v1482 = vld [vmem:[%s8 + $0xec8] sm:$0xff]
    %v1483 = vld [vmem:[%s8 + $0xed0] sm:$0xff]
    %v1484 = vld [vmem:[%s8 + $0xed8] sm:$0xff]
    %v1485 = vld [vmem:[%s8 + $0xee0] sm:$0xff]
    %v1486 = vld [vmem:[%s8 + $0xee8] sm:$0xff]
    %v1487 = vld [vmem:[%s8 + $0xef0] sm:$0xff]
    %v1488 = vld [vmem:[%s8 + $0xef8] sm:$0xff]
    %v1489 = vld [vmem:[%s8 + $0xf00] sm:$0xff]
    %v1490 = vld [vmem:[%s8 + $0xf08] sm:$0xff]
    %v1491 = vld [vmem:[%s8 + $0xf10] sm:$0xff]
    %v1492 = vld [vmem:[%s8 + $0xf18] sm:$0xff]
    %v1493 = vld [vmem:[%s8 + $0xf20] sm:$0xff]
    %v1494 = vld [vmem:[%s8 + $0xf28] sm:$0xff]
    %v1495 = vld [vmem:[%s8 + $0xf30] sm:$0xff]
    %v1496 = vld [vmem:[%s8 + $0xf38] sm:$0xff]
    %v1497 = vld [vmem:[%s8 + $0xf40] sm:$0xff]
    %v1498 = vld [vmem:[%s8 + $0xf48] sm:$0xff]
    %v1499 = vld [vmem:[%s8 + $0xf50] sm:$0xff]
    %v1500 = vld [vmem:[%s8 + $0xf58] sm:$0xff]
    %v1501 = vld [vmem:[%s8 + $0xf60] sm:$0xff]
    %v1502 = vld [vmem:[%s8 + $0xf68] sm:$0xff]
    %v1503 = vld [vmem:[%s8 + $0xf70] sm:$0xff]
    %v1504 = vld [vmem:[%s8 + $0xf78] sm:$0xff]
    %v1505 = vld [vmem:[%s8 + $0xf80] sm:$0xff]
    %v1506 = vld [vmem:[%s8 + $0xf88] sm:$0xff]
    %v1507 = vld [vmem:[%s8 + $0xf90] sm:$0xff]
    %v1508 = vld [vmem:[%s8 + $0xf98] sm:$0xff]
    %v1509 = vld [vmem:[%s8 + $0xfa0] sm:$0xff]
    %v1510 = vld [vmem:[%s8 + $0xfa8] sm:$0xff]
    %v1511 = vld [vmem:[%s8 + $0xfb0] sm:$0xff]
    %v1512 = vld [vmem:[%s8 + $0xfb8] sm:$0xff]
    %v1513 = vld [vmem:[%s8 + $0xfc0] sm:$0xff]
    %v1514 = vld [vmem:[%s8 + $0xfc8] sm:$0xff]
    %v1515 = vld [vmem:[%s8 + $0xfd0] sm:$0xff]
    %v1516 = vld [vmem:[%s8 + $0xfd8] sm:$0xff]
    %v1517 = vld [vmem:[%s8 + $0xfe0] sm:$0xff]
    %v1518 = vld [vmem:[%s8 + $0xfe8] sm:$0xff]
    %v1519 = vld [vmem:[%s8 + $0xff0] sm:$0xff]
    %v1520 = vld [vmem:[%s8 + $0xff8] sm:$0xff]
    %1522 = vset.pattern.permute.xlu0 0
    %1523 = vperm.xlu0 %1522, %v1009
    %v1524 = vpop.permute.xlu0 %1523
    %1527 = vset.pattern.permute.xlu0 0
    %1528 = vperm.xlu0 %1527, %v1010
    %v1529 = vpop.permute.xlu0 %1528
    %1532 = vset.pattern.permute.xlu0 0
    %1533 = vperm.xlu0 %1532, %v1011
    %v1534 = vpop.permute.xlu0 %1533
    %1537 = vset.pattern.permute.xlu0 0
    %1538 = vperm.xlu0 %1537, %v1012
    %v1539 = vpop.permute.xlu0 %1538
    %1542 = vset.pattern.permute.xlu0 0
    %1543 = vperm.xlu0 %1542, %v1013
    %v1544 = vpop.permute.xlu0 %1543
    %1547 = vset.pattern.permute.xlu0 0
    %1548 = vperm.xlu0 %1547, %v1014
    %v1549 = vpop.permute.xlu0 %1548
    %1552 = vset.pattern.permute.xlu0 0
    %1553 = vperm.xlu0 %1552, %v1015
    %v1554 = vpop.permute.xlu0 %1553
    %1557 = vset.pattern.permute.xlu0 0
    %1558 = vperm.xlu0 %1557, %v1016
    %v1559 = vpop.permute.xlu0 %1558
    %1562 = vset.pattern.permute.xlu0 0
    %1563 = vperm.xlu0 %1562, %v1017
    %v1564 = vpop.permute.xlu0 %1563
    %1567 = vset.pattern.permute.xlu0 0
    %1568 = vperm.xlu0 %1567, %v1018
    %v1569 = vpop.permute.xlu0 %1568
    %1572 = vset.pattern.permute.xlu0 0
    %1573 = vperm.xlu0 %1572, %v1019
    %v1574 = vpop.permute.xlu0 %1573
    %1577 = vset.pattern.permute.xlu0 0
    %1578 = vperm.xlu0 %1577, %v1020
    %v1579 = vpop.permute.xlu0 %1578
    %1582 = vset.pattern.permute.xlu0 0
    %1583 = vperm.xlu0 %1582, %v1021
    %v1584 = vpop.permute.xlu0 %1583
    %1587 = vset.pattern.permute.xlu0 0
    %1588 = vperm.xlu0 %1587, %v1022
    %v1589 = vpop.permute.xlu0 %1588
    %1592 = vset.pattern.permute.xlu0 0
    %1593 = vperm.xlu0 %1592, %v1023
    %v1594 = vpop.permute.xlu0 %1593
    %1597 = vset.pattern.permute.xlu0 0
    %1598 = vperm.xlu0 %1597, %v1024
    %v1599 = vpop.permute.xlu0 %1598
    %1602 = vset.pattern.permute.xlu0 0
    %1603 = vperm.xlu0 %1602, %v1025
    %v1604 = vpop.permute.xlu0 %1603
    %1607 = vset.pattern.permute.xlu0 0
    %1608 = vperm.xlu0 %1607, %v1026
    %v1609 = vpop.permute.xlu0 %1608
    %1612 = vset.pattern.permute.xlu0 0
    %1613 = vperm.xlu0 %1612, %v1027
    %v1614 = vpop.permute.xlu0 %1613
    %1617 = vset.pattern.permute.xlu0 0
    %1618 = vperm.xlu0 %1617, %v1028
    %v1619 = vpop.permute.xlu0 %1618
    %1622 = vset.pattern.permute.xlu0 0
    %1623 = vperm.xlu0 %1622, %v1029
    %v1624 = vpop.permute.xlu0 %1623
    %1627 = vset.pattern.permute.xlu0 0
    %1628 = vperm.xlu0 %1627, %v1030
    %v1629 = vpop.permute.xlu0 %1628
    %1632 = vset.pattern.permute.xlu0 0
    %1633 = vperm.xlu0 %1632, %v1031
    %v1634 = vpop.permute.xlu0 %1633
    %1637 = vset.pattern.permute.xlu0 0
    %1638 = vperm.xlu0 %1637, %v1032
    %v1639 = vpop.permute.xlu0 %1638
    %1642 = vset.pattern.permute.xlu0 0
    %1643 = vperm.xlu0 %1642, %v1033
    %v1644 = vpop.permute.xlu0 %1643
    %1647 = vset.pattern.permute.xlu0 0
    %1648 = vperm.xlu0 %1647, %v1034
    %v1649 = vpop.permute.xlu0 %1648
    %1652 = vset.pattern.permute.xlu0 0
    %1653 = vperm.xlu0 %1652, %v1035
    %v1654 = vpop.permute.xlu0 %1653
    %1657 = vset.pattern.permute.xlu0 0
    %1658 = vperm.xlu0 %1657, %v1036
    %v1659 = vpop.permute.xlu0 %1658
    %1662 = vset.pattern.permute.xlu0 0
    %1663 = vperm.xlu0 %1662, %v1037
    %v1664 = vpop.permute.xlu0 %1663
    %1667 = vset.pattern.permute.xlu0 0
    %1668 = vperm.xlu0 %1667, %v1038
    %v1669 = vpop.permute.xlu0 %1668
    %1672 = vset.pattern.permute.xlu0 0
    %1673 = vperm.xlu0 %1672, %v1039
    %v1674 = vpop.permute.xlu0 %1673
    %1677 = vset.pattern.permute.xlu0 0
    %1678 = vperm.xlu0 %1677, %v1040
    %v1679 = vpop.permute.xlu0 %1678
    %1682 = vset.pattern.permute.xlu0 0
    %1683 = vperm.xlu0 %1682, %v1041
    %v1684 = vpop.permute.xlu0 %1683
    %1687 = vset.pattern.permute.xlu0 0
    %1688 = vperm.xlu0 %1687, %v1042
    %v1689 = vpop.permute.xlu0 %1688
    %1692 = vset.pattern.permute.xlu0 0
    %1693 = vperm.xlu0 %1692, %v1043
    %v1694 = vpop.permute.xlu0 %1693
    %1697 = vset.pattern.permute.xlu0 0
    %1698 = vperm.xlu0 %1697, %v1044
    %v1699 = vpop.permute.xlu0 %1698
    %1702 = vset.pattern.permute.xlu0 0
    %1703 = vperm.xlu0 %1702, %v1045
    %v1704 = vpop.permute.xlu0 %1703
    %1707 = vset.pattern.permute.xlu0 0
    %1708 = vperm.xlu0 %1707, %v1046
    %v1709 = vpop.permute.xlu0 %1708
    %1712 = vset.pattern.permute.xlu0 0
    %1713 = vperm.xlu0 %1712, %v1047
    %v1714 = vpop.permute.xlu0 %1713
    %1717 = vset.pattern.permute.xlu0 0
    %1718 = vperm.xlu0 %1717, %v1048
    %v1719 = vpop.permute.xlu0 %1718
    %1722 = vset.pattern.permute.xlu0 0
    %1723 = vperm.xlu0 %1722, %v1049
    %v1724 = vpop.permute.xlu0 %1723
    %1727 = vset.pattern.permute.xlu0 0
    %1728 = vperm.xlu0 %1727, %v1050
    %v1729 = vpop.permute.xlu0 %1728
    %1732 = vset.pattern.permute.xlu0 0
    %1733 = vperm.xlu0 %1732, %v1051
    %v1734 = vpop.permute.xlu0 %1733
    %1737 = vset.pattern.permute.xlu0 0
    %1738 = vperm.xlu0 %1737, %v1052
    %v1739 = vpop.permute.xlu0 %1738
    %1742 = vset.pattern.permute.xlu0 0
    %1743 = vperm.xlu0 %1742, %v1053
    %v1744 = vpop.permute.xlu0 %1743
    %1747 = vset.pattern.permute.xlu0 0
    %1748 = vperm.xlu0 %1747, %v1054
    %v1749 = vpop.permute.xlu0 %1748
    %1752 = vset.pattern.permute.xlu0 0
    %1753 = vperm.xlu0 %1752, %v1055
    %v1754 = vpop.permute.xlu0 %1753
    %1757 = vset.pattern.permute.xlu0 0
    %1758 = vperm.xlu0 %1757, %v1056
    %v1759 = vpop.permute.xlu0 %1758
    %1762 = vset.pattern.permute.xlu0 0
    %1763 = vperm.xlu0 %1762, %v1057
    %v1764 = vpop.permute.xlu0 %1763
    %1767 = vset.pattern.permute.xlu0 0
    %1768 = vperm.xlu0 %1767, %v1058
    %v1769 = vpop.permute.xlu0 %1768
    %1772 = vset.pattern.permute.xlu0 0
    %1773 = vperm.xlu0 %1772, %v1059
    %v1774 = vpop.permute.xlu0 %1773
    %1777 = vset.pattern.permute.xlu0 0
    %1778 = vperm.xlu0 %1777, %v1060
    %v1779 = vpop.permute.xlu0 %1778
    %1782 = vset.pattern.permute.xlu0 0
    %1783 = vperm.xlu0 %1782, %v1061
    %v1784 = vpop.permute.xlu0 %1783
    %1787 = vset.pattern.permute.xlu0 0
    %1788 = vperm.xlu0 %1787, %v1062
    %v1789 = vpop.permute.xlu0 %1788
    %1792 = vset.pattern.permute.xlu0 0
    %1793 = vperm.xlu0 %1792, %v1063
    %v1794 = vpop.permute.xlu0 %1793
    %1797 = vset.pattern.permute.xlu0 0
    %1798 = vperm.xlu0 %1797, %v1064
    %v1799 = vpop.permute.xlu0 %1798
    %1802 = vset.pattern.permute.xlu0 0
    %1803 = vperm.xlu0 %1802, %v1065
    %v1804 = vpop.permute.xlu0 %1803
    %1807 = vset.pattern.permute.xlu0 0
    %1808 = vperm.xlu0 %1807, %v1066
    %v1809 = vpop.permute.xlu0 %1808
    %1812 = vset.pattern.permute.xlu0 0
    %1813 = vperm.xlu0 %1812, %v1067
    %v1814 = vpop.permute.xlu0 %1813
    %1817 = vset.pattern.permute.xlu0 0
    %1818 = vperm.xlu0 %1817, %v1068
    %v1819 = vpop.permute.xlu0 %1818
    %1822 = vset.pattern.permute.xlu0 0
    %1823 = vperm.xlu0 %1822, %v1069
    %v1824 = vpop.permute.xlu0 %1823
    %1827 = vset.pattern.permute.xlu0 0
    %1828 = vperm.xlu0 %1827, %v1070
    %v1829 = vpop.permute.xlu0 %1828
    %1832 = vset.pattern.permute.xlu0 0
    %1833 = vperm.xlu0 %1832, %v1071
    %v1834 = vpop.permute.xlu0 %1833
    %1837 = vset.pattern.permute.xlu0 0
    %1838 = vperm.xlu0 %1837, %v1072
    %v1839 = vpop.permute.xlu0 %1838
    %1842 = vset.pattern.permute.xlu0 0
    %1843 = vperm.xlu0 %1842, %v1073
    %v1844 = vpop.permute.xlu0 %1843
    %1847 = vset.pattern.permute.xlu0 0
    %1848 = vperm.xlu0 %1847, %v1074
    %v1849 = vpop.permute.xlu0 %1848
    %1852 = vset.pattern.permute.xlu0 0
    %1853 = vperm.xlu0 %1852, %v1075
    %v1854 = vpop.permute.xlu0 %1853
    %1857 = vset.pattern.permute.xlu0 0
    %1858 = vperm.xlu0 %1857, %v1076
    %v1859 = vpop.permute.xlu0 %1858
    %1862 = vset.pattern.permute.xlu0 0
    %1863 = vperm.xlu0 %1862, %v1077
    %v1864 = vpop.permute.xlu0 %1863
    %1867 = vset.pattern.permute.xlu0 0
    %1868 = vperm.xlu0 %1867, %v1078
    %v1869 = vpop.permute.xlu0 %1868
    %1872 = vset.pattern.permute.xlu0 0
    %1873 = vperm.xlu0 %1872, %v1079
    %v1874 = vpop.permute.xlu0 %1873
    %1877 = vset.pattern.permute.xlu0 0
    %1878 = vperm.xlu0 %1877, %v1080
    %v1879 = vpop.permute.xlu0 %1878
    %1882 = vset.pattern.permute.xlu0 0
    %1883 = vperm.xlu0 %1882, %v1081
    %v1884 = vpop.permute.xlu0 %1883
    %1887 = vset.pattern.permute.xlu0 0
    %1888 = vperm.xlu0 %1887, %v1082
    %v1889 = vpop.permute.xlu0 %1888
    %1892 = vset.pattern.permute.xlu0 0
    %1893 = vperm.xlu0 %1892, %v1083
    %v1894 = vpop.permute.xlu0 %1893
    %1897 = vset.pattern.permute.xlu0 0
    %1898 = vperm.xlu0 %1897, %v1084
    %v1899 = vpop.permute.xlu0 %1898
    %1902 = vset.pattern.permute.xlu0 0
    %1903 = vperm.xlu0 %1902, %v1085
    %v1904 = vpop.permute.xlu0 %1903
    %1907 = vset.pattern.permute.xlu0 0
    %1908 = vperm.xlu0 %1907, %v1086
    %v1909 = vpop.permute.xlu0 %1908
    %1912 = vset.pattern.permute.xlu0 0
    %1913 = vperm.xlu0 %1912, %v1087
    %v1914 = vpop.permute.xlu0 %1913
    %1917 = vset.pattern.permute.xlu0 0
    %1918 = vperm.xlu0 %1917, %v1088
    %v1919 = vpop.permute.xlu0 %1918
    %1922 = vset.pattern.permute.xlu0 0
    %1923 = vperm.xlu0 %1922, %v1089
    %v1924 = vpop.permute.xlu0 %1923
    %1927 = vset.pattern.permute.xlu0 0
    %1928 = vperm.xlu0 %1927, %v1090
    %v1929 = vpop.permute.xlu0 %1928
    %1932 = vset.pattern.permute.xlu0 0
    %1933 = vperm.xlu0 %1932, %v1091
    %v1934 = vpop.permute.xlu0 %1933
    %1937 = vset.pattern.permute.xlu0 0
    %1938 = vperm.xlu0 %1937, %v1092
    %v1939 = vpop.permute.xlu0 %1938
    %1942 = vset.pattern.permute.xlu0 0
    %1943 = vperm.xlu0 %1942, %v1093
    %v1944 = vpop.permute.xlu0 %1943
    %1947 = vset.pattern.permute.xlu0 0
    %1948 = vperm.xlu0 %1947, %v1094
    %v1949 = vpop.permute.xlu0 %1948
    %1952 = vset.pattern.permute.xlu0 0
    %1953 = vperm.xlu0 %1952, %v1095
    %v1954 = vpop.permute.xlu0 %1953
    %1957 = vset.pattern.permute.xlu0 0
    %1958 = vperm.xlu0 %1957, %v1096
    %v1959 = vpop.permute.xlu0 %1958
    %1962 = vset.pattern.permute.xlu0 0
    %1963 = vperm.xlu0 %1962, %v1097
    %v1964 = vpop.permute.xlu0 %1963
    %1967 = vset.pattern.permute.xlu0 0
    %1968 = vperm.xlu0 %1967, %v1098
    %v1969 = vpop.permute.xlu0 %1968
    %1972 = vset.pattern.permute.xlu0 0
    %1973 = vperm.xlu0 %1972, %v1099
    %v1974 = vpop.permute.xlu0 %1973
    %1977 = vset.pattern.permute.xlu0 0
    %1978 = vperm.xlu0 %1977, %v1100
    %v1979 = vpop.permute.xlu0 %1978
    %1982 = vset.pattern.permute.xlu0 0
    %1983 = vperm.xlu0 %1982, %v1101
    %v1984 = vpop.permute.xlu0 %1983
    %1987 = vset.pattern.permute.xlu0 0
    %1988 = vperm.xlu0 %1987, %v1102
    %v1989 = vpop.permute.xlu0 %1988
    %1992 = vset.pattern.permute.xlu0 0
    %1993 = vperm.xlu0 %1992, %v1103
    %v1994 = vpop.permute.xlu0 %1993
    %1997 = vset.pattern.permute.xlu0 0
    %1998 = vperm.xlu0 %1997, %v1104
    %v1999 = vpop.permute.xlu0 %1998
    %2002 = vset.pattern.permute.xlu0 0
    %2003 = vperm.xlu0 %2002, %v1105
    %v2004 = vpop.permute.xlu0 %2003
    %2007 = vset.pattern.permute.xlu0 0
    %2008 = vperm.xlu0 %2007, %v1106
    %v2009 = vpop.permute.xlu0 %2008
    %2012 = vset.pattern.permute.xlu0 0
    %2013 = vperm.xlu0 %2012, %v1107
    %v2014 = vpop.permute.xlu0 %2013
    %2017 = vset.pattern.permute.xlu0 0
    %2018 = vperm.xlu0 %2017, %v1108
    %v2019 = vpop.permute.xlu0 %2018
    %2022 = vset.pattern.permute.xlu0 0
    %2023 = vperm.xlu0 %2022, %v1109
    %v2024 = vpop.permute.xlu0 %2023
    %2027 = vset.pattern.permute.xlu0 0
    %2028 = vperm.xlu0 %2027, %v1110
    %v2029 = vpop.permute.xlu0 %2028
    %2032 = vset.pattern.permute.xlu0 0
    %2033 = vperm.xlu0 %2032, %v1111
    %v2034 = vpop.permute.xlu0 %2033
    %2037 = vset.pattern.permute.xlu0 0
    %2038 = vperm.xlu0 %2037, %v1112
    %v2039 = vpop.permute.xlu0 %2038
    %2042 = vset.pattern.permute.xlu0 0
    %2043 = vperm.xlu0 %2042, %v1113
    %v2044 = vpop.permute.xlu0 %2043
    %2047 = vset.pattern.permute.xlu0 0
    %2048 = vperm.xlu0 %2047, %v1114
    %v2049 = vpop.permute.xlu0 %2048
    %2052 = vset.pattern.permute.xlu0 0
    %2053 = vperm.xlu0 %2052, %v1115
    %v2054 = vpop.permute.xlu0 %2053
    %2057 = vset.pattern.permute.xlu0 0
    %2058 = vperm.xlu0 %2057, %v1116
    %v2059 = vpop.permute.xlu0 %2058
    %2062 = vset.pattern.permute.xlu0 0
    %2063 = vperm.xlu0 %2062, %v1117
    %v2064 = vpop.permute.xlu0 %2063
    %2067 = vset.pattern.permute.xlu0 0
    %2068 = vperm.xlu0 %2067, %v1118
    %v2069 = vpop.permute.xlu0 %2068
    %2072 = vset.pattern.permute.xlu0 0
    %2073 = vperm.xlu0 %2072, %v1119
    %v2074 = vpop.permute.xlu0 %2073
    %2077 = vset.pattern.permute.xlu0 0
    %2078 = vperm.xlu0 %2077, %v1120
    %v2079 = vpop.permute.xlu0 %2078
    %2082 = vset.pattern.permute.xlu0 0
    %2083 = vperm.xlu0 %2082, %v1121
    %v2084 = vpop.permute.xlu0 %2083
    %2087 = vset.pattern.permute.xlu0 0
    %2088 = vperm.xlu0 %2087, %v1122
    %v2089 = vpop.permute.xlu0 %2088
    %2092 = vset.pattern.permute.xlu0 0
    %2093 = vperm.xlu0 %2092, %v1123
    %v2094 = vpop.permute.xlu0 %2093
    %2097 = vset.pattern.permute.xlu0 0
    %2098 = vperm.xlu0 %2097, %v1124
    %v2099 = vpop.permute.xlu0 %2098
    %2102 = vset.pattern.permute.xlu0 0
    %2103 = vperm.xlu0 %2102, %v1125
    %v2104 = vpop.permute.xlu0 %2103
    %2107 = vset.pattern.permute.xlu0 0
    %2108 = vperm.xlu0 %2107, %v1126
    %v2109 = vpop.permute.xlu0 %2108
    %2112 = vset.pattern.permute.xlu0 0
    %2113 = vperm.xlu0 %2112, %v1127
    %v2114 = vpop.permute.xlu0 %2113
    %2117 = vset.pattern.permute.xlu0 0
    %2118 = vperm.xlu0 %2117, %v1128
    %v2119 = vpop.permute.xlu0 %2118
    %2122 = vset.pattern.permute.xlu0 0
    %2123 = vperm.xlu0 %2122, %v1129
    %v2124 = vpop.permute.xlu0 %2123
    %2127 = vset.pattern.permute.xlu0 0
    %2128 = vperm.xlu0 %2127, %v1130
    %v2129 = vpop.permute.xlu0 %2128
    %2132 = vset.pattern.permute.xlu0 0
    %2133 = vperm.xlu0 %2132, %v1131
    %v2134 = vpop.permute.xlu0 %2133
    %2137 = vset.pattern.permute.xlu0 0
    %2138 = vperm.xlu0 %2137, %v1132
    %v2139 = vpop.permute.xlu0 %2138
    %2142 = vset.pattern.permute.xlu0 0
    %2143 = vperm.xlu0 %2142, %v1133
    %v2144 = vpop.permute.xlu0 %2143
    %2147 = vset.pattern.permute.xlu0 0
    %2148 = vperm.xlu0 %2147, %v1134
    %v2149 = vpop.permute.xlu0 %2148
    %2152 = vset.pattern.permute.xlu0 0
    %2153 = vperm.xlu0 %2152, %v1135
    %v2154 = vpop.permute.xlu0 %2153
    %2157 = vset.pattern.permute.xlu0 0
    %2158 = vperm.xlu0 %2157, %v1136
    %v2159 = vpop.permute.xlu0 %2158
    %2162 = vset.pattern.permute.xlu0 0
    %2163 = vperm.xlu0 %2162, %v1137
    %v2164 = vpop.permute.xlu0 %2163
    %2167 = vset.pattern.permute.xlu0 0
    %2168 = vperm.xlu0 %2167, %v1138
    %v2169 = vpop.permute.xlu0 %2168
    %2172 = vset.pattern.permute.xlu0 0
    %2173 = vperm.xlu0 %2172, %v1139
    %v2174 = vpop.permute.xlu0 %2173
    %2177 = vset.pattern.permute.xlu0 0
    %2178 = vperm.xlu0 %2177, %v1140
    %v2179 = vpop.permute.xlu0 %2178
    %2182 = vset.pattern.permute.xlu0 0
    %2183 = vperm.xlu0 %2182, %v1141
    %v2184 = vpop.permute.xlu0 %2183
    %2187 = vset.pattern.permute.xlu0 0
    %2188 = vperm.xlu0 %2187, %v1142
    %v2189 = vpop.permute.xlu0 %2188
    %2192 = vset.pattern.permute.xlu0 0
    %2193 = vperm.xlu0 %2192, %v1143
    %v2194 = vpop.permute.xlu0 %2193
    %2197 = vset.pattern.permute.xlu0 0
    %2198 = vperm.xlu0 %2197, %v1144
    %v2199 = vpop.permute.xlu0 %2198
    %2202 = vset.pattern.permute.xlu0 0
    %2203 = vperm.xlu0 %2202, %v1145
    %v2204 = vpop.permute.xlu0 %2203
    %2207 = vset.pattern.permute.xlu0 0
    %2208 = vperm.xlu0 %2207, %v1146
    %v2209 = vpop.permute.xlu0 %2208
    %2212 = vset.pattern.permute.xlu0 0
    %2213 = vperm.xlu0 %2212, %v1147
    %v2214 = vpop.permute.xlu0 %2213
    %2217 = vset.pattern.permute.xlu0 0
    %2218 = vperm.xlu0 %2217, %v1148
    %v2219 = vpop.permute.xlu0 %2218
    %2222 = vset.pattern.permute.xlu0 0
    %2223 = vperm.xlu0 %2222, %v1149
    %v2224 = vpop.permute.xlu0 %2223
    %2227 = vset.pattern.permute.xlu0 0
    %2228 = vperm.xlu0 %2227, %v1150
    %v2229 = vpop.permute.xlu0 %2228
    %2232 = vset.pattern.permute.xlu0 0
    %2233 = vperm.xlu0 %2232, %v1151
    %v2234 = vpop.permute.xlu0 %2233
    %2237 = vset.pattern.permute.xlu0 0
    %2238 = vperm.xlu0 %2237, %v1152
    %v2239 = vpop.permute.xlu0 %2238
    %2242 = vset.pattern.permute.xlu0 0
    %2243 = vperm.xlu0 %2242, %v1153
    %v2244 = vpop.permute.xlu0 %2243
    %2247 = vset.pattern.permute.xlu0 0
    %2248 = vperm.xlu0 %2247, %v1154
    %v2249 = vpop.permute.xlu0 %2248
    %2252 = vset.pattern.permute.xlu0 0
    %2253 = vperm.xlu0 %2252, %v1155
    %v2254 = vpop.permute.xlu0 %2253
    %2257 = vset.pattern.permute.xlu0 0
    %2258 = vperm.xlu0 %2257, %v1156
    %v2259 = vpop.permute.xlu0 %2258
    %2262 = vset.pattern.permute.xlu0 0
    %2263 = vperm.xlu0 %2262, %v1157
    %v2264 = vpop.permute.xlu0 %2263
    %2267 = vset.pattern.permute.xlu0 0
    %2268 = vperm.xlu0 %2267, %v1158
    %v2269 = vpop.permute.xlu0 %2268
    %2272 = vset.pattern.permute.xlu0 0
    %2273 = vperm.xlu0 %2272, %v1159
    %v2274 = vpop.permute.xlu0 %2273
    %2277 = vset.pattern.permute.xlu0 0
    %2278 = vperm.xlu0 %2277, %v1160
    %v2279 = vpop.permute.xlu0 %2278
    %2282 = vset.pattern.permute.xlu0 0
    %2283 = vperm.xlu0 %2282, %v1161
    %v2284 = vpop.permute.xlu0 %2283
    %2287 = vset.pattern.permute.xlu0 0
    %2288 = vperm.xlu0 %2287, %v1162
    %v2289 = vpop.permute.xlu0 %2288
    %2292 = vset.pattern.permute.xlu0 0
    %2293 = vperm.xlu0 %2292, %v1163
    %v2294 = vpop.permute.xlu0 %2293
    %2297 = vset.pattern.permute.xlu0 0
    %2298 = vperm.xlu0 %2297, %v1164
    %v2299 = vpop.permute.xlu0 %2298
    %2302 = vset.pattern.permute.xlu0 0
    %2303 = vperm.xlu0 %2302, %v1165
    %v2304 = vpop.permute.xlu0 %2303
    %2307 = vset.pattern.permute.xlu0 0
    %2308 = vperm.xlu0 %2307, %v1166
    %v2309 = vpop.permute.xlu0 %2308
    %2312 = vset.pattern.permute.xlu0 0
    %2313 = vperm.xlu0 %2312, %v1167
    %v2314 = vpop.permute.xlu0 %2313
    %2317 = vset.pattern.permute.xlu0 0
    %2318 = vperm.xlu0 %2317, %v1168
    %v2319 = vpop.permute.xlu0 %2318
    %2322 = vset.pattern.permute.xlu0 0
    %2323 = vperm.xlu0 %2322, %v1169
    %v2324 = vpop.permute.xlu0 %2323
    %2327 = vset.pattern.permute.xlu0 0
    %2328 = vperm.xlu0 %2327, %v1170
    %v2329 = vpop.permute.xlu0 %2328
    %2332 = vset.pattern.permute.xlu0 0
    %2333 = vperm.xlu0 %2332, %v1171
    %v2334 = vpop.permute.xlu0 %2333
    %2337 = vset.pattern.permute.xlu0 0
    %2338 = vperm.xlu0 %2337, %v1172
    %v2339 = vpop.permute.xlu0 %2338
    %2342 = vset.pattern.permute.xlu0 0
    %2343 = vperm.xlu0 %2342, %v1173
    %v2344 = vpop.permute.xlu0 %2343
    %2347 = vset.pattern.permute.xlu0 0
    %2348 = vperm.xlu0 %2347, %v1174
    %v2349 = vpop.permute.xlu0 %2348
    %2352 = vset.pattern.permute.xlu0 0
    %2353 = vperm.xlu0 %2352, %v1175
    %v2354 = vpop.permute.xlu0 %2353
    %2357 = vset.pattern.permute.xlu0 0
    %2358 = vperm.xlu0 %2357, %v1176
    %v2359 = vpop.permute.xlu0 %2358
    %2362 = vset.pattern.permute.xlu0 0
    %2363 = vperm.xlu0 %2362, %v1177
    %v2364 = vpop.permute.xlu0 %2363
    %2367 = vset.pattern.permute.xlu0 0
    %2368 = vperm.xlu0 %2367, %v1178
    %v2369 = vpop.permute.xlu0 %2368
    %2372 = vset.pattern.permute.xlu0 0
    %2373 = vperm.xlu0 %2372, %v1179
    %v2374 = vpop.permute.xlu0 %2373
    %2377 = vset.pattern.permute.xlu0 0
    %2378 = vperm.xlu0 %2377, %v1180
    %v2379 = vpop.permute.xlu0 %2378
    %2382 = vset.pattern.permute.xlu0 0
    %2383 = vperm.xlu0 %2382, %v1181
    %v2384 = vpop.permute.xlu0 %2383
    %2387 = vset.pattern.permute.xlu0 0
    %2388 = vperm.xlu0 %2387, %v1182
    %v2389 = vpop.permute.xlu0 %2388
    %2392 = vset.pattern.permute.xlu0 0
    %2393 = vperm.xlu0 %2392, %v1183
    %v2394 = vpop.permute.xlu0 %2393
    %2397 = vset.pattern.permute.xlu0 0
    %2398 = vperm.xlu0 %2397, %v1184
    %v2399 = vpop.permute.xlu0 %2398
    %2402 = vset.pattern.permute.xlu0 0
    %2403 = vperm.xlu0 %2402, %v1185
    %v2404 = vpop.permute.xlu0 %2403
    %2407 = vset.pattern.permute.xlu0 0
    %2408 = vperm.xlu0 %2407, %v1186
    %v2409 = vpop.permute.xlu0 %2408
    %2412 = vset.pattern.permute.xlu0 0
    %2413 = vperm.xlu0 %2412, %v1187
    %v2414 = vpop.permute.xlu0 %2413
    %2417 = vset.pattern.permute.xlu0 0
    %2418 = vperm.xlu0 %2417, %v1188
    %v2419 = vpop.permute.xlu0 %2418
    %2422 = vset.pattern.permute.xlu0 0
    %2423 = vperm.xlu0 %2422, %v1189
    %v2424 = vpop.permute.xlu0 %2423
    %2427 = vset.pattern.permute.xlu0 0
    %2428 = vperm.xlu0 %2427, %v1190
    %v2429 = vpop.permute.xlu0 %2428
    %2432 = vset.pattern.permute.xlu0 0
    %2433 = vperm.xlu0 %2432, %v1191
    %v2434 = vpop.permute.xlu0 %2433
    %2437 = vset.pattern.permute.xlu0 0
    %2438 = vperm.xlu0 %2437, %v1192
    %v2439 = vpop.permute.xlu0 %2438
    %2442 = vset.pattern.permute.xlu0 0
    %2443 = vperm.xlu0 %2442, %v1193
    %v2444 = vpop.permute.xlu0 %2443
    %2447 = vset.pattern.permute.xlu0 0
    %2448 = vperm.xlu0 %2447, %v1194
    %v2449 = vpop.permute.xlu0 %2448
    %2452 = vset.pattern.permute.xlu0 0
    %2453 = vperm.xlu0 %2452, %v1195
    %v2454 = vpop.permute.xlu0 %2453
    %2457 = vset.pattern.permute.xlu0 0
    %2458 = vperm.xlu0 %2457, %v1196
    %v2459 = vpop.permute.xlu0 %2458
    %2462 = vset.pattern.permute.xlu0 0
    %2463 = vperm.xlu0 %2462, %v1197
    %v2464 = vpop.permute.xlu0 %2463
    %2467 = vset.pattern.permute.xlu0 0
    %2468 = vperm.xlu0 %2467, %v1198
    %v2469 = vpop.permute.xlu0 %2468
    %2472 = vset.pattern.permute.xlu0 0
    %2473 = vperm.xlu0 %2472, %v1199
    %v2474 = vpop.permute.xlu0 %2473
    %2477 = vset.pattern.permute.xlu0 0
    %2478 = vperm.xlu0 %2477, %v1200
    %v2479 = vpop.permute.xlu0 %2478
    %2482 = vset.pattern.permute.xlu0 0
    %2483 = vperm.xlu0 %2482, %v1201
    %v2484 = vpop.permute.xlu0 %2483
    %2487 = vset.pattern.permute.xlu0 0
    %2488 = vperm.xlu0 %2487, %v1202
    %v2489 = vpop.permute.xlu0 %2488
    %2492 = vset.pattern.permute.xlu0 0
    %2493 = vperm.xlu0 %2492, %v1203
    %v2494 = vpop.permute.xlu0 %2493
    %2497 = vset.pattern.permute.xlu0 0
    %2498 = vperm.xlu0 %2497, %v1204
    %v2499 = vpop.permute.xlu0 %2498
    %2502 = vset.pattern.permute.xlu0 0
    %2503 = vperm.xlu0 %2502, %v1205
    %v2504 = vpop.permute.xlu0 %2503
    %2507 = vset.pattern.permute.xlu0 0
    %2508 = vperm.xlu0 %2507, %v1206
    %v2509 = vpop.permute.xlu0 %2508
    %2512 = vset.pattern.permute.xlu0 0
    %2513 = vperm.xlu0 %2512, %v1207
    %v2514 = vpop.permute.xlu0 %2513
    %2517 = vset.pattern.permute.xlu0 0
    %2518 = vperm.xlu0 %2517, %v1208
    %v2519 = vpop.permute.xlu0 %2518
    %2522 = vset.pattern.permute.xlu0 0
    %2523 = vperm.xlu0 %2522, %v1209
    %v2524 = vpop.permute.xlu0 %2523
    %2527 = vset.pattern.permute.xlu0 0
    %2528 = vperm.xlu0 %2527, %v1210
    %v2529 = vpop.permute.xlu0 %2528
    %2532 = vset.pattern.permute.xlu0 0
    %2533 = vperm.xlu0 %2532, %v1211
    %v2534 = vpop.permute.xlu0 %2533
    %2537 = vset.pattern.permute.xlu0 0
    %2538 = vperm.xlu0 %2537, %v1212
    %v2539 = vpop.permute.xlu0 %2538
    %2542 = vset.pattern.permute.xlu0 0
    %2543 = vperm.xlu0 %2542, %v1213
    %v2544 = vpop.permute.xlu0 %2543
    %2547 = vset.pattern.permute.xlu0 0
    %2548 = vperm.xlu0 %2547, %v1214
    %v2549 = vpop.permute.xlu0 %2548
    %2552 = vset.pattern.permute.xlu0 0
    %2553 = vperm.xlu0 %2552, %v1215
    %v2554 = vpop.permute.xlu0 %2553
    %2557 = vset.pattern.permute.xlu0 0
    %2558 = vperm.xlu0 %2557, %v1216
    %v2559 = vpop.permute.xlu0 %2558
    %2562 = vset.pattern.permute.xlu0 0
    %2563 = vperm.xlu0 %2562, %v1217
    %v2564 = vpop.permute.xlu0 %2563
    %2567 = vset.pattern.permute.xlu0 0
    %2568 = vperm.xlu0 %2567, %v1218
    %v2569 = vpop.permute.xlu0 %2568
    %2572 = vset.pattern.permute.xlu0 0
    %2573 = vperm.xlu0 %2572, %v1219
    %v2574 = vpop.permute.xlu0 %2573
    %2577 = vset.pattern.permute.xlu0 0
    %2578 = vperm.xlu0 %2577, %v1220
    %v2579 = vpop.permute.xlu0 %2578
    %2582 = vset.pattern.permute.xlu0 0
    %2583 = vperm.xlu0 %2582, %v1221
    %v2584 = vpop.permute.xlu0 %2583
    %2587 = vset.pattern.permute.xlu0 0
    %2588 = vperm.xlu0 %2587, %v1222
    %v2589 = vpop.permute.xlu0 %2588
    %2592 = vset.pattern.permute.xlu0 0
    %2593 = vperm.xlu0 %2592, %v1223
    %v2594 = vpop.permute.xlu0 %2593
    %2597 = vset.pattern.permute.xlu0 0
    %2598 = vperm.xlu0 %2597, %v1224
    %v2599 = vpop.permute.xlu0 %2598
    %2602 = vset.pattern.permute.xlu0 0
    %2603 = vperm.xlu0 %2602, %v1225
    %v2604 = vpop.permute.xlu0 %2603
    %2607 = vset.pattern.permute.xlu0 0
    %2608 = vperm.xlu0 %2607, %v1226
    %v2609 = vpop.permute.xlu0 %2608
    %2612 = vset.pattern.permute.xlu0 0
    %2613 = vperm.xlu0 %2612, %v1227
    %v2614 = vpop.permute.xlu0 %2613
    %2617 = vset.pattern.permute.xlu0 0
    %2618 = vperm.xlu0 %2617, %v1228
    %v2619 = vpop.permute.xlu0 %2618
    %2622 = vset.pattern.permute.xlu0 0
    %2623 = vperm.xlu0 %2622, %v1229
    %v2624 = vpop.permute.xlu0 %2623
    %2627 = vset.pattern.permute.xlu0 0
    %2628 = vperm.xlu0 %2627, %v1230
    %v2629 = vpop.permute.xlu0 %2628
    %2632 = vset.pattern.permute.xlu0 0
    %2633 = vperm.xlu0 %2632, %v1231
    %v2634 = vpop.permute.xlu0 %2633
    %2637 = vset.pattern.permute.xlu0 0
    %2638 = vperm.xlu0 %2637, %v1232
    %v2639 = vpop.permute.xlu0 %2638
    %2642 = vset.pattern.permute.xlu0 0
    %2643 = vperm.xlu0 %2642, %v1233
    %v2644 = vpop.permute.xlu0 %2643
    %2647 = vset.pattern.permute.xlu0 0
    %2648 = vperm.xlu0 %2647, %v1234
    %v2649 = vpop.permute.xlu0 %2648
    %2652 = vset.pattern.permute.xlu0 0
    %2653 = vperm.xlu0 %2652, %v1235
    %v2654 = vpop.permute.xlu0 %2653
    %2657 = vset.pattern.permute.xlu0 0
    %2658 = vperm.xlu0 %2657, %v1236
    %v2659 = vpop.permute.xlu0 %2658
    %2662 = vset.pattern.permute.xlu0 0
    %2663 = vperm.xlu0 %2662, %v1237
    %v2664 = vpop.permute.xlu0 %2663
    %2667 = vset.pattern.permute.xlu0 0
    %2668 = vperm.xlu0 %2667, %v1238
    %v2669 = vpop.permute.xlu0 %2668
    %2672 = vset.pattern.permute.xlu0 0
    %2673 = vperm.xlu0 %2672, %v1239
    %v2674 = vpop.permute.xlu0 %2673
    %2677 = vset.pattern.permute.xlu0 0
    %2678 = vperm.xlu0 %2677, %v1240
    %v2679 = vpop.permute.xlu0 %2678
    %2682 = vset.pattern.permute.xlu0 0
    %2683 = vperm.xlu0 %2682, %v1241
    %v2684 = vpop.permute.xlu0 %2683
    %2687 = vset.pattern.permute.xlu0 0
    %2688 = vperm.xlu0 %2687, %v1242
    %v2689 = vpop.permute.xlu0 %2688
    %2692 = vset.pattern.permute.xlu0 0
    %2693 = vperm.xlu0 %2692, %v1243
    %v2694 = vpop.permute.xlu0 %2693
    %2697 = vset.pattern.permute.xlu0 0
    %2698 = vperm.xlu0 %2697, %v1244
    %v2699 = vpop.permute.xlu0 %2698
    %2702 = vset.pattern.permute.xlu0 0
    %2703 = vperm.xlu0 %2702, %v1245
    %v2704 = vpop.permute.xlu0 %2703
    %2707 = vset.pattern.permute.xlu0 0
    %2708 = vperm.xlu0 %2707, %v1246
    %v2709 = vpop.permute.xlu0 %2708
    %2712 = vset.pattern.permute.xlu0 0
    %2713 = vperm.xlu0 %2712, %v1247
    %v2714 = vpop.permute.xlu0 %2713
    %2717 = vset.pattern.permute.xlu0 0
    %2718 = vperm.xlu0 %2717, %v1248
    %v2719 = vpop.permute.xlu0 %2718
    %2722 = vset.pattern.permute.xlu0 0
    %2723 = vperm.xlu0 %2722, %v1249
    %v2724 = vpop.permute.xlu0 %2723
    %2727 = vset.pattern.permute.xlu0 0
    %2728 = vperm.xlu0 %2727, %v1250
    %v2729 = vpop.permute.xlu0 %2728
    %2732 = vset.pattern.permute.xlu0 0
    %2733 = vperm.xlu0 %2732, %v1251
    %v2734 = vpop.permute.xlu0 %2733
    %2737 = vset.pattern.permute.xlu0 0
    %2738 = vperm.xlu0 %2737, %v1252
    %v2739 = vpop.permute.xlu0 %2738
    %2742 = vset.pattern.permute.xlu0 0
    %2743 = vperm.xlu0 %2742, %v1253
    %v2744 = vpop.permute.xlu0 %2743
    %2747 = vset.pattern.permute.xlu0 0
    %2748 = vperm.xlu0 %2747, %v1254
    %v2749 = vpop.permute.xlu0 %2748
    %2752 = vset.pattern.permute.xlu0 0
    %2753 = vperm.xlu0 %2752, %v1255
    %v2754 = vpop.permute.xlu0 %2753
    %2757 = vset.pattern.permute.xlu0 0
    %2758 = vperm.xlu0 %2757, %v1256
    %v2759 = vpop.permute.xlu0 %2758
    %2762 = vset.pattern.permute.xlu0 0
    %2763 = vperm.xlu0 %2762, %v1257
    %v2764 = vpop.permute.xlu0 %2763
    %2767 = vset.pattern.permute.xlu0 0
    %2768 = vperm.xlu0 %2767, %v1258
    %v2769 = vpop.permute.xlu0 %2768
    %2772 = vset.pattern.permute.xlu0 0
    %2773 = vperm.xlu0 %2772, %v1259
    %v2774 = vpop.permute.xlu0 %2773
    %2777 = vset.pattern.permute.xlu0 0
    %2778 = vperm.xlu0 %2777, %v1260
    %v2779 = vpop.permute.xlu0 %2778
    %2782 = vset.pattern.permute.xlu0 0
    %2783 = vperm.xlu0 %2782, %v1261
    %v2784 = vpop.permute.xlu0 %2783
    %2787 = vset.pattern.permute.xlu0 0
    %2788 = vperm.xlu0 %2787, %v1262
    %v2789 = vpop.permute.xlu0 %2788
    %2792 = vset.pattern.permute.xlu0 0
    %2793 = vperm.xlu0 %2792, %v1263
    %v2794 = vpop.permute.xlu0 %2793
    %2797 = vset.pattern.permute.xlu0 0
    %2798 = vperm.xlu0 %2797, %v1264
    %v2799 = vpop.permute.xlu0 %2798
    %2802 = vset.pattern.permute.xlu0 0
    %2803 = vperm.xlu0 %2802, %v1265
    %v2804 = vpop.permute.xlu0 %2803
    %2807 = vset.pattern.permute.xlu0 0
    %2808 = vperm.xlu0 %2807, %v1266
    %v2809 = vpop.permute.xlu0 %2808
    %2812 = vset.pattern.permute.xlu0 0
    %2813 = vperm.xlu0 %2812, %v1267
    %v2814 = vpop.permute.xlu0 %2813
    %2817 = vset.pattern.permute.xlu0 0
    %2818 = vperm.xlu0 %2817, %v1268
    %v2819 = vpop.permute.xlu0 %2818
    %2822 = vset.pattern.permute.xlu0 0
    %2823 = vperm.xlu0 %2822, %v1269
    %v2824 = vpop.permute.xlu0 %2823
    %2827 = vset.pattern.permute.xlu0 0
    %2828 = vperm.xlu0 %2827, %v1270
    %v2829 = vpop.permute.xlu0 %2828
    %2832 = vset.pattern.permute.xlu0 0
    %2833 = vperm.xlu0 %2832, %v1271
    %v2834 = vpop.permute.xlu0 %2833
    %2837 = vset.pattern.permute.xlu0 0
    %2838 = vperm.xlu0 %2837, %v1272
    %v2839 = vpop.permute.xlu0 %2838
    %2842 = vset.pattern.permute.xlu0 0
    %2843 = vperm.xlu0 %2842, %v1273
    %v2844 = vpop.permute.xlu0 %2843
    %2847 = vset.pattern.permute.xlu0 0
    %2848 = vperm.xlu0 %2847, %v1274
    %v2849 = vpop.permute.xlu0 %2848
    %2852 = vset.pattern.permute.xlu0 0
    %2853 = vperm.xlu0 %2852, %v1275
    %v2854 = vpop.permute.xlu0 %2853
    %2857 = vset.pattern.permute.xlu0 0
    %2858 = vperm.xlu0 %2857, %v1276
    %v2859 = vpop.permute.xlu0 %2858
    %2862 = vset.pattern.permute.xlu0 0
    %2863 = vperm.xlu0 %2862, %v1277
    %v2864 = vpop.permute.xlu0 %2863
    %2867 = vset.pattern.permute.xlu0 0
    %2868 = vperm.xlu0 %2867, %v1278
    %v2869 = vpop.permute.xlu0 %2868
    %2872 = vset.pattern.permute.xlu0 0
    %2873 = vperm.xlu0 %2872, %v1279
    %v2874 = vpop.permute.xlu0 %2873
    %2877 = vset.pattern.permute.xlu0 0
    %2878 = vperm.xlu0 %2877, %v1280
    %v2879 = vpop.permute.xlu0 %2878
    %2882 = vset.pattern.permute.xlu0 0
    %2883 = vperm.xlu0 %2882, %v1281
    %v2884 = vpop.permute.xlu0 %2883
    %2887 = vset.pattern.permute.xlu0 0
    %2888 = vperm.xlu0 %2887, %v1282
    %v2889 = vpop.permute.xlu0 %2888
    %2892 = vset.pattern.permute.xlu0 0
    %2893 = vperm.xlu0 %2892, %v1283
    %v2894 = vpop.permute.xlu0 %2893
    %2897 = vset.pattern.permute.xlu0 0
    %2898 = vperm.xlu0 %2897, %v1284
    %v2899 = vpop.permute.xlu0 %2898
    %2902 = vset.pattern.permute.xlu0 0
    %2903 = vperm.xlu0 %2902, %v1285
    %v2904 = vpop.permute.xlu0 %2903
    %2907 = vset.pattern.permute.xlu0 0
    %2908 = vperm.xlu0 %2907, %v1286
    %v2909 = vpop.permute.xlu0 %2908
    %2912 = vset.pattern.permute.xlu0 0
    %2913 = vperm.xlu0 %2912, %v1287
    %v2914 = vpop.permute.xlu0 %2913
    %2917 = vset.pattern.permute.xlu0 0
    %2918 = vperm.xlu0 %2917, %v1288
    %v2919 = vpop.permute.xlu0 %2918
    %2922 = vset.pattern.permute.xlu0 0
    %2923 = vperm.xlu0 %2922, %v1289
    %v2924 = vpop.permute.xlu0 %2923
    %2927 = vset.pattern.permute.xlu0 0
    %2928 = vperm.xlu0 %2927, %v1290
    %v2929 = vpop.permute.xlu0 %2928
    %2932 = vset.pattern.permute.xlu0 0
    %2933 = vperm.xlu0 %2932, %v1291
    %v2934 = vpop.permute.xlu0 %2933
    %2937 = vset.pattern.permute.xlu0 0
    %2938 = vperm.xlu0 %2937, %v1292
    %v2939 = vpop.permute.xlu0 %2938
    %2942 = vset.pattern.permute.xlu0 0
    %2943 = vperm.xlu0 %2942, %v1293
    %v2944 = vpop.permute.xlu0 %2943
    %2947 = vset.pattern.permute.xlu0 0
    %2948 = vperm.xlu0 %2947, %v1294
    %v2949 = vpop.permute.xlu0 %2948
    %2952 = vset.pattern.permute.xlu0 0
    %2953 = vperm.xlu0 %2952, %v1295
    %v2954 = vpop.permute.xlu0 %2953
    %2957 = vset.pattern.permute.xlu0 0
    %2958 = vperm.xlu0 %2957, %v1296
    %v2959 = vpop.permute.xlu0 %2958
    %2962 = vset.pattern.permute.xlu0 0
    %2963 = vperm.xlu0 %2962, %v1297
    %v2964 = vpop.permute.xlu0 %2963
    %2967 = vset.pattern.permute.xlu0 0
    %2968 = vperm.xlu0 %2967, %v1298
    %v2969 = vpop.permute.xlu0 %2968
    %2972 = vset.pattern.permute.xlu0 0
    %2973 = vperm.xlu0 %2972, %v1299
    %v2974 = vpop.permute.xlu0 %2973
    %2977 = vset.pattern.permute.xlu0 0
    %2978 = vperm.xlu0 %2977, %v1300
    %v2979 = vpop.permute.xlu0 %2978
    %2982 = vset.pattern.permute.xlu0 0
    %2983 = vperm.xlu0 %2982, %v1301
    %v2984 = vpop.permute.xlu0 %2983
    %2987 = vset.pattern.permute.xlu0 0
    %2988 = vperm.xlu0 %2987, %v1302
    %v2989 = vpop.permute.xlu0 %2988
    %2992 = vset.pattern.permute.xlu0 0
    %2993 = vperm.xlu0 %2992, %v1303
    %v2994 = vpop.permute.xlu0 %2993
    %2997 = vset.pattern.permute.xlu0 0
    %2998 = vperm.xlu0 %2997, %v1304
    %v2999 = vpop.permute.xlu0 %2998
    %3002 = vset.pattern.permute.xlu0 0
    %3003 = vperm.xlu0 %3002, %v1305
    %v3004 = vpop.permute.xlu0 %3003
    %3007 = vset.pattern.permute.xlu0 0
    %3008 = vperm.xlu0 %3007, %v1306
    %v3009 = vpop.permute.xlu0 %3008
    %3012 = vset.pattern.permute.xlu0 0
    %3013 = vperm.xlu0 %3012, %v1307
    %v3014 = vpop.permute.xlu0 %3013
    %3017 = vset.pattern.permute.xlu0 0
    %3018 = vperm.xlu0 %3017, %v1308
    %v3019 = vpop.permute.xlu0 %3018
    %3022 = vset.pattern.permute.xlu0 0
    %3023 = vperm.xlu0 %3022, %v1309
    %v3024 = vpop.permute.xlu0 %3023
    %3027 = vset.pattern.permute.xlu0 0
    %3028 = vperm.xlu0 %3027, %v1310
    %v3029 = vpop.permute.xlu0 %3028
    %3032 = vset.pattern.permute.xlu0 0
    %3033 = vperm.xlu0 %3032, %v1311
    %v3034 = vpop.permute.xlu0 %3033
    %3037 = vset.pattern.permute.xlu0 0
    %3038 = vperm.xlu0 %3037, %v1312
    %v3039 = vpop.permute.xlu0 %3038
    %3042 = vset.pattern.permute.xlu0 0
    %3043 = vperm.xlu0 %3042, %v1313
    %v3044 = vpop.permute.xlu0 %3043
    %3047 = vset.pattern.permute.xlu0 0
    %3048 = vperm.xlu0 %3047, %v1314
    %v3049 = vpop.permute.xlu0 %3048
    %3052 = vset.pattern.permute.xlu0 0
    %3053 = vperm.xlu0 %3052, %v1315
    %v3054 = vpop.permute.xlu0 %3053
    %3057 = vset.pattern.permute.xlu0 0
    %3058 = vperm.xlu0 %3057, %v1316
    %v3059 = vpop.permute.xlu0 %3058
    %3062 = vset.pattern.permute.xlu0 0
    %3063 = vperm.xlu0 %3062, %v1317
    %v3064 = vpop.permute.xlu0 %3063
    %3067 = vset.pattern.permute.xlu0 0
    %3068 = vperm.xlu0 %3067, %v1318
    %v3069 = vpop.permute.xlu0 %3068
    %3072 = vset.pattern.permute.xlu0 0
    %3073 = vperm.xlu0 %3072, %v1319
    %v3074 = vpop.permute.xlu0 %3073
    %3077 = vset.pattern.permute.xlu0 0
    %3078 = vperm.xlu0 %3077, %v1320
    %v3079 = vpop.permute.xlu0 %3078
    %3082 = vset.pattern.permute.xlu0 0
    %3083 = vperm.xlu0 %3082, %v1321
    %v3084 = vpop.permute.xlu0 %3083
    %3087 = vset.pattern.permute.xlu0 0
    %3088 = vperm.xlu0 %3087, %v1322
    %v3089 = vpop.permute.xlu0 %3088
    %3092 = vset.pattern.permute.xlu0 0
    %3093 = vperm.xlu0 %3092, %v1323
    %v3094 = vpop.permute.xlu0 %3093
    %3097 = vset.pattern.permute.xlu0 0
    %3098 = vperm.xlu0 %3097, %v1324
    %v3099 = vpop.permute.xlu0 %3098
    %3102 = vset.pattern.permute.xlu0 0
    %3103 = vperm.xlu0 %3102, %v1325
    %v3104 = vpop.permute.xlu0 %3103
    %3107 = vset.pattern.permute.xlu0 0
    %3108 = vperm.xlu0 %3107, %v1326
    %v3109 = vpop.permute.xlu0 %3108
    %3112 = vset.pattern.permute.xlu0 0
    %3113 = vperm.xlu0 %3112, %v1327
    %v3114 = vpop.permute.xlu0 %3113
    %3117 = vset.pattern.permute.xlu0 0
    %3118 = vperm.xlu0 %3117, %v1328
    %v3119 = vpop.permute.xlu0 %3118
    %3122 = vset.pattern.permute.xlu0 0
    %3123 = vperm.xlu0 %3122, %v1329
    %v3124 = vpop.permute.xlu0 %3123
    %3127 = vset.pattern.permute.xlu0 0
    %3128 = vperm.xlu0 %3127, %v1330
    %v3129 = vpop.permute.xlu0 %3128
    %3132 = vset.pattern.permute.xlu0 0
    %3133 = vperm.xlu0 %3132, %v1331
    %v3134 = vpop.permute.xlu0 %3133
    %3137 = vset.pattern.permute.xlu0 0
    %3138 = vperm.xlu0 %3137, %v1332
    %v3139 = vpop.permute.xlu0 %3138
    %3142 = vset.pattern.permute.xlu0 0
    %3143 = vperm.xlu0 %3142, %v1333
    %v3144 = vpop.permute.xlu0 %3143
    %3147 = vset.pattern.permute.xlu0 0
    %3148 = vperm.xlu0 %3147, %v1334
    %v3149 = vpop.permute.xlu0 %3148
    %3152 = vset.pattern.permute.xlu0 0
    %3153 = vperm.xlu0 %3152, %v1335
    %v3154 = vpop.permute.xlu0 %3153
    %3157 = vset.pattern.permute.xlu0 0
    %3158 = vperm.xlu0 %3157, %v1336
    %v3159 = vpop.permute.xlu0 %3158
    %3162 = vset.pattern.permute.xlu0 0
    %3163 = vperm.xlu0 %3162, %v1337
    %v3164 = vpop.permute.xlu0 %3163
    %3167 = vset.pattern.permute.xlu0 0
    %3168 = vperm.xlu0 %3167, %v1338
    %v3169 = vpop.permute.xlu0 %3168
    %3172 = vset.pattern.permute.xlu0 0
    %3173 = vperm.xlu0 %3172, %v1339
    %v3174 = vpop.permute.xlu0 %3173
    %3177 = vset.pattern.permute.xlu0 0
    %3178 = vperm.xlu0 %3177, %v1340
    %v3179 = vpop.permute.xlu0 %3178
    %3182 = vset.pattern.permute.xlu0 0
    %3183 = vperm.xlu0 %3182, %v1341
    %v3184 = vpop.permute.xlu0 %3183
    %3187 = vset.pattern.permute.xlu0 0
    %3188 = vperm.xlu0 %3187, %v1342
    %v3189 = vpop.permute.xlu0 %3188
    %3192 = vset.pattern.permute.xlu0 0
    %3193 = vperm.xlu0 %3192, %v1343
    %v3194 = vpop.permute.xlu0 %3193
    %3197 = vset.pattern.permute.xlu0 0
    %3198 = vperm.xlu0 %3197, %v1344
    %v3199 = vpop.permute.xlu0 %3198
    %3202 = vset.pattern.permute.xlu0 0
    %3203 = vperm.xlu0 %3202, %v1345
    %v3204 = vpop.permute.xlu0 %3203
    %3207 = vset.pattern.permute.xlu0 0
    %3208 = vperm.xlu0 %3207, %v1346
    %v3209 = vpop.permute.xlu0 %3208
    %3212 = vset.pattern.permute.xlu0 0
    %3213 = vperm.xlu0 %3212, %v1347
    %v3214 = vpop.permute.xlu0 %3213
    %3217 = vset.pattern.permute.xlu0 0
    %3218 = vperm.xlu0 %3217, %v1348
    %v3219 = vpop.permute.xlu0 %3218
    %3222 = vset.pattern.permute.xlu0 0
    %3223 = vperm.xlu0 %3222, %v1349
    %v3224 = vpop.permute.xlu0 %3223
    %3227 = vset.pattern.permute.xlu0 0
    %3228 = vperm.xlu0 %3227, %v1350
    %v3229 = vpop.permute.xlu0 %3228
    %3232 = vset.pattern.permute.xlu0 0
    %3233 = vperm.xlu0 %3232, %v1351
    %v3234 = vpop.permute.xlu0 %3233
    %3237 = vset.pattern.permute.xlu0 0
    %3238 = vperm.xlu0 %3237, %v1352
    %v3239 = vpop.permute.xlu0 %3238
    %3242 = vset.pattern.permute.xlu0 0
    %3243 = vperm.xlu0 %3242, %v1353
    %v3244 = vpop.permute.xlu0 %3243
    %3247 = vset.pattern.permute.xlu0 0
    %3248 = vperm.xlu0 %3247, %v1354
    %v3249 = vpop.permute.xlu0 %3248
    %3252 = vset.pattern.permute.xlu0 0
    %3253 = vperm.xlu0 %3252, %v1355
    %v3254 = vpop.permute.xlu0 %3253
    %3257 = vset.pattern.permute.xlu0 0
    %3258 = vperm.xlu0 %3257, %v1356
    %v3259 = vpop.permute.xlu0 %3258
    %3262 = vset.pattern.permute.xlu0 0
    %3263 = vperm.xlu0 %3262, %v1357
    %v3264 = vpop.permute.xlu0 %3263
    %3267 = vset.pattern.permute.xlu0 0
    %3268 = vperm.xlu0 %3267, %v1358
    %v3269 = vpop.permute.xlu0 %3268
    %3272 = vset.pattern.permute.xlu0 0
    %3273 = vperm.xlu0 %3272, %v1359
    %v3274 = vpop.permute.xlu0 %3273
    %3277 = vset.pattern.permute.xlu0 0
    %3278 = vperm.xlu0 %3277, %v1360
    %v3279 = vpop.permute.xlu0 %3278
    %3282 = vset.pattern.permute.xlu0 0
    %3283 = vperm.xlu0 %3282, %v1361
    %v3284 = vpop.permute.xlu0 %3283
    %3287 = vset.pattern.permute.xlu0 0
    %3288 = vperm.xlu0 %3287, %v1362
    %v3289 = vpop.permute.xlu0 %3288
    %3292 = vset.pattern.permute.xlu0 0
    %3293 = vperm.xlu0 %3292, %v1363
    %v3294 = vpop.permute.xlu0 %3293
    %3297 = vset.pattern.permute.xlu0 0
    %3298 = vperm.xlu0 %3297, %v1364
    %v3299 = vpop.permute.xlu0 %3298
    %3302 = vset.pattern.permute.xlu0 0
    %3303 = vperm.xlu0 %3302, %v1365
    %v3304 = vpop.permute.xlu0 %3303
    %3307 = vset.pattern.permute.xlu0 0
    %3308 = vperm.xlu0 %3307, %v1366
    %v3309 = vpop.permute.xlu0 %3308
    %3312 = vset.pattern.permute.xlu0 0
    %3313 = vperm.xlu0 %3312, %v1367
    %v3314 = vpop.permute.xlu0 %3313
    %3317 = vset.pattern.permute.xlu0 0
    %3318 = vperm.xlu0 %3317, %v1368
    %v3319 = vpop.permute.xlu0 %3318
    %3322 = vset.pattern.permute.xlu0 0
    %3323 = vperm.xlu0 %3322, %v1369
    %v3324 = vpop.permute.xlu0 %3323
    %3327 = vset.pattern.permute.xlu0 0
    %3328 = vperm.xlu0 %3327, %v1370
    %v3329 = vpop.permute.xlu0 %3328
    %3332 = vset.pattern.permute.xlu0 0
    %3333 = vperm.xlu0 %3332, %v1371
    %v3334 = vpop.permute.xlu0 %3333
    %3337 = vset.pattern.permute.xlu0 0
    %3338 = vperm.xlu0 %3337, %v1372
    %v3339 = vpop.permute.xlu0 %3338
    %3342 = vset.pattern.permute.xlu0 0
    %3343 = vperm.xlu0 %3342, %v1373
    %v3344 = vpop.permute.xlu0 %3343
    %3347 = vset.pattern.permute.xlu0 0
    %3348 = vperm.xlu0 %3347, %v1374
    %v3349 = vpop.permute.xlu0 %3348
    %3352 = vset.pattern.permute.xlu0 0
    %3353 = vperm.xlu0 %3352, %v1375
    %v3354 = vpop.permute.xlu0 %3353
    %3357 = vset.pattern.permute.xlu0 0
    %3358 = vperm.xlu0 %3357, %v1376
    %v3359 = vpop.permute.xlu0 %3358
    %3362 = vset.pattern.permute.xlu0 0
    %3363 = vperm.xlu0 %3362, %v1377
    %v3364 = vpop.permute.xlu0 %3363
    %3367 = vset.pattern.permute.xlu0 0
    %3368 = vperm.xlu0 %3367, %v1378
    %v3369 = vpop.permute.xlu0 %3368
    %3372 = vset.pattern.permute.xlu0 0
    %3373 = vperm.xlu0 %3372, %v1379
    %v3374 = vpop.permute.xlu0 %3373
    %3377 = vset.pattern.permute.xlu0 0
    %3378 = vperm.xlu0 %3377, %v1380
    %v3379 = vpop.permute.xlu0 %3378
    %3382 = vset.pattern.permute.xlu0 0
    %3383 = vperm.xlu0 %3382, %v1381
    %v3384 = vpop.permute.xlu0 %3383
    %3387 = vset.pattern.permute.xlu0 0
    %3388 = vperm.xlu0 %3387, %v1382
    %v3389 = vpop.permute.xlu0 %3388
    %3392 = vset.pattern.permute.xlu0 0
    %3393 = vperm.xlu0 %3392, %v1383
    %v3394 = vpop.permute.xlu0 %3393
    %3397 = vset.pattern.permute.xlu0 0
    %3398 = vperm.xlu0 %3397, %v1384
    %v3399 = vpop.permute.xlu0 %3398
    %3402 = vset.pattern.permute.xlu0 0
    %3403 = vperm.xlu0 %3402, %v1385
    %v3404 = vpop.permute.xlu0 %3403
    %3407 = vset.pattern.permute.xlu0 0
    %3408 = vperm.xlu0 %3407, %v1386
    %v3409 = vpop.permute.xlu0 %3408
    %3412 = vset.pattern.permute.xlu0 0
    %3413 = vperm.xlu0 %3412, %v1387
    %v3414 = vpop.permute.xlu0 %3413
    %3417 = vset.pattern.permute.xlu0 0
    %3418 = vperm.xlu0 %3417, %v1388
    %v3419 = vpop.permute.xlu0 %3418
    %3422 = vset.pattern.permute.xlu0 0
    %3423 = vperm.xlu0 %3422, %v1389
    %v3424 = vpop.permute.xlu0 %3423
    %3427 = vset.pattern.permute.xlu0 0
    %3428 = vperm.xlu0 %3427, %v1390
    %v3429 = vpop.permute.xlu0 %3428
    %3432 = vset.pattern.permute.xlu0 0
    %3433 = vperm.xlu0 %3432, %v1391
    %v3434 = vpop.permute.xlu0 %3433
    %3437 = vset.pattern.permute.xlu0 0
    %3438 = vperm.xlu0 %3437, %v1392
    %v3439 = vpop.permute.xlu0 %3438
    %3442 = vset.pattern.permute.xlu0 0
    %3443 = vperm.xlu0 %3442, %v1393
    %v3444 = vpop.permute.xlu0 %3443
    %3447 = vset.pattern.permute.xlu0 0
    %3448 = vperm.xlu0 %3447, %v1394
    %v3449 = vpop.permute.xlu0 %3448
    %3452 = vset.pattern.permute.xlu0 0
    %3453 = vperm.xlu0 %3452, %v1395
    %v3454 = vpop.permute.xlu0 %3453
    %3457 = vset.pattern.permute.xlu0 0
    %3458 = vperm.xlu0 %3457, %v1396
    %v3459 = vpop.permute.xlu0 %3458
    %3462 = vset.pattern.permute.xlu0 0
    %3463 = vperm.xlu0 %3462, %v1397
    %v3464 = vpop.permute.xlu0 %3463
    %3467 = vset.pattern.permute.xlu0 0
    %3468 = vperm.xlu0 %3467, %v1398
    %v3469 = vpop.permute.xlu0 %3468
    %3472 = vset.pattern.permute.xlu0 0
    %3473 = vperm.xlu0 %3472, %v1399
    %v3474 = vpop.permute.xlu0 %3473
    %3477 = vset.pattern.permute.xlu0 0
    %3478 = vperm.xlu0 %3477, %v1400
    %v3479 = vpop.permute.xlu0 %3478
    %3482 = vset.pattern.permute.xlu0 0
    %3483 = vperm.xlu0 %3482, %v1401
    %v3484 = vpop.permute.xlu0 %3483
    %3487 = vset.pattern.permute.xlu0 0
    %3488 = vperm.xlu0 %3487, %v1402
    %v3489 = vpop.permute.xlu0 %3488
    %3492 = vset.pattern.permute.xlu0 0
    %3493 = vperm.xlu0 %3492, %v1403
    %v3494 = vpop.permute.xlu0 %3493
    %3497 = vset.pattern.permute.xlu0 0
    %3498 = vperm.xlu0 %3497, %v1404
    %v3499 = vpop.permute.xlu0 %3498
    %3502 = vset.pattern.permute.xlu0 0
    %3503 = vperm.xlu0 %3502, %v1405
    %v3504 = vpop.permute.xlu0 %3503
    %3507 = vset.pattern.permute.xlu0 0
    %3508 = vperm.xlu0 %3507, %v1406
    %v3509 = vpop.permute.xlu0 %3508
    %3512 = vset.pattern.permute.xlu0 0
    %3513 = vperm.xlu0 %3512, %v1407
    %v3514 = vpop.permute.xlu0 %3513
    %3517 = vset.pattern.permute.xlu0 0
    %3518 = vperm.xlu0 %3517, %v1408
    %v3519 = vpop.permute.xlu0 %3518
    %3522 = vset.pattern.permute.xlu0 0
    %3523 = vperm.xlu0 %3522, %v1409
    %v3524 = vpop.permute.xlu0 %3523
    %3527 = vset.pattern.permute.xlu0 0
    %3528 = vperm.xlu0 %3527, %v1410
    %v3529 = vpop.permute.xlu0 %3528
    %3532 = vset.pattern.permute.xlu0 0
    %3533 = vperm.xlu0 %3532, %v1411
    %v3534 = vpop.permute.xlu0 %3533
    %3537 = vset.pattern.permute.xlu0 0
    %3538 = vperm.xlu0 %3537, %v1412
    %v3539 = vpop.permute.xlu0 %3538
    %3542 = vset.pattern.permute.xlu0 0
    %3543 = vperm.xlu0 %3542, %v1413
    %v3544 = vpop.permute.xlu0 %3543
    %3547 = vset.pattern.permute.xlu0 0
    %3548 = vperm.xlu0 %3547, %v1414
    %v3549 = vpop.permute.xlu0 %3548
    %3552 = vset.pattern.permute.xlu0 0
    %3553 = vperm.xlu0 %3552, %v1415
    %v3554 = vpop.permute.xlu0 %3553
    %3557 = vset.pattern.permute.xlu0 0
    %3558 = vperm.xlu0 %3557, %v1416
    %v3559 = vpop.permute.xlu0 %3558
    %3562 = vset.pattern.permute.xlu0 0
    %3563 = vperm.xlu0 %3562, %v1417
    %v3564 = vpop.permute.xlu0 %3563
    %3567 = vset.pattern.permute.xlu0 0
    %3568 = vperm.xlu0 %3567, %v1418
    %v3569 = vpop.permute.xlu0 %3568
    %3572 = vset.pattern.permute.xlu0 0
    %3573 = vperm.xlu0 %3572, %v1419
    %v3574 = vpop.permute.xlu0 %3573
    %3577 = vset.pattern.permute.xlu0 0
    %3578 = vperm.xlu0 %3577, %v1420
    %v3579 = vpop.permute.xlu0 %3578
    %3582 = vset.pattern.permute.xlu0 0
    %3583 = vperm.xlu0 %3582, %v1421
    %v3584 = vpop.permute.xlu0 %3583
    %3587 = vset.pattern.permute.xlu0 0
    %3588 = vperm.xlu0 %3587, %v1422
    %v3589 = vpop.permute.xlu0 %3588
    %3592 = vset.pattern.permute.xlu0 0
    %3593 = vperm.xlu0 %3592, %v1423
    %v3594 = vpop.permute.xlu0 %3593
    %3597 = vset.pattern.permute.xlu0 0
    %3598 = vperm.xlu0 %3597, %v1424
    %v3599 = vpop.permute.xlu0 %3598
    %3602 = vset.pattern.permute.xlu0 0
    %3603 = vperm.xlu0 %3602, %v1425
    %v3604 = vpop.permute.xlu0 %3603
    %3607 = vset.pattern.permute.xlu0 0
    %3608 = vperm.xlu0 %3607, %v1426
    %v3609 = vpop.permute.xlu0 %3608
    %3612 = vset.pattern.permute.xlu0 0
    %3613 = vperm.xlu0 %3612, %v1427
    %v3614 = vpop.permute.xlu0 %3613
    %3617 = vset.pattern.permute.xlu0 0
    %3618 = vperm.xlu0 %3617, %v1428
    %v3619 = vpop.permute.xlu0 %3618
    %3622 = vset.pattern.permute.xlu0 0
    %3623 = vperm.xlu0 %3622, %v1429
    %v3624 = vpop.permute.xlu0 %3623
    %3627 = vset.pattern.permute.xlu0 0
    %3628 = vperm.xlu0 %3627, %v1430
    %v3629 = vpop.permute.xlu0 %3628
    %3632 = vset.pattern.permute.xlu0 0
    %3633 = vperm.xlu0 %3632, %v1431
    %v3634 = vpop.permute.xlu0 %3633
    %3637 = vset.pattern.permute.xlu0 0
    %3638 = vperm.xlu0 %3637, %v1432
    %v3639 = vpop.permute.xlu0 %3638
    %3642 = vset.pattern.permute.xlu0 0
    %3643 = vperm.xlu0 %3642, %v1433
    %v3644 = vpop.permute.xlu0 %3643
    %3647 = vset.pattern.permute.xlu0 0
    %3648 = vperm.xlu0 %3647, %v1434
    %v3649 = vpop.permute.xlu0 %3648
    %3652 = vset.pattern.permute.xlu0 0
    %3653 = vperm.xlu0 %3652, %v1435
    %v3654 = vpop.permute.xlu0 %3653
    %3657 = vset.pattern.permute.xlu0 0
    %3658 = vperm.xlu0 %3657, %v1436
    %v3659 = vpop.permute.xlu0 %3658
    %3662 = vset.pattern.permute.xlu0 0
    %3663 = vperm.xlu0 %3662, %v1437
    %v3664 = vpop.permute.xlu0 %3663
    %3667 = vset.pattern.permute.xlu0 0
    %3668 = vperm.xlu0 %3667, %v1438
    %v3669 = vpop.permute.xlu0 %3668
    %3672 = vset.pattern.permute.xlu0 0
    %3673 = vperm.xlu0 %3672, %v1439
    %v3674 = vpop.permute.xlu0 %3673
    %3677 = vset.pattern.permute.xlu0 0
    %3678 = vperm.xlu0 %3677, %v1440
    %v3679 = vpop.permute.xlu0 %3678
    %3682 = vset.pattern.permute.xlu0 0
    %3683 = vperm.xlu0 %3682, %v1441
    %v3684 = vpop.permute.xlu0 %3683
    %3687 = vset.pattern.permute.xlu0 0
    %3688 = vperm.xlu0 %3687, %v1442
    %v3689 = vpop.permute.xlu0 %3688
    %3692 = vset.pattern.permute.xlu0 0
    %3693 = vperm.xlu0 %3692, %v1443
    %v3694 = vpop.permute.xlu0 %3693
    %3697 = vset.pattern.permute.xlu0 0
    %3698 = vperm.xlu0 %3697, %v1444
    %v3699 = vpop.permute.xlu0 %3698
    %3702 = vset.pattern.permute.xlu0 0
    %3703 = vperm.xlu0 %3702, %v1445
    %v3704 = vpop.permute.xlu0 %3703
    %3707 = vset.pattern.permute.xlu0 0
    %3708 = vperm.xlu0 %3707, %v1446
    %v3709 = vpop.permute.xlu0 %3708
    %3712 = vset.pattern.permute.xlu0 0
    %3713 = vperm.xlu0 %3712, %v1447
    %v3714 = vpop.permute.xlu0 %3713
    %3717 = vset.pattern.permute.xlu0 0
    %3718 = vperm.xlu0 %3717, %v1448
    %v3719 = vpop.permute.xlu0 %3718
    %3722 = vset.pattern.permute.xlu0 0
    %3723 = vperm.xlu0 %3722, %v1449
    %v3724 = vpop.permute.xlu0 %3723
    %3727 = vset.pattern.permute.xlu0 0
    %3728 = vperm.xlu0 %3727, %v1450
    %v3729 = vpop.permute.xlu0 %3728
    %3732 = vset.pattern.permute.xlu0 0
    %3733 = vperm.xlu0 %3732, %v1451
    %v3734 = vpop.permute.xlu0 %3733
    %3737 = vset.pattern.permute.xlu0 0
    %3738 = vperm.xlu0 %3737, %v1452
    %v3739 = vpop.permute.xlu0 %3738
    %3742 = vset.pattern.permute.xlu0 0
    %3743 = vperm.xlu0 %3742, %v1453
    %v3744 = vpop.permute.xlu0 %3743
    %3747 = vset.pattern.permute.xlu0 0
    %3748 = vperm.xlu0 %3747, %v1454
    %v3749 = vpop.permute.xlu0 %3748
    %3752 = vset.pattern.permute.xlu0 0
    %3753 = vperm.xlu0 %3752, %v1455
    %v3754 = vpop.permute.xlu0 %3753
    %3757 = vset.pattern.permute.xlu0 0
    %3758 = vperm.xlu0 %3757, %v1456
    %v3759 = vpop.permute.xlu0 %3758
    %3762 = vset.pattern.permute.xlu0 0
    %3763 = vperm.xlu0 %3762, %v1457
    %v3764 = vpop.permute.xlu0 %3763
    %3767 = vset.pattern.permute.xlu0 0
    %3768 = vperm.xlu0 %3767, %v1458
    %v3769 = vpop.permute.xlu0 %3768
    %3772 = vset.pattern.permute.xlu0 0
    %3773 = vperm.xlu0 %3772, %v1459
    %v3774 = vpop.permute.xlu0 %3773
    %3777 = vset.pattern.permute.xlu0 0
    %3778 = vperm.xlu0 %3777, %v1460
    %v3779 = vpop.permute.xlu0 %3778
    %3782 = vset.pattern.permute.xlu0 0
    %3783 = vperm.xlu0 %3782, %v1461
    %v3784 = vpop.permute.xlu0 %3783
    %3787 = vset.pattern.permute.xlu0 0
    %3788 = vperm.xlu0 %3787, %v1462
    %v3789 = vpop.permute.xlu0 %3788
    %3792 = vset.pattern.permute.xlu0 0
    %3793 = vperm.xlu0 %3792, %v1463
    %v3794 = vpop.permute.xlu0 %3793
    %3797 = vset.pattern.permute.xlu0 0
    %3798 = vperm.xlu0 %3797, %v1464
    %v3799 = vpop.permute.xlu0 %3798
    %3802 = vset.pattern.permute.xlu0 0
    %3803 = vperm.xlu0 %3802, %v1465
    %v3804 = vpop.permute.xlu0 %3803
    %3807 = vset.pattern.permute.xlu0 0
    %3808 = vperm.xlu0 %3807, %v1466
    %v3809 = vpop.permute.xlu0 %3808
    %3812 = vset.pattern.permute.xlu0 0
    %3813 = vperm.xlu0 %3812, %v1467
    %v3814 = vpop.permute.xlu0 %3813
    %3817 = vset.pattern.permute.xlu0 0
    %3818 = vperm.xlu0 %3817, %v1468
    %v3819 = vpop.permute.xlu0 %3818
    %3822 = vset.pattern.permute.xlu0 0
    %3823 = vperm.xlu0 %3822, %v1469
    %v3824 = vpop.permute.xlu0 %3823
    %3827 = vset.pattern.permute.xlu0 0
    %3828 = vperm.xlu0 %3827, %v1470
    %v3829 = vpop.permute.xlu0 %3828
    %3832 = vset.pattern.permute.xlu0 0
    %3833 = vperm.xlu0 %3832, %v1471
    %v3834 = vpop.permute.xlu0 %3833
    %3837 = vset.pattern.permute.xlu0 0
    %3838 = vperm.xlu0 %3837, %v1472
    %v3839 = vpop.permute.xlu0 %3838
    %3842 = vset.pattern.permute.xlu0 0
    %3843 = vperm.xlu0 %3842, %v1473
    %v3844 = vpop.permute.xlu0 %3843
    %3847 = vset.pattern.permute.xlu0 0
    %3848 = vperm.xlu0 %3847, %v1474
    %v3849 = vpop.permute.xlu0 %3848
    %3852 = vset.pattern.permute.xlu0 0
    %3853 = vperm.xlu0 %3852, %v1475
    %v3854 = vpop.permute.xlu0 %3853
    %3857 = vset.pattern.permute.xlu0 0
    %3858 = vperm.xlu0 %3857, %v1476
    %v3859 = vpop.permute.xlu0 %3858
    %3862 = vset.pattern.permute.xlu0 0
    %3863 = vperm.xlu0 %3862, %v1477
    %v3864 = vpop.permute.xlu0 %3863
    %3867 = vset.pattern.permute.xlu0 0
    %3868 = vperm.xlu0 %3867, %v1478
    %v3869 = vpop.permute.xlu0 %3868
    %3872 = vset.pattern.permute.xlu0 0
    %3873 = vperm.xlu0 %3872, %v1479
    %v3874 = vpop.permute.xlu0 %3873
    %3877 = vset.pattern.permute.xlu0 0
    %3878 = vperm.xlu0 %3877, %v1480
    %v3879 = vpop.permute.xlu0 %3878
    %3882 = vset.pattern.permute.xlu0 0
    %3883 = vperm.xlu0 %3882, %v1481
    %v3884 = vpop.permute.xlu0 %3883
    %3887 = vset.pattern.permute.xlu0 0
    %3888 = vperm.xlu0 %3887, %v1482
    %v3889 = vpop.permute.xlu0 %3888
    %3892 = vset.pattern.permute.xlu0 0
    %3893 = vperm.xlu0 %3892, %v1483
    %v3894 = vpop.permute.xlu0 %3893
    %3897 = vset.pattern.permute.xlu0 0
    %3898 = vperm.xlu0 %3897, %v1484
    %v3899 = vpop.permute.xlu0 %3898
    %3902 = vset.pattern.permute.xlu0 0
    %3903 = vperm.xlu0 %3902, %v1485
    %v3904 = vpop.permute.xlu0 %3903
    %3907 = vset.pattern.permute.xlu0 0
    %3908 = vperm.xlu0 %3907, %v1486
    %v3909 = vpop.permute.xlu0 %3908
    %3912 = vset.pattern.permute.xlu0 0
    %3913 = vperm.xlu0 %3912, %v1487
    %v3914 = vpop.permute.xlu0 %3913
    %3917 = vset.pattern.permute.xlu0 0
    %3918 = vperm.xlu0 %3917, %v1488
    %v3919 = vpop.permute.xlu0 %3918
    %3922 = vset.pattern.permute.xlu0 0
    %3923 = vperm.xlu0 %3922, %v1489
    %v3924 = vpop.permute.xlu0 %3923
    %3927 = vset.pattern.permute.xlu0 0
    %3928 = vperm.xlu0 %3927, %v1490
    %v3929 = vpop.permute.xlu0 %3928
    %3932 = vset.pattern.permute.xlu0 0
    %3933 = vperm.xlu0 %3932, %v1491
    %v3934 = vpop.permute.xlu0 %3933
    %3937 = vset.pattern.permute.xlu0 0
    %3938 = vperm.xlu0 %3937, %v1492
    %v3939 = vpop.permute.xlu0 %3938
    %3942 = vset.pattern.permute.xlu0 0
    %3943 = vperm.xlu0 %3942, %v1493
    %v3944 = vpop.permute.xlu0 %3943
    %3947 = vset.pattern.permute.xlu0 0
    %3948 = vperm.xlu0 %3947, %v1494
    %v3949 = vpop.permute.xlu0 %3948
    %3952 = vset.pattern.permute.xlu0 0
    %3953 = vperm.xlu0 %3952, %v1495
    %v3954 = vpop.permute.xlu0 %3953
    %3957 = vset.pattern.permute.xlu0 0
    %3958 = vperm.xlu0 %3957, %v1496
    %v3959 = vpop.permute.xlu0 %3958
    %3962 = vset.pattern.permute.xlu0 0
    %3963 = vperm.xlu0 %3962, %v1497
    %v3964 = vpop.permute.xlu0 %3963
    %3967 = vset.pattern.permute.xlu0 0
    %3968 = vperm.xlu0 %3967, %v1498
    %v3969 = vpop.permute.xlu0 %3968
    %3972 = vset.pattern.permute.xlu0 0
    %3973 = vperm.xlu0 %3972, %v1499
    %v3974 = vpop.permute.xlu0 %3973
    %3977 = vset.pattern.permute.xlu0 0
    %3978 = vperm.xlu0 %3977, %v1500
    %v3979 = vpop.permute.xlu0 %3978
    %3982 = vset.pattern.permute.xlu0 0
    %3983 = vperm.xlu0 %3982, %v1501
    %v3984 = vpop.permute.xlu0 %3983
    %3987 = vset.pattern.permute.xlu0 0
    %3988 = vperm.xlu0 %3987, %v1502
    %v3989 = vpop.permute.xlu0 %3988
    %3992 = vset.pattern.permute.xlu0 0
    %3993 = vperm.xlu0 %3992, %v1503
    %v3994 = vpop.permute.xlu0 %3993
    %3997 = vset.pattern.permute.xlu0 0
    %3998 = vperm.xlu0 %3997, %v1504
    %v3999 = vpop.permute.xlu0 %3998
    %4002 = vset.pattern.permute.xlu0 0
    %4003 = vperm.xlu0 %4002, %v1505
    %v4004 = vpop.permute.xlu0 %4003
    %4007 = vset.pattern.permute.xlu0 0
    %4008 = vperm.xlu0 %4007, %v1506
    %v4009 = vpop.permute.xlu0 %4008
    %4012 = vset.pattern.permute.xlu0 0
    %4013 = vperm.xlu0 %4012, %v1507
    %v4014 = vpop.permute.xlu0 %4013
    %4017 = vset.pattern.permute.xlu0 0
    %4018 = vperm.xlu0 %4017, %v1508
    %v4019 = vpop.permute.xlu0 %4018
    %4022 = vset.pattern.permute.xlu0 0
    %4023 = vperm.xlu0 %4022, %v1509
    %v4024 = vpop.permute.xlu0 %4023
    %4027 = vset.pattern.permute.xlu0 0
    %4028 = vperm.xlu0 %4027, %v1510
    %v4029 = vpop.permute.xlu0 %4028
    %4032 = vset.pattern.permute.xlu0 0
    %4033 = vperm.xlu0 %4032, %v1511
    %v4034 = vpop.permute.xlu0 %4033
    %4037 = vset.pattern.permute.xlu0 0
    %4038 = vperm.xlu0 %4037, %v1512
    %v4039 = vpop.permute.xlu0 %4038
    %4042 = vset.pattern.permute.xlu0 0
    %4043 = vperm.xlu0 %4042, %v1513
    %v4044 = vpop.permute.xlu0 %4043
    %4047 = vset.pattern.permute.xlu0 0
    %4048 = vperm.xlu0 %4047, %v1514
    %v4049 = vpop.permute.xlu0 %4048
    %4052 = vset.pattern.permute.xlu0 0
    %4053 = vperm.xlu0 %4052, %v1515
    %v4054 = vpop.permute.xlu0 %4053
    %4057 = vset.pattern.permute.xlu0 0
    %4058 = vperm.xlu0 %4057, %v1516
    %v4059 = vpop.permute.xlu0 %4058
    %4062 = vset.pattern.permute.xlu0 0
    %4063 = vperm.xlu0 %4062, %v1517
    %v4064 = vpop.permute.xlu0 %4063
    %4067 = vset.pattern.permute.xlu0 0
    %4068 = vperm.xlu0 %4067, %v1518
    %v4069 = vpop.permute.xlu0 %4068
    %4072 = vset.pattern.permute.xlu0 0
    %4073 = vperm.xlu0 %4072, %v1519
    %v4074 = vpop.permute.xlu0 %4073
    %4077 = vset.pattern.permute.xlu0 0
    %4078 = vperm.xlu0 %4077, %v1520
    %v4079 = vpop.permute.xlu0 %4078
    %v4593 = vunpack.c.l.b16 %v497
    %v4594 = vunpack.c.h.b16 %v497
    %v4595 = vunpack.c.l.b16 %v498
    %v4596 = vunpack.c.h.b16 %v498
    %v4597 = vunpack.c.l.b16 %v499
    %v4598 = vunpack.c.h.b16 %v499
    %v4599 = vunpack.c.l.b16 %v500
    %v4600 = vunpack.c.h.b16 %v500
    %v4601 = vunpack.c.l.b16 %v501
    %v4602 = vunpack.c.h.b16 %v501
    %v4603 = vunpack.c.l.b16 %v502
    %v4604 = vunpack.c.h.b16 %v502
    %v4605 = vunpack.c.l.b16 %v503
    %v4606 = vunpack.c.h.b16 %v503
    %v4607 = vunpack.c.l.b16 %v504
    %v4608 = vunpack.c.h.b16 %v504
    %v4609 = vunpack.c.l.b16 %v505
    %v4610 = vunpack.c.h.b16 %v505
    %v4611 = vunpack.c.l.b16 %v506
    %v4612 = vunpack.c.h.b16 %v506
    %v4613 = vunpack.c.l.b16 %v507
    %v4614 = vunpack.c.h.b16 %v507
    %v4615 = vunpack.c.l.b16 %v508
    %v4616 = vunpack.c.h.b16 %v508
    %v4617 = vunpack.c.l.b16 %v509
    %v4618 = vunpack.c.h.b16 %v509
    %v4619 = vunpack.c.l.b16 %v510
    %v4620 = vunpack.c.h.b16 %v510
    %v4621 = vunpack.c.l.b16 %v511
    %v4622 = vunpack.c.h.b16 %v511
    %v4623 = vunpack.c.l.b16 %v512
    %v4624 = vunpack.c.h.b16 %v512
    %v4625 = vunpack.c.l.b16 %v513
    %v4626 = vunpack.c.h.b16 %v513
    %v4627 = vunpack.c.l.b16 %v514
    %v4628 = vunpack.c.h.b16 %v514
    %v4629 = vunpack.c.l.b16 %v515
    %v4630 = vunpack.c.h.b16 %v515
    %v4631 = vunpack.c.l.b16 %v516
    %v4632 = vunpack.c.h.b16 %v516
    %v4633 = vunpack.c.l.b16 %v517
    %v4634 = vunpack.c.h.b16 %v517
    %v4635 = vunpack.c.l.b16 %v518
    %v4636 = vunpack.c.h.b16 %v518
    %v4637 = vunpack.c.l.b16 %v519
    %v4638 = vunpack.c.h.b16 %v519
    %v4639 = vunpack.c.l.b16 %v520
    %v4640 = vunpack.c.h.b16 %v520
    %v4641 = vunpack.c.l.b16 %v521
    %v4642 = vunpack.c.h.b16 %v521
    %v4643 = vunpack.c.l.b16 %v522
    %v4644 = vunpack.c.h.b16 %v522
    %v4645 = vunpack.c.l.b16 %v523
    %v4646 = vunpack.c.h.b16 %v523
    %v4647 = vunpack.c.l.b16 %v524
    %v4648 = vunpack.c.h.b16 %v524
    %v4649 = vunpack.c.l.b16 %v525
    %v4650 = vunpack.c.h.b16 %v525
    %v4651 = vunpack.c.l.b16 %v526
    %v4652 = vunpack.c.h.b16 %v526
    %v4653 = vunpack.c.l.b16 %v527
    %v4654 = vunpack.c.h.b16 %v527
    %v4655 = vunpack.c.l.b16 %v528
    %v4656 = vunpack.c.h.b16 %v528
    %v4657 = vunpack.c.l.b16 %v529
    %v4658 = vunpack.c.h.b16 %v529
    %v4659 = vunpack.c.l.b16 %v530
    %v4660 = vunpack.c.h.b16 %v530
    %v4661 = vunpack.c.l.b16 %v531
    %v4662 = vunpack.c.h.b16 %v531
    %v4663 = vunpack.c.l.b16 %v532
    %v4664 = vunpack.c.h.b16 %v532
    %v4665 = vunpack.c.l.b16 %v533
    %v4666 = vunpack.c.h.b16 %v533
    %v4667 = vunpack.c.l.b16 %v534
    %v4668 = vunpack.c.h.b16 %v534
    %v4669 = vunpack.c.l.b16 %v535
    %v4670 = vunpack.c.h.b16 %v535
    %v4671 = vunpack.c.l.b16 %v536
    %v4672 = vunpack.c.h.b16 %v536
    %v4673 = vunpack.c.l.b16 %v537
    %v4674 = vunpack.c.h.b16 %v537
    %v4675 = vunpack.c.l.b16 %v538
    %v4676 = vunpack.c.h.b16 %v538
    %v4677 = vunpack.c.l.b16 %v539
    %v4678 = vunpack.c.h.b16 %v539
    %v4679 = vunpack.c.l.b16 %v540
    %v4680 = vunpack.c.h.b16 %v540
    %v4681 = vunpack.c.l.b16 %v541
    %v4682 = vunpack.c.h.b16 %v541
    %v4683 = vunpack.c.l.b16 %v542
    %v4684 = vunpack.c.h.b16 %v542
    %v4685 = vunpack.c.l.b16 %v543
    %v4686 = vunpack.c.h.b16 %v543
    %v4687 = vunpack.c.l.b16 %v544
    %v4688 = vunpack.c.h.b16 %v544
    %v4689 = vunpack.c.l.b16 %v545
    %v4690 = vunpack.c.h.b16 %v545
    %v4691 = vunpack.c.l.b16 %v546
    %v4692 = vunpack.c.h.b16 %v546
    %v4693 = vunpack.c.l.b16 %v547
    %v4694 = vunpack.c.h.b16 %v547
    %v4695 = vunpack.c.l.b16 %v548
    %v4696 = vunpack.c.h.b16 %v548
    %v4697 = vunpack.c.l.b16 %v549
    %v4698 = vunpack.c.h.b16 %v549
    %v4699 = vunpack.c.l.b16 %v550
    %v4700 = vunpack.c.h.b16 %v550
    %v4701 = vunpack.c.l.b16 %v551
    %v4702 = vunpack.c.h.b16 %v551
    %v4703 = vunpack.c.l.b16 %v552
    %v4704 = vunpack.c.h.b16 %v552
    %v4705 = vunpack.c.l.b16 %v553
    %v4706 = vunpack.c.h.b16 %v553
    %v4707 = vunpack.c.l.b16 %v554
    %v4708 = vunpack.c.h.b16 %v554
    %v4709 = vunpack.c.l.b16 %v555
    %v4710 = vunpack.c.h.b16 %v555
    %v4711 = vunpack.c.l.b16 %v556
    %v4712 = vunpack.c.h.b16 %v556
    %v4713 = vunpack.c.l.b16 %v557
    %v4714 = vunpack.c.h.b16 %v557
    %v4715 = vunpack.c.l.b16 %v558
    %v4716 = vunpack.c.h.b16 %v558
    %v4717 = vunpack.c.l.b16 %v559
    %v4718 = vunpack.c.h.b16 %v559
    %v4719 = vunpack.c.l.b16 %v560
    %v4720 = vunpack.c.h.b16 %v560
    %v4721 = vunpack.c.l.b16 %v561
    %v4722 = vunpack.c.h.b16 %v561
    %v4723 = vunpack.c.l.b16 %v562
    %v4724 = vunpack.c.h.b16 %v562
    %v4725 = vunpack.c.l.b16 %v563
    %v4726 = vunpack.c.h.b16 %v563
    %v4727 = vunpack.c.l.b16 %v564
    %v4728 = vunpack.c.h.b16 %v564
    %v4729 = vunpack.c.l.b16 %v565
    %v4730 = vunpack.c.h.b16 %v565
    %v4731 = vunpack.c.l.b16 %v566
    %v4732 = vunpack.c.h.b16 %v566
    %v4733 = vunpack.c.l.b16 %v567
    %v4734 = vunpack.c.h.b16 %v567
    %v4735 = vunpack.c.l.b16 %v568
    %v4736 = vunpack.c.h.b16 %v568
    %v4737 = vunpack.c.l.b16 %v569
    %v4738 = vunpack.c.h.b16 %v569
    %v4739 = vunpack.c.l.b16 %v570
    %v4740 = vunpack.c.h.b16 %v570
    %v4741 = vunpack.c.l.b16 %v571
    %v4742 = vunpack.c.h.b16 %v571
    %v4743 = vunpack.c.l.b16 %v572
    %v4744 = vunpack.c.h.b16 %v572
    %v4745 = vunpack.c.l.b16 %v573
    %v4746 = vunpack.c.h.b16 %v573
    %v4747 = vunpack.c.l.b16 %v574
    %v4748 = vunpack.c.h.b16 %v574
    %v4749 = vunpack.c.l.b16 %v575
    %v4750 = vunpack.c.h.b16 %v575
    %v4751 = vunpack.c.l.b16 %v576
    %v4752 = vunpack.c.h.b16 %v576
    %v4753 = vunpack.c.l.b16 %v577
    %v4754 = vunpack.c.h.b16 %v577
    %v4755 = vunpack.c.l.b16 %v578
    %v4756 = vunpack.c.h.b16 %v578
    %v4757 = vunpack.c.l.b16 %v579
    %v4758 = vunpack.c.h.b16 %v579
    %v4759 = vunpack.c.l.b16 %v580
    %v4760 = vunpack.c.h.b16 %v580
    %v4761 = vunpack.c.l.b16 %v581
    %v4762 = vunpack.c.h.b16 %v581
    %v4763 = vunpack.c.l.b16 %v582
    %v4764 = vunpack.c.h.b16 %v582
    %v4765 = vunpack.c.l.b16 %v583
    %v4766 = vunpack.c.h.b16 %v583
    %v4767 = vunpack.c.l.b16 %v584
    %v4768 = vunpack.c.h.b16 %v584
    %v4769 = vunpack.c.l.b16 %v585
    %v4770 = vunpack.c.h.b16 %v585
    %v4771 = vunpack.c.l.b16 %v586
    %v4772 = vunpack.c.h.b16 %v586
    %v4773 = vunpack.c.l.b16 %v587
    %v4774 = vunpack.c.h.b16 %v587
    %v4775 = vunpack.c.l.b16 %v588
    %v4776 = vunpack.c.h.b16 %v588
    %v4777 = vunpack.c.l.b16 %v589
    %v4778 = vunpack.c.h.b16 %v589
    %v4779 = vunpack.c.l.b16 %v590
    %v4780 = vunpack.c.h.b16 %v590
    %v4781 = vunpack.c.l.b16 %v591
    %v4782 = vunpack.c.h.b16 %v591
    %v4783 = vunpack.c.l.b16 %v592
    %v4784 = vunpack.c.h.b16 %v592
    %v4785 = vunpack.c.l.b16 %v593
    %v4786 = vunpack.c.h.b16 %v593
    %v4787 = vunpack.c.l.b16 %v594
    %v4788 = vunpack.c.h.b16 %v594
    %v4789 = vunpack.c.l.b16 %v595
    %v4790 = vunpack.c.h.b16 %v595
    %v4791 = vunpack.c.l.b16 %v596
    %v4792 = vunpack.c.h.b16 %v596
    %v4793 = vunpack.c.l.b16 %v597
    %v4794 = vunpack.c.h.b16 %v597
    %v4795 = vunpack.c.l.b16 %v598
    %v4796 = vunpack.c.h.b16 %v598
    %v4797 = vunpack.c.l.b16 %v599
    %v4798 = vunpack.c.h.b16 %v599
    %v4799 = vunpack.c.l.b16 %v600
    %v4800 = vunpack.c.h.b16 %v600
    %v4801 = vunpack.c.l.b16 %v601
    %v4802 = vunpack.c.h.b16 %v601
    %v4803 = vunpack.c.l.b16 %v602
    %v4804 = vunpack.c.h.b16 %v602
    %v4805 = vunpack.c.l.b16 %v603
    %v4806 = vunpack.c.h.b16 %v603
    %v4807 = vunpack.c.l.b16 %v604
    %v4808 = vunpack.c.h.b16 %v604
    %v4809 = vunpack.c.l.b16 %v605
    %v4810 = vunpack.c.h.b16 %v605
    %v4811 = vunpack.c.l.b16 %v606
    %v4812 = vunpack.c.h.b16 %v606
    %v4813 = vunpack.c.l.b16 %v607
    %v4814 = vunpack.c.h.b16 %v607
    %v4815 = vunpack.c.l.b16 %v608
    %v4816 = vunpack.c.h.b16 %v608
    %v4817 = vunpack.c.l.b16 %v609
    %v4818 = vunpack.c.h.b16 %v609
    %v4819 = vunpack.c.l.b16 %v610
    %v4820 = vunpack.c.h.b16 %v610
    %v4821 = vunpack.c.l.b16 %v611
    %v4822 = vunpack.c.h.b16 %v611
    %v4823 = vunpack.c.l.b16 %v612
    %v4824 = vunpack.c.h.b16 %v612
    %v4825 = vunpack.c.l.b16 %v613
    %v4826 = vunpack.c.h.b16 %v613
    %v4827 = vunpack.c.l.b16 %v614
    %v4828 = vunpack.c.h.b16 %v614
    %v4829 = vunpack.c.l.b16 %v615
    %v4830 = vunpack.c.h.b16 %v615
    %v4831 = vunpack.c.l.b16 %v616
    %v4832 = vunpack.c.h.b16 %v616
    %v4833 = vunpack.c.l.b16 %v617
    %v4834 = vunpack.c.h.b16 %v617
    %v4835 = vunpack.c.l.b16 %v618
    %v4836 = vunpack.c.h.b16 %v618
    %v4837 = vunpack.c.l.b16 %v619
    %v4838 = vunpack.c.h.b16 %v619
    %v4839 = vunpack.c.l.b16 %v620
    %v4840 = vunpack.c.h.b16 %v620
    %v4841 = vunpack.c.l.b16 %v621
    %v4842 = vunpack.c.h.b16 %v621
    %v4843 = vunpack.c.l.b16 %v622
    %v4844 = vunpack.c.h.b16 %v622
    %v4845 = vunpack.c.l.b16 %v623
    %v4846 = vunpack.c.h.b16 %v623
    %v4847 = vunpack.c.l.b16 %v624
    %v4848 = vunpack.c.h.b16 %v624
    %v4849 = vunpack.c.l.b16 %v625
    %v4850 = vunpack.c.h.b16 %v625
    %v4851 = vunpack.c.l.b16 %v626
    %v4852 = vunpack.c.h.b16 %v626
    %v4853 = vunpack.c.l.b16 %v627
    %v4854 = vunpack.c.h.b16 %v627
    %v4855 = vunpack.c.l.b16 %v628
    %v4856 = vunpack.c.h.b16 %v628
    %v4857 = vunpack.c.l.b16 %v629
    %v4858 = vunpack.c.h.b16 %v629
    %v4859 = vunpack.c.l.b16 %v630
    %v4860 = vunpack.c.h.b16 %v630
    %v4861 = vunpack.c.l.b16 %v631
    %v4862 = vunpack.c.h.b16 %v631
    %v4863 = vunpack.c.l.b16 %v632
    %v4864 = vunpack.c.h.b16 %v632
    %v4865 = vunpack.c.l.b16 %v633
    %v4866 = vunpack.c.h.b16 %v633
    %v4867 = vunpack.c.l.b16 %v634
    %v4868 = vunpack.c.h.b16 %v634
    %v4869 = vunpack.c.l.b16 %v635
    %v4870 = vunpack.c.h.b16 %v635
    %v4871 = vunpack.c.l.b16 %v636
    %v4872 = vunpack.c.h.b16 %v636
    %v4873 = vunpack.c.l.b16 %v637
    %v4874 = vunpack.c.h.b16 %v637
    %v4875 = vunpack.c.l.b16 %v638
    %v4876 = vunpack.c.h.b16 %v638
    %v4877 = vunpack.c.l.b16 %v639
    %v4878 = vunpack.c.h.b16 %v639
    %v4879 = vunpack.c.l.b16 %v640
    %v4880 = vunpack.c.h.b16 %v640
    %v4881 = vunpack.c.l.b16 %v641
    %v4882 = vunpack.c.h.b16 %v641
    %v4883 = vunpack.c.l.b16 %v642
    %v4884 = vunpack.c.h.b16 %v642
    %v4885 = vunpack.c.l.b16 %v643
    %v4886 = vunpack.c.h.b16 %v643
    %v4887 = vunpack.c.l.b16 %v644
    %v4888 = vunpack.c.h.b16 %v644
    %v4889 = vunpack.c.l.b16 %v645
    %v4890 = vunpack.c.h.b16 %v645
    %v4891 = vunpack.c.l.b16 %v646
    %v4892 = vunpack.c.h.b16 %v646
    %v4893 = vunpack.c.l.b16 %v647
    %v4894 = vunpack.c.h.b16 %v647
    %v4895 = vunpack.c.l.b16 %v648
    %v4896 = vunpack.c.h.b16 %v648
    %v4897 = vunpack.c.l.b16 %v649
    %v4898 = vunpack.c.h.b16 %v649
    %v4899 = vunpack.c.l.b16 %v650
    %v4900 = vunpack.c.h.b16 %v650
    %v4901 = vunpack.c.l.b16 %v651
    %v4902 = vunpack.c.h.b16 %v651
    %v4903 = vunpack.c.l.b16 %v652
    %v4904 = vunpack.c.h.b16 %v652
    %v4905 = vunpack.c.l.b16 %v653
    %v4906 = vunpack.c.h.b16 %v653
    %v4907 = vunpack.c.l.b16 %v654
    %v4908 = vunpack.c.h.b16 %v654
    %v4909 = vunpack.c.l.b16 %v655
    %v4910 = vunpack.c.h.b16 %v655
    %v4911 = vunpack.c.l.b16 %v656
    %v4912 = vunpack.c.h.b16 %v656
    %v4913 = vunpack.c.l.b16 %v657
    %v4914 = vunpack.c.h.b16 %v657
    %v4915 = vunpack.c.l.b16 %v658
    %v4916 = vunpack.c.h.b16 %v658
    %v4917 = vunpack.c.l.b16 %v659
    %v4918 = vunpack.c.h.b16 %v659
    %v4919 = vunpack.c.l.b16 %v660
    %v4920 = vunpack.c.h.b16 %v660
    %v4921 = vunpack.c.l.b16 %v661
    %v4922 = vunpack.c.h.b16 %v661
    %v4923 = vunpack.c.l.b16 %v662
    %v4924 = vunpack.c.h.b16 %v662
    %v4925 = vunpack.c.l.b16 %v663
    %v4926 = vunpack.c.h.b16 %v663
    %v4927 = vunpack.c.l.b16 %v664
    %v4928 = vunpack.c.h.b16 %v664
    %v4929 = vunpack.c.l.b16 %v665
    %v4930 = vunpack.c.h.b16 %v665
    %v4931 = vunpack.c.l.b16 %v666
    %v4932 = vunpack.c.h.b16 %v666
    %v4933 = vunpack.c.l.b16 %v667
    %v4934 = vunpack.c.h.b16 %v667
    %v4935 = vunpack.c.l.b16 %v668
    %v4936 = vunpack.c.h.b16 %v668
    %v4937 = vunpack.c.l.b16 %v669
    %v4938 = vunpack.c.h.b16 %v669
    %v4939 = vunpack.c.l.b16 %v670
    %v4940 = vunpack.c.h.b16 %v670
    %v4941 = vunpack.c.l.b16 %v671
    %v4942 = vunpack.c.h.b16 %v671
    %v4943 = vunpack.c.l.b16 %v672
    %v4944 = vunpack.c.h.b16 %v672
    %v4945 = vunpack.c.l.b16 %v673
    %v4946 = vunpack.c.h.b16 %v673
    %v4947 = vunpack.c.l.b16 %v674
    %v4948 = vunpack.c.h.b16 %v674
    %v4949 = vunpack.c.l.b16 %v675
    %v4950 = vunpack.c.h.b16 %v675
    %v4951 = vunpack.c.l.b16 %v676
    %v4952 = vunpack.c.h.b16 %v676
    %v4953 = vunpack.c.l.b16 %v677
    %v4954 = vunpack.c.h.b16 %v677
    %v4955 = vunpack.c.l.b16 %v678
    %v4956 = vunpack.c.h.b16 %v678
    %v4957 = vunpack.c.l.b16 %v679
    %v4958 = vunpack.c.h.b16 %v679
    %v4959 = vunpack.c.l.b16 %v680
    %v4960 = vunpack.c.h.b16 %v680
    %v4961 = vunpack.c.l.b16 %v681
    %v4962 = vunpack.c.h.b16 %v681
    %v4963 = vunpack.c.l.b16 %v682
    %v4964 = vunpack.c.h.b16 %v682
    %v4965 = vunpack.c.l.b16 %v683
    %v4966 = vunpack.c.h.b16 %v683
    %v4967 = vunpack.c.l.b16 %v684
    %v4968 = vunpack.c.h.b16 %v684
    %v4969 = vunpack.c.l.b16 %v685
    %v4970 = vunpack.c.h.b16 %v685
    %v4971 = vunpack.c.l.b16 %v686
    %v4972 = vunpack.c.h.b16 %v686
    %v4973 = vunpack.c.l.b16 %v687
    %v4974 = vunpack.c.h.b16 %v687
    %v4975 = vunpack.c.l.b16 %v688
    %v4976 = vunpack.c.h.b16 %v688
    %v4977 = vunpack.c.l.b16 %v689
    %v4978 = vunpack.c.h.b16 %v689
    %v4979 = vunpack.c.l.b16 %v690
    %v4980 = vunpack.c.h.b16 %v690
    %v4981 = vunpack.c.l.b16 %v691
    %v4982 = vunpack.c.h.b16 %v691
    %v4983 = vunpack.c.l.b16 %v692
    %v4984 = vunpack.c.h.b16 %v692
    %v4985 = vunpack.c.l.b16 %v693
    %v4986 = vunpack.c.h.b16 %v693
    %v4987 = vunpack.c.l.b16 %v694
    %v4988 = vunpack.c.h.b16 %v694
    %v4989 = vunpack.c.l.b16 %v695
    %v4990 = vunpack.c.h.b16 %v695
    %v4991 = vunpack.c.l.b16 %v696
    %v4992 = vunpack.c.h.b16 %v696
    %v4993 = vunpack.c.l.b16 %v697
    %v4994 = vunpack.c.h.b16 %v697
    %v4995 = vunpack.c.l.b16 %v698
    %v4996 = vunpack.c.h.b16 %v698
    %v4997 = vunpack.c.l.b16 %v699
    %v4998 = vunpack.c.h.b16 %v699
    %v4999 = vunpack.c.l.b16 %v700
    %v5000 = vunpack.c.h.b16 %v700
    %v5001 = vunpack.c.l.b16 %v701
    %v5002 = vunpack.c.h.b16 %v701
    %v5003 = vunpack.c.l.b16 %v702
    %v5004 = vunpack.c.h.b16 %v702
    %v5005 = vunpack.c.l.b16 %v703
    %v5006 = vunpack.c.h.b16 %v703
    %v5007 = vunpack.c.l.b16 %v704
    %v5008 = vunpack.c.h.b16 %v704
    %v5009 = vunpack.c.l.b16 %v705
    %v5010 = vunpack.c.h.b16 %v705
    %v5011 = vunpack.c.l.b16 %v706
    %v5012 = vunpack.c.h.b16 %v706
    %v5013 = vunpack.c.l.b16 %v707
    %v5014 = vunpack.c.h.b16 %v707
    %v5015 = vunpack.c.l.b16 %v708
    %v5016 = vunpack.c.h.b16 %v708
    %v5017 = vunpack.c.l.b16 %v709
    %v5018 = vunpack.c.h.b16 %v709
    %v5019 = vunpack.c.l.b16 %v710
    %v5020 = vunpack.c.h.b16 %v710
    %v5021 = vunpack.c.l.b16 %v711
    %v5022 = vunpack.c.h.b16 %v711
    %v5023 = vunpack.c.l.b16 %v712
    %v5024 = vunpack.c.h.b16 %v712
    %v5025 = vunpack.c.l.b16 %v713
    %v5026 = vunpack.c.h.b16 %v713
    %v5027 = vunpack.c.l.b16 %v714
    %v5028 = vunpack.c.h.b16 %v714
    %v5029 = vunpack.c.l.b16 %v715
    %v5030 = vunpack.c.h.b16 %v715
    %v5031 = vunpack.c.l.b16 %v716
    %v5032 = vunpack.c.h.b16 %v716
    %v5033 = vunpack.c.l.b16 %v717
    %v5034 = vunpack.c.h.b16 %v717
    %v5035 = vunpack.c.l.b16 %v718
    %v5036 = vunpack.c.h.b16 %v718
    %v5037 = vunpack.c.l.b16 %v719
    %v5038 = vunpack.c.h.b16 %v719
    %v5039 = vunpack.c.l.b16 %v720
    %v5040 = vunpack.c.h.b16 %v720
    %v5041 = vunpack.c.l.b16 %v721
    %v5042 = vunpack.c.h.b16 %v721
    %v5043 = vunpack.c.l.b16 %v722
    %v5044 = vunpack.c.h.b16 %v722
    %v5045 = vunpack.c.l.b16 %v723
    %v5046 = vunpack.c.h.b16 %v723
    %v5047 = vunpack.c.l.b16 %v724
    %v5048 = vunpack.c.h.b16 %v724
    %v5049 = vunpack.c.l.b16 %v725
    %v5050 = vunpack.c.h.b16 %v725
    %v5051 = vunpack.c.l.b16 %v726
    %v5052 = vunpack.c.h.b16 %v726
    %v5053 = vunpack.c.l.b16 %v727
    %v5054 = vunpack.c.h.b16 %v727
    %v5055 = vunpack.c.l.b16 %v728
    %v5056 = vunpack.c.h.b16 %v728
    %v5057 = vunpack.c.l.b16 %v729
    %v5058 = vunpack.c.h.b16 %v729
    %v5059 = vunpack.c.l.b16 %v730
    %v5060 = vunpack.c.h.b16 %v730
    %v5061 = vunpack.c.l.b16 %v731
    %v5062 = vunpack.c.h.b16 %v731
    %v5063 = vunpack.c.l.b16 %v732
    %v5064 = vunpack.c.h.b16 %v732
    %v5065 = vunpack.c.l.b16 %v733
    %v5066 = vunpack.c.h.b16 %v733
    %v5067 = vunpack.c.l.b16 %v734
    %v5068 = vunpack.c.h.b16 %v734
    %v5069 = vunpack.c.l.b16 %v735
    %v5070 = vunpack.c.h.b16 %v735
    %v5071 = vunpack.c.l.b16 %v736
    %v5072 = vunpack.c.h.b16 %v736
    %v5073 = vunpack.c.l.b16 %v737
    %v5074 = vunpack.c.h.b16 %v737
    %v5075 = vunpack.c.l.b16 %v738
    %v5076 = vunpack.c.h.b16 %v738
    %v5077 = vunpack.c.l.b16 %v739
    %v5078 = vunpack.c.h.b16 %v739
    %v5079 = vunpack.c.l.b16 %v740
    %v5080 = vunpack.c.h.b16 %v740
    %v5081 = vunpack.c.l.b16 %v741
    %v5082 = vunpack.c.h.b16 %v741
    %v5083 = vunpack.c.l.b16 %v742
    %v5084 = vunpack.c.h.b16 %v742
    %v5085 = vunpack.c.l.b16 %v743
    %v5086 = vunpack.c.h.b16 %v743
    %v5087 = vunpack.c.l.b16 %v744
    %v5088 = vunpack.c.h.b16 %v744
    %v5089 = vunpack.c.l.b16 %v745
    %v5090 = vunpack.c.h.b16 %v745
    %v5091 = vunpack.c.l.b16 %v746
    %v5092 = vunpack.c.h.b16 %v746
    %v5093 = vunpack.c.l.b16 %v747
    %v5094 = vunpack.c.h.b16 %v747
    %v5095 = vunpack.c.l.b16 %v748
    %v5096 = vunpack.c.h.b16 %v748
    %v5097 = vunpack.c.l.b16 %v749
    %v5098 = vunpack.c.h.b16 %v749
    %v5099 = vunpack.c.l.b16 %v750
    %v5100 = vunpack.c.h.b16 %v750
    %v5101 = vunpack.c.l.b16 %v751
    %v5102 = vunpack.c.h.b16 %v751
    %v5103 = vunpack.c.l.b16 %v752
    %v5104 = vunpack.c.h.b16 %v752
    %v5105 = vunpack.c.l.b16 %v753
    %v5106 = vunpack.c.h.b16 %v753
    %v5107 = vunpack.c.l.b16 %v754
    %v5108 = vunpack.c.h.b16 %v754
    %v5109 = vunpack.c.l.b16 %v755
    %v5110 = vunpack.c.h.b16 %v755
    %v5111 = vunpack.c.l.b16 %v756
    %v5112 = vunpack.c.h.b16 %v756
    %v5113 = vunpack.c.l.b16 %v757
    %v5114 = vunpack.c.h.b16 %v757
    %v5115 = vunpack.c.l.b16 %v758
    %v5116 = vunpack.c.h.b16 %v758
    %v5117 = vunpack.c.l.b16 %v759
    %v5118 = vunpack.c.h.b16 %v759
    %v5119 = vunpack.c.l.b16 %v760
    %v5120 = vunpack.c.h.b16 %v760
    %v5121 = vunpack.c.l.b16 %v761
    %v5122 = vunpack.c.h.b16 %v761
    %v5123 = vunpack.c.l.b16 %v762
    %v5124 = vunpack.c.h.b16 %v762
    %v5125 = vunpack.c.l.b16 %v763
    %v5126 = vunpack.c.h.b16 %v763
    %v5127 = vunpack.c.l.b16 %v764
    %v5128 = vunpack.c.h.b16 %v764
    %v5129 = vunpack.c.l.b16 %v765
    %v5130 = vunpack.c.h.b16 %v765
    %v5131 = vunpack.c.l.b16 %v766
    %v5132 = vunpack.c.h.b16 %v766
    %v5133 = vunpack.c.l.b16 %v767
    %v5134 = vunpack.c.h.b16 %v767
    %v5135 = vunpack.c.l.b16 %v768
    %v5136 = vunpack.c.h.b16 %v768
    %v5137 = vunpack.c.l.b16 %v769
    %v5138 = vunpack.c.h.b16 %v769
    %v5139 = vunpack.c.l.b16 %v770
    %v5140 = vunpack.c.h.b16 %v770
    %v5141 = vunpack.c.l.b16 %v771
    %v5142 = vunpack.c.h.b16 %v771
    %v5143 = vunpack.c.l.b16 %v772
    %v5144 = vunpack.c.h.b16 %v772
    %v5145 = vunpack.c.l.b16 %v773
    %v5146 = vunpack.c.h.b16 %v773
    %v5147 = vunpack.c.l.b16 %v774
    %v5148 = vunpack.c.h.b16 %v774
    %v5149 = vunpack.c.l.b16 %v775
    %v5150 = vunpack.c.h.b16 %v775
    %v5151 = vunpack.c.l.b16 %v776
    %v5152 = vunpack.c.h.b16 %v776
    %v5153 = vunpack.c.l.b16 %v777
    %v5154 = vunpack.c.h.b16 %v777
    %v5155 = vunpack.c.l.b16 %v778
    %v5156 = vunpack.c.h.b16 %v778
    %v5157 = vunpack.c.l.b16 %v779
    %v5158 = vunpack.c.h.b16 %v779
    %v5159 = vunpack.c.l.b16 %v780
    %v5160 = vunpack.c.h.b16 %v780
    %v5161 = vunpack.c.l.b16 %v781
    %v5162 = vunpack.c.h.b16 %v781
    %v5163 = vunpack.c.l.b16 %v782
    %v5164 = vunpack.c.h.b16 %v782
    %v5165 = vunpack.c.l.b16 %v783
    %v5166 = vunpack.c.h.b16 %v783
    %v5167 = vunpack.c.l.b16 %v784
    %v5168 = vunpack.c.h.b16 %v784
    %v5169 = vunpack.c.l.b16 %v785
    %v5170 = vunpack.c.h.b16 %v785
    %v5171 = vunpack.c.l.b16 %v786
    %v5172 = vunpack.c.h.b16 %v786
    %v5173 = vunpack.c.l.b16 %v787
    %v5174 = vunpack.c.h.b16 %v787
    %v5175 = vunpack.c.l.b16 %v788
    %v5176 = vunpack.c.h.b16 %v788
    %v5177 = vunpack.c.l.b16 %v789
    %v5178 = vunpack.c.h.b16 %v789
    %v5179 = vunpack.c.l.b16 %v790
    %v5180 = vunpack.c.h.b16 %v790
    %v5181 = vunpack.c.l.b16 %v791
    %v5182 = vunpack.c.h.b16 %v791
    %v5183 = vunpack.c.l.b16 %v792
    %v5184 = vunpack.c.h.b16 %v792
    %v5185 = vunpack.c.l.b16 %v793
    %v5186 = vunpack.c.h.b16 %v793
    %v5187 = vunpack.c.l.b16 %v794
    %v5188 = vunpack.c.h.b16 %v794
    %v5189 = vunpack.c.l.b16 %v795
    %v5190 = vunpack.c.h.b16 %v795
    %v5191 = vunpack.c.l.b16 %v796
    %v5192 = vunpack.c.h.b16 %v796
    %v5193 = vunpack.c.l.b16 %v797
    %v5194 = vunpack.c.h.b16 %v797
    %v5195 = vunpack.c.l.b16 %v798
    %v5196 = vunpack.c.h.b16 %v798
    %v5197 = vunpack.c.l.b16 %v799
    %v5198 = vunpack.c.h.b16 %v799
    %v5199 = vunpack.c.l.b16 %v800
    %v5200 = vunpack.c.h.b16 %v800
    %v5201 = vunpack.c.l.b16 %v801
    %v5202 = vunpack.c.h.b16 %v801
    %v5203 = vunpack.c.l.b16 %v802
    %v5204 = vunpack.c.h.b16 %v802
    %v5205 = vunpack.c.l.b16 %v803
    %v5206 = vunpack.c.h.b16 %v803
    %v5207 = vunpack.c.l.b16 %v804
    %v5208 = vunpack.c.h.b16 %v804
    %v5209 = vunpack.c.l.b16 %v805
    %v5210 = vunpack.c.h.b16 %v805
    %v5211 = vunpack.c.l.b16 %v806
    %v5212 = vunpack.c.h.b16 %v806
    %v5213 = vunpack.c.l.b16 %v807
    %v5214 = vunpack.c.h.b16 %v807
    %v5215 = vunpack.c.l.b16 %v808
    %v5216 = vunpack.c.h.b16 %v808
    %v5217 = vunpack.c.l.b16 %v809
    %v5218 = vunpack.c.h.b16 %v809
    %v5219 = vunpack.c.l.b16 %v810
    %v5220 = vunpack.c.h.b16 %v810
    %v5221 = vunpack.c.l.b16 %v811
    %v5222 = vunpack.c.h.b16 %v811
    %v5223 = vunpack.c.l.b16 %v812
    %v5224 = vunpack.c.h.b16 %v812
    %v5225 = vunpack.c.l.b16 %v813
    %v5226 = vunpack.c.h.b16 %v813
    %v5227 = vunpack.c.l.b16 %v814
    %v5228 = vunpack.c.h.b16 %v814
    %v5229 = vunpack.c.l.b16 %v815
    %v5230 = vunpack.c.h.b16 %v815
    %v5231 = vunpack.c.l.b16 %v816
    %v5232 = vunpack.c.h.b16 %v816
    %v5233 = vunpack.c.l.b16 %v817
    %v5234 = vunpack.c.h.b16 %v817
    %v5235 = vunpack.c.l.b16 %v818
    %v5236 = vunpack.c.h.b16 %v818
    %v5237 = vunpack.c.l.b16 %v819
    %v5238 = vunpack.c.h.b16 %v819
    %v5239 = vunpack.c.l.b16 %v820
    %v5240 = vunpack.c.h.b16 %v820
    %v5241 = vunpack.c.l.b16 %v821
    %v5242 = vunpack.c.h.b16 %v821
    %v5243 = vunpack.c.l.b16 %v822
    %v5244 = vunpack.c.h.b16 %v822
    %v5245 = vunpack.c.l.b16 %v823
    %v5246 = vunpack.c.h.b16 %v823
    %v5247 = vunpack.c.l.b16 %v824
    %v5248 = vunpack.c.h.b16 %v824
    %v5249 = vunpack.c.l.b16 %v825
    %v5250 = vunpack.c.h.b16 %v825
    %v5251 = vunpack.c.l.b16 %v826
    %v5252 = vunpack.c.h.b16 %v826
    %v5253 = vunpack.c.l.b16 %v827
    %v5254 = vunpack.c.h.b16 %v827
    %v5255 = vunpack.c.l.b16 %v828
    %v5256 = vunpack.c.h.b16 %v828
    %v5257 = vunpack.c.l.b16 %v829
    %v5258 = vunpack.c.h.b16 %v829
    %v5259 = vunpack.c.l.b16 %v830
    %v5260 = vunpack.c.h.b16 %v830
    %v5261 = vunpack.c.l.b16 %v831
    %v5262 = vunpack.c.h.b16 %v831
    %v5263 = vunpack.c.l.b16 %v832
    %v5264 = vunpack.c.h.b16 %v832
    %v5265 = vunpack.c.l.b16 %v833
    %v5266 = vunpack.c.h.b16 %v833
    %v5267 = vunpack.c.l.b16 %v834
    %v5268 = vunpack.c.h.b16 %v834
    %v5269 = vunpack.c.l.b16 %v835
    %v5270 = vunpack.c.h.b16 %v835
    %v5271 = vunpack.c.l.b16 %v836
    %v5272 = vunpack.c.h.b16 %v836
    %v5273 = vunpack.c.l.b16 %v837
    %v5274 = vunpack.c.h.b16 %v837
    %v5275 = vunpack.c.l.b16 %v838
    %v5276 = vunpack.c.h.b16 %v838
    %v5277 = vunpack.c.l.b16 %v839
    %v5278 = vunpack.c.h.b16 %v839
    %v5279 = vunpack.c.l.b16 %v840
    %v5280 = vunpack.c.h.b16 %v840
    %v5281 = vunpack.c.l.b16 %v841
    %v5282 = vunpack.c.h.b16 %v841
    %v5283 = vunpack.c.l.b16 %v842
    %v5284 = vunpack.c.h.b16 %v842
    %v5285 = vunpack.c.l.b16 %v843
    %v5286 = vunpack.c.h.b16 %v843
    %v5287 = vunpack.c.l.b16 %v844
    %v5288 = vunpack.c.h.b16 %v844
    %v5289 = vunpack.c.l.b16 %v845
    %v5290 = vunpack.c.h.b16 %v845
    %v5291 = vunpack.c.l.b16 %v846
    %v5292 = vunpack.c.h.b16 %v846
    %v5293 = vunpack.c.l.b16 %v847
    %v5294 = vunpack.c.h.b16 %v847
    %v5295 = vunpack.c.l.b16 %v848
    %v5296 = vunpack.c.h.b16 %v848
    %v5297 = vunpack.c.l.b16 %v849
    %v5298 = vunpack.c.h.b16 %v849
    %v5299 = vunpack.c.l.b16 %v850
    %v5300 = vunpack.c.h.b16 %v850
    %v5301 = vunpack.c.l.b16 %v851
    %v5302 = vunpack.c.h.b16 %v851
    %v5303 = vunpack.c.l.b16 %v852
    %v5304 = vunpack.c.h.b16 %v852
    %v5305 = vunpack.c.l.b16 %v853
    %v5306 = vunpack.c.h.b16 %v853
    %v5307 = vunpack.c.l.b16 %v854
    %v5308 = vunpack.c.h.b16 %v854
    %v5309 = vunpack.c.l.b16 %v855
    %v5310 = vunpack.c.h.b16 %v855
    %v5311 = vunpack.c.l.b16 %v856
    %v5312 = vunpack.c.h.b16 %v856
    %v5313 = vunpack.c.l.b16 %v857
    %v5314 = vunpack.c.h.b16 %v857
    %v5315 = vunpack.c.l.b16 %v858
    %v5316 = vunpack.c.h.b16 %v858
    %v5317 = vunpack.c.l.b16 %v859
    %v5318 = vunpack.c.h.b16 %v859
    %v5319 = vunpack.c.l.b16 %v860
    %v5320 = vunpack.c.h.b16 %v860
    %v5321 = vunpack.c.l.b16 %v861
    %v5322 = vunpack.c.h.b16 %v861
    %v5323 = vunpack.c.l.b16 %v862
    %v5324 = vunpack.c.h.b16 %v862
    %v5325 = vunpack.c.l.b16 %v863
    %v5326 = vunpack.c.h.b16 %v863
    %v5327 = vunpack.c.l.b16 %v864
    %v5328 = vunpack.c.h.b16 %v864
    %v5329 = vunpack.c.l.b16 %v865
    %v5330 = vunpack.c.h.b16 %v865
    %v5331 = vunpack.c.l.b16 %v866
    %v5332 = vunpack.c.h.b16 %v866
    %v5333 = vunpack.c.l.b16 %v867
    %v5334 = vunpack.c.h.b16 %v867
    %v5335 = vunpack.c.l.b16 %v868
    %v5336 = vunpack.c.h.b16 %v868
    %v5337 = vunpack.c.l.b16 %v869
    %v5338 = vunpack.c.h.b16 %v869
    %v5339 = vunpack.c.l.b16 %v870
    %v5340 = vunpack.c.h.b16 %v870
    %v5341 = vunpack.c.l.b16 %v871
    %v5342 = vunpack.c.h.b16 %v871
    %v5343 = vunpack.c.l.b16 %v872
    %v5344 = vunpack.c.h.b16 %v872
    %v5345 = vunpack.c.l.b16 %v873
    %v5346 = vunpack.c.h.b16 %v873
    %v5347 = vunpack.c.l.b16 %v874
    %v5348 = vunpack.c.h.b16 %v874
    %v5349 = vunpack.c.l.b16 %v875
    %v5350 = vunpack.c.h.b16 %v875
    %v5351 = vunpack.c.l.b16 %v876
    %v5352 = vunpack.c.h.b16 %v876
    %v5353 = vunpack.c.l.b16 %v877
    %v5354 = vunpack.c.h.b16 %v877
    %v5355 = vunpack.c.l.b16 %v878
    %v5356 = vunpack.c.h.b16 %v878
    %v5357 = vunpack.c.l.b16 %v879
    %v5358 = vunpack.c.h.b16 %v879
    %v5359 = vunpack.c.l.b16 %v880
    %v5360 = vunpack.c.h.b16 %v880
    %v5361 = vunpack.c.l.b16 %v881
    %v5362 = vunpack.c.h.b16 %v881
    %v5363 = vunpack.c.l.b16 %v882
    %v5364 = vunpack.c.h.b16 %v882
    %v5365 = vunpack.c.l.b16 %v883
    %v5366 = vunpack.c.h.b16 %v883
    %v5367 = vunpack.c.l.b16 %v884
    %v5368 = vunpack.c.h.b16 %v884
    %v5369 = vunpack.c.l.b16 %v885
    %v5370 = vunpack.c.h.b16 %v885
    %v5371 = vunpack.c.l.b16 %v886
    %v5372 = vunpack.c.h.b16 %v886
    %v5373 = vunpack.c.l.b16 %v887
    %v5374 = vunpack.c.h.b16 %v887
    %v5375 = vunpack.c.l.b16 %v888
    %v5376 = vunpack.c.h.b16 %v888
    %v5377 = vunpack.c.l.b16 %v889
    %v5378 = vunpack.c.h.b16 %v889
    %v5379 = vunpack.c.l.b16 %v890
    %v5380 = vunpack.c.h.b16 %v890
    %v5381 = vunpack.c.l.b16 %v891
    %v5382 = vunpack.c.h.b16 %v891
    %v5383 = vunpack.c.l.b16 %v892
    %v5384 = vunpack.c.h.b16 %v892
    %v5385 = vunpack.c.l.b16 %v893
    %v5386 = vunpack.c.h.b16 %v893
    %v5387 = vunpack.c.l.b16 %v894
    %v5388 = vunpack.c.h.b16 %v894
    %v5389 = vunpack.c.l.b16 %v895
    %v5390 = vunpack.c.h.b16 %v895
    %v5391 = vunpack.c.l.b16 %v896
    %v5392 = vunpack.c.h.b16 %v896
    %v5393 = vunpack.c.l.b16 %v897
    %v5394 = vunpack.c.h.b16 %v897
    %v5395 = vunpack.c.l.b16 %v898
    %v5396 = vunpack.c.h.b16 %v898
    %v5397 = vunpack.c.l.b16 %v899
    %v5398 = vunpack.c.h.b16 %v899
    %v5399 = vunpack.c.l.b16 %v900
    %v5400 = vunpack.c.h.b16 %v900
    %v5401 = vunpack.c.l.b16 %v901
    %v5402 = vunpack.c.h.b16 %v901
    %v5403 = vunpack.c.l.b16 %v902
    %v5404 = vunpack.c.h.b16 %v902
    %v5405 = vunpack.c.l.b16 %v903
    %v5406 = vunpack.c.h.b16 %v903
    %v5407 = vunpack.c.l.b16 %v904
    %v5408 = vunpack.c.h.b16 %v904
    %v5409 = vunpack.c.l.b16 %v905
    %v5410 = vunpack.c.h.b16 %v905
    %v5411 = vunpack.c.l.b16 %v906
    %v5412 = vunpack.c.h.b16 %v906
    %v5413 = vunpack.c.l.b16 %v907
    %v5414 = vunpack.c.h.b16 %v907
    %v5415 = vunpack.c.l.b16 %v908
    %v5416 = vunpack.c.h.b16 %v908
    %v5417 = vunpack.c.l.b16 %v909
    %v5418 = vunpack.c.h.b16 %v909
    %v5419 = vunpack.c.l.b16 %v910
    %v5420 = vunpack.c.h.b16 %v910
    %v5421 = vunpack.c.l.b16 %v911
    %v5422 = vunpack.c.h.b16 %v911
    %v5423 = vunpack.c.l.b16 %v912
    %v5424 = vunpack.c.h.b16 %v912
    %v5425 = vunpack.c.l.b16 %v913
    %v5426 = vunpack.c.h.b16 %v913
    %v5427 = vunpack.c.l.b16 %v914
    %v5428 = vunpack.c.h.b16 %v914
    %v5429 = vunpack.c.l.b16 %v915
    %v5430 = vunpack.c.h.b16 %v915
    %v5431 = vunpack.c.l.b16 %v916
    %v5432 = vunpack.c.h.b16 %v916
    %v5433 = vunpack.c.l.b16 %v917
    %v5434 = vunpack.c.h.b16 %v917
    %v5435 = vunpack.c.l.b16 %v918
    %v5436 = vunpack.c.h.b16 %v918
    %v5437 = vunpack.c.l.b16 %v919
    %v5438 = vunpack.c.h.b16 %v919
    %v5439 = vunpack.c.l.b16 %v920
    %v5440 = vunpack.c.h.b16 %v920
    %v5441 = vunpack.c.l.b16 %v921
    %v5442 = vunpack.c.h.b16 %v921
    %v5443 = vunpack.c.l.b16 %v922
    %v5444 = vunpack.c.h.b16 %v922
    %v5445 = vunpack.c.l.b16 %v923
    %v5446 = vunpack.c.h.b16 %v923
    %v5447 = vunpack.c.l.b16 %v924
    %v5448 = vunpack.c.h.b16 %v924
    %v5449 = vunpack.c.l.b16 %v925
    %v5450 = vunpack.c.h.b16 %v925
    %v5451 = vunpack.c.l.b16 %v926
    %v5452 = vunpack.c.h.b16 %v926
    %v5453 = vunpack.c.l.b16 %v927
    %v5454 = vunpack.c.h.b16 %v927
    %v5455 = vunpack.c.l.b16 %v928
    %v5456 = vunpack.c.h.b16 %v928
    %v5457 = vunpack.c.l.b16 %v929
    %v5458 = vunpack.c.h.b16 %v929
    %v5459 = vunpack.c.l.b16 %v930
    %v5460 = vunpack.c.h.b16 %v930
    %v5461 = vunpack.c.l.b16 %v931
    %v5462 = vunpack.c.h.b16 %v931
    %v5463 = vunpack.c.l.b16 %v932
    %v5464 = vunpack.c.h.b16 %v932
    %v5465 = vunpack.c.l.b16 %v933
    %v5466 = vunpack.c.h.b16 %v933
    %v5467 = vunpack.c.l.b16 %v934
    %v5468 = vunpack.c.h.b16 %v934
    %v5469 = vunpack.c.l.b16 %v935
    %v5470 = vunpack.c.h.b16 %v935
    %v5471 = vunpack.c.l.b16 %v936
    %v5472 = vunpack.c.h.b16 %v936
    %v5473 = vunpack.c.l.b16 %v937
    %v5474 = vunpack.c.h.b16 %v937
    %v5475 = vunpack.c.l.b16 %v938
    %v5476 = vunpack.c.h.b16 %v938
    %v5477 = vunpack.c.l.b16 %v939
    %v5478 = vunpack.c.h.b16 %v939
    %v5479 = vunpack.c.l.b16 %v940
    %v5480 = vunpack.c.h.b16 %v940
    %v5481 = vunpack.c.l.b16 %v941
    %v5482 = vunpack.c.h.b16 %v941
    %v5483 = vunpack.c.l.b16 %v942
    %v5484 = vunpack.c.h.b16 %v942
    %v5485 = vunpack.c.l.b16 %v943
    %v5486 = vunpack.c.h.b16 %v943
    %v5487 = vunpack.c.l.b16 %v944
    %v5488 = vunpack.c.h.b16 %v944
    %v5489 = vunpack.c.l.b16 %v945
    %v5490 = vunpack.c.h.b16 %v945
    %v5491 = vunpack.c.l.b16 %v946
    %v5492 = vunpack.c.h.b16 %v946
    %v5493 = vunpack.c.l.b16 %v947
    %v5494 = vunpack.c.h.b16 %v947
    %v5495 = vunpack.c.l.b16 %v948
    %v5496 = vunpack.c.h.b16 %v948
    %v5497 = vunpack.c.l.b16 %v949
    %v5498 = vunpack.c.h.b16 %v949
    %v5499 = vunpack.c.l.b16 %v950
    %v5500 = vunpack.c.h.b16 %v950
    %v5501 = vunpack.c.l.b16 %v951
    %v5502 = vunpack.c.h.b16 %v951
    %v5503 = vunpack.c.l.b16 %v952
    %v5504 = vunpack.c.h.b16 %v952
    %v5505 = vunpack.c.l.b16 %v953
    %v5506 = vunpack.c.h.b16 %v953
    %v5507 = vunpack.c.l.b16 %v954
    %v5508 = vunpack.c.h.b16 %v954
    %v5509 = vunpack.c.l.b16 %v955
    %v5510 = vunpack.c.h.b16 %v955
    %v5511 = vunpack.c.l.b16 %v956
    %v5512 = vunpack.c.h.b16 %v956
    %v5513 = vunpack.c.l.b16 %v957
    %v5514 = vunpack.c.h.b16 %v957
    %v5515 = vunpack.c.l.b16 %v958
    %v5516 = vunpack.c.h.b16 %v958
    %v5517 = vunpack.c.l.b16 %v959
    %v5518 = vunpack.c.h.b16 %v959
    %v5519 = vunpack.c.l.b16 %v960
    %v5520 = vunpack.c.h.b16 %v960
    %v5521 = vunpack.c.l.b16 %v961
    %v5522 = vunpack.c.h.b16 %v961
    %v5523 = vunpack.c.l.b16 %v962
    %v5524 = vunpack.c.h.b16 %v962
    %v5525 = vunpack.c.l.b16 %v963
    %v5526 = vunpack.c.h.b16 %v963
    %v5527 = vunpack.c.l.b16 %v964
    %v5528 = vunpack.c.h.b16 %v964
    %v5529 = vunpack.c.l.b16 %v965
    %v5530 = vunpack.c.h.b16 %v965
    %v5531 = vunpack.c.l.b16 %v966
    %v5532 = vunpack.c.h.b16 %v966
    %v5533 = vunpack.c.l.b16 %v967
    %v5534 = vunpack.c.h.b16 %v967
    %v5535 = vunpack.c.l.b16 %v968
    %v5536 = vunpack.c.h.b16 %v968
    %v5537 = vunpack.c.l.b16 %v969
    %v5538 = vunpack.c.h.b16 %v969
    %v5539 = vunpack.c.l.b16 %v970
    %v5540 = vunpack.c.h.b16 %v970
    %v5541 = vunpack.c.l.b16 %v971
    %v5542 = vunpack.c.h.b16 %v971
    %v5543 = vunpack.c.l.b16 %v972
    %v5544 = vunpack.c.h.b16 %v972
    %v5545 = vunpack.c.l.b16 %v973
    %v5546 = vunpack.c.h.b16 %v973
    %v5547 = vunpack.c.l.b16 %v974
    %v5548 = vunpack.c.h.b16 %v974
    %v5549 = vunpack.c.l.b16 %v975
    %v5550 = vunpack.c.h.b16 %v975
    %v5551 = vunpack.c.l.b16 %v976
    %v5552 = vunpack.c.h.b16 %v976
    %v5553 = vunpack.c.l.b16 %v977
    %v5554 = vunpack.c.h.b16 %v977
    %v5555 = vunpack.c.l.b16 %v978
    %v5556 = vunpack.c.h.b16 %v978
    %v5557 = vunpack.c.l.b16 %v979
    %v5558 = vunpack.c.h.b16 %v979
    %v5559 = vunpack.c.l.b16 %v980
    %v5560 = vunpack.c.h.b16 %v980
    %v5561 = vunpack.c.l.b16 %v981
    %v5562 = vunpack.c.h.b16 %v981
    %v5563 = vunpack.c.l.b16 %v982
    %v5564 = vunpack.c.h.b16 %v982
    %v5565 = vunpack.c.l.b16 %v983
    %v5566 = vunpack.c.h.b16 %v983
    %v5567 = vunpack.c.l.b16 %v984
    %v5568 = vunpack.c.h.b16 %v984
    %v5569 = vunpack.c.l.b16 %v985
    %v5570 = vunpack.c.h.b16 %v985
    %v5571 = vunpack.c.l.b16 %v986
    %v5572 = vunpack.c.h.b16 %v986
    %v5573 = vunpack.c.l.b16 %v987
    %v5574 = vunpack.c.h.b16 %v987
    %v5575 = vunpack.c.l.b16 %v988
    %v5576 = vunpack.c.h.b16 %v988
    %v5577 = vunpack.c.l.b16 %v989
    %v5578 = vunpack.c.h.b16 %v989
    %v5579 = vunpack.c.l.b16 %v990
    %v5580 = vunpack.c.h.b16 %v990
    %v5581 = vunpack.c.l.b16 %v991
    %v5582 = vunpack.c.h.b16 %v991
    %v5583 = vunpack.c.l.b16 %v992
    %v5584 = vunpack.c.h.b16 %v992
    %v5585 = vunpack.c.l.b16 %v993
    %v5586 = vunpack.c.h.b16 %v993
    %v5587 = vunpack.c.l.b16 %v994
    %v5588 = vunpack.c.h.b16 %v994
    %v5589 = vunpack.c.l.b16 %v995
    %v5590 = vunpack.c.h.b16 %v995
    %v5591 = vunpack.c.l.b16 %v996
    %v5592 = vunpack.c.h.b16 %v996
    %v5593 = vunpack.c.l.b16 %v997
    %v5594 = vunpack.c.h.b16 %v997
    %v5595 = vunpack.c.l.b16 %v998
    %v5596 = vunpack.c.h.b16 %v998
    %v5597 = vunpack.c.l.b16 %v999
    %v5598 = vunpack.c.h.b16 %v999
    %v5599 = vunpack.c.l.b16 %v1000
    %v5600 = vunpack.c.h.b16 %v1000
    %v5601 = vunpack.c.l.b16 %v1001
    %v5602 = vunpack.c.h.b16 %v1001
    %v5603 = vunpack.c.l.b16 %v1002
    %v5604 = vunpack.c.h.b16 %v1002
    %v5605 = vunpack.c.l.b16 %v1003
    %v5606 = vunpack.c.h.b16 %v1003
    %v5607 = vunpack.c.l.b16 %v1004
    %v5608 = vunpack.c.h.b16 %v1004
    %v5609 = vunpack.c.l.b16 %v1005
    %v5610 = vunpack.c.h.b16 %v1005
    %v5611 = vunpack.c.l.b16 %v1006
    %v5612 = vunpack.c.h.b16 %v1006
    %v5613 = vunpack.c.l.b16 %v1007
    %v5614 = vunpack.c.h.b16 %v1007
    %v5615 = vunpack.c.l.b16 %v1008
    %v5616 = vunpack.c.h.b16 %v1008
    %v5617 = vpack.c.b16 %v4595, %v4593
    %v5618 = vpack.c.b16 %v4596, %v4594
    %v5619 = vpack.c.b16 %v4599, %v4597
    %v5620 = vpack.c.b16 %v4600, %v4598
    %v5621 = vpack.c.b16 %v4603, %v4601
    %v5622 = vpack.c.b16 %v4604, %v4602
    %v5623 = vpack.c.b16 %v4607, %v4605
    %v5624 = vpack.c.b16 %v4608, %v4606
    %v5625 = vpack.c.b16 %v4611, %v4609
    %v5626 = vpack.c.b16 %v4612, %v4610
    %v5627 = vpack.c.b16 %v4615, %v4613
    %v5628 = vpack.c.b16 %v4616, %v4614
    %v5629 = vpack.c.b16 %v4619, %v4617
    %v5630 = vpack.c.b16 %v4620, %v4618
    %v5631 = vpack.c.b16 %v4623, %v4621
    %v5632 = vpack.c.b16 %v4624, %v4622
    %v5633 = vpack.c.b16 %v4627, %v4625
    %v5634 = vpack.c.b16 %v4628, %v4626
    %v5635 = vpack.c.b16 %v4631, %v4629
    %v5636 = vpack.c.b16 %v4632, %v4630
    %v5637 = vpack.c.b16 %v4635, %v4633
    %v5638 = vpack.c.b16 %v4636, %v4634
    %v5639 = vpack.c.b16 %v4639, %v4637
    %v5640 = vpack.c.b16 %v4640, %v4638
    %v5641 = vpack.c.b16 %v4643, %v4641
    %v5642 = vpack.c.b16 %v4644, %v4642
    %v5643 = vpack.c.b16 %v4647, %v4645
    %v5644 = vpack.c.b16 %v4648, %v4646
    %v5645 = vpack.c.b16 %v4651, %v4649
    %v5646 = vpack.c.b16 %v4652, %v4650
    %v5647 = vpack.c.b16 %v4655, %v4653
    %v5648 = vpack.c.b16 %v4656, %v4654
    %v5649 = vpack.c.b16 %v4659, %v4657
    %v5650 = vpack.c.b16 %v4660, %v4658
    %v5651 = vpack.c.b16 %v4663, %v4661
    %v5652 = vpack.c.b16 %v4664, %v4662
    %v5653 = vpack.c.b16 %v4667, %v4665
    %v5654 = vpack.c.b16 %v4668, %v4666
    %v5655 = vpack.c.b16 %v4671, %v4669
    %v5656 = vpack.c.b16 %v4672, %v4670
    %v5657 = vpack.c.b16 %v4675, %v4673
    %v5658 = vpack.c.b16 %v4676, %v4674
    %v5659 = vpack.c.b16 %v4679, %v4677
    %v5660 = vpack.c.b16 %v4680, %v4678
    %v5661 = vpack.c.b16 %v4683, %v4681
    %v5662 = vpack.c.b16 %v4684, %v4682
    %v5663 = vpack.c.b16 %v4687, %v4685
    %v5664 = vpack.c.b16 %v4688, %v4686
    %v5665 = vpack.c.b16 %v4691, %v4689
    %v5666 = vpack.c.b16 %v4692, %v4690
    %v5667 = vpack.c.b16 %v4695, %v4693
    %v5668 = vpack.c.b16 %v4696, %v4694
    %v5669 = vpack.c.b16 %v4699, %v4697
    %v5670 = vpack.c.b16 %v4700, %v4698
    %v5671 = vpack.c.b16 %v4703, %v4701
    %v5672 = vpack.c.b16 %v4704, %v4702
    %v5673 = vpack.c.b16 %v4707, %v4705
    %v5674 = vpack.c.b16 %v4708, %v4706
    %v5675 = vpack.c.b16 %v4711, %v4709
    %v5676 = vpack.c.b16 %v4712, %v4710
    %v5677 = vpack.c.b16 %v4715, %v4713
    %v5678 = vpack.c.b16 %v4716, %v4714
    %v5679 = vpack.c.b16 %v4719, %v4717
    %v5680 = vpack.c.b16 %v4720, %v4718
    %v5681 = vpack.c.b16 %v4723, %v4721
    %v5682 = vpack.c.b16 %v4724, %v4722
    %v5683 = vpack.c.b16 %v4727, %v4725
    %v5684 = vpack.c.b16 %v4728, %v4726
    %v5685 = vpack.c.b16 %v4731, %v4729
    %v5686 = vpack.c.b16 %v4732, %v4730
    %v5687 = vpack.c.b16 %v4735, %v4733
    %v5688 = vpack.c.b16 %v4736, %v4734
    %v5689 = vpack.c.b16 %v4739, %v4737
    %v5690 = vpack.c.b16 %v4740, %v4738
    %v5691 = vpack.c.b16 %v4743, %v4741
    %v5692 = vpack.c.b16 %v4744, %v4742
    %v5693 = vpack.c.b16 %v4747, %v4745
    %v5694 = vpack.c.b16 %v4748, %v4746
    %v5695 = vpack.c.b16 %v4751, %v4749
    %v5696 = vpack.c.b16 %v4752, %v4750
    %v5697 = vpack.c.b16 %v4755, %v4753
    %v5698 = vpack.c.b16 %v4756, %v4754
    %v5699 = vpack.c.b16 %v4759, %v4757
    %v5700 = vpack.c.b16 %v4760, %v4758
    %v5701 = vpack.c.b16 %v4763, %v4761
    %v5702 = vpack.c.b16 %v4764, %v4762
    %v5703 = vpack.c.b16 %v4767, %v4765
    %v5704 = vpack.c.b16 %v4768, %v4766
    %v5705 = vpack.c.b16 %v4771, %v4769
    %v5706 = vpack.c.b16 %v4772, %v4770
    %v5707 = vpack.c.b16 %v4775, %v4773
    %v5708 = vpack.c.b16 %v4776, %v4774
    %v5709 = vpack.c.b16 %v4779, %v4777
    %v5710 = vpack.c.b16 %v4780, %v4778
    %v5711 = vpack.c.b16 %v4783, %v4781
    %v5712 = vpack.c.b16 %v4784, %v4782
    %v5713 = vpack.c.b16 %v4787, %v4785
    %v5714 = vpack.c.b16 %v4788, %v4786
    %v5715 = vpack.c.b16 %v4791, %v4789
    %v5716 = vpack.c.b16 %v4792, %v4790
    %v5717 = vpack.c.b16 %v4795, %v4793
    %v5718 = vpack.c.b16 %v4796, %v4794
    %v5719 = vpack.c.b16 %v4799, %v4797
    %v5720 = vpack.c.b16 %v4800, %v4798
    %v5721 = vpack.c.b16 %v4803, %v4801
    %v5722 = vpack.c.b16 %v4804, %v4802
    %v5723 = vpack.c.b16 %v4807, %v4805
    %v5724 = vpack.c.b16 %v4808, %v4806
    %v5725 = vpack.c.b16 %v4811, %v4809
    %v5726 = vpack.c.b16 %v4812, %v4810
    %v5727 = vpack.c.b16 %v4815, %v4813
    %v5728 = vpack.c.b16 %v4816, %v4814
    %v5729 = vpack.c.b16 %v4819, %v4817
    %v5730 = vpack.c.b16 %v4820, %v4818
    %v5731 = vpack.c.b16 %v4823, %v4821
    %v5732 = vpack.c.b16 %v4824, %v4822
    %v5733 = vpack.c.b16 %v4827, %v4825
    %v5734 = vpack.c.b16 %v4828, %v4826
    %v5735 = vpack.c.b16 %v4831, %v4829
    %v5736 = vpack.c.b16 %v4832, %v4830
    %v5737 = vpack.c.b16 %v4835, %v4833
    %v5738 = vpack.c.b16 %v4836, %v4834
    %v5739 = vpack.c.b16 %v4839, %v4837
    %v5740 = vpack.c.b16 %v4840, %v4838
    %v5741 = vpack.c.b16 %v4843, %v4841
    %v5742 = vpack.c.b16 %v4844, %v4842
    %v5743 = vpack.c.b16 %v4847, %v4845
    %v5744 = vpack.c.b16 %v4848, %v4846
    %v5745 = vpack.c.b16 %v4851, %v4849
    %v5746 = vpack.c.b16 %v4852, %v4850
    %v5747 = vpack.c.b16 %v4855, %v4853
    %v5748 = vpack.c.b16 %v4856, %v4854
    %v5749 = vpack.c.b16 %v4859, %v4857
    %v5750 = vpack.c.b16 %v4860, %v4858
    %v5751 = vpack.c.b16 %v4863, %v4861
    %v5752 = vpack.c.b16 %v4864, %v4862
    %v5753 = vpack.c.b16 %v4867, %v4865
    %v5754 = vpack.c.b16 %v4868, %v4866
    %v5755 = vpack.c.b16 %v4871, %v4869
    %v5756 = vpack.c.b16 %v4872, %v4870
    %v5757 = vpack.c.b16 %v4875, %v4873
    %v5758 = vpack.c.b16 %v4876, %v4874
    %v5759 = vpack.c.b16 %v4879, %v4877
    %v5760 = vpack.c.b16 %v4880, %v4878
    %v5761 = vpack.c.b16 %v4883, %v4881
    %v5762 = vpack.c.b16 %v4884, %v4882
    %v5763 = vpack.c.b16 %v4887, %v4885
    %v5764 = vpack.c.b16 %v4888, %v4886
    %v5765 = vpack.c.b16 %v4891, %v4889
    %v5766 = vpack.c.b16 %v4892, %v4890
    %v5767 = vpack.c.b16 %v4895, %v4893
    %v5768 = vpack.c.b16 %v4896, %v4894
    %v5769 = vpack.c.b16 %v4899, %v4897
    %v5770 = vpack.c.b16 %v4900, %v4898
    %v5771 = vpack.c.b16 %v4903, %v4901
    %v5772 = vpack.c.b16 %v4904, %v4902
    %v5773 = vpack.c.b16 %v4907, %v4905
    %v5774 = vpack.c.b16 %v4908, %v4906
    %v5775 = vpack.c.b16 %v4911, %v4909
    %v5776 = vpack.c.b16 %v4912, %v4910
    %v5777 = vpack.c.b16 %v4915, %v4913
    %v5778 = vpack.c.b16 %v4916, %v4914
    %v5779 = vpack.c.b16 %v4919, %v4917
    %v5780 = vpack.c.b16 %v4920, %v4918
    %v5781 = vpack.c.b16 %v4923, %v4921
    %v5782 = vpack.c.b16 %v4924, %v4922
    %v5783 = vpack.c.b16 %v4927, %v4925
    %v5784 = vpack.c.b16 %v4928, %v4926
    %v5785 = vpack.c.b16 %v4931, %v4929
    %v5786 = vpack.c.b16 %v4932, %v4930
    %v5787 = vpack.c.b16 %v4935, %v4933
    %v5788 = vpack.c.b16 %v4936, %v4934
    %v5789 = vpack.c.b16 %v4939, %v4937
    %v5790 = vpack.c.b16 %v4940, %v4938
    %v5791 = vpack.c.b16 %v4943, %v4941
    %v5792 = vpack.c.b16 %v4944, %v4942
    %v5793 = vpack.c.b16 %v4947, %v4945
    %v5794 = vpack.c.b16 %v4948, %v4946
    %v5795 = vpack.c.b16 %v4951, %v4949
    %v5796 = vpack.c.b16 %v4952, %v4950
    %v5797 = vpack.c.b16 %v4955, %v4953
    %v5798 = vpack.c.b16 %v4956, %v4954
    %v5799 = vpack.c.b16 %v4959, %v4957
    %v5800 = vpack.c.b16 %v4960, %v4958
    %v5801 = vpack.c.b16 %v4963, %v4961
    %v5802 = vpack.c.b16 %v4964, %v4962
    %v5803 = vpack.c.b16 %v4967, %v4965
    %v5804 = vpack.c.b16 %v4968, %v4966
    %v5805 = vpack.c.b16 %v4971, %v4969
    %v5806 = vpack.c.b16 %v4972, %v4970
    %v5807 = vpack.c.b16 %v4975, %v4973
    %v5808 = vpack.c.b16 %v4976, %v4974
    %v5809 = vpack.c.b16 %v4979, %v4977
    %v5810 = vpack.c.b16 %v4980, %v4978
    %v5811 = vpack.c.b16 %v4983, %v4981
    %v5812 = vpack.c.b16 %v4984, %v4982
    %v5813 = vpack.c.b16 %v4987, %v4985
    %v5814 = vpack.c.b16 %v4988, %v4986
    %v5815 = vpack.c.b16 %v4991, %v4989
    %v5816 = vpack.c.b16 %v4992, %v4990
    %v5817 = vpack.c.b16 %v4995, %v4993
    %v5818 = vpack.c.b16 %v4996, %v4994
    %v5819 = vpack.c.b16 %v4999, %v4997
    %v5820 = vpack.c.b16 %v5000, %v4998
    %v5821 = vpack.c.b16 %v5003, %v5001
    %v5822 = vpack.c.b16 %v5004, %v5002
    %v5823 = vpack.c.b16 %v5007, %v5005
    %v5824 = vpack.c.b16 %v5008, %v5006
    %v5825 = vpack.c.b16 %v5011, %v5009
    %v5826 = vpack.c.b16 %v5012, %v5010
    %v5827 = vpack.c.b16 %v5015, %v5013
    %v5828 = vpack.c.b16 %v5016, %v5014
    %v5829 = vpack.c.b16 %v5019, %v5017
    %v5830 = vpack.c.b16 %v5020, %v5018
    %v5831 = vpack.c.b16 %v5023, %v5021
    %v5832 = vpack.c.b16 %v5024, %v5022
    %v5833 = vpack.c.b16 %v5027, %v5025
    %v5834 = vpack.c.b16 %v5028, %v5026
    %v5835 = vpack.c.b16 %v5031, %v5029
    %v5836 = vpack.c.b16 %v5032, %v5030
    %v5837 = vpack.c.b16 %v5035, %v5033
    %v5838 = vpack.c.b16 %v5036, %v5034
    %v5839 = vpack.c.b16 %v5039, %v5037
    %v5840 = vpack.c.b16 %v5040, %v5038
    %v5841 = vpack.c.b16 %v5043, %v5041
    %v5842 = vpack.c.b16 %v5044, %v5042
    %v5843 = vpack.c.b16 %v5047, %v5045
    %v5844 = vpack.c.b16 %v5048, %v5046
    %v5845 = vpack.c.b16 %v5051, %v5049
    %v5846 = vpack.c.b16 %v5052, %v5050
    %v5847 = vpack.c.b16 %v5055, %v5053
    %v5848 = vpack.c.b16 %v5056, %v5054
    %v5849 = vpack.c.b16 %v5059, %v5057
    %v5850 = vpack.c.b16 %v5060, %v5058
    %v5851 = vpack.c.b16 %v5063, %v5061
    %v5852 = vpack.c.b16 %v5064, %v5062
    %v5853 = vpack.c.b16 %v5067, %v5065
    %v5854 = vpack.c.b16 %v5068, %v5066
    %v5855 = vpack.c.b16 %v5071, %v5069
    %v5856 = vpack.c.b16 %v5072, %v5070
    %v5857 = vpack.c.b16 %v5075, %v5073
    %v5858 = vpack.c.b16 %v5076, %v5074
    %v5859 = vpack.c.b16 %v5079, %v5077
    %v5860 = vpack.c.b16 %v5080, %v5078
    %v5861 = vpack.c.b16 %v5083, %v5081
    %v5862 = vpack.c.b16 %v5084, %v5082
    %v5863 = vpack.c.b16 %v5087, %v5085
    %v5864 = vpack.c.b16 %v5088, %v5086
    %v5865 = vpack.c.b16 %v5091, %v5089
    %v5866 = vpack.c.b16 %v5092, %v5090
    %v5867 = vpack.c.b16 %v5095, %v5093
    %v5868 = vpack.c.b16 %v5096, %v5094
    %v5869 = vpack.c.b16 %v5099, %v5097
    %v5870 = vpack.c.b16 %v5100, %v5098
    %v5871 = vpack.c.b16 %v5103, %v5101
    %v5872 = vpack.c.b16 %v5104, %v5102
    %v5873 = vpack.c.b16 %v5107, %v5105
    %v5874 = vpack.c.b16 %v5108, %v5106
    %v5875 = vpack.c.b16 %v5111, %v5109
    %v5876 = vpack.c.b16 %v5112, %v5110
    %v5877 = vpack.c.b16 %v5115, %v5113
    %v5878 = vpack.c.b16 %v5116, %v5114
    %v5879 = vpack.c.b16 %v5119, %v5117
    %v5880 = vpack.c.b16 %v5120, %v5118
    %v5881 = vpack.c.b16 %v5123, %v5121
    %v5882 = vpack.c.b16 %v5124, %v5122
    %v5883 = vpack.c.b16 %v5127, %v5125
    %v5884 = vpack.c.b16 %v5128, %v5126
    %v5885 = vpack.c.b16 %v5131, %v5129
    %v5886 = vpack.c.b16 %v5132, %v5130
    %v5887 = vpack.c.b16 %v5135, %v5133
    %v5888 = vpack.c.b16 %v5136, %v5134
    %v5889 = vpack.c.b16 %v5139, %v5137
    %v5890 = vpack.c.b16 %v5140, %v5138
    %v5891 = vpack.c.b16 %v5143, %v5141
    %v5892 = vpack.c.b16 %v5144, %v5142
    %v5893 = vpack.c.b16 %v5147, %v5145
    %v5894 = vpack.c.b16 %v5148, %v5146
    %v5895 = vpack.c.b16 %v5151, %v5149
    %v5896 = vpack.c.b16 %v5152, %v5150
    %v5897 = vpack.c.b16 %v5155, %v5153
    %v5898 = vpack.c.b16 %v5156, %v5154
    %v5899 = vpack.c.b16 %v5159, %v5157
    %v5900 = vpack.c.b16 %v5160, %v5158
    %v5901 = vpack.c.b16 %v5163, %v5161
    %v5902 = vpack.c.b16 %v5164, %v5162
    %v5903 = vpack.c.b16 %v5167, %v5165
    %v5904 = vpack.c.b16 %v5168, %v5166
    %v5905 = vpack.c.b16 %v5171, %v5169
    %v5906 = vpack.c.b16 %v5172, %v5170
    %v5907 = vpack.c.b16 %v5175, %v5173
    %v5908 = vpack.c.b16 %v5176, %v5174
    %v5909 = vpack.c.b16 %v5179, %v5177
    %v5910 = vpack.c.b16 %v5180, %v5178
    %v5911 = vpack.c.b16 %v5183, %v5181
    %v5912 = vpack.c.b16 %v5184, %v5182
    %v5913 = vpack.c.b16 %v5187, %v5185
    %v5914 = vpack.c.b16 %v5188, %v5186
    %v5915 = vpack.c.b16 %v5191, %v5189
    %v5916 = vpack.c.b16 %v5192, %v5190
    %v5917 = vpack.c.b16 %v5195, %v5193
    %v5918 = vpack.c.b16 %v5196, %v5194
    %v5919 = vpack.c.b16 %v5199, %v5197
    %v5920 = vpack.c.b16 %v5200, %v5198
    %v5921 = vpack.c.b16 %v5203, %v5201
    %v5922 = vpack.c.b16 %v5204, %v5202
    %v5923 = vpack.c.b16 %v5207, %v5205
    %v5924 = vpack.c.b16 %v5208, %v5206
    %v5925 = vpack.c.b16 %v5211, %v5209
    %v5926 = vpack.c.b16 %v5212, %v5210
    %v5927 = vpack.c.b16 %v5215, %v5213
    %v5928 = vpack.c.b16 %v5216, %v5214
    %v5929 = vpack.c.b16 %v5219, %v5217
    %v5930 = vpack.c.b16 %v5220, %v5218
    %v5931 = vpack.c.b16 %v5223, %v5221
    %v5932 = vpack.c.b16 %v5224, %v5222
    %v5933 = vpack.c.b16 %v5227, %v5225
    %v5934 = vpack.c.b16 %v5228, %v5226
    %v5935 = vpack.c.b16 %v5231, %v5229
    %v5936 = vpack.c.b16 %v5232, %v5230
    %v5937 = vpack.c.b16 %v5235, %v5233
    %v5938 = vpack.c.b16 %v5236, %v5234
    %v5939 = vpack.c.b16 %v5239, %v5237
    %v5940 = vpack.c.b16 %v5240, %v5238
    %v5941 = vpack.c.b16 %v5243, %v5241
    %v5942 = vpack.c.b16 %v5244, %v5242
    %v5943 = vpack.c.b16 %v5247, %v5245
    %v5944 = vpack.c.b16 %v5248, %v5246
    %v5945 = vpack.c.b16 %v5251, %v5249
    %v5946 = vpack.c.b16 %v5252, %v5250
    %v5947 = vpack.c.b16 %v5255, %v5253
    %v5948 = vpack.c.b16 %v5256, %v5254
    %v5949 = vpack.c.b16 %v5259, %v5257
    %v5950 = vpack.c.b16 %v5260, %v5258
    %v5951 = vpack.c.b16 %v5263, %v5261
    %v5952 = vpack.c.b16 %v5264, %v5262
    %v5953 = vpack.c.b16 %v5267, %v5265
    %v5954 = vpack.c.b16 %v5268, %v5266
    %v5955 = vpack.c.b16 %v5271, %v5269
    %v5956 = vpack.c.b16 %v5272, %v5270
    %v5957 = vpack.c.b16 %v5275, %v5273
    %v5958 = vpack.c.b16 %v5276, %v5274
    %v5959 = vpack.c.b16 %v5279, %v5277
    %v5960 = vpack.c.b16 %v5280, %v5278
    %v5961 = vpack.c.b16 %v5283, %v5281
    %v5962 = vpack.c.b16 %v5284, %v5282
    %v5963 = vpack.c.b16 %v5287, %v5285
    %v5964 = vpack.c.b16 %v5288, %v5286
    %v5965 = vpack.c.b16 %v5291, %v5289
    %v5966 = vpack.c.b16 %v5292, %v5290
    %v5967 = vpack.c.b16 %v5295, %v5293
    %v5968 = vpack.c.b16 %v5296, %v5294
    %v5969 = vpack.c.b16 %v5299, %v5297
    %v5970 = vpack.c.b16 %v5300, %v5298
    %v5971 = vpack.c.b16 %v5303, %v5301
    %v5972 = vpack.c.b16 %v5304, %v5302
    %v5973 = vpack.c.b16 %v5307, %v5305
    %v5974 = vpack.c.b16 %v5308, %v5306
    %v5975 = vpack.c.b16 %v5311, %v5309
    %v5976 = vpack.c.b16 %v5312, %v5310
    %v5977 = vpack.c.b16 %v5315, %v5313
    %v5978 = vpack.c.b16 %v5316, %v5314
    %v5979 = vpack.c.b16 %v5319, %v5317
    %v5980 = vpack.c.b16 %v5320, %v5318
    %v5981 = vpack.c.b16 %v5323, %v5321
    %v5982 = vpack.c.b16 %v5324, %v5322
    %v5983 = vpack.c.b16 %v5327, %v5325
    %v5984 = vpack.c.b16 %v5328, %v5326
    %v5985 = vpack.c.b16 %v5331, %v5329
    %v5986 = vpack.c.b16 %v5332, %v5330
    %v5987 = vpack.c.b16 %v5335, %v5333
    %v5988 = vpack.c.b16 %v5336, %v5334
    %v5989 = vpack.c.b16 %v5339, %v5337
    %v5990 = vpack.c.b16 %v5340, %v5338
    %v5991 = vpack.c.b16 %v5343, %v5341
    %v5992 = vpack.c.b16 %v5344, %v5342
    %v5993 = vpack.c.b16 %v5347, %v5345
    %v5994 = vpack.c.b16 %v5348, %v5346
    %v5995 = vpack.c.b16 %v5351, %v5349
    %v5996 = vpack.c.b16 %v5352, %v5350
    %v5997 = vpack.c.b16 %v5355, %v5353
    %v5998 = vpack.c.b16 %v5356, %v5354
    %v5999 = vpack.c.b16 %v5359, %v5357
    %v6000 = vpack.c.b16 %v5360, %v5358
    %v6001 = vpack.c.b16 %v5363, %v5361
    %v6002 = vpack.c.b16 %v5364, %v5362
    %v6003 = vpack.c.b16 %v5367, %v5365
    %v6004 = vpack.c.b16 %v5368, %v5366
    %v6005 = vpack.c.b16 %v5371, %v5369
    %v6006 = vpack.c.b16 %v5372, %v5370
    %v6007 = vpack.c.b16 %v5375, %v5373
    %v6008 = vpack.c.b16 %v5376, %v5374
    %v6009 = vpack.c.b16 %v5379, %v5377
    %v6010 = vpack.c.b16 %v5380, %v5378
    %v6011 = vpack.c.b16 %v5383, %v5381
    %v6012 = vpack.c.b16 %v5384, %v5382
    %v6013 = vpack.c.b16 %v5387, %v5385
    %v6014 = vpack.c.b16 %v5388, %v5386
    %v6015 = vpack.c.b16 %v5391, %v5389
    %v6016 = vpack.c.b16 %v5392, %v5390
    %v6017 = vpack.c.b16 %v5395, %v5393
    %v6018 = vpack.c.b16 %v5396, %v5394
    %v6019 = vpack.c.b16 %v5399, %v5397
    %v6020 = vpack.c.b16 %v5400, %v5398
    %v6021 = vpack.c.b16 %v5403, %v5401
    %v6022 = vpack.c.b16 %v5404, %v5402
    %v6023 = vpack.c.b16 %v5407, %v5405
    %v6024 = vpack.c.b16 %v5408, %v5406
    %v6025 = vpack.c.b16 %v5411, %v5409
    %v6026 = vpack.c.b16 %v5412, %v5410
    %v6027 = vpack.c.b16 %v5415, %v5413
    %v6028 = vpack.c.b16 %v5416, %v5414
    %v6029 = vpack.c.b16 %v5419, %v5417
    %v6030 = vpack.c.b16 %v5420, %v5418
    %v6031 = vpack.c.b16 %v5423, %v5421
    %v6032 = vpack.c.b16 %v5424, %v5422
    %v6033 = vpack.c.b16 %v5427, %v5425
    %v6034 = vpack.c.b16 %v5428, %v5426
    %v6035 = vpack.c.b16 %v5431, %v5429
    %v6036 = vpack.c.b16 %v5432, %v5430
    %v6037 = vpack.c.b16 %v5435, %v5433
    %v6038 = vpack.c.b16 %v5436, %v5434
    %v6039 = vpack.c.b16 %v5439, %v5437
    %v6040 = vpack.c.b16 %v5440, %v5438
    %v6041 = vpack.c.b16 %v5443, %v5441
    %v6042 = vpack.c.b16 %v5444, %v5442
    %v6043 = vpack.c.b16 %v5447, %v5445
    %v6044 = vpack.c.b16 %v5448, %v5446
    %v6045 = vpack.c.b16 %v5451, %v5449
    %v6046 = vpack.c.b16 %v5452, %v5450
    %v6047 = vpack.c.b16 %v5455, %v5453
    %v6048 = vpack.c.b16 %v5456, %v5454
    %v6049 = vpack.c.b16 %v5459, %v5457
    %v6050 = vpack.c.b16 %v5460, %v5458
    %v6051 = vpack.c.b16 %v5463, %v5461
    %v6052 = vpack.c.b16 %v5464, %v5462
    %v6053 = vpack.c.b16 %v5467, %v5465
    %v6054 = vpack.c.b16 %v5468, %v5466
    %v6055 = vpack.c.b16 %v5471, %v5469
    %v6056 = vpack.c.b16 %v5472, %v5470
    %v6057 = vpack.c.b16 %v5475, %v5473
    %v6058 = vpack.c.b16 %v5476, %v5474
    %v6059 = vpack.c.b16 %v5479, %v5477
    %v6060 = vpack.c.b16 %v5480, %v5478
    %v6061 = vpack.c.b16 %v5483, %v5481
    %v6062 = vpack.c.b16 %v5484, %v5482
    %v6063 = vpack.c.b16 %v5487, %v5485
    %v6064 = vpack.c.b16 %v5488, %v5486
    %v6065 = vpack.c.b16 %v5491, %v5489
    %v6066 = vpack.c.b16 %v5492, %v5490
    %v6067 = vpack.c.b16 %v5495, %v5493
    %v6068 = vpack.c.b16 %v5496, %v5494
    %v6069 = vpack.c.b16 %v5499, %v5497
    %v6070 = vpack.c.b16 %v5500, %v5498
    %v6071 = vpack.c.b16 %v5503, %v5501
    %v6072 = vpack.c.b16 %v5504, %v5502
    %v6073 = vpack.c.b16 %v5507, %v5505
    %v6074 = vpack.c.b16 %v5508, %v5506
    %v6075 = vpack.c.b16 %v5511, %v5509
    %v6076 = vpack.c.b16 %v5512, %v5510
    %v6077 = vpack.c.b16 %v5515, %v5513
    %v6078 = vpack.c.b16 %v5516, %v5514
    %v6079 = vpack.c.b16 %v5519, %v5517
    %v6080 = vpack.c.b16 %v5520, %v5518
    %v6081 = vpack.c.b16 %v5523, %v5521
    %v6082 = vpack.c.b16 %v5524, %v5522
    %v6083 = vpack.c.b16 %v5527, %v5525
    %v6084 = vpack.c.b16 %v5528, %v5526
    %v6085 = vpack.c.b16 %v5531, %v5529
    %v6086 = vpack.c.b16 %v5532, %v5530
    %v6087 = vpack.c.b16 %v5535, %v5533
    %v6088 = vpack.c.b16 %v5536, %v5534
    %v6089 = vpack.c.b16 %v5539, %v5537
    %v6090 = vpack.c.b16 %v5540, %v5538
    %v6091 = vpack.c.b16 %v5543, %v5541
    %v6092 = vpack.c.b16 %v5544, %v5542
    %v6093 = vpack.c.b16 %v5547, %v5545
    %v6094 = vpack.c.b16 %v5548, %v5546
    %v6095 = vpack.c.b16 %v5551, %v5549
    %v6096 = vpack.c.b16 %v5552, %v5550
    %v6097 = vpack.c.b16 %v5555, %v5553
    %v6098 = vpack.c.b16 %v5556, %v5554
    %v6099 = vpack.c.b16 %v5559, %v5557
    %v6100 = vpack.c.b16 %v5560, %v5558
    %v6101 = vpack.c.b16 %v5563, %v5561
    %v6102 = vpack.c.b16 %v5564, %v5562
    %v6103 = vpack.c.b16 %v5567, %v5565
    %v6104 = vpack.c.b16 %v5568, %v5566
    %v6105 = vpack.c.b16 %v5571, %v5569
    %v6106 = vpack.c.b16 %v5572, %v5570
    %v6107 = vpack.c.b16 %v5575, %v5573
    %v6108 = vpack.c.b16 %v5576, %v5574
    %v6109 = vpack.c.b16 %v5579, %v5577
    %v6110 = vpack.c.b16 %v5580, %v5578
    %v6111 = vpack.c.b16 %v5583, %v5581
    %v6112 = vpack.c.b16 %v5584, %v5582
    %v6113 = vpack.c.b16 %v5587, %v5585
    %v6114 = vpack.c.b16 %v5588, %v5586
    %v6115 = vpack.c.b16 %v5591, %v5589
    %v6116 = vpack.c.b16 %v5592, %v5590
    %v6117 = vpack.c.b16 %v5595, %v5593
    %v6118 = vpack.c.b16 %v5596, %v5594
    %v6119 = vpack.c.b16 %v5599, %v5597
    %v6120 = vpack.c.b16 %v5600, %v5598
    %v6121 = vpack.c.b16 %v5603, %v5601
    %v6122 = vpack.c.b16 %v5604, %v5602
    %v6123 = vpack.c.b16 %v5607, %v5605
    %v6124 = vpack.c.b16 %v5608, %v5606
    %v6125 = vpack.c.b16 %v5611, %v5609
    %v6126 = vpack.c.b16 %v5612, %v5610
    %v6127 = vpack.c.b16 %v5615, %v5613
    %v6128 = vpack.c.b16 %v5616, %v5614
    %6641 = vmatprep.subr.bf16.mxu0 %v496
    %6642 = vmatpush1.bf16.xpose.msra.mxu0 %v495
    %6643 = vmatprep.subr.bf16.mxu0 0
    %6644 = vmatpush1.bf16.xpose.msra.mxu0 0
    %6645 = vmatprep.subr.bf16.mxu0 0
    %6646 = vmatpush1.bf16.xpose.msra.mxu0 0
    %6647 = vmatprep.subr.bf16.mxu0 0
    %6648 = vmatpush1.bf16.xpose.msra.mxu0 0
    %6649 = vmatprep.subr.bf16.mxu0 0
    %6650 = vmatpush1.bf16.xpose.msra.mxu0 0
    %6651 = vmatprep.subr.bf16.mxu0 0
    %6652 = vmatpush1.bf16.xpose.msra.mxu0 0
    %6653 = vmatprep.subr.bf16.mxu0 0
    %6654 = vmatpush1.bf16.xpose.msra.mxu0 0
    %6655 = vmatprep.subr.bf16.mxu0 0
    %6656 = vmatpush1.bf16.xpose.msra.mxu0 0
    %6657 = vmatprep.subr.bf16.mxu0 0
    %6658 = vmatpush1.bf16.xpose.msra.mxu0 0
    %6659 = vmatprep.subr.bf16.mxu0 0
    %6660 = vmatpush1.bf16.xpose.msra.mxu0 0
    %6661 = vmatprep.subr.bf16.mxu0 0
    %6662 = vmatpush1.bf16.xpose.msra.mxu0 0
    %6663 = vmatprep.subr.bf16.mxu0 0
    %6664 = vmatpush1.bf16.xpose.msra.mxu0 0
    %6665 = vmatprep.subr.bf16.mxu0 0
    %6666 = vmatpush1.bf16.xpose.msra.mxu0 0
    %6667 = vmatprep.subr.bf16.mxu0 0
    %6668 = vmatpush1.bf16.xpose.msra.mxu0 0
    %6669 = vmatprep.subr.bf16.mxu0 0
    %6670 = vmatpush1.bf16.xpose.msra.mxu0 0
    %6671 = vmatprep.subr.bf16.mxu0 0
    %6672 = vmatpush1.bf16.xpose.msra.mxu0 0
    %6673 = vmatprep.mubr.bf16.mxu0 %v5618
    %6674 = vmatmul.mubr.bf16.gmra.mrb[0].mxu0 %v5617
    %v6675 = vpop.f32.mrb[0].mxu0
    %v6676 = vadd.f32 %v1524, %v6675
    %v6677 = vpop.f32.mrb[0].mxu0
    %v6678 = vpop.f32.mrb[0].mxu0
    %v6679 = vadd.f32 %v1529, %v6678
    %v6680 = vpop.f32.mrb[0].mxu0
    %6681 = vmatprep.mubr.bf16.mxu0 %v5620
    %6682 = vmatmul.mubr.bf16.gmra.mrb[0].mxu0 %v5619
    %v6683 = vpop.f32.mrb[0].mxu0
    %v6684 = vadd.f32 %v1534, %v6683
    %v6685 = vpop.f32.mrb[0].mxu0
    %v6686 = vpop.f32.mrb[0].mxu0
    %v6687 = vadd.f32 %v1539, %v6686
    %v6688 = vpop.f32.mrb[0].mxu0
    %6689 = vmatprep.mubr.bf16.mxu0 %v5622
    %6690 = vmatmul.mubr.bf16.gmra.mrb[0].mxu0 %v5621
    %v6691 = vpop.f32.mrb[0].mxu0
    %v6692 = vadd.f32 %v1544, %v6691
    %v6693 = vpop.f32.mrb[0].mxu0
    %v6694 = vpop.f32.mrb[0].mxu0
    %v6695 = vadd.f32 %v1549, %v6694
    %v6696 = vpop.f32.mrb[0].mxu0
    %6697 = vmatprep.mubr.bf16.mxu0 %v5624
    %6698 = vmatmul.mubr.bf16.gmra.mrb[0].mxu0 %v5623
    %v6699 = vpop.f32.mrb[0].mxu0
    %v6700 = vadd.f32 %v1554, %v6699
    %v6701 = vpop.f32.mrb[0].mxu0
    %v6702 = vpop.f32.mrb[0].mxu0
    %v6703 = vadd.f32 %v1559, %v6702
    %v6704 = vpop.f32.mrb[0].mxu0
    %6705 = vmatprep.mubr.bf16.mxu0 %v5626
    %6706 = vmatmul.mubr.bf16.gmra.mrb[0].mxu0 %v5625
    %v6707 = vpop.f32.mrb[0].mxu0
    %v6708 = vadd.f32 %v1564, %v6707
    %v6709 = vpop.f32.mrb[0].mxu0
    %v6710 = vpop.f32.mrb[0].mxu0
    %v6711 = vadd.f32 %v1569, %v6710
    %v6712 = vpop.f32.mrb[0].mxu0
    %6713 = vmatprep.mubr.bf16.mxu0 %v5628
    %6714 = vmatmul.mubr.bf16.gmra.mrb[0].mxu0 %v5627
    %v6715 = vpop.f32.mrb[0].mxu0
    %v6716 = vadd.f32 %v1574, %v6715
    %v6717 = vpop.f32.mrb[0].mxu0
    %v6718 = vpop.f32.mrb[0].mxu0
    %v6719 = vadd.f32 %v1579, %v6718
    %v6720 = vpop.f32.mrb[0].mxu0
    %6721 = vmatprep.mubr.bf16.mxu0 %v5630
    %6722 = vmatmul.mubr.bf16.gmra.mrb[0].mxu0 %v5629
    %v6723 = vpop.f32.mrb[0].mxu0
    %v6724 = vadd.f32 %v1584, %v6723
    %v6725 = vpop.f32.mrb[0].mxu0
    %v6726 = vpop.f32.mrb[0].mxu0
    %v6727 = vadd.f32 %v1589, %v6726
    %v6728 = vpop.f32.mrb[0].mxu0
    %6729 = vmatprep.mubr.bf16.mxu0 %v5632
    %6730 = vmatmul.mubr.bf16.gmra.mrb[0].mxu0 %v5631
    %v6731 = vpop.f32.mrb[0].mxu0
    %v6732 = vadd.f32 %v1594, %v6731
    %v6733 = vpop.f32.mrb[0].mxu0
    %v6734 = vpop.f32.mrb[0].mxu0
    %v6735 = vadd.f32 %v1599, %v6734
    %v6736 = vpop.f32.mrb[0].mxu0
    %6737 = vmatprep.mubr.bf16.mxu0 %v5634
    %6738 = vmatmul.mubr.bf16.gmra.mrb[0].mxu0 %v5633
    %v6739 = vpop.f32.mrb[0].mxu0
    %v6740 = vadd.f32 %v1604, %v6739
    %v6741 = vpop.f32.mrb[0].mxu0
    %v6742 = vpop.f32.mrb[0].mxu0
    %v6743 = vadd.f32 %v1609, %v6742
    %v6744 = vpop.f32.mrb[0].mxu0
    %6745 = vmatprep.mubr.bf16.mxu0 %v5636
    %6746 = vmatmul.mubr.bf16.gmra.mrb[0].mxu0 %v5635
    %v6747 = vpop.f32.mrb[0].mxu0
    %v6748 = vadd.f32 %v1614, %v6747
    %v6749 = vpop.f32.mrb[0].mxu0
    %v6750 = vpop.f32.mrb[0].mxu0
    %v6751 = vadd.f32 %v1619, %v6750
    %v6752 = vpop.f32.mrb[0].mxu0
    %6753 = vmatprep.mubr.bf16.mxu0 %v5638
    %6754 = vmatmul.mubr.bf16.gmra.mrb[0].mxu0 %v5637
    %v6755 = vpop.f32.mrb[0].mxu0
    %v6756 = vadd.f32 %v1624, %v6755
    %v6757 = vpop.f32.mrb[0].mxu0
    %v6758 = vpop.f32.mrb[0].mxu0
    %v6759 = vadd.f32 %v1629, %v6758
    %v6760 = vpop.f32.mrb[0].mxu0
    %6761 = vmatprep.mubr.bf16.mxu0 %v5640
    %6762 = vmatmul.mubr.bf16.gmra.mrb[0].mxu0 %v5639
    %v6763 = vpop.f32.mrb[0].mxu0
    %v6764 = vadd.f32 %v1634, %v6763
    %v6765 = vpop.f32.mrb[0].mxu0
    %v6766 = vpop.f32.mrb[0].mxu0
    %v6767 = vadd.f32 %v1639, %v6766
    %v6768 = vpop.f32.mrb[0].mxu0
    %6769 = vmatprep.mubr.bf16.mxu0 %v5642
    %6770 = vmatmul.mubr.bf16.gmra.mrb[0].mxu0 %v5641
    %v6771 = vpop.f32.mrb[0].mxu0
    %v6772 = vadd.f32 %v1644, %v6771
    %v6773 = vpop.f32.mrb[0].mxu0
    %v6774 = vpop.f32.mrb[0].mxu0
    %v6775 = vadd.f32 %v1649, %v6774
    %v6776 = vpop.f32.mrb[0].mxu0
    %6777 = vmatprep.mubr.bf16.mxu0 %v5644
    %6778 = vmatmul.mubr.bf16.gmra.mrb[0].mxu0 %v5643
    %v6779 = vpop.f32.mrb[0].mxu0
    %v6780 = vadd.f32 %v1654, %v6779
    %v6781 = vpop.f32.mrb[0].mxu0
    %v6782 = vpop.f32.mrb[0].mxu0
    %v6783 = vadd.f32 %v1659, %v6782
    %v6784 = vpop.f32.mrb[0].mxu0
    %6785 = vmatprep.mubr.bf16.mxu0 %v5646
    %6786 = vmatmul.mubr.bf16.gmra.mrb[0].mxu0 %v5645
    %v6787 = vpop.f32.mrb[0].mxu0
    %v6788 = vadd.f32 %v1664, %v6787
    %v6789 = vpop.f32.mrb[0].mxu0
    %v6790 = vpop.f32.mrb[0].mxu0
    %v6791 = vadd.f32 %v1669, %v6790
    %v6792 = vpop.f32.mrb[0].mxu0
    %6793 = vmatprep.mubr.bf16.mxu0 %v5648
    %6794 = vmatmul.mubr.bf16.gmra.mrb[0].mxu0 %v5647
    %v6795 = vpop.f32.mrb[0].mxu0
    %v6796 = vadd.f32 %v1674, %v6795
    %v6797 = vpop.f32.mrb[0].mxu0
    %v6798 = vpop.f32.mrb[0].mxu0
    %v6799 = vadd.f32 %v1679, %v6798
    %v6800 = vpop.f32.mrb[0].mxu0
    %6801 = vmatprep.mubr.bf16.mxu0 %v5650
    %6802 = vmatmul.mubr.bf16.gmra.mrb[0].mxu0 %v5649
    %v6803 = vpop.f32.mrb[0].mxu0
    %v6804 = vadd.f32 %v1684, %v6803
    %v6805 = vpop.f32.mrb[0].mxu0
    %v6806 = vpop.f32.mrb[0].mxu0
    %v6807 = vadd.f32 %v1689, %v6806
    %v6808 = vpop.f32.mrb[0].mxu0
    %6809 = vmatprep.mubr.bf16.mxu0 %v5652
    %6810 = vmatmul.mubr.bf16.gmra.mrb[0].mxu0 %v5651
    %v6811 = vpop.f32.mrb[0].mxu0
    %v6812 = vadd.f32 %v1694, %v6811
    %v6813 = vpop.f32.mrb[0].mxu0
    %v6814 = vpop.f32.mrb[0].mxu0
    %v6815 = vadd.f32 %v1699, %v6814
    %v6816 = vpop.f32.mrb[0].mxu0
    %6817 = vmatprep.mubr.bf16.mxu0 %v5654
    %6818 = vmatmul.mubr.bf16.gmra.mrb[0].mxu0 %v5653
    %v6819 = vpop.f32.mrb[0].mxu0
    %v6820 = vadd.f32 %v1704, %v6819
    %v6821 = vpop.f32.mrb[0].mxu0
    %v6822 = vpop.f32.mrb[0].mxu0
    %v6823 = vadd.f32 %v1709, %v6822
    %v6824 = vpop.f32.mrb[0].mxu0
    %6825 = vmatprep.mubr.bf16.mxu0 %v5656
    %6826 = vmatmul.mubr.bf16.gmra.mrb[0].mxu0 %v5655
    %v6827 = vpop.f32.mrb[0].mxu0
    %v6828 = vadd.f32 %v1714, %v6827
    %v6829 = vpop.f32.mrb[0].mxu0
    %v6830 = vpop.f32.mrb[0].mxu0
    %v6831 = vadd.f32 %v1719, %v6830
    %v6832 = vpop.f32.mrb[0].mxu0
    %6833 = vmatprep.mubr.bf16.mxu0 %v5658
    %6834 = vmatmul.mubr.bf16.gmra.mrb[0].mxu0 %v5657
    %v6835 = vpop.f32.mrb[0].mxu0
    %v6836 = vadd.f32 %v1724, %v6835
    %v6837 = vpop.f32.mrb[0].mxu0
    %v6838 = vpop.f32.mrb[0].mxu0
    %v6839 = vadd.f32 %v1729, %v6838
    %v6840 = vpop.f32.mrb[0].mxu0
    %6841 = vmatprep.mubr.bf16.mxu0 %v5660
    %6842 = vmatmul.mubr.bf16.gmra.mrb[0].mxu0 %v5659
    %v6843 = vpop.f32.mrb[0].mxu0
    %v6844 = vadd.f32 %v1734, %v6843
    %v6845 = vpop.f32.mrb[0].mxu0
    %v6846 = vpop.f32.mrb[0].mxu0
    %v6847 = vadd.f32 %v1739, %v6846
    %v6848 = vpop.f32.mrb[0].mxu0
    %6849 = vmatprep.mubr.bf16.mxu0 %v5662
    %6850 = vmatmul.mubr.bf16.gmra.mrb[0].mxu0 %v5661
    %v6851 = vpop.f32.mrb[0].mxu0
    %v6852 = vadd.f32 %v1744, %v6851
    %v6853 = vpop.f32.mrb[0].mxu0
    %v6854 = vpop.f32.mrb[0].mxu0
    %v6855 = vadd.f32 %v1749, %v6854
    %v6856 = vpop.f32.mrb[0].mxu0
    %6857 = vmatprep.mubr.bf16.mxu0 %v5664
    %6858 = vmatmul.mubr.bf16.gmra.mrb[0].mxu0 %v5663
    %v6859 = vpop.f32.mrb[0].mxu0
    %v6860 = vadd.f32 %v1754, %v6859
    %v6861 = vpop.f32.mrb[0].mxu0
    %v6862 = vpop.f32.mrb[0].mxu0
    %v6863 = vadd.f32 %v1759, %v6862
    %v6864 = vpop.f32.mrb[0].mxu0
    %6865 = vmatprep.mubr.bf16.mxu0 %v5666
    %6866 = vmatmul.mubr.bf16.gmra.mrb[0].mxu0 %v5665
    %v6867 = vpop.f32.mrb[0].mxu0
    %v6868 = vadd.f32 %v1764, %v6867
    %v6869 = vpop.f32.mrb[0].mxu0
    %v6870 = vpop.f32.mrb[0].mxu0
    %v6871 = vadd.f32 %v1769, %v6870
    %v6872 = vpop.f32.mrb[0].mxu0
    %6873 = vmatprep.mubr.bf16.mxu0 %v5668
    %6874 = vmatmul.mubr.bf16.gmra.mrb[0].mxu0 %v5667
    %v6875 = vpop.f32.mrb[0].mxu0
    %v6876 = vadd.f32 %v1774, %v6875
    %v6877 = vpop.f32.mrb[0].mxu0
    %v6878 = vpop.f32.mrb[0].mxu0
    %v6879 = vadd.f32 %v1779, %v6878
    %v6880 = vpop.f32.mrb[0].mxu0
    %6881 = vmatprep.mubr.bf16.mxu0 %v5670
    %6882 = vmatmul.mubr.bf16.gmra.mrb[0].mxu0 %v5669
    %v6883 = vpop.f32.mrb[0].mxu0
    %v6884 = vadd.f32 %v1784, %v6883
    %v6885 = vpop.f32.mrb[0].mxu0
    %v6886 = vpop.f32.mrb[0].mxu0
    %v6887 = vadd.f32 %v1789, %v6886
    %v6888 = vpop.f32.mrb[0].mxu0
    %6889 = vmatprep.mubr.bf16.mxu0 %v5672
    %6890 = vmatmul.mubr.bf16.gmra.mrb[0].mxu0 %v5671
    %v6891 = vpop.f32.mrb[0].mxu0
    %v6892 = vadd.f32 %v1794, %v6891
    %v6893 = vpop.f32.mrb[0].mxu0
    %v6894 = vpop.f32.mrb[0].mxu0
    %v6895 = vadd.f32 %v1799, %v6894
    %v6896 = vpop.f32.mrb[0].mxu0
    %6897 = vmatprep.mubr.bf16.mxu0 %v5674
    %6898 = vmatmul.mubr.bf16.gmra.mrb[0].mxu0 %v5673
    %v6899 = vpop.f32.mrb[0].mxu0
    %v6900 = vadd.f32 %v1804, %v6899
    %v6901 = vpop.f32.mrb[0].mxu0
    %v6902 = vpop.f32.mrb[0].mxu0
    %v6903 = vadd.f32 %v1809, %v6902
    %v6904 = vpop.f32.mrb[0].mxu0
    %6905 = vmatprep.mubr.bf16.mxu0 %v5676
    %6906 = vmatmul.mubr.bf16.gmra.mrb[0].mxu0 %v5675
    %v6907 = vpop.f32.mrb[0].mxu0
    %v6908 = vadd.f32 %v1814, %v6907
    %v6909 = vpop.f32.mrb[0].mxu0
    %v6910 = vpop.f32.mrb[0].mxu0
    %v6911 = vadd.f32 %v1819, %v6910
    %v6912 = vpop.f32.mrb[0].mxu0
    %6913 = vmatprep.mubr.bf16.mxu0 %v5678
    %6914 = vmatmul.mubr.bf16.gmra.mrb[0].mxu0 %v5677
    %v6915 = vpop.f32.mrb[0].mxu0
    %v6916 = vadd.f32 %v1824, %v6915
    %v6917 = vpop.f32.mrb[0].mxu0
    %v6918 = vpop.f32.mrb[0].mxu0
    %v6919 = vadd.f32 %v1829, %v6918
    %v6920 = vpop.f32.mrb[0].mxu0
    %6921 = vmatprep.mubr.bf16.mxu0 %v5680
    %6922 = vmatmul.mubr.bf16.gmra.mrb[0].mxu0 %v5679
    %v6923 = vpop.f32.mrb[0].mxu0
    %v6924 = vadd.f32 %v1834, %v6923
    %v6925 = vpop.f32.mrb[0].mxu0
    %v6926 = vpop.f32.mrb[0].mxu0
    %v6927 = vadd.f32 %v1839, %v6926
    %v6928 = vpop.f32.mrb[0].mxu0
    %6929 = vmatprep.mubr.bf16.mxu0 %v5682
    %6930 = vmatmul.mubr.bf16.gmra.mrb[0].mxu0 %v5681
    %v6931 = vpop.f32.mrb[0].mxu0
    %v6932 = vadd.f32 %v1844, %v6931
    %v6933 = vpop.f32.mrb[0].mxu0
    %v6934 = vpop.f32.mrb[0].mxu0
    %v6935 = vadd.f32 %v1849, %v6934
    %v6936 = vpop.f32.mrb[0].mxu0
    %6937 = vmatprep.mubr.bf16.mxu0 %v5684
    %6938 = vmatmul.mubr.bf16.gmra.mrb[0].mxu0 %v5683
    %v6939 = vpop.f32.mrb[0].mxu0
    %v6940 = vadd.f32 %v1854, %v6939
    %v6941 = vpop.f32.mrb[0].mxu0
    %v6942 = vpop.f32.mrb[0].mxu0
    %v6943 = vadd.f32 %v1859, %v6942
    %v6944 = vpop.f32.mrb[0].mxu0
    %6945 = vmatprep.mubr.bf16.mxu0 %v5686
    %6946 = vmatmul.mubr.bf16.gmra.mrb[0].mxu0 %v5685
    %v6947 = vpop.f32.mrb[0].mxu0
    %v6948 = vadd.f32 %v1864, %v6947
    %v6949 = vpop.f32.mrb[0].mxu0
    %v6950 = vpop.f32.mrb[0].mxu0
    %v6951 = vadd.f32 %v1869, %v6950
    %v6952 = vpop.f32.mrb[0].mxu0
    %6953 = vmatprep.mubr.bf16.mxu0 %v5688
    %6954 = vmatmul.mubr.bf16.gmra.mrb[0].mxu0 %v5687
    %v6955 = vpop.f32.mrb[0].mxu0
    %v6956 = vadd.f32 %v1874, %v6955
    %v6957 = vpop.f32.mrb[0].mxu0
    %v6958 = vpop.f32.mrb[0].mxu0
    %v6959 = vadd.f32 %v1879, %v6958
    %v6960 = vpop.f32.mrb[0].mxu0
    %6961 = vmatprep.mubr.bf16.mxu0 %v5690
    %6962 = vmatmul.mubr.bf16.gmra.mrb[0].mxu0 %v5689
    %v6963 = vpop.f32.mrb[0].mxu0
    %v6964 = vadd.f32 %v1884, %v6963
    %v6965 = vpop.f32.mrb[0].mxu0
    %v6966 = vpop.f32.mrb[0].mxu0
    %v6967 = vadd.f32 %v1889, %v6966
    %v6968 = vpop.f32.mrb[0].mxu0
    %6969 = vmatprep.mubr.bf16.mxu0 %v5692
    %6970 = vmatmul.mubr.bf16.gmra.mrb[0].mxu0 %v5691
    %v6971 = vpop.f32.mrb[0].mxu0
    %v6972 = vadd.f32 %v1894, %v6971
    %v6973 = vpop.f32.mrb[0].mxu0
    %v6974 = vpop.f32.mrb[0].mxu0
    %v6975 = vadd.f32 %v1899, %v6974
    %v6976 = vpop.f32.mrb[0].mxu0
    %6977 = vmatprep.mubr.bf16.mxu0 %v5694
    %6978 = vmatmul.mubr.bf16.gmra.mrb[0].mxu0 %v5693
    %v6979 = vpop.f32.mrb[0].mxu0
    %v6980 = vadd.f32 %v1904, %v6979
    %v6981 = vpop.f32.mrb[0].mxu0
    %v6982 = vpop.f32.mrb[0].mxu0
    %v6983 = vadd.f32 %v1909, %v6982
    %v6984 = vpop.f32.mrb[0].mxu0
    %6985 = vmatprep.mubr.bf16.mxu0 %v5696
    %6986 = vmatmul.mubr.bf16.gmra.mrb[0].mxu0 %v5695
    %v6987 = vpop.f32.mrb[0].mxu0
    %v6988 = vadd.f32 %v1914, %v6987
    %v6989 = vpop.f32.mrb[0].mxu0
    %v6990 = vpop.f32.mrb[0].mxu0
    %v6991 = vadd.f32 %v1919, %v6990
    %v6992 = vpop.f32.mrb[0].mxu0
    %6993 = vmatprep.mubr.bf16.mxu0 %v5698
    %6994 = vmatmul.mubr.bf16.gmra.mrb[0].mxu0 %v5697
    %v6995 = vpop.f32.mrb[0].mxu0
    %v6996 = vadd.f32 %v1924, %v6995
    %v6997 = vpop.f32.mrb[0].mxu0
    %v6998 = vpop.f32.mrb[0].mxu0
    %v6999 = vadd.f32 %v1929, %v6998
    %v7000 = vpop.f32.mrb[0].mxu0
    %7001 = vmatprep.mubr.bf16.mxu0 %v5700
    %7002 = vmatmul.mubr.bf16.gmra.mrb[0].mxu0 %v5699
    %v7003 = vpop.f32.mrb[0].mxu0
    %v7004 = vadd.f32 %v1934, %v7003
    %v7005 = vpop.f32.mrb[0].mxu0
    %v7006 = vpop.f32.mrb[0].mxu0
    %v7007 = vadd.f32 %v1939, %v7006
    %v7008 = vpop.f32.mrb[0].mxu0
    %7009 = vmatprep.mubr.bf16.mxu0 %v5702
    %7010 = vmatmul.mubr.bf16.gmra.mrb[0].mxu0 %v5701
    %v7011 = vpop.f32.mrb[0].mxu0
    %v7012 = vadd.f32 %v1944, %v7011
    %v7013 = vpop.f32.mrb[0].mxu0
    %v7014 = vpop.f32.mrb[0].mxu0
    %v7015 = vadd.f32 %v1949, %v7014
    %v7016 = vpop.f32.mrb[0].mxu0
    %7017 = vmatprep.mubr.bf16.mxu0 %v5704
    %7018 = vmatmul.mubr.bf16.gmra.mrb[0].mxu0 %v5703
    %v7019 = vpop.f32.mrb[0].mxu0
    %v7020 = vadd.f32 %v1954, %v7019
    %v7021 = vpop.f32.mrb[0].mxu0
    %v7022 = vpop.f32.mrb[0].mxu0
    %v7023 = vadd.f32 %v1959, %v7022
    %v7024 = vpop.f32.mrb[0].mxu0
    %7025 = vmatprep.mubr.bf16.mxu0 %v5706
    %7026 = vmatmul.mubr.bf16.gmra.mrb[0].mxu0 %v5705
    %v7027 = vpop.f32.mrb[0].mxu0
    %v7028 = vadd.f32 %v1964, %v7027
    %v7029 = vpop.f32.mrb[0].mxu0
    %v7030 = vpop.f32.mrb[0].mxu0
    %v7031 = vadd.f32 %v1969, %v7030
    %v7032 = vpop.f32.mrb[0].mxu0
    %7033 = vmatprep.mubr.bf16.mxu0 %v5708
    %7034 = vmatmul.mubr.bf16.gmra.mrb[0].mxu0 %v5707
    %v7035 = vpop.f32.mrb[0].mxu0
    %v7036 = vadd.f32 %v1974, %v7035
    %v7037 = vpop.f32.mrb[0].mxu0
    %v7038 = vpop.f32.mrb[0].mxu0
    %v7039 = vadd.f32 %v1979, %v7038
    %v7040 = vpop.f32.mrb[0].mxu0
    %7041 = vmatprep.mubr.bf16.mxu0 %v5710
    %7042 = vmatmul.mubr.bf16.gmra.mrb[0].mxu0 %v5709
    %v7043 = vpop.f32.mrb[0].mxu0
    %v7044 = vadd.f32 %v1984, %v7043
    %v7045 = vpop.f32.mrb[0].mxu0
    %v7046 = vpop.f32.mrb[0].mxu0
    %v7047 = vadd.f32 %v1989, %v7046
    %v7048 = vpop.f32.mrb[0].mxu0
    %7049 = vmatprep.mubr.bf16.mxu0 %v5712
    %7050 = vmatmul.mubr.bf16.gmra.mrb[0].mxu0 %v5711
    %v7051 = vpop.f32.mrb[0].mxu0
    %v7052 = vadd.f32 %v1994, %v7051
    %v7053 = vpop.f32.mrb[0].mxu0
    %v7054 = vpop.f32.mrb[0].mxu0
    %v7055 = vadd.f32 %v1999, %v7054
    %v7056 = vpop.f32.mrb[0].mxu0
    %7057 = vmatprep.mubr.bf16.mxu0 %v5714
    %7058 = vmatmul.mubr.bf16.gmra.mrb[0].mxu0 %v5713
    %v7059 = vpop.f32.mrb[0].mxu0
    %v7060 = vadd.f32 %v2004, %v7059
    %v7061 = vpop.f32.mrb[0].mxu0
    %v7062 = vpop.f32.mrb[0].mxu0
    %v7063 = vadd.f32 %v2009, %v7062
    %v7064 = vpop.f32.mrb[0].mxu0
    %7065 = vmatprep.mubr.bf16.mxu0 %v5716
    %7066 = vmatmul.mubr.bf16.gmra.mrb[0].mxu0 %v5715
    %v7067 = vpop.f32.mrb[0].mxu0
    %v7068 = vadd.f32 %v2014, %v7067
    %v7069 = vpop.f32.mrb[0].mxu0
    %v7070 = vpop.f32.mrb[0].mxu0
    %v7071 = vadd.f32 %v2019, %v7070
    %v7072 = vpop.f32.mrb[0].mxu0
    %7073 = vmatprep.mubr.bf16.mxu0 %v5718
    %7074 = vmatmul.mubr.bf16.gmra.mrb[0].mxu0 %v5717
    %v7075 = vpop.f32.mrb[0].mxu0
    %v7076 = vadd.f32 %v2024, %v7075
    %v7077 = vpop.f32.mrb[0].mxu0
    %v7078 = vpop.f32.mrb[0].mxu0
    %v7079 = vadd.f32 %v2029, %v7078
    %v7080 = vpop.f32.mrb[0].mxu0
    %7081 = vmatprep.mubr.bf16.mxu0 %v5720
    %7082 = vmatmul.mubr.bf16.gmra.mrb[0].mxu0 %v5719
    %v7083 = vpop.f32.mrb[0].mxu0
    %v7084 = vadd.f32 %v2034, %v7083
    %v7085 = vpop.f32.mrb[0].mxu0
    %v7086 = vpop.f32.mrb[0].mxu0
    %v7087 = vadd.f32 %v2039, %v7086
    %v7088 = vpop.f32.mrb[0].mxu0
    %7089 = vmatprep.mubr.bf16.mxu0 %v5722
    %7090 = vmatmul.mubr.bf16.gmra.mrb[0].mxu0 %v5721
    %v7091 = vpop.f32.mrb[0].mxu0
    %v7092 = vadd.f32 %v2044, %v7091
    %v7093 = vpop.f32.mrb[0].mxu0
    %v7094 = vpop.f32.mrb[0].mxu0
    %v7095 = vadd.f32 %v2049, %v7094
    %v7096 = vpop.f32.mrb[0].mxu0
    %7097 = vmatprep.mubr.bf16.mxu0 %v5724
    %7098 = vmatmul.mubr.bf16.gmra.mrb[0].mxu0 %v5723
    %v7099 = vpop.f32.mrb[0].mxu0
    %v7100 = vadd.f32 %v2054, %v7099
    %v7101 = vpop.f32.mrb[0].mxu0
    %v7102 = vpop.f32.mrb[0].mxu0
    %v7103 = vadd.f32 %v2059, %v7102
    %v7104 = vpop.f32.mrb[0].mxu0
    %7105 = vmatprep.mubr.bf16.mxu0 %v5726
    %7106 = vmatmul.mubr.bf16.gmra.mrb[0].mxu0 %v5725
    %v7107 = vpop.f32.mrb[0].mxu0
    %v7108 = vadd.f32 %v2064, %v7107
    %v7109 = vpop.f32.mrb[0].mxu0
    %v7110 = vpop.f32.mrb[0].mxu0
    %v7111 = vadd.f32 %v2069, %v7110
    %v7112 = vpop.f32.mrb[0].mxu0
    %7113 = vmatprep.mubr.bf16.mxu0 %v5728
    %7114 = vmatmul.mubr.bf16.gmra.mrb[0].mxu0 %v5727
    %v7115 = vpop.f32.mrb[0].mxu0
    %v7116 = vadd.f32 %v2074, %v7115
    %v7117 = vpop.f32.mrb[0].mxu0
    %v7118 = vpop.f32.mrb[0].mxu0
    %v7119 = vadd.f32 %v2079, %v7118
    %v7120 = vpop.f32.mrb[0].mxu0
    %7121 = vmatprep.mubr.bf16.mxu0 %v5730
    %7122 = vmatmul.mubr.bf16.gmra.mrb[0].mxu0 %v5729
    %v7123 = vpop.f32.mrb[0].mxu0
    %v7124 = vadd.f32 %v2084, %v7123
    %v7125 = vpop.f32.mrb[0].mxu0
    %v7126 = vpop.f32.mrb[0].mxu0
    %v7127 = vadd.f32 %v2089, %v7126
    %v7128 = vpop.f32.mrb[0].mxu0
    %7129 = vmatprep.mubr.bf16.mxu0 %v5732
    %7130 = vmatmul.mubr.bf16.gmra.mrb[0].mxu0 %v5731
    %v7131 = vpop.f32.mrb[0].mxu0
    %v7132 = vadd.f32 %v2094, %v7131
    %v7133 = vpop.f32.mrb[0].mxu0
    %v7134 = vpop.f32.mrb[0].mxu0
    %v7135 = vadd.f32 %v2099, %v7134
    %v7136 = vpop.f32.mrb[0].mxu0
    %7137 = vmatprep.mubr.bf16.mxu0 %v5734
    %7138 = vmatmul.mubr.bf16.gmra.mrb[0].mxu0 %v5733
    %v7139 = vpop.f32.mrb[0].mxu0
    %v7140 = vadd.f32 %v2104, %v7139
    %v7141 = vpop.f32.mrb[0].mxu0
    %v7142 = vpop.f32.mrb[0].mxu0
    %v7143 = vadd.f32 %v2109, %v7142
    %v7144 = vpop.f32.mrb[0].mxu0
    %7145 = vmatprep.mubr.bf16.mxu0 %v5736
    %7146 = vmatmul.mubr.bf16.gmra.mrb[0].mxu0 %v5735
    %v7147 = vpop.f32.mrb[0].mxu0
    %v7148 = vadd.f32 %v2114, %v7147
    %v7149 = vpop.f32.mrb[0].mxu0
    %v7150 = vpop.f32.mrb[0].mxu0
    %v7151 = vadd.f32 %v2119, %v7150
    %v7152 = vpop.f32.mrb[0].mxu0
    %7153 = vmatprep.mubr.bf16.mxu0 %v5738
    %7154 = vmatmul.mubr.bf16.gmra.mrb[0].mxu0 %v5737
    %v7155 = vpop.f32.mrb[0].mxu0
    %v7156 = vadd.f32 %v2124, %v7155
    %v7157 = vpop.f32.mrb[0].mxu0
    %v7158 = vpop.f32.mrb[0].mxu0
    %v7159 = vadd.f32 %v2129, %v7158
    %v7160 = vpop.f32.mrb[0].mxu0
    %7161 = vmatprep.mubr.bf16.mxu0 %v5740
    %7162 = vmatmul.mubr.bf16.gmra.mrb[0].mxu0 %v5739
    %v7163 = vpop.f32.mrb[0].mxu0
    %v7164 = vadd.f32 %v2134, %v7163
    %v7165 = vpop.f32.mrb[0].mxu0
    %v7166 = vpop.f32.mrb[0].mxu0
    %v7167 = vadd.f32 %v2139, %v7166
    %v7168 = vpop.f32.mrb[0].mxu0
    %7169 = vmatprep.mubr.bf16.mxu0 %v5742
    %7170 = vmatmul.mubr.bf16.gmra.mrb[0].mxu0 %v5741
    %v7171 = vpop.f32.mrb[0].mxu0
    %v7172 = vadd.f32 %v2144, %v7171
    %v7173 = vpop.f32.mrb[0].mxu0
    %v7174 = vpop.f32.mrb[0].mxu0
    %v7175 = vadd.f32 %v2149, %v7174
    %v7176 = vpop.f32.mrb[0].mxu0
    %7177 = vmatprep.mubr.bf16.mxu0 %v5744
    %7178 = vmatmul.mubr.bf16.gmra.mrb[0].mxu0 %v5743
    %v7179 = vpop.f32.mrb[0].mxu0
    %v7180 = vadd.f32 %v2154, %v7179
    %v7181 = vpop.f32.mrb[0].mxu0
    %v7182 = vpop.f32.mrb[0].mxu0
    %v7183 = vadd.f32 %v2159, %v7182
    %v7184 = vpop.f32.mrb[0].mxu0
    %7185 = vmatprep.mubr.bf16.mxu0 %v5746
    %7186 = vmatmul.mubr.bf16.gmra.mrb[0].mxu0 %v5745
    %v7187 = vpop.f32.mrb[0].mxu0
    %v7188 = vadd.f32 %v2164, %v7187
    %v7189 = vpop.f32.mrb[0].mxu0
    %v7190 = vpop.f32.mrb[0].mxu0
    %v7191 = vadd.f32 %v2169, %v7190
    %v7192 = vpop.f32.mrb[0].mxu0
    %7193 = vmatprep.mubr.bf16.mxu0 %v5748
    %7194 = vmatmul.mubr.bf16.gmra.mrb[0].mxu0 %v5747
    %v7195 = vpop.f32.mrb[0].mxu0
    %v7196 = vadd.f32 %v2174, %v7195
    %v7197 = vpop.f32.mrb[0].mxu0
    %v7198 = vpop.f32.mrb[0].mxu0
    %v7199 = vadd.f32 %v2179, %v7198
    %v7200 = vpop.f32.mrb[0].mxu0
    %7201 = vmatprep.mubr.bf16.mxu0 %v5750
    %7202 = vmatmul.mubr.bf16.gmra.mrb[0].mxu0 %v5749
    %v7203 = vpop.f32.mrb[0].mxu0
    %v7204 = vadd.f32 %v2184, %v7203
    %v7205 = vpop.f32.mrb[0].mxu0
    %v7206 = vpop.f32.mrb[0].mxu0
    %v7207 = vadd.f32 %v2189, %v7206
    %v7208 = vpop.f32.mrb[0].mxu0
    %7209 = vmatprep.mubr.bf16.mxu0 %v5752
    %7210 = vmatmul.mubr.bf16.gmra.mrb[0].mxu0 %v5751
    %v7211 = vpop.f32.mrb[0].mxu0
    %v7212 = vadd.f32 %v2194, %v7211
    %v7213 = vpop.f32.mrb[0].mxu0
    %v7214 = vpop.f32.mrb[0].mxu0
    %v7215 = vadd.f32 %v2199, %v7214
    %v7216 = vpop.f32.mrb[0].mxu0
    %7217 = vmatprep.mubr.bf16.mxu0 %v5754
    %7218 = vmatmul.mubr.bf16.gmra.mrb[0].mxu0 %v5753
    %v7219 = vpop.f32.mrb[0].mxu0
    %v7220 = vadd.f32 %v2204, %v7219
    %v7221 = vpop.f32.mrb[0].mxu0
    %v7222 = vpop.f32.mrb[0].mxu0
    %v7223 = vadd.f32 %v2209, %v7222
    %v7224 = vpop.f32.mrb[0].mxu0
    %7225 = vmatprep.mubr.bf16.mxu0 %v5756
    %7226 = vmatmul.mubr.bf16.gmra.mrb[0].mxu0 %v5755
    %v7227 = vpop.f32.mrb[0].mxu0
    %v7228 = vadd.f32 %v2214, %v7227
    %v7229 = vpop.f32.mrb[0].mxu0
    %v7230 = vpop.f32.mrb[0].mxu0
    %v7231 = vadd.f32 %v2219, %v7230
    %v7232 = vpop.f32.mrb[0].mxu0
    %7233 = vmatprep.mubr.bf16.mxu0 %v5758
    %7234 = vmatmul.mubr.bf16.gmra.mrb[0].mxu0 %v5757
    %v7235 = vpop.f32.mrb[0].mxu0
    %v7236 = vadd.f32 %v2224, %v7235
    %v7237 = vpop.f32.mrb[0].mxu0
    %v7238 = vpop.f32.mrb[0].mxu0
    %v7239 = vadd.f32 %v2229, %v7238
    %v7240 = vpop.f32.mrb[0].mxu0
    %7241 = vmatprep.mubr.bf16.mxu0 %v5760
    %7242 = vmatmul.mubr.bf16.gmra.mrb[0].mxu0 %v5759
    %v7243 = vpop.f32.mrb[0].mxu0
    %v7244 = vadd.f32 %v2234, %v7243
    %v7245 = vpop.f32.mrb[0].mxu0
    %v7246 = vpop.f32.mrb[0].mxu0
    %v7247 = vadd.f32 %v2239, %v7246
    %v7248 = vpop.f32.mrb[0].mxu0
    %7249 = vmatprep.mubr.bf16.mxu0 %v5762
    %7250 = vmatmul.mubr.bf16.gmra.mrb[0].mxu0 %v5761
    %v7251 = vpop.f32.mrb[0].mxu0
    %v7252 = vadd.f32 %v2244, %v7251
    %v7253 = vpop.f32.mrb[0].mxu0
    %v7254 = vpop.f32.mrb[0].mxu0
    %v7255 = vadd.f32 %v2249, %v7254
    %v7256 = vpop.f32.mrb[0].mxu0
    %7257 = vmatprep.mubr.bf16.mxu0 %v5764
    %7258 = vmatmul.mubr.bf16.gmra.mrb[0].mxu0 %v5763
    %v7259 = vpop.f32.mrb[0].mxu0
    %v7260 = vadd.f32 %v2254, %v7259
    %v7261 = vpop.f32.mrb[0].mxu0
    %v7262 = vpop.f32.mrb[0].mxu0
    %v7263 = vadd.f32 %v2259, %v7262
    %v7264 = vpop.f32.mrb[0].mxu0
    %7265 = vmatprep.mubr.bf16.mxu0 %v5766
    %7266 = vmatmul.mubr.bf16.gmra.mrb[0].mxu0 %v5765
    %v7267 = vpop.f32.mrb[0].mxu0
    %v7268 = vadd.f32 %v2264, %v7267
    %v7269 = vpop.f32.mrb[0].mxu0
    %v7270 = vpop.f32.mrb[0].mxu0
    %v7271 = vadd.f32 %v2269, %v7270
    %v7272 = vpop.f32.mrb[0].mxu0
    %7273 = vmatprep.mubr.bf16.mxu0 %v5768
    %7274 = vmatmul.mubr.bf16.gmra.mrb[0].mxu0 %v5767
    %v7275 = vpop.f32.mrb[0].mxu0
    %v7276 = vadd.f32 %v2274, %v7275
    %v7277 = vpop.f32.mrb[0].mxu0
    %v7278 = vpop.f32.mrb[0].mxu0
    %v7279 = vadd.f32 %v2279, %v7278
    %v7280 = vpop.f32.mrb[0].mxu0
    %7281 = vmatprep.mubr.bf16.mxu0 %v5770
    %7282 = vmatmul.mubr.bf16.gmra.mrb[0].mxu0 %v5769
    %v7283 = vpop.f32.mrb[0].mxu0
    %v7284 = vadd.f32 %v2284, %v7283
    %v7285 = vpop.f32.mrb[0].mxu0
    %v7286 = vpop.f32.mrb[0].mxu0
    %v7287 = vadd.f32 %v2289, %v7286
    %v7288 = vpop.f32.mrb[0].mxu0
    %7289 = vmatprep.mubr.bf16.mxu0 %v5772
    %7290 = vmatmul.mubr.bf16.gmra.mrb[0].mxu0 %v5771
    %v7291 = vpop.f32.mrb[0].mxu0
    %v7292 = vadd.f32 %v2294, %v7291
    %v7293 = vpop.f32.mrb[0].mxu0
    %v7294 = vpop.f32.mrb[0].mxu0
    %v7295 = vadd.f32 %v2299, %v7294
    %v7296 = vpop.f32.mrb[0].mxu0
    %7297 = vmatprep.mubr.bf16.mxu0 %v5774
    %7298 = vmatmul.mubr.bf16.gmra.mrb[0].mxu0 %v5773
    %v7299 = vpop.f32.mrb[0].mxu0
    %v7300 = vadd.f32 %v2304, %v7299
    %v7301 = vpop.f32.mrb[0].mxu0
    %v7302 = vpop.f32.mrb[0].mxu0
    %v7303 = vadd.f32 %v2309, %v7302
    %v7304 = vpop.f32.mrb[0].mxu0
    %7305 = vmatprep.mubr.bf16.mxu0 %v5776
    %7306 = vmatmul.mubr.bf16.gmra.mrb[0].mxu0 %v5775
    %v7307 = vpop.f32.mrb[0].mxu0
    %v7308 = vadd.f32 %v2314, %v7307
    %v7309 = vpop.f32.mrb[0].mxu0
    %v7310 = vpop.f32.mrb[0].mxu0
    %v7311 = vadd.f32 %v2319, %v7310
    %v7312 = vpop.f32.mrb[0].mxu0
    %7313 = vmatprep.mubr.bf16.mxu0 %v5778
    %7314 = vmatmul.mubr.bf16.gmra.mrb[0].mxu0 %v5777
    %v7315 = vpop.f32.mrb[0].mxu0
    %v7316 = vadd.f32 %v2324, %v7315
    %v7317 = vpop.f32.mrb[0].mxu0
    %v7318 = vpop.f32.mrb[0].mxu0
    %v7319 = vadd.f32 %v2329, %v7318
    %v7320 = vpop.f32.mrb[0].mxu0
    %7321 = vmatprep.mubr.bf16.mxu0 %v5780
    %7322 = vmatmul.mubr.bf16.gmra.mrb[0].mxu0 %v5779
    %v7323 = vpop.f32.mrb[0].mxu0
    %v7324 = vadd.f32 %v2334, %v7323
    %v7325 = vpop.f32.mrb[0].mxu0
    %v7326 = vpop.f32.mrb[0].mxu0
    %v7327 = vadd.f32 %v2339, %v7326
    %v7328 = vpop.f32.mrb[0].mxu0
    %7329 = vmatprep.mubr.bf16.mxu0 %v5782
    %7330 = vmatmul.mubr.bf16.gmra.mrb[0].mxu0 %v5781
    %v7331 = vpop.f32.mrb[0].mxu0
    %v7332 = vadd.f32 %v2344, %v7331
    %v7333 = vpop.f32.mrb[0].mxu0
    %v7334 = vpop.f32.mrb[0].mxu0
    %v7335 = vadd.f32 %v2349, %v7334
    %v7336 = vpop.f32.mrb[0].mxu0
    %7337 = vmatprep.mubr.bf16.mxu0 %v5784
    %7338 = vmatmul.mubr.bf16.gmra.mrb[0].mxu0 %v5783
    %v7339 = vpop.f32.mrb[0].mxu0
    %v7340 = vadd.f32 %v2354, %v7339
    %v7341 = vpop.f32.mrb[0].mxu0
    %v7342 = vpop.f32.mrb[0].mxu0
    %v7343 = vadd.f32 %v2359, %v7342
    %v7344 = vpop.f32.mrb[0].mxu0
    %7345 = vmatprep.mubr.bf16.mxu0 %v5786
    %7346 = vmatmul.mubr.bf16.gmra.mrb[0].mxu0 %v5785
    %v7347 = vpop.f32.mrb[0].mxu0
    %v7348 = vadd.f32 %v2364, %v7347
    %v7349 = vpop.f32.mrb[0].mxu0
    %v7350 = vpop.f32.mrb[0].mxu0
    %v7351 = vadd.f32 %v2369, %v7350
    %v7352 = vpop.f32.mrb[0].mxu0
    %7353 = vmatprep.mubr.bf16.mxu0 %v5788
    %7354 = vmatmul.mubr.bf16.gmra.mrb[0].mxu0 %v5787
    %v7355 = vpop.f32.mrb[0].mxu0
    %v7356 = vadd.f32 %v2374, %v7355
    %v7357 = vpop.f32.mrb[0].mxu0
    %v7358 = vpop.f32.mrb[0].mxu0
    %v7359 = vadd.f32 %v2379, %v7358
    %v7360 = vpop.f32.mrb[0].mxu0
    %7361 = vmatprep.mubr.bf16.mxu0 %v5790
    %7362 = vmatmul.mubr.bf16.gmra.mrb[0].mxu0 %v5789
    %v7363 = vpop.f32.mrb[0].mxu0
    %v7364 = vadd.f32 %v2384, %v7363
    %v7365 = vpop.f32.mrb[0].mxu0
    %v7366 = vpop.f32.mrb[0].mxu0
    %v7367 = vadd.f32 %v2389, %v7366
    %v7368 = vpop.f32.mrb[0].mxu0
    %7369 = vmatprep.mubr.bf16.mxu0 %v5792
    %7370 = vmatmul.mubr.bf16.gmra.mrb[0].mxu0 %v5791
    %v7371 = vpop.f32.mrb[0].mxu0
    %v7372 = vadd.f32 %v2394, %v7371
    %v7373 = vpop.f32.mrb[0].mxu0
    %v7374 = vpop.f32.mrb[0].mxu0
    %v7375 = vadd.f32 %v2399, %v7374
    %v7376 = vpop.f32.mrb[0].mxu0
    %7377 = vmatprep.mubr.bf16.mxu0 %v5794
    %7378 = vmatmul.mubr.bf16.gmra.mrb[0].mxu0 %v5793
    %v7379 = vpop.f32.mrb[0].mxu0
    %v7380 = vadd.f32 %v2404, %v7379
    %v7381 = vpop.f32.mrb[0].mxu0
    %v7382 = vpop.f32.mrb[0].mxu0
    %v7383 = vadd.f32 %v2409, %v7382
    %v7384 = vpop.f32.mrb[0].mxu0
    %7385 = vmatprep.mubr.bf16.mxu0 %v5796
    %7386 = vmatmul.mubr.bf16.gmra.mrb[0].mxu0 %v5795
    %v7387 = vpop.f32.mrb[0].mxu0
    %v7388 = vadd.f32 %v2414, %v7387
    %v7389 = vpop.f32.mrb[0].mxu0
    %v7390 = vpop.f32.mrb[0].mxu0
    %v7391 = vadd.f32 %v2419, %v7390
    %v7392 = vpop.f32.mrb[0].mxu0
    %7393 = vmatprep.mubr.bf16.mxu0 %v5798
    %7394 = vmatmul.mubr.bf16.gmra.mrb[0].mxu0 %v5797
    %v7395 = vpop.f32.mrb[0].mxu0
    %v7396 = vadd.f32 %v2424, %v7395
    %v7397 = vpop.f32.mrb[0].mxu0
    %v7398 = vpop.f32.mrb[0].mxu0
    %v7399 = vadd.f32 %v2429, %v7398
    %v7400 = vpop.f32.mrb[0].mxu0
    %7401 = vmatprep.mubr.bf16.mxu0 %v5800
    %7402 = vmatmul.mubr.bf16.gmra.mrb[0].mxu0 %v5799
    %v7403 = vpop.f32.mrb[0].mxu0
    %v7404 = vadd.f32 %v2434, %v7403
    %v7405 = vpop.f32.mrb[0].mxu0
    %v7406 = vpop.f32.mrb[0].mxu0
    %v7407 = vadd.f32 %v2439, %v7406
    %v7408 = vpop.f32.mrb[0].mxu0
    %7409 = vmatprep.mubr.bf16.mxu0 %v5802
    %7410 = vmatmul.mubr.bf16.gmra.mrb[0].mxu0 %v5801
    %v7411 = vpop.f32.mrb[0].mxu0
    %v7412 = vadd.f32 %v2444, %v7411
    %v7413 = vpop.f32.mrb[0].mxu0
    %v7414 = vpop.f32.mrb[0].mxu0
    %v7415 = vadd.f32 %v2449, %v7414
    %v7416 = vpop.f32.mrb[0].mxu0
    %7417 = vmatprep.mubr.bf16.mxu0 %v5804
    %7418 = vmatmul.mubr.bf16.gmra.mrb[0].mxu0 %v5803
    %v7419 = vpop.f32.mrb[0].mxu0
    %v7420 = vadd.f32 %v2454, %v7419
    %v7421 = vpop.f32.mrb[0].mxu0
    %v7422 = vpop.f32.mrb[0].mxu0
    %v7423 = vadd.f32 %v2459, %v7422
    %v7424 = vpop.f32.mrb[0].mxu0
    %7425 = vmatprep.mubr.bf16.mxu0 %v5806
    %7426 = vmatmul.mubr.bf16.gmra.mrb[0].mxu0 %v5805
    %v7427 = vpop.f32.mrb[0].mxu0
    %v7428 = vadd.f32 %v2464, %v7427
    %v7429 = vpop.f32.mrb[0].mxu0
    %v7430 = vpop.f32.mrb[0].mxu0
    %v7431 = vadd.f32 %v2469, %v7430
    %v7432 = vpop.f32.mrb[0].mxu0
    %7433 = vmatprep.mubr.bf16.mxu0 %v5808
    %7434 = vmatmul.mubr.bf16.gmra.mrb[0].mxu0 %v5807
    %v7435 = vpop.f32.mrb[0].mxu0
    %v7436 = vadd.f32 %v2474, %v7435
    %v7437 = vpop.f32.mrb[0].mxu0
    %v7438 = vpop.f32.mrb[0].mxu0
    %v7439 = vadd.f32 %v2479, %v7438
    %v7440 = vpop.f32.mrb[0].mxu0
    %7441 = vmatprep.mubr.bf16.mxu0 %v5810
    %7442 = vmatmul.mubr.bf16.gmra.mrb[0].mxu0 %v5809
    %v7443 = vpop.f32.mrb[0].mxu0
    %v7444 = vadd.f32 %v2484, %v7443
    %v7445 = vpop.f32.mrb[0].mxu0
    %v7446 = vpop.f32.mrb[0].mxu0
    %v7447 = vadd.f32 %v2489, %v7446
    %v7448 = vpop.f32.mrb[0].mxu0
    %7449 = vmatprep.mubr.bf16.mxu0 %v5812
    %7450 = vmatmul.mubr.bf16.gmra.mrb[0].mxu0 %v5811
    %v7451 = vpop.f32.mrb[0].mxu0
    %v7452 = vadd.f32 %v2494, %v7451
    %v7453 = vpop.f32.mrb[0].mxu0
    %v7454 = vpop.f32.mrb[0].mxu0
    %v7455 = vadd.f32 %v2499, %v7454
    %v7456 = vpop.f32.mrb[0].mxu0
    %7457 = vmatprep.mubr.bf16.mxu0 %v5814
    %7458 = vmatmul.mubr.bf16.gmra.mrb[0].mxu0 %v5813
    %v7459 = vpop.f32.mrb[0].mxu0
    %v7460 = vadd.f32 %v2504, %v7459
    %v7461 = vpop.f32.mrb[0].mxu0
    %v7462 = vpop.f32.mrb[0].mxu0
    %v7463 = vadd.f32 %v2509, %v7462
    %v7464 = vpop.f32.mrb[0].mxu0
    %7465 = vmatprep.mubr.bf16.mxu0 %v5816
    %7466 = vmatmul.mubr.bf16.gmra.mrb[0].mxu0 %v5815
    %v7467 = vpop.f32.mrb[0].mxu0
    %v7468 = vadd.f32 %v2514, %v7467
    %v7469 = vpop.f32.mrb[0].mxu0
    %v7470 = vpop.f32.mrb[0].mxu0
    %v7471 = vadd.f32 %v2519, %v7470
    %v7472 = vpop.f32.mrb[0].mxu0
    %7473 = vmatprep.mubr.bf16.mxu0 %v5818
    %7474 = vmatmul.mubr.bf16.gmra.mrb[0].mxu0 %v5817
    %v7475 = vpop.f32.mrb[0].mxu0
    %v7476 = vadd.f32 %v2524, %v7475
    %v7477 = vpop.f32.mrb[0].mxu0
    %v7478 = vpop.f32.mrb[0].mxu0
    %v7479 = vadd.f32 %v2529, %v7478
    %v7480 = vpop.f32.mrb[0].mxu0
    %7481 = vmatprep.mubr.bf16.mxu0 %v5820
    %7482 = vmatmul.mubr.bf16.gmra.mrb[0].mxu0 %v5819
    %v7483 = vpop.f32.mrb[0].mxu0
    %v7484 = vadd.f32 %v2534, %v7483
    %v7485 = vpop.f32.mrb[0].mxu0
    %v7486 = vpop.f32.mrb[0].mxu0
    %v7487 = vadd.f32 %v2539, %v7486
    %v7488 = vpop.f32.mrb[0].mxu0
    %7489 = vmatprep.mubr.bf16.mxu0 %v5822
    %7490 = vmatmul.mubr.bf16.gmra.mrb[0].mxu0 %v5821
    %v7491 = vpop.f32.mrb[0].mxu0
    %v7492 = vadd.f32 %v2544, %v7491
    %v7493 = vpop.f32.mrb[0].mxu0
    %v7494 = vpop.f32.mrb[0].mxu0
    %v7495 = vadd.f32 %v2549, %v7494
    %v7496 = vpop.f32.mrb[0].mxu0
    %7497 = vmatprep.mubr.bf16.mxu0 %v5824
    %7498 = vmatmul.mubr.bf16.gmra.mrb[0].mxu0 %v5823
    %v7499 = vpop.f32.mrb[0].mxu0
    %v7500 = vadd.f32 %v2554, %v7499
    %v7501 = vpop.f32.mrb[0].mxu0
    %v7502 = vpop.f32.mrb[0].mxu0
    %v7503 = vadd.f32 %v2559, %v7502
    %v7504 = vpop.f32.mrb[0].mxu0
    %7505 = vmatprep.mubr.bf16.mxu0 %v5826
    %7506 = vmatmul.mubr.bf16.gmra.mrb[0].mxu0 %v5825
    %v7507 = vpop.f32.mrb[0].mxu0
    %v7508 = vadd.f32 %v2564, %v7507
    %v7509 = vpop.f32.mrb[0].mxu0
    %v7510 = vpop.f32.mrb[0].mxu0
    %v7511 = vadd.f32 %v2569, %v7510
    %v7512 = vpop.f32.mrb[0].mxu0
    %7513 = vmatprep.mubr.bf16.mxu0 %v5828
    %7514 = vmatmul.mubr.bf16.gmra.mrb[0].mxu0 %v5827
    %v7515 = vpop.f32.mrb[0].mxu0
    %v7516 = vadd.f32 %v2574, %v7515
    %v7517 = vpop.f32.mrb[0].mxu0
    %v7518 = vpop.f32.mrb[0].mxu0
    %v7519 = vadd.f32 %v2579, %v7518
    %v7520 = vpop.f32.mrb[0].mxu0
    %7521 = vmatprep.mubr.bf16.mxu0 %v5830
    %7522 = vmatmul.mubr.bf16.gmra.mrb[0].mxu0 %v5829
    %v7523 = vpop.f32.mrb[0].mxu0
    %v7524 = vadd.f32 %v2584, %v7523
    %v7525 = vpop.f32.mrb[0].mxu0
    %v7526 = vpop.f32.mrb[0].mxu0
    %v7527 = vadd.f32 %v2589, %v7526
    %v7528 = vpop.f32.mrb[0].mxu0
    %7529 = vmatprep.mubr.bf16.mxu0 %v5832
    %7530 = vmatmul.mubr.bf16.gmra.mrb[0].mxu0 %v5831
    %v7531 = vpop.f32.mrb[0].mxu0
    %v7532 = vadd.f32 %v2594, %v7531
    %v7533 = vpop.f32.mrb[0].mxu0
    %v7534 = vpop.f32.mrb[0].mxu0
    %v7535 = vadd.f32 %v2599, %v7534
    %v7536 = vpop.f32.mrb[0].mxu0
    %7537 = vmatprep.mubr.bf16.mxu0 %v5834
    %7538 = vmatmul.mubr.bf16.gmra.mrb[0].mxu0 %v5833
    %v7539 = vpop.f32.mrb[0].mxu0
    %v7540 = vadd.f32 %v2604, %v7539
    %v7541 = vpop.f32.mrb[0].mxu0
    %v7542 = vpop.f32.mrb[0].mxu0
    %v7543 = vadd.f32 %v2609, %v7542
    %v7544 = vpop.f32.mrb[0].mxu0
    %7545 = vmatprep.mubr.bf16.mxu0 %v5836
    %7546 = vmatmul.mubr.bf16.gmra.mrb[0].mxu0 %v5835
    %v7547 = vpop.f32.mrb[0].mxu0
    %v7548 = vadd.f32 %v2614, %v7547
    %v7549 = vpop.f32.mrb[0].mxu0
    %v7550 = vpop.f32.mrb[0].mxu0
    %v7551 = vadd.f32 %v2619, %v7550
    %v7552 = vpop.f32.mrb[0].mxu0
    %7553 = vmatprep.mubr.bf16.mxu0 %v5838
    %7554 = vmatmul.mubr.bf16.gmra.mrb[0].mxu0 %v5837
    %v7555 = vpop.f32.mrb[0].mxu0
    %v7556 = vadd.f32 %v2624, %v7555
    %v7557 = vpop.f32.mrb[0].mxu0
    %v7558 = vpop.f32.mrb[0].mxu0
    %v7559 = vadd.f32 %v2629, %v7558
    %v7560 = vpop.f32.mrb[0].mxu0
    %7561 = vmatprep.mubr.bf16.mxu0 %v5840
    %7562 = vmatmul.mubr.bf16.gmra.mrb[0].mxu0 %v5839
    %v7563 = vpop.f32.mrb[0].mxu0
    %v7564 = vadd.f32 %v2634, %v7563
    %v7565 = vpop.f32.mrb[0].mxu0
    %v7566 = vpop.f32.mrb[0].mxu0
    %v7567 = vadd.f32 %v2639, %v7566
    %v7568 = vpop.f32.mrb[0].mxu0
    %7569 = vmatprep.mubr.bf16.mxu0 %v5842
    %7570 = vmatmul.mubr.bf16.gmra.mrb[0].mxu0 %v5841
    %v7571 = vpop.f32.mrb[0].mxu0
    %v7572 = vadd.f32 %v2644, %v7571
    %v7573 = vpop.f32.mrb[0].mxu0
    %v7574 = vpop.f32.mrb[0].mxu0
    %v7575 = vadd.f32 %v2649, %v7574
    %v7576 = vpop.f32.mrb[0].mxu0
    %7577 = vmatprep.mubr.bf16.mxu0 %v5844
    %7578 = vmatmul.mubr.bf16.gmra.mrb[0].mxu0 %v5843
    %v7579 = vpop.f32.mrb[0].mxu0
    %v7580 = vadd.f32 %v2654, %v7579
    %v7581 = vpop.f32.mrb[0].mxu0
    %v7582 = vpop.f32.mrb[0].mxu0
    %v7583 = vadd.f32 %v2659, %v7582
    %v7584 = vpop.f32.mrb[0].mxu0
    %7585 = vmatprep.mubr.bf16.mxu0 %v5846
    %7586 = vmatmul.mubr.bf16.gmra.mrb[0].mxu0 %v5845
    %v7587 = vpop.f32.mrb[0].mxu0
    %v7588 = vadd.f32 %v2664, %v7587
    %v7589 = vpop.f32.mrb[0].mxu0
    %v7590 = vpop.f32.mrb[0].mxu0
    %v7591 = vadd.f32 %v2669, %v7590
    %v7592 = vpop.f32.mrb[0].mxu0
    %7593 = vmatprep.mubr.bf16.mxu0 %v5848
    %7594 = vmatmul.mubr.bf16.gmra.mrb[0].mxu0 %v5847
    %v7595 = vpop.f32.mrb[0].mxu0
    %v7596 = vadd.f32 %v2674, %v7595
    %v7597 = vpop.f32.mrb[0].mxu0
    %v7598 = vpop.f32.mrb[0].mxu0
    %v7599 = vadd.f32 %v2679, %v7598
    %v7600 = vpop.f32.mrb[0].mxu0
    %7601 = vmatprep.mubr.bf16.mxu0 %v5850
    %7602 = vmatmul.mubr.bf16.gmra.mrb[0].mxu0 %v5849
    %v7603 = vpop.f32.mrb[0].mxu0
    %v7604 = vadd.f32 %v2684, %v7603
    %v7605 = vpop.f32.mrb[0].mxu0
    %v7606 = vpop.f32.mrb[0].mxu0
    %v7607 = vadd.f32 %v2689, %v7606
    %v7608 = vpop.f32.mrb[0].mxu0
    %7609 = vmatprep.mubr.bf16.mxu0 %v5852
    %7610 = vmatmul.mubr.bf16.gmra.mrb[0].mxu0 %v5851
    %v7611 = vpop.f32.mrb[0].mxu0
    %v7612 = vadd.f32 %v2694, %v7611
    %v7613 = vpop.f32.mrb[0].mxu0
    %v7614 = vpop.f32.mrb[0].mxu0
    %v7615 = vadd.f32 %v2699, %v7614
    %v7616 = vpop.f32.mrb[0].mxu0
    %7617 = vmatprep.mubr.bf16.mxu0 %v5854
    %7618 = vmatmul.mubr.bf16.gmra.mrb[0].mxu0 %v5853
    %v7619 = vpop.f32.mrb[0].mxu0
    %v7620 = vadd.f32 %v2704, %v7619
    %v7621 = vpop.f32.mrb[0].mxu0
    %v7622 = vpop.f32.mrb[0].mxu0
    %v7623 = vadd.f32 %v2709, %v7622
    %v7624 = vpop.f32.mrb[0].mxu0
    %7625 = vmatprep.mubr.bf16.mxu0 %v5856
    %7626 = vmatmul.mubr.bf16.gmra.mrb[0].mxu0 %v5855
    %v7627 = vpop.f32.mrb[0].mxu0
    %v7628 = vadd.f32 %v2714, %v7627
    %v7629 = vpop.f32.mrb[0].mxu0
    %v7630 = vpop.f32.mrb[0].mxu0
    %v7631 = vadd.f32 %v2719, %v7630
    %v7632 = vpop.f32.mrb[0].mxu0
    %7633 = vmatprep.mubr.bf16.mxu0 %v5858
    %7634 = vmatmul.mubr.bf16.gmra.mrb[0].mxu0 %v5857
    %v7635 = vpop.f32.mrb[0].mxu0
    %v7636 = vadd.f32 %v2724, %v7635
    %v7637 = vpop.f32.mrb[0].mxu0
    %v7638 = vpop.f32.mrb[0].mxu0
    %v7639 = vadd.f32 %v2729, %v7638
    %v7640 = vpop.f32.mrb[0].mxu0
    %7641 = vmatprep.mubr.bf16.mxu0 %v5860
    %7642 = vmatmul.mubr.bf16.gmra.mrb[0].mxu0 %v5859
    %v7643 = vpop.f32.mrb[0].mxu0
    %v7644 = vadd.f32 %v2734, %v7643
    %v7645 = vpop.f32.mrb[0].mxu0
    %v7646 = vpop.f32.mrb[0].mxu0
    %v7647 = vadd.f32 %v2739, %v7646
    %v7648 = vpop.f32.mrb[0].mxu0
    %7649 = vmatprep.mubr.bf16.mxu0 %v5862
    %7650 = vmatmul.mubr.bf16.gmra.mrb[0].mxu0 %v5861
    %v7651 = vpop.f32.mrb[0].mxu0
    %v7652 = vadd.f32 %v2744, %v7651
    %v7653 = vpop.f32.mrb[0].mxu0
    %v7654 = vpop.f32.mrb[0].mxu0
    %v7655 = vadd.f32 %v2749, %v7654
    %v7656 = vpop.f32.mrb[0].mxu0
    %7657 = vmatprep.mubr.bf16.mxu0 %v5864
    %7658 = vmatmul.mubr.bf16.gmra.mrb[0].mxu0 %v5863
    %v7659 = vpop.f32.mrb[0].mxu0
    %v7660 = vadd.f32 %v2754, %v7659
    %v7661 = vpop.f32.mrb[0].mxu0
    %v7662 = vpop.f32.mrb[0].mxu0
    %v7663 = vadd.f32 %v2759, %v7662
    %v7664 = vpop.f32.mrb[0].mxu0
    %7665 = vmatprep.mubr.bf16.mxu0 %v5866
    %7666 = vmatmul.mubr.bf16.gmra.mrb[0].mxu0 %v5865
    %v7667 = vpop.f32.mrb[0].mxu0
    %v7668 = vadd.f32 %v2764, %v7667
    %v7669 = vpop.f32.mrb[0].mxu0
    %v7670 = vpop.f32.mrb[0].mxu0
    %v7671 = vadd.f32 %v2769, %v7670
    %v7672 = vpop.f32.mrb[0].mxu0
    %7673 = vmatprep.mubr.bf16.mxu0 %v5868
    %7674 = vmatmul.mubr.bf16.gmra.mrb[0].mxu0 %v5867
    %v7675 = vpop.f32.mrb[0].mxu0
    %v7676 = vadd.f32 %v2774, %v7675
    %v7677 = vpop.f32.mrb[0].mxu0
    %v7678 = vpop.f32.mrb[0].mxu0
    %v7679 = vadd.f32 %v2779, %v7678
    %v7680 = vpop.f32.mrb[0].mxu0
    %7681 = vmatprep.mubr.bf16.mxu0 %v5870
    %7682 = vmatmul.mubr.bf16.gmra.mrb[0].mxu0 %v5869
    %v7683 = vpop.f32.mrb[0].mxu0
    %v7684 = vadd.f32 %v2784, %v7683
    %v7685 = vpop.f32.mrb[0].mxu0
    %v7686 = vpop.f32.mrb[0].mxu0
    %v7687 = vadd.f32 %v2789, %v7686
    %v7688 = vpop.f32.mrb[0].mxu0
    %7689 = vmatprep.mubr.bf16.mxu0 %v5872
    %7690 = vmatmul.mubr.bf16.gmra.mrb[0].mxu0 %v5871
    %v7691 = vpop.f32.mrb[0].mxu0
    %v7692 = vadd.f32 %v2794, %v7691
    %v7693 = vpop.f32.mrb[0].mxu0
    %v7694 = vpop.f32.mrb[0].mxu0
    %v7695 = vadd.f32 %v2799, %v7694
    %v7696 = vpop.f32.mrb[0].mxu0
    %7697 = vmatprep.mubr.bf16.mxu0 %v5874
    %7698 = vmatmul.mubr.bf16.gmra.mrb[0].mxu0 %v5873
    %v7699 = vpop.f32.mrb[0].mxu0
    %v7700 = vadd.f32 %v2804, %v7699
    %v7701 = vpop.f32.mrb[0].mxu0
    %v7702 = vpop.f32.mrb[0].mxu0
    %v7703 = vadd.f32 %v2809, %v7702
    %v7704 = vpop.f32.mrb[0].mxu0
    %7705 = vmatprep.mubr.bf16.mxu0 %v5876
    %7706 = vmatmul.mubr.bf16.gmra.mrb[0].mxu0 %v5875
    %v7707 = vpop.f32.mrb[0].mxu0
    %v7708 = vadd.f32 %v2814, %v7707
    %v7709 = vpop.f32.mrb[0].mxu0
    %v7710 = vpop.f32.mrb[0].mxu0
    %v7711 = vadd.f32 %v2819, %v7710
    %v7712 = vpop.f32.mrb[0].mxu0
    %7713 = vmatprep.mubr.bf16.mxu0 %v5878
    %7714 = vmatmul.mubr.bf16.gmra.mrb[0].mxu0 %v5877
    %v7715 = vpop.f32.mrb[0].mxu0
    %v7716 = vadd.f32 %v2824, %v7715
    %v7717 = vpop.f32.mrb[0].mxu0
    %v7718 = vpop.f32.mrb[0].mxu0
    %v7719 = vadd.f32 %v2829, %v7718
    %v7720 = vpop.f32.mrb[0].mxu0
    %7721 = vmatprep.mubr.bf16.mxu0 %v5880
    %7722 = vmatmul.mubr.bf16.gmra.mrb[0].mxu0 %v5879
    %v7723 = vpop.f32.mrb[0].mxu0
    %v7724 = vadd.f32 %v2834, %v7723
    %v7725 = vpop.f32.mrb[0].mxu0
    %v7726 = vpop.f32.mrb[0].mxu0
    %v7727 = vadd.f32 %v2839, %v7726
    %v7728 = vpop.f32.mrb[0].mxu0
    %7729 = vmatprep.mubr.bf16.mxu0 %v5882
    %7730 = vmatmul.mubr.bf16.gmra.mrb[0].mxu0 %v5881
    %v7731 = vpop.f32.mrb[0].mxu0
    %v7732 = vadd.f32 %v2844, %v7731
    %v7733 = vpop.f32.mrb[0].mxu0
    %v7734 = vpop.f32.mrb[0].mxu0
    %v7735 = vadd.f32 %v2849, %v7734
    %v7736 = vpop.f32.mrb[0].mxu0
    %7737 = vmatprep.mubr.bf16.mxu0 %v5884
    %7738 = vmatmul.mubr.bf16.gmra.mrb[0].mxu0 %v5883
    %v7739 = vpop.f32.mrb[0].mxu0
    %v7740 = vadd.f32 %v2854, %v7739
    %v7741 = vpop.f32.mrb[0].mxu0
    %v7742 = vpop.f32.mrb[0].mxu0
    %v7743 = vadd.f32 %v2859, %v7742
    %v7744 = vpop.f32.mrb[0].mxu0
    %7745 = vmatprep.mubr.bf16.mxu0 %v5886
    %7746 = vmatmul.mubr.bf16.gmra.mrb[0].mxu0 %v5885
    %v7747 = vpop.f32.mrb[0].mxu0
    %v7748 = vadd.f32 %v2864, %v7747
    %v7749 = vpop.f32.mrb[0].mxu0
    %v7750 = vpop.f32.mrb[0].mxu0
    %v7751 = vadd.f32 %v2869, %v7750
    %v7752 = vpop.f32.mrb[0].mxu0
    %7753 = vmatprep.mubr.bf16.mxu0 %v5888
    %7754 = vmatmul.mubr.bf16.gmra.mrb[0].mxu0 %v5887
    %v7755 = vpop.f32.mrb[0].mxu0
    %v7756 = vadd.f32 %v2874, %v7755
    %v7757 = vpop.f32.mrb[0].mxu0
    %v7758 = vpop.f32.mrb[0].mxu0
    %v7759 = vadd.f32 %v2879, %v7758
    %v7760 = vpop.f32.mrb[0].mxu0
    %7761 = vmatprep.mubr.bf16.mxu0 %v5890
    %7762 = vmatmul.mubr.bf16.gmra.mrb[0].mxu0 %v5889
    %v7763 = vpop.f32.mrb[0].mxu0
    %v7764 = vadd.f32 %v2884, %v7763
    %v7765 = vpop.f32.mrb[0].mxu0
    %v7766 = vpop.f32.mrb[0].mxu0
    %v7767 = vadd.f32 %v2889, %v7766
    %v7768 = vpop.f32.mrb[0].mxu0
    %7769 = vmatprep.mubr.bf16.mxu0 %v5892
    %7770 = vmatmul.mubr.bf16.gmra.mrb[0].mxu0 %v5891
    %v7771 = vpop.f32.mrb[0].mxu0
    %v7772 = vadd.f32 %v2894, %v7771
    %v7773 = vpop.f32.mrb[0].mxu0
    %v7774 = vpop.f32.mrb[0].mxu0
    %v7775 = vadd.f32 %v2899, %v7774
    %v7776 = vpop.f32.mrb[0].mxu0
    %7777 = vmatprep.mubr.bf16.mxu0 %v5894
    %7778 = vmatmul.mubr.bf16.gmra.mrb[0].mxu0 %v5893
    %v7779 = vpop.f32.mrb[0].mxu0
    %v7780 = vadd.f32 %v2904, %v7779
    %v7781 = vpop.f32.mrb[0].mxu0
    %v7782 = vpop.f32.mrb[0].mxu0
    %v7783 = vadd.f32 %v2909, %v7782
    %v7784 = vpop.f32.mrb[0].mxu0
    %7785 = vmatprep.mubr.bf16.mxu0 %v5896
    %7786 = vmatmul.mubr.bf16.gmra.mrb[0].mxu0 %v5895
    %v7787 = vpop.f32.mrb[0].mxu0
    %v7788 = vadd.f32 %v2914, %v7787
    %v7789 = vpop.f32.mrb[0].mxu0
    %v7790 = vpop.f32.mrb[0].mxu0
    %v7791 = vadd.f32 %v2919, %v7790
    %v7792 = vpop.f32.mrb[0].mxu0
    %7793 = vmatprep.mubr.bf16.mxu0 %v5898
    %7794 = vmatmul.mubr.bf16.gmra.mrb[0].mxu0 %v5897
    %v7795 = vpop.f32.mrb[0].mxu0
    %v7796 = vadd.f32 %v2924, %v7795
    %v7797 = vpop.f32.mrb[0].mxu0
    %v7798 = vpop.f32.mrb[0].mxu0
    %v7799 = vadd.f32 %v2929, %v7798
    %v7800 = vpop.f32.mrb[0].mxu0
    %7801 = vmatprep.mubr.bf16.mxu0 %v5900
    %7802 = vmatmul.mubr.bf16.gmra.mrb[0].mxu0 %v5899
    %v7803 = vpop.f32.mrb[0].mxu0
    %v7804 = vadd.f32 %v2934, %v7803
    %v7805 = vpop.f32.mrb[0].mxu0
    %v7806 = vpop.f32.mrb[0].mxu0
    %v7807 = vadd.f32 %v2939, %v7806
    %v7808 = vpop.f32.mrb[0].mxu0
    %7809 = vmatprep.mubr.bf16.mxu0 %v5902
    %7810 = vmatmul.mubr.bf16.gmra.mrb[0].mxu0 %v5901
    %v7811 = vpop.f32.mrb[0].mxu0
    %v7812 = vadd.f32 %v2944, %v7811
    %v7813 = vpop.f32.mrb[0].mxu0
    %v7814 = vpop.f32.mrb[0].mxu0
    %v7815 = vadd.f32 %v2949, %v7814
    %v7816 = vpop.f32.mrb[0].mxu0
    %7817 = vmatprep.mubr.bf16.mxu0 %v5904
    %7818 = vmatmul.mubr.bf16.gmra.mrb[0].mxu0 %v5903
    %v7819 = vpop.f32.mrb[0].mxu0
    %v7820 = vadd.f32 %v2954, %v7819
    %v7821 = vpop.f32.mrb[0].mxu0
    %v7822 = vpop.f32.mrb[0].mxu0
    %v7823 = vadd.f32 %v2959, %v7822
    %v7824 = vpop.f32.mrb[0].mxu0
    %7825 = vmatprep.mubr.bf16.mxu0 %v5906
    %7826 = vmatmul.mubr.bf16.gmra.mrb[0].mxu0 %v5905
    %v7827 = vpop.f32.mrb[0].mxu0
    %v7828 = vadd.f32 %v2964, %v7827
    %v7829 = vpop.f32.mrb[0].mxu0
    %v7830 = vpop.f32.mrb[0].mxu0
    %v7831 = vadd.f32 %v2969, %v7830
    %v7832 = vpop.f32.mrb[0].mxu0
    %7833 = vmatprep.mubr.bf16.mxu0 %v5908
    %7834 = vmatmul.mubr.bf16.gmra.mrb[0].mxu0 %v5907
    %v7835 = vpop.f32.mrb[0].mxu0
    %v7836 = vadd.f32 %v2974, %v7835
    %v7837 = vpop.f32.mrb[0].mxu0
    %v7838 = vpop.f32.mrb[0].mxu0
    %v7839 = vadd.f32 %v2979, %v7838
    %v7840 = vpop.f32.mrb[0].mxu0
    %7841 = vmatprep.mubr.bf16.mxu0 %v5910
    %7842 = vmatmul.mubr.bf16.gmra.mrb[0].mxu0 %v5909
    %v7843 = vpop.f32.mrb[0].mxu0
    %v7844 = vadd.f32 %v2984, %v7843
    %v7845 = vpop.f32.mrb[0].mxu0
    %v7846 = vpop.f32.mrb[0].mxu0
    %v7847 = vadd.f32 %v2989, %v7846
    %v7848 = vpop.f32.mrb[0].mxu0
    %7849 = vmatprep.mubr.bf16.mxu0 %v5912
    %7850 = vmatmul.mubr.bf16.gmra.mrb[0].mxu0 %v5911
    %v7851 = vpop.f32.mrb[0].mxu0
    %v7852 = vadd.f32 %v2994, %v7851
    %v7853 = vpop.f32.mrb[0].mxu0
    %v7854 = vpop.f32.mrb[0].mxu0
    %v7855 = vadd.f32 %v2999, %v7854
    %v7856 = vpop.f32.mrb[0].mxu0
    %7857 = vmatprep.mubr.bf16.mxu0 %v5914
    %7858 = vmatmul.mubr.bf16.gmra.mrb[0].mxu0 %v5913
    %v7859 = vpop.f32.mrb[0].mxu0
    %v7860 = vadd.f32 %v3004, %v7859
    %v7861 = vpop.f32.mrb[0].mxu0
    %v7862 = vpop.f32.mrb[0].mxu0
    %v7863 = vadd.f32 %v3009, %v7862
    %v7864 = vpop.f32.mrb[0].mxu0
    %7865 = vmatprep.mubr.bf16.mxu0 %v5916
    %7866 = vmatmul.mubr.bf16.gmra.mrb[0].mxu0 %v5915
    %v7867 = vpop.f32.mrb[0].mxu0
    %v7868 = vadd.f32 %v3014, %v7867
    %v7869 = vpop.f32.mrb[0].mxu0
    %v7870 = vpop.f32.mrb[0].mxu0
    %v7871 = vadd.f32 %v3019, %v7870
    %v7872 = vpop.f32.mrb[0].mxu0
    %7873 = vmatprep.mubr.bf16.mxu0 %v5918
    %7874 = vmatmul.mubr.bf16.gmra.mrb[0].mxu0 %v5917
    %v7875 = vpop.f32.mrb[0].mxu0
    %v7876 = vadd.f32 %v3024, %v7875
    %v7877 = vpop.f32.mrb[0].mxu0
    %v7878 = vpop.f32.mrb[0].mxu0
    %v7879 = vadd.f32 %v3029, %v7878
    %v7880 = vpop.f32.mrb[0].mxu0
    %7881 = vmatprep.mubr.bf16.mxu0 %v5920
    %7882 = vmatmul.mubr.bf16.gmra.mrb[0].mxu0 %v5919
    %v7883 = vpop.f32.mrb[0].mxu0
    %v7884 = vadd.f32 %v3034, %v7883
    %v7885 = vpop.f32.mrb[0].mxu0
    %v7886 = vpop.f32.mrb[0].mxu0
    %v7887 = vadd.f32 %v3039, %v7886
    %v7888 = vpop.f32.mrb[0].mxu0
    %7889 = vmatprep.mubr.bf16.mxu0 %v5922
    %7890 = vmatmul.mubr.bf16.gmra.mrb[0].mxu0 %v5921
    %v7891 = vpop.f32.mrb[0].mxu0
    %v7892 = vadd.f32 %v3044, %v7891
    %v7893 = vpop.f32.mrb[0].mxu0
    %v7894 = vpop.f32.mrb[0].mxu0
    %v7895 = vadd.f32 %v3049, %v7894
    %v7896 = vpop.f32.mrb[0].mxu0
    %7897 = vmatprep.mubr.bf16.mxu0 %v5924
    %7898 = vmatmul.mubr.bf16.gmra.mrb[0].mxu0 %v5923
    %v7899 = vpop.f32.mrb[0].mxu0
    %v7900 = vadd.f32 %v3054, %v7899
    %v7901 = vpop.f32.mrb[0].mxu0
    %v7902 = vpop.f32.mrb[0].mxu0
    %v7903 = vadd.f32 %v3059, %v7902
    %v7904 = vpop.f32.mrb[0].mxu0
    %7905 = vmatprep.mubr.bf16.mxu0 %v5926
    %7906 = vmatmul.mubr.bf16.gmra.mrb[0].mxu0 %v5925
    %v7907 = vpop.f32.mrb[0].mxu0
    %v7908 = vadd.f32 %v3064, %v7907
    %v7909 = vpop.f32.mrb[0].mxu0
    %v7910 = vpop.f32.mrb[0].mxu0
    %v7911 = vadd.f32 %v3069, %v7910
    %v7912 = vpop.f32.mrb[0].mxu0
    %7913 = vmatprep.mubr.bf16.mxu0 %v5928
    %7914 = vmatmul.mubr.bf16.gmra.mrb[0].mxu0 %v5927
    %v7915 = vpop.f32.mrb[0].mxu0
    %v7916 = vadd.f32 %v3074, %v7915
    %v7917 = vpop.f32.mrb[0].mxu0
    %v7918 = vpop.f32.mrb[0].mxu0
    %v7919 = vadd.f32 %v3079, %v7918
    %v7920 = vpop.f32.mrb[0].mxu0
    %7921 = vmatprep.mubr.bf16.mxu0 %v5930
    %7922 = vmatmul.mubr.bf16.gmra.mrb[0].mxu0 %v5929
    %v7923 = vpop.f32.mrb[0].mxu0
    %v7924 = vadd.f32 %v3084, %v7923
    %v7925 = vpop.f32.mrb[0].mxu0
    %v7926 = vpop.f32.mrb[0].mxu0
    %v7927 = vadd.f32 %v3089, %v7926
    %v7928 = vpop.f32.mrb[0].mxu0
    %7929 = vmatprep.mubr.bf16.mxu0 %v5932
    %7930 = vmatmul.mubr.bf16.gmra.mrb[0].mxu0 %v5931
    %v7931 = vpop.f32.mrb[0].mxu0
    %v7932 = vadd.f32 %v3094, %v7931
    %v7933 = vpop.f32.mrb[0].mxu0
    %v7934 = vpop.f32.mrb[0].mxu0
    %v7935 = vadd.f32 %v3099, %v7934
    %v7936 = vpop.f32.mrb[0].mxu0
    %7937 = vmatprep.mubr.bf16.mxu0 %v5934
    %7938 = vmatmul.mubr.bf16.gmra.mrb[0].mxu0 %v5933
    %v7939 = vpop.f32.mrb[0].mxu0
    %v7940 = vadd.f32 %v3104, %v7939
    %v7941 = vpop.f32.mrb[0].mxu0
    %v7942 = vpop.f32.mrb[0].mxu0
    %v7943 = vadd.f32 %v3109, %v7942
    %v7944 = vpop.f32.mrb[0].mxu0
    %7945 = vmatprep.mubr.bf16.mxu0 %v5936
    %7946 = vmatmul.mubr.bf16.gmra.mrb[0].mxu0 %v5935
    %v7947 = vpop.f32.mrb[0].mxu0
    %v7948 = vadd.f32 %v3114, %v7947
    %v7949 = vpop.f32.mrb[0].mxu0
    %v7950 = vpop.f32.mrb[0].mxu0
    %v7951 = vadd.f32 %v3119, %v7950
    %v7952 = vpop.f32.mrb[0].mxu0
    %7953 = vmatprep.mubr.bf16.mxu0 %v5938
    %7954 = vmatmul.mubr.bf16.gmra.mrb[0].mxu0 %v5937
    %v7955 = vpop.f32.mrb[0].mxu0
    %v7956 = vadd.f32 %v3124, %v7955
    %v7957 = vpop.f32.mrb[0].mxu0
    %v7958 = vpop.f32.mrb[0].mxu0
    %v7959 = vadd.f32 %v3129, %v7958
    %v7960 = vpop.f32.mrb[0].mxu0
    %7961 = vmatprep.mubr.bf16.mxu0 %v5940
    %7962 = vmatmul.mubr.bf16.gmra.mrb[0].mxu0 %v5939
    %v7963 = vpop.f32.mrb[0].mxu0
    %v7964 = vadd.f32 %v3134, %v7963
    %v7965 = vpop.f32.mrb[0].mxu0
    %v7966 = vpop.f32.mrb[0].mxu0
    %v7967 = vadd.f32 %v3139, %v7966
    %v7968 = vpop.f32.mrb[0].mxu0
    %7969 = vmatprep.mubr.bf16.mxu0 %v5942
    %7970 = vmatmul.mubr.bf16.gmra.mrb[0].mxu0 %v5941
    %v7971 = vpop.f32.mrb[0].mxu0
    %v7972 = vadd.f32 %v3144, %v7971
    %v7973 = vpop.f32.mrb[0].mxu0
    %v7974 = vpop.f32.mrb[0].mxu0
    %v7975 = vadd.f32 %v3149, %v7974
    %v7976 = vpop.f32.mrb[0].mxu0
    %7977 = vmatprep.mubr.bf16.mxu0 %v5944
    %7978 = vmatmul.mubr.bf16.gmra.mrb[0].mxu0 %v5943
    %v7979 = vpop.f32.mrb[0].mxu0
    %v7980 = vadd.f32 %v3154, %v7979
    %v7981 = vpop.f32.mrb[0].mxu0
    %v7982 = vpop.f32.mrb[0].mxu0
    %v7983 = vadd.f32 %v3159, %v7982
    %v7984 = vpop.f32.mrb[0].mxu0
    %7985 = vmatprep.mubr.bf16.mxu0 %v5946
    %7986 = vmatmul.mubr.bf16.gmra.mrb[0].mxu0 %v5945
    %v7987 = vpop.f32.mrb[0].mxu0
    %v7988 = vadd.f32 %v3164, %v7987
    %v7989 = vpop.f32.mrb[0].mxu0
    %v7990 = vpop.f32.mrb[0].mxu0
    %v7991 = vadd.f32 %v3169, %v7990
    %v7992 = vpop.f32.mrb[0].mxu0
    %7993 = vmatprep.mubr.bf16.mxu0 %v5948
    %7994 = vmatmul.mubr.bf16.gmra.mrb[0].mxu0 %v5947
    %v7995 = vpop.f32.mrb[0].mxu0
    %v7996 = vadd.f32 %v3174, %v7995
    %v7997 = vpop.f32.mrb[0].mxu0
    %v7998 = vpop.f32.mrb[0].mxu0
    %v7999 = vadd.f32 %v3179, %v7998
    %v8000 = vpop.f32.mrb[0].mxu0
    %8001 = vmatprep.mubr.bf16.mxu0 %v5950
    %8002 = vmatmul.mubr.bf16.gmra.mrb[0].mxu0 %v5949
    %v8003 = vpop.f32.mrb[0].mxu0
    %v8004 = vadd.f32 %v3184, %v8003
    %v8005 = vpop.f32.mrb[0].mxu0
    %v8006 = vpop.f32.mrb[0].mxu0
    %v8007 = vadd.f32 %v3189, %v8006
    %v8008 = vpop.f32.mrb[0].mxu0
    %8009 = vmatprep.mubr.bf16.mxu0 %v5952
    %8010 = vmatmul.mubr.bf16.gmra.mrb[0].mxu0 %v5951
    %v8011 = vpop.f32.mrb[0].mxu0
    %v8012 = vadd.f32 %v3194, %v8011
    %v8013 = vpop.f32.mrb[0].mxu0
    %v8014 = vpop.f32.mrb[0].mxu0
    %v8015 = vadd.f32 %v3199, %v8014
    %v8016 = vpop.f32.mrb[0].mxu0
    %8017 = vmatprep.mubr.bf16.mxu0 %v5954
    %8018 = vmatmul.mubr.bf16.gmra.mrb[0].mxu0 %v5953
    %v8019 = vpop.f32.mrb[0].mxu0
    %v8020 = vadd.f32 %v3204, %v8019
    %v8021 = vpop.f32.mrb[0].mxu0
    %v8022 = vpop.f32.mrb[0].mxu0
    %v8023 = vadd.f32 %v3209, %v8022
    %v8024 = vpop.f32.mrb[0].mxu0
    %8025 = vmatprep.mubr.bf16.mxu0 %v5956
    %8026 = vmatmul.mubr.bf16.gmra.mrb[0].mxu0 %v5955
    %v8027 = vpop.f32.mrb[0].mxu0
    %v8028 = vadd.f32 %v3214, %v8027
    %v8029 = vpop.f32.mrb[0].mxu0
    %v8030 = vpop.f32.mrb[0].mxu0
    %v8031 = vadd.f32 %v3219, %v8030
    %v8032 = vpop.f32.mrb[0].mxu0
    %8033 = vmatprep.mubr.bf16.mxu0 %v5958
    %8034 = vmatmul.mubr.bf16.gmra.mrb[0].mxu0 %v5957
    %v8035 = vpop.f32.mrb[0].mxu0
    %v8036 = vadd.f32 %v3224, %v8035
    %v8037 = vpop.f32.mrb[0].mxu0
    %v8038 = vpop.f32.mrb[0].mxu0
    %v8039 = vadd.f32 %v3229, %v8038
    %v8040 = vpop.f32.mrb[0].mxu0
    %8041 = vmatprep.mubr.bf16.mxu0 %v5960
    %8042 = vmatmul.mubr.bf16.gmra.mrb[0].mxu0 %v5959
    %v8043 = vpop.f32.mrb[0].mxu0
    %v8044 = vadd.f32 %v3234, %v8043
    %v8045 = vpop.f32.mrb[0].mxu0
    %v8046 = vpop.f32.mrb[0].mxu0
    %v8047 = vadd.f32 %v3239, %v8046
    %v8048 = vpop.f32.mrb[0].mxu0
    %8049 = vmatprep.mubr.bf16.mxu0 %v5962
    %8050 = vmatmul.mubr.bf16.gmra.mrb[0].mxu0 %v5961
    %v8051 = vpop.f32.mrb[0].mxu0
    %v8052 = vadd.f32 %v3244, %v8051
    %v8053 = vpop.f32.mrb[0].mxu0
    %v8054 = vpop.f32.mrb[0].mxu0
    %v8055 = vadd.f32 %v3249, %v8054
    %v8056 = vpop.f32.mrb[0].mxu0
    %8057 = vmatprep.mubr.bf16.mxu0 %v5964
    %8058 = vmatmul.mubr.bf16.gmra.mrb[0].mxu0 %v5963
    %v8059 = vpop.f32.mrb[0].mxu0
    %v8060 = vadd.f32 %v3254, %v8059
    %v8061 = vpop.f32.mrb[0].mxu0
    %v8062 = vpop.f32.mrb[0].mxu0
    %v8063 = vadd.f32 %v3259, %v8062
    %v8064 = vpop.f32.mrb[0].mxu0
    %8065 = vmatprep.mubr.bf16.mxu0 %v5966
    %8066 = vmatmul.mubr.bf16.gmra.mrb[0].mxu0 %v5965
    %v8067 = vpop.f32.mrb[0].mxu0
    %v8068 = vadd.f32 %v3264, %v8067
    %v8069 = vpop.f32.mrb[0].mxu0
    %v8070 = vpop.f32.mrb[0].mxu0
    %v8071 = vadd.f32 %v3269, %v8070
    %v8072 = vpop.f32.mrb[0].mxu0
    %8073 = vmatprep.mubr.bf16.mxu0 %v5968
    %8074 = vmatmul.mubr.bf16.gmra.mrb[0].mxu0 %v5967
    %v8075 = vpop.f32.mrb[0].mxu0
    %v8076 = vadd.f32 %v3274, %v8075
    %v8077 = vpop.f32.mrb[0].mxu0
    %v8078 = vpop.f32.mrb[0].mxu0
    %v8079 = vadd.f32 %v3279, %v8078
    %v8080 = vpop.f32.mrb[0].mxu0
    %8081 = vmatprep.mubr.bf16.mxu0 %v5970
    %8082 = vmatmul.mubr.bf16.gmra.mrb[0].mxu0 %v5969
    %v8083 = vpop.f32.mrb[0].mxu0
    %v8084 = vadd.f32 %v3284, %v8083
    %v8085 = vpop.f32.mrb[0].mxu0
    %v8086 = vpop.f32.mrb[0].mxu0
    %v8087 = vadd.f32 %v3289, %v8086
    %v8088 = vpop.f32.mrb[0].mxu0
    %8089 = vmatprep.mubr.bf16.mxu0 %v5972
    %8090 = vmatmul.mubr.bf16.gmra.mrb[0].mxu0 %v5971
    %v8091 = vpop.f32.mrb[0].mxu0
    %v8092 = vadd.f32 %v3294, %v8091
    %v8093 = vpop.f32.mrb[0].mxu0
    %v8094 = vpop.f32.mrb[0].mxu0
    %v8095 = vadd.f32 %v3299, %v8094
    %v8096 = vpop.f32.mrb[0].mxu0
    %8097 = vmatprep.mubr.bf16.mxu0 %v5974
    %8098 = vmatmul.mubr.bf16.gmra.mrb[0].mxu0 %v5973
    %v8099 = vpop.f32.mrb[0].mxu0
    %v8100 = vadd.f32 %v3304, %v8099
    %v8101 = vpop.f32.mrb[0].mxu0
    %v8102 = vpop.f32.mrb[0].mxu0
    %v8103 = vadd.f32 %v3309, %v8102
    %v8104 = vpop.f32.mrb[0].mxu0
    %8105 = vmatprep.mubr.bf16.mxu0 %v5976
    %8106 = vmatmul.mubr.bf16.gmra.mrb[0].mxu0 %v5975
    %v8107 = vpop.f32.mrb[0].mxu0
    %v8108 = vadd.f32 %v3314, %v8107
    %v8109 = vpop.f32.mrb[0].mxu0
    %v8110 = vpop.f32.mrb[0].mxu0
    %v8111 = vadd.f32 %v3319, %v8110
    %v8112 = vpop.f32.mrb[0].mxu0
    %8113 = vmatprep.mubr.bf16.mxu0 %v5978
    %8114 = vmatmul.mubr.bf16.gmra.mrb[0].mxu0 %v5977
    %v8115 = vpop.f32.mrb[0].mxu0
    %v8116 = vadd.f32 %v3324, %v8115
    %v8117 = vpop.f32.mrb[0].mxu0
    %v8118 = vpop.f32.mrb[0].mxu0
    %v8119 = vadd.f32 %v3329, %v8118
    %v8120 = vpop.f32.mrb[0].mxu0
    %8121 = vmatprep.mubr.bf16.mxu0 %v5980
    %8122 = vmatmul.mubr.bf16.gmra.mrb[0].mxu0 %v5979
    %v8123 = vpop.f32.mrb[0].mxu0
    %v8124 = vadd.f32 %v3334, %v8123
    %v8125 = vpop.f32.mrb[0].mxu0
    %v8126 = vpop.f32.mrb[0].mxu0
    %v8127 = vadd.f32 %v3339, %v8126
    %v8128 = vpop.f32.mrb[0].mxu0
    %8129 = vmatprep.mubr.bf16.mxu0 %v5982
    %8130 = vmatmul.mubr.bf16.gmra.mrb[0].mxu0 %v5981
    %v8131 = vpop.f32.mrb[0].mxu0
    %v8132 = vadd.f32 %v3344, %v8131
    %v8133 = vpop.f32.mrb[0].mxu0
    %v8134 = vpop.f32.mrb[0].mxu0
    %v8135 = vadd.f32 %v3349, %v8134
    %v8136 = vpop.f32.mrb[0].mxu0
    %8137 = vmatprep.mubr.bf16.mxu0 %v5984
    %8138 = vmatmul.mubr.bf16.gmra.mrb[0].mxu0 %v5983
    %v8139 = vpop.f32.mrb[0].mxu0
    %v8140 = vadd.f32 %v3354, %v8139
    %v8141 = vpop.f32.mrb[0].mxu0
    %v8142 = vpop.f32.mrb[0].mxu0
    %v8143 = vadd.f32 %v3359, %v8142
    %v8144 = vpop.f32.mrb[0].mxu0
    %8145 = vmatprep.mubr.bf16.mxu0 %v5986
    %8146 = vmatmul.mubr.bf16.gmra.mrb[0].mxu0 %v5985
    %v8147 = vpop.f32.mrb[0].mxu0
    %v8148 = vadd.f32 %v3364, %v8147
    %v8149 = vpop.f32.mrb[0].mxu0
    %v8150 = vpop.f32.mrb[0].mxu0
    %v8151 = vadd.f32 %v3369, %v8150
    %v8152 = vpop.f32.mrb[0].mxu0
    %8153 = vmatprep.mubr.bf16.mxu0 %v5988
    %8154 = vmatmul.mubr.bf16.gmra.mrb[0].mxu0 %v5987
    %v8155 = vpop.f32.mrb[0].mxu0
    %v8156 = vadd.f32 %v3374, %v8155
    %v8157 = vpop.f32.mrb[0].mxu0
    %v8158 = vpop.f32.mrb[0].mxu0
    %v8159 = vadd.f32 %v3379, %v8158
    %v8160 = vpop.f32.mrb[0].mxu0
    %8161 = vmatprep.mubr.bf16.mxu0 %v5990
    %8162 = vmatmul.mubr.bf16.gmra.mrb[0].mxu0 %v5989
    %v8163 = vpop.f32.mrb[0].mxu0
    %v8164 = vadd.f32 %v3384, %v8163
    %v8165 = vpop.f32.mrb[0].mxu0
    %v8166 = vpop.f32.mrb[0].mxu0
    %v8167 = vadd.f32 %v3389, %v8166
    %v8168 = vpop.f32.mrb[0].mxu0
    %8169 = vmatprep.mubr.bf16.mxu0 %v5992
    %8170 = vmatmul.mubr.bf16.gmra.mrb[0].mxu0 %v5991
    %v8171 = vpop.f32.mrb[0].mxu0
    %v8172 = vadd.f32 %v3394, %v8171
    %v8173 = vpop.f32.mrb[0].mxu0
    %v8174 = vpop.f32.mrb[0].mxu0
    %v8175 = vadd.f32 %v3399, %v8174
    %v8176 = vpop.f32.mrb[0].mxu0
    %8177 = vmatprep.mubr.bf16.mxu0 %v5994
    %8178 = vmatmul.mubr.bf16.gmra.mrb[0].mxu0 %v5993
    %v8179 = vpop.f32.mrb[0].mxu0
    %v8180 = vadd.f32 %v3404, %v8179
    %v8181 = vpop.f32.mrb[0].mxu0
    %v8182 = vpop.f32.mrb[0].mxu0
    %v8183 = vadd.f32 %v3409, %v8182
    %v8184 = vpop.f32.mrb[0].mxu0
    %8185 = vmatprep.mubr.bf16.mxu0 %v5996
    %8186 = vmatmul.mubr.bf16.gmra.mrb[0].mxu0 %v5995
    %v8187 = vpop.f32.mrb[0].mxu0
    %v8188 = vadd.f32 %v3414, %v8187
    %v8189 = vpop.f32.mrb[0].mxu0
    %v8190 = vpop.f32.mrb[0].mxu0
    %v8191 = vadd.f32 %v3419, %v8190
    %v8192 = vpop.f32.mrb[0].mxu0
    %8193 = vmatprep.mubr.bf16.mxu0 %v5998
    %8194 = vmatmul.mubr.bf16.gmra.mrb[0].mxu0 %v5997
    %v8195 = vpop.f32.mrb[0].mxu0
    %v8196 = vadd.f32 %v3424, %v8195
    %v8197 = vpop.f32.mrb[0].mxu0
    %v8198 = vpop.f32.mrb[0].mxu0
    %v8199 = vadd.f32 %v3429, %v8198
    %v8200 = vpop.f32.mrb[0].mxu0
    %8201 = vmatprep.mubr.bf16.mxu0 %v6000
    %8202 = vmatmul.mubr.bf16.gmra.mrb[0].mxu0 %v5999
    %v8203 = vpop.f32.mrb[0].mxu0
    %v8204 = vadd.f32 %v3434, %v8203
    %v8205 = vpop.f32.mrb[0].mxu0
    %v8206 = vpop.f32.mrb[0].mxu0
    %v8207 = vadd.f32 %v3439, %v8206
    %v8208 = vpop.f32.mrb[0].mxu0
    %8209 = vmatprep.mubr.bf16.mxu0 %v6002
    %8210 = vmatmul.mubr.bf16.gmra.mrb[0].mxu0 %v6001
    %v8211 = vpop.f32.mrb[0].mxu0
    %v8212 = vadd.f32 %v3444, %v8211
    %v8213 = vpop.f32.mrb[0].mxu0
    %v8214 = vpop.f32.mrb[0].mxu0
    %v8215 = vadd.f32 %v3449, %v8214
    %v8216 = vpop.f32.mrb[0].mxu0
    %8217 = vmatprep.mubr.bf16.mxu0 %v6004
    %8218 = vmatmul.mubr.bf16.gmra.mrb[0].mxu0 %v6003
    %v8219 = vpop.f32.mrb[0].mxu0
    %v8220 = vadd.f32 %v3454, %v8219
    %v8221 = vpop.f32.mrb[0].mxu0
    %v8222 = vpop.f32.mrb[0].mxu0
    %v8223 = vadd.f32 %v3459, %v8222
    %v8224 = vpop.f32.mrb[0].mxu0
    %8225 = vmatprep.mubr.bf16.mxu0 %v6006
    %8226 = vmatmul.mubr.bf16.gmra.mrb[0].mxu0 %v6005
    %v8227 = vpop.f32.mrb[0].mxu0
    %v8228 = vadd.f32 %v3464, %v8227
    %v8229 = vpop.f32.mrb[0].mxu0
    %v8230 = vpop.f32.mrb[0].mxu0
    %v8231 = vadd.f32 %v3469, %v8230
    %v8232 = vpop.f32.mrb[0].mxu0
    %8233 = vmatprep.mubr.bf16.mxu0 %v6008
    %8234 = vmatmul.mubr.bf16.gmra.mrb[0].mxu0 %v6007
    %v8235 = vpop.f32.mrb[0].mxu0
    %v8236 = vadd.f32 %v3474, %v8235
    %v8237 = vpop.f32.mrb[0].mxu0
    %v8238 = vpop.f32.mrb[0].mxu0
    %v8239 = vadd.f32 %v3479, %v8238
    %v8240 = vpop.f32.mrb[0].mxu0
    %8241 = vmatprep.mubr.bf16.mxu0 %v6010
    %8242 = vmatmul.mubr.bf16.gmra.mrb[0].mxu0 %v6009
    %v8243 = vpop.f32.mrb[0].mxu0
    %v8244 = vadd.f32 %v3484, %v8243
    %v8245 = vpop.f32.mrb[0].mxu0
    %v8246 = vpop.f32.mrb[0].mxu0
    %v8247 = vadd.f32 %v3489, %v8246
    %v8248 = vpop.f32.mrb[0].mxu0
    %8249 = vmatprep.mubr.bf16.mxu0 %v6012
    %8250 = vmatmul.mubr.bf16.gmra.mrb[0].mxu0 %v6011
    %v8251 = vpop.f32.mrb[0].mxu0
    %v8252 = vadd.f32 %v3494, %v8251
    %v8253 = vpop.f32.mrb[0].mxu0
    %v8254 = vpop.f32.mrb[0].mxu0
    %v8255 = vadd.f32 %v3499, %v8254
    %v8256 = vpop.f32.mrb[0].mxu0
    %8257 = vmatprep.mubr.bf16.mxu0 %v6014
    %8258 = vmatmul.mubr.bf16.gmra.mrb[0].mxu0 %v6013
    %v8259 = vpop.f32.mrb[0].mxu0
    %v8260 = vadd.f32 %v3504, %v8259
    %v8261 = vpop.f32.mrb[0].mxu0
    %v8262 = vpop.f32.mrb[0].mxu0
    %v8263 = vadd.f32 %v3509, %v8262
    %v8264 = vpop.f32.mrb[0].mxu0
    %8265 = vmatprep.mubr.bf16.mxu0 %v6016
    %8266 = vmatmul.mubr.bf16.gmra.mrb[0].mxu0 %v6015
    %v8267 = vpop.f32.mrb[0].mxu0
    %v8268 = vadd.f32 %v3514, %v8267
    %v8269 = vpop.f32.mrb[0].mxu0
    %v8270 = vpop.f32.mrb[0].mxu0
    %v8271 = vadd.f32 %v3519, %v8270
    %v8272 = vpop.f32.mrb[0].mxu0
    %8273 = vmatprep.mubr.bf16.mxu0 %v6018
    %8274 = vmatmul.mubr.bf16.gmra.mrb[0].mxu0 %v6017
    %v8275 = vpop.f32.mrb[0].mxu0
    %v8276 = vadd.f32 %v3524, %v8275
    %v8277 = vpop.f32.mrb[0].mxu0
    %v8278 = vpop.f32.mrb[0].mxu0
    %v8279 = vadd.f32 %v3529, %v8278
    %v8280 = vpop.f32.mrb[0].mxu0
    %8281 = vmatprep.mubr.bf16.mxu0 %v6020
    %8282 = vmatmul.mubr.bf16.gmra.mrb[0].mxu0 %v6019
    %v8283 = vpop.f32.mrb[0].mxu0
    %v8284 = vadd.f32 %v3534, %v8283
    %v8285 = vpop.f32.mrb[0].mxu0
    %v8286 = vpop.f32.mrb[0].mxu0
    %v8287 = vadd.f32 %v3539, %v8286
    %v8288 = vpop.f32.mrb[0].mxu0
    %8289 = vmatprep.mubr.bf16.mxu0 %v6022
    %8290 = vmatmul.mubr.bf16.gmra.mrb[0].mxu0 %v6021
    %v8291 = vpop.f32.mrb[0].mxu0
    %v8292 = vadd.f32 %v3544, %v8291
    %v8293 = vpop.f32.mrb[0].mxu0
    %v8294 = vpop.f32.mrb[0].mxu0
    %v8295 = vadd.f32 %v3549, %v8294
    %v8296 = vpop.f32.mrb[0].mxu0
    %8297 = vmatprep.mubr.bf16.mxu0 %v6024
    %8298 = vmatmul.mubr.bf16.gmra.mrb[0].mxu0 %v6023
    %v8299 = vpop.f32.mrb[0].mxu0
    %v8300 = vadd.f32 %v3554, %v8299
    %v8301 = vpop.f32.mrb[0].mxu0
    %v8302 = vpop.f32.mrb[0].mxu0
    %v8303 = vadd.f32 %v3559, %v8302
    %v8304 = vpop.f32.mrb[0].mxu0
    %8305 = vmatprep.mubr.bf16.mxu0 %v6026
    %8306 = vmatmul.mubr.bf16.gmra.mrb[0].mxu0 %v6025
    %v8307 = vpop.f32.mrb[0].mxu0
    %v8308 = vadd.f32 %v3564, %v8307
    %v8309 = vpop.f32.mrb[0].mxu0
    %v8310 = vpop.f32.mrb[0].mxu0
    %v8311 = vadd.f32 %v3569, %v8310
    %v8312 = vpop.f32.mrb[0].mxu0
    %8313 = vmatprep.mubr.bf16.mxu0 %v6028
    %8314 = vmatmul.mubr.bf16.gmra.mrb[0].mxu0 %v6027
    %v8315 = vpop.f32.mrb[0].mxu0
    %v8316 = vadd.f32 %v3574, %v8315
    %v8317 = vpop.f32.mrb[0].mxu0
    %v8318 = vpop.f32.mrb[0].mxu0
    %v8319 = vadd.f32 %v3579, %v8318
    %v8320 = vpop.f32.mrb[0].mxu0
    %8321 = vmatprep.mubr.bf16.mxu0 %v6030
    %8322 = vmatmul.mubr.bf16.gmra.mrb[0].mxu0 %v6029
    %v8323 = vpop.f32.mrb[0].mxu0
    %v8324 = vadd.f32 %v3584, %v8323
    %v8325 = vpop.f32.mrb[0].mxu0
    %v8326 = vpop.f32.mrb[0].mxu0
    %v8327 = vadd.f32 %v3589, %v8326
    %v8328 = vpop.f32.mrb[0].mxu0
    %8329 = vmatprep.mubr.bf16.mxu0 %v6032
    %8330 = vmatmul.mubr.bf16.gmra.mrb[0].mxu0 %v6031
    %v8331 = vpop.f32.mrb[0].mxu0
    %v8332 = vadd.f32 %v3594, %v8331
    %v8333 = vpop.f32.mrb[0].mxu0
    %v8334 = vpop.f32.mrb[0].mxu0
    %v8335 = vadd.f32 %v3599, %v8334
    %v8336 = vpop.f32.mrb[0].mxu0
    %8337 = vmatprep.mubr.bf16.mxu0 %v6034
    %8338 = vmatmul.mubr.bf16.gmra.mrb[0].mxu0 %v6033
    %v8339 = vpop.f32.mrb[0].mxu0
    %v8340 = vadd.f32 %v3604, %v8339
    %v8341 = vpop.f32.mrb[0].mxu0
    %v8342 = vpop.f32.mrb[0].mxu0
    %v8343 = vadd.f32 %v3609, %v8342
    %v8344 = vpop.f32.mrb[0].mxu0
    %8345 = vmatprep.mubr.bf16.mxu0 %v6036
    %8346 = vmatmul.mubr.bf16.gmra.mrb[0].mxu0 %v6035
    %v8347 = vpop.f32.mrb[0].mxu0
    %v8348 = vadd.f32 %v3614, %v8347
    %v8349 = vpop.f32.mrb[0].mxu0
    %v8350 = vpop.f32.mrb[0].mxu0
    %v8351 = vadd.f32 %v3619, %v8350
    %v8352 = vpop.f32.mrb[0].mxu0
    %8353 = vmatprep.mubr.bf16.mxu0 %v6038
    %8354 = vmatmul.mubr.bf16.gmra.mrb[0].mxu0 %v6037
    %v8355 = vpop.f32.mrb[0].mxu0
    %v8356 = vadd.f32 %v3624, %v8355
    %v8357 = vpop.f32.mrb[0].mxu0
    %v8358 = vpop.f32.mrb[0].mxu0
    %v8359 = vadd.f32 %v3629, %v8358
    %v8360 = vpop.f32.mrb[0].mxu0
    %8361 = vmatprep.mubr.bf16.mxu0 %v6040
    %8362 = vmatmul.mubr.bf16.gmra.mrb[0].mxu0 %v6039
    %v8363 = vpop.f32.mrb[0].mxu0
    %v8364 = vadd.f32 %v3634, %v8363
    %v8365 = vpop.f32.mrb[0].mxu0
    %v8366 = vpop.f32.mrb[0].mxu0
    %v8367 = vadd.f32 %v3639, %v8366
    %v8368 = vpop.f32.mrb[0].mxu0
    %8369 = vmatprep.mubr.bf16.mxu0 %v6042
    %8370 = vmatmul.mubr.bf16.gmra.mrb[0].mxu0 %v6041
    %v8371 = vpop.f32.mrb[0].mxu0
    %v8372 = vadd.f32 %v3644, %v8371
    %v8373 = vpop.f32.mrb[0].mxu0
    %v8374 = vpop.f32.mrb[0].mxu0
    %v8375 = vadd.f32 %v3649, %v8374
    %v8376 = vpop.f32.mrb[0].mxu0
    %8377 = vmatprep.mubr.bf16.mxu0 %v6044
    %8378 = vmatmul.mubr.bf16.gmra.mrb[0].mxu0 %v6043
    %v8379 = vpop.f32.mrb[0].mxu0
    %v8380 = vadd.f32 %v3654, %v8379
    %v8381 = vpop.f32.mrb[0].mxu0
    %v8382 = vpop.f32.mrb[0].mxu0
    %v8383 = vadd.f32 %v3659, %v8382
    %v8384 = vpop.f32.mrb[0].mxu0
    %8385 = vmatprep.mubr.bf16.mxu0 %v6046
    %8386 = vmatmul.mubr.bf16.gmra.mrb[0].mxu0 %v6045
    %v8387 = vpop.f32.mrb[0].mxu0
    %v8388 = vadd.f32 %v3664, %v8387
    %v8389 = vpop.f32.mrb[0].mxu0
    %v8390 = vpop.f32.mrb[0].mxu0
    %v8391 = vadd.f32 %v3669, %v8390
    %v8392 = vpop.f32.mrb[0].mxu0
    %8393 = vmatprep.mubr.bf16.mxu0 %v6048
    %8394 = vmatmul.mubr.bf16.gmra.mrb[0].mxu0 %v6047
    %v8395 = vpop.f32.mrb[0].mxu0
    %v8396 = vadd.f32 %v3674, %v8395
    %v8397 = vpop.f32.mrb[0].mxu0
    %v8398 = vpop.f32.mrb[0].mxu0
    %v8399 = vadd.f32 %v3679, %v8398
    %v8400 = vpop.f32.mrb[0].mxu0
    %8401 = vmatprep.mubr.bf16.mxu0 %v6050
    %8402 = vmatmul.mubr.bf16.gmra.mrb[0].mxu0 %v6049
    %v8403 = vpop.f32.mrb[0].mxu0
    %v8404 = vadd.f32 %v3684, %v8403
    %v8405 = vpop.f32.mrb[0].mxu0
    %v8406 = vpop.f32.mrb[0].mxu0
    %v8407 = vadd.f32 %v3689, %v8406
    %v8408 = vpop.f32.mrb[0].mxu0
    %8409 = vmatprep.mubr.bf16.mxu0 %v6052
    %8410 = vmatmul.mubr.bf16.gmra.mrb[0].mxu0 %v6051
    %v8411 = vpop.f32.mrb[0].mxu0
    %v8412 = vadd.f32 %v3694, %v8411
    %v8413 = vpop.f32.mrb[0].mxu0
    %v8414 = vpop.f32.mrb[0].mxu0
    %v8415 = vadd.f32 %v3699, %v8414
    %v8416 = vpop.f32.mrb[0].mxu0
    %8417 = vmatprep.mubr.bf16.mxu0 %v6054
    %8418 = vmatmul.mubr.bf16.gmra.mrb[0].mxu0 %v6053
    %v8419 = vpop.f32.mrb[0].mxu0
    %v8420 = vadd.f32 %v3704, %v8419
    %v8421 = vpop.f32.mrb[0].mxu0
    %v8422 = vpop.f32.mrb[0].mxu0
    %v8423 = vadd.f32 %v3709, %v8422
    %v8424 = vpop.f32.mrb[0].mxu0
    %8425 = vmatprep.mubr.bf16.mxu0 %v6056
    %8426 = vmatmul.mubr.bf16.gmra.mrb[0].mxu0 %v6055
    %v8427 = vpop.f32.mrb[0].mxu0
    %v8428 = vadd.f32 %v3714, %v8427
    %v8429 = vpop.f32.mrb[0].mxu0
    %v8430 = vpop.f32.mrb[0].mxu0
    %v8431 = vadd.f32 %v3719, %v8430
    %v8432 = vpop.f32.mrb[0].mxu0
    %8433 = vmatprep.mubr.bf16.mxu0 %v6058
    %8434 = vmatmul.mubr.bf16.gmra.mrb[0].mxu0 %v6057
    %v8435 = vpop.f32.mrb[0].mxu0
    %v8436 = vadd.f32 %v3724, %v8435
    %v8437 = vpop.f32.mrb[0].mxu0
    %v8438 = vpop.f32.mrb[0].mxu0
    %v8439 = vadd.f32 %v3729, %v8438
    %v8440 = vpop.f32.mrb[0].mxu0
    %8441 = vmatprep.mubr.bf16.mxu0 %v6060
    %8442 = vmatmul.mubr.bf16.gmra.mrb[0].mxu0 %v6059
    %v8443 = vpop.f32.mrb[0].mxu0
    %v8444 = vadd.f32 %v3734, %v8443
    %v8445 = vpop.f32.mrb[0].mxu0
    %v8446 = vpop.f32.mrb[0].mxu0
    %v8447 = vadd.f32 %v3739, %v8446
    %v8448 = vpop.f32.mrb[0].mxu0
    %8449 = vmatprep.mubr.bf16.mxu0 %v6062
    %8450 = vmatmul.mubr.bf16.gmra.mrb[0].mxu0 %v6061
    %v8451 = vpop.f32.mrb[0].mxu0
    %v8452 = vadd.f32 %v3744, %v8451
    %v8453 = vpop.f32.mrb[0].mxu0
    %v8454 = vpop.f32.mrb[0].mxu0
    %v8455 = vadd.f32 %v3749, %v8454
    %v8456 = vpop.f32.mrb[0].mxu0
    %8457 = vmatprep.mubr.bf16.mxu0 %v6064
    %8458 = vmatmul.mubr.bf16.gmra.mrb[0].mxu0 %v6063
    %v8459 = vpop.f32.mrb[0].mxu0
    %v8460 = vadd.f32 %v3754, %v8459
    %v8461 = vpop.f32.mrb[0].mxu0
    %v8462 = vpop.f32.mrb[0].mxu0
    %v8463 = vadd.f32 %v3759, %v8462
    %v8464 = vpop.f32.mrb[0].mxu0
    %8465 = vmatprep.mubr.bf16.mxu0 %v6066
    %8466 = vmatmul.mubr.bf16.gmra.mrb[0].mxu0 %v6065
    %v8467 = vpop.f32.mrb[0].mxu0
    %v8468 = vadd.f32 %v3764, %v8467
    %v8469 = vpop.f32.mrb[0].mxu0
    %v8470 = vpop.f32.mrb[0].mxu0
    %v8471 = vadd.f32 %v3769, %v8470
    %v8472 = vpop.f32.mrb[0].mxu0
    %8473 = vmatprep.mubr.bf16.mxu0 %v6068
    %8474 = vmatmul.mubr.bf16.gmra.mrb[0].mxu0 %v6067
    %v8475 = vpop.f32.mrb[0].mxu0
    %v8476 = vadd.f32 %v3774, %v8475
    %v8477 = vpop.f32.mrb[0].mxu0
    %v8478 = vpop.f32.mrb[0].mxu0
    %v8479 = vadd.f32 %v3779, %v8478
    %v8480 = vpop.f32.mrb[0].mxu0
    %8481 = vmatprep.mubr.bf16.mxu0 %v6070
    %8482 = vmatmul.mubr.bf16.gmra.mrb[0].mxu0 %v6069
    %v8483 = vpop.f32.mrb[0].mxu0
    %v8484 = vadd.f32 %v3784, %v8483
    %v8485 = vpop.f32.mrb[0].mxu0
    %v8486 = vpop.f32.mrb[0].mxu0
    %v8487 = vadd.f32 %v3789, %v8486
    %v8488 = vpop.f32.mrb[0].mxu0
    %8489 = vmatprep.mubr.bf16.mxu0 %v6072
    %8490 = vmatmul.mubr.bf16.gmra.mrb[0].mxu0 %v6071
    %v8491 = vpop.f32.mrb[0].mxu0
    %v8492 = vadd.f32 %v3794, %v8491
    %v8493 = vpop.f32.mrb[0].mxu0
    %v8494 = vpop.f32.mrb[0].mxu0
    %v8495 = vadd.f32 %v3799, %v8494
    %v8496 = vpop.f32.mrb[0].mxu0
    %8497 = vmatprep.mubr.bf16.mxu0 %v6074
    %8498 = vmatmul.mubr.bf16.gmra.mrb[0].mxu0 %v6073
    %v8499 = vpop.f32.mrb[0].mxu0
    %v8500 = vadd.f32 %v3804, %v8499
    %v8501 = vpop.f32.mrb[0].mxu0
    %v8502 = vpop.f32.mrb[0].mxu0
    %v8503 = vadd.f32 %v3809, %v8502
    %v8504 = vpop.f32.mrb[0].mxu0
    %8505 = vmatprep.mubr.bf16.mxu0 %v6076
    %8506 = vmatmul.mubr.bf16.gmra.mrb[0].mxu0 %v6075
    %v8507 = vpop.f32.mrb[0].mxu0
    %v8508 = vadd.f32 %v3814, %v8507
    %v8509 = vpop.f32.mrb[0].mxu0
    %v8510 = vpop.f32.mrb[0].mxu0
    %v8511 = vadd.f32 %v3819, %v8510
    %v8512 = vpop.f32.mrb[0].mxu0
    %8513 = vmatprep.mubr.bf16.mxu0 %v6078
    %8514 = vmatmul.mubr.bf16.gmra.mrb[0].mxu0 %v6077
    %v8515 = vpop.f32.mrb[0].mxu0
    %v8516 = vadd.f32 %v3824, %v8515
    %v8517 = vpop.f32.mrb[0].mxu0
    %v8518 = vpop.f32.mrb[0].mxu0
    %v8519 = vadd.f32 %v3829, %v8518
    %v8520 = vpop.f32.mrb[0].mxu0
    %8521 = vmatprep.mubr.bf16.mxu0 %v6080
    %8522 = vmatmul.mubr.bf16.gmra.mrb[0].mxu0 %v6079
    %v8523 = vpop.f32.mrb[0].mxu0
    %v8524 = vadd.f32 %v3834, %v8523
    %v8525 = vpop.f32.mrb[0].mxu0
    %v8526 = vpop.f32.mrb[0].mxu0
    %v8527 = vadd.f32 %v3839, %v8526
    %v8528 = vpop.f32.mrb[0].mxu0
    %8529 = vmatprep.mubr.bf16.mxu0 %v6082
    %8530 = vmatmul.mubr.bf16.gmra.mrb[0].mxu0 %v6081
    %v8531 = vpop.f32.mrb[0].mxu0
    %v8532 = vadd.f32 %v3844, %v8531
    %v8533 = vpop.f32.mrb[0].mxu0
    %v8534 = vpop.f32.mrb[0].mxu0
    %v8535 = vadd.f32 %v3849, %v8534
    %v8536 = vpop.f32.mrb[0].mxu0
    %8537 = vmatprep.mubr.bf16.mxu0 %v6084
    %8538 = vmatmul.mubr.bf16.gmra.mrb[0].mxu0 %v6083
    %v8539 = vpop.f32.mrb[0].mxu0
    %v8540 = vadd.f32 %v3854, %v8539
    %v8541 = vpop.f32.mrb[0].mxu0
    %v8542 = vpop.f32.mrb[0].mxu0
    %v8543 = vadd.f32 %v3859, %v8542
    %v8544 = vpop.f32.mrb[0].mxu0
    %8545 = vmatprep.mubr.bf16.mxu0 %v6086
    %8546 = vmatmul.mubr.bf16.gmra.mrb[0].mxu0 %v6085
    %v8547 = vpop.f32.mrb[0].mxu0
    %v8548 = vadd.f32 %v3864, %v8547
    %v8549 = vpop.f32.mrb[0].mxu0
    %v8550 = vpop.f32.mrb[0].mxu0
    %v8551 = vadd.f32 %v3869, %v8550
    %v8552 = vpop.f32.mrb[0].mxu0
    %8553 = vmatprep.mubr.bf16.mxu0 %v6088
    %8554 = vmatmul.mubr.bf16.gmra.mrb[0].mxu0 %v6087
    %v8555 = vpop.f32.mrb[0].mxu0
    %v8556 = vadd.f32 %v3874, %v8555
    %v8557 = vpop.f32.mrb[0].mxu0
    %v8558 = vpop.f32.mrb[0].mxu0
    %v8559 = vadd.f32 %v3879, %v8558
    %v8560 = vpop.f32.mrb[0].mxu0
    %8561 = vmatprep.mubr.bf16.mxu0 %v6090
    %8562 = vmatmul.mubr.bf16.gmra.mrb[0].mxu0 %v6089
    %v8563 = vpop.f32.mrb[0].mxu0
    %v8564 = vadd.f32 %v3884, %v8563
    %v8565 = vpop.f32.mrb[0].mxu0
    %v8566 = vpop.f32.mrb[0].mxu0
    %v8567 = vadd.f32 %v3889, %v8566
    %v8568 = vpop.f32.mrb[0].mxu0
    %8569 = vmatprep.mubr.bf16.mxu0 %v6092
    %8570 = vmatmul.mubr.bf16.gmra.mrb[0].mxu0 %v6091
    %v8571 = vpop.f32.mrb[0].mxu0
    %v8572 = vadd.f32 %v3894, %v8571
    %v8573 = vpop.f32.mrb[0].mxu0
    %v8574 = vpop.f32.mrb[0].mxu0
    %v8575 = vadd.f32 %v3899, %v8574
    %v8576 = vpop.f32.mrb[0].mxu0
    %8577 = vmatprep.mubr.bf16.mxu0 %v6094
    %8578 = vmatmul.mubr.bf16.gmra.mrb[0].mxu0 %v6093
    %v8579 = vpop.f32.mrb[0].mxu0
    %v8580 = vadd.f32 %v3904, %v8579
    %v8581 = vpop.f32.mrb[0].mxu0
    %v8582 = vpop.f32.mrb[0].mxu0
    %v8583 = vadd.f32 %v3909, %v8582
    %v8584 = vpop.f32.mrb[0].mxu0
    %8585 = vmatprep.mubr.bf16.mxu0 %v6096
    %8586 = vmatmul.mubr.bf16.gmra.mrb[0].mxu0 %v6095
    %v8587 = vpop.f32.mrb[0].mxu0
    %v8588 = vadd.f32 %v3914, %v8587
    %v8589 = vpop.f32.mrb[0].mxu0
    %v8590 = vpop.f32.mrb[0].mxu0
    %v8591 = vadd.f32 %v3919, %v8590
    %v8592 = vpop.f32.mrb[0].mxu0
    %8593 = vmatprep.mubr.bf16.mxu0 %v6098
    %8594 = vmatmul.mubr.bf16.gmra.mrb[0].mxu0 %v6097
    %v8595 = vpop.f32.mrb[0].mxu0
    %v8596 = vadd.f32 %v3924, %v8595
    %v8597 = vpop.f32.mrb[0].mxu0
    %v8598 = vpop.f32.mrb[0].mxu0
    %v8599 = vadd.f32 %v3929, %v8598
    %v8600 = vpop.f32.mrb[0].mxu0
    %8601 = vmatprep.mubr.bf16.mxu0 %v6100
    %8602 = vmatmul.mubr.bf16.gmra.mrb[0].mxu0 %v6099
    %v8603 = vpop.f32.mrb[0].mxu0
    %v8604 = vadd.f32 %v3934, %v8603
    %v8605 = vpop.f32.mrb[0].mxu0
    %v8606 = vpop.f32.mrb[0].mxu0
    %v8607 = vadd.f32 %v3939, %v8606
    %v8608 = vpop.f32.mrb[0].mxu0
    %8609 = vmatprep.mubr.bf16.mxu0 %v6102
    %8610 = vmatmul.mubr.bf16.gmra.mrb[0].mxu0 %v6101
    %v8611 = vpop.f32.mrb[0].mxu0
    %v8612 = vadd.f32 %v3944, %v8611
    %v8613 = vpop.f32.mrb[0].mxu0
    %v8614 = vpop.f32.mrb[0].mxu0
    %v8615 = vadd.f32 %v3949, %v8614
    %v8616 = vpop.f32.mrb[0].mxu0
    %8617 = vmatprep.mubr.bf16.mxu0 %v6104
    %8618 = vmatmul.mubr.bf16.gmra.mrb[0].mxu0 %v6103
    %v8619 = vpop.f32.mrb[0].mxu0
    %v8620 = vadd.f32 %v3954, %v8619
    %v8621 = vpop.f32.mrb[0].mxu0
    %v8622 = vpop.f32.mrb[0].mxu0
    %v8623 = vadd.f32 %v3959, %v8622
    %v8624 = vpop.f32.mrb[0].mxu0
    %8625 = vmatprep.mubr.bf16.mxu0 %v6106
    %8626 = vmatmul.mubr.bf16.gmra.mrb[0].mxu0 %v6105
    %v8627 = vpop.f32.mrb[0].mxu0
    %v8628 = vadd.f32 %v3964, %v8627
    %v8629 = vpop.f32.mrb[0].mxu0
    %v8630 = vpop.f32.mrb[0].mxu0
    %v8631 = vadd.f32 %v3969, %v8630
    %v8632 = vpop.f32.mrb[0].mxu0
    %8633 = vmatprep.mubr.bf16.mxu0 %v6108
    %8634 = vmatmul.mubr.bf16.gmra.mrb[0].mxu0 %v6107
    %v8635 = vpop.f32.mrb[0].mxu0
    %v8636 = vadd.f32 %v3974, %v8635
    %v8637 = vpop.f32.mrb[0].mxu0
    %v8638 = vpop.f32.mrb[0].mxu0
    %v8639 = vadd.f32 %v3979, %v8638
    %v8640 = vpop.f32.mrb[0].mxu0
    %8641 = vmatprep.mubr.bf16.mxu0 %v6110
    %8642 = vmatmul.mubr.bf16.gmra.mrb[0].mxu0 %v6109
    %v8643 = vpop.f32.mrb[0].mxu0
    %v8644 = vadd.f32 %v3984, %v8643
    %v8645 = vpop.f32.mrb[0].mxu0
    %v8646 = vpop.f32.mrb[0].mxu0
    %v8647 = vadd.f32 %v3989, %v8646
    %v8648 = vpop.f32.mrb[0].mxu0
    %8649 = vmatprep.mubr.bf16.mxu0 %v6112
    %8650 = vmatmul.mubr.bf16.gmra.mrb[0].mxu0 %v6111
    %v8651 = vpop.f32.mrb[0].mxu0
    %v8652 = vadd.f32 %v3994, %v8651
    %v8653 = vpop.f32.mrb[0].mxu0
    %v8654 = vpop.f32.mrb[0].mxu0
    %v8655 = vadd.f32 %v3999, %v8654
    %v8656 = vpop.f32.mrb[0].mxu0
    %8657 = vmatprep.mubr.bf16.mxu0 %v6114
    %8658 = vmatmul.mubr.bf16.gmra.mrb[0].mxu0 %v6113
    %v8659 = vpop.f32.mrb[0].mxu0
    %v8660 = vadd.f32 %v4004, %v8659
    %v8661 = vpop.f32.mrb[0].mxu0
    %v8662 = vpop.f32.mrb[0].mxu0
    %v8663 = vadd.f32 %v4009, %v8662
    %v8664 = vpop.f32.mrb[0].mxu0
    %8665 = vmatprep.mubr.bf16.mxu0 %v6116
    %8666 = vmatmul.mubr.bf16.gmra.mrb[0].mxu0 %v6115
    %v8667 = vpop.f32.mrb[0].mxu0
    %v8668 = vadd.f32 %v4014, %v8667
    %v8669 = vpop.f32.mrb[0].mxu0
    %v8670 = vpop.f32.mrb[0].mxu0
    %v8671 = vadd.f32 %v4019, %v8670
    %v8672 = vpop.f32.mrb[0].mxu0
    %8673 = vmatprep.mubr.bf16.mxu0 %v6118
    %8674 = vmatmul.mubr.bf16.gmra.mrb[0].mxu0 %v6117
    %v8675 = vpop.f32.mrb[0].mxu0
    %v8676 = vadd.f32 %v4024, %v8675
    %v8677 = vpop.f32.mrb[0].mxu0
    %v8678 = vpop.f32.mrb[0].mxu0
    %v8679 = vadd.f32 %v4029, %v8678
    %v8680 = vpop.f32.mrb[0].mxu0
    %8681 = vmatprep.mubr.bf16.mxu0 %v6120
    %8682 = vmatmul.mubr.bf16.gmra.mrb[0].mxu0 %v6119
    %v8683 = vpop.f32.mrb[0].mxu0
    %v8684 = vadd.f32 %v4034, %v8683
    %v8685 = vpop.f32.mrb[0].mxu0
    %v8686 = vpop.f32.mrb[0].mxu0
    %v8687 = vadd.f32 %v4039, %v8686
    %v8688 = vpop.f32.mrb[0].mxu0
    %8689 = vmatprep.mubr.bf16.mxu0 %v6122
    %8690 = vmatmul.mubr.bf16.gmra.mrb[0].mxu0 %v6121
    %v8691 = vpop.f32.mrb[0].mxu0
    %v8692 = vadd.f32 %v4044, %v8691
    %v8693 = vpop.f32.mrb[0].mxu0
    %v8694 = vpop.f32.mrb[0].mxu0
    %v8695 = vadd.f32 %v4049, %v8694
    %v8696 = vpop.f32.mrb[0].mxu0
    %8697 = vmatprep.mubr.bf16.mxu0 %v6124
    %8698 = vmatmul.mubr.bf16.gmra.mrb[0].mxu0 %v6123
    %v8699 = vpop.f32.mrb[0].mxu0
    %v8700 = vadd.f32 %v4054, %v8699
    %v8701 = vpop.f32.mrb[0].mxu0
    %v8702 = vpop.f32.mrb[0].mxu0
    %v8703 = vadd.f32 %v4059, %v8702
    %v8704 = vpop.f32.mrb[0].mxu0
    %8705 = vmatprep.mubr.bf16.mxu0 %v6126
    %8706 = vmatmul.mubr.bf16.gmra.mrb[0].mxu0 %v6125
    %v8707 = vpop.f32.mrb[0].mxu0
    %v8708 = vadd.f32 %v4064, %v8707
    %v8709 = vpop.f32.mrb[0].mxu0
    %v8710 = vpop.f32.mrb[0].mxu0
    %v8711 = vadd.f32 %v4069, %v8710
    %v8712 = vpop.f32.mrb[0].mxu0
    %8713 = vmatprep.mubr.bf16.mxu0 %v6128
    %8714 = vmatmul.mubr.bf16.gmra.mrb[0].mxu0 %v6127
    %v8715 = vpop.f32.mrb[0].mxu0
    %v8716 = vadd.f32 %v4074, %v8715
    %v8717 = vpop.f32.mrb[0].mxu0
    %v8718 = vpop.f32.mrb[0].mxu0
    %v8719 = vadd.f32 %v4079, %v8718
    %v8720 = vpop.f32.mrb[0].mxu0
    %8721 = vdwg.mxu0
    %v8722 = vpack.c.bf16 %v6679, %v6676
    %v8723 = vpack.c.bf16 %v6687, %v6684
    %v8724 = vpack.c.bf16 %v6695, %v6692
    %v8725 = vpack.c.bf16 %v6703, %v6700
    %v8726 = vpack.c.bf16 %v6711, %v6708
    %v8727 = vpack.c.bf16 %v6719, %v6716
    %v8728 = vpack.c.bf16 %v6727, %v6724
    %v8729 = vpack.c.bf16 %v6735, %v6732
    %v8730 = vpack.c.bf16 %v6743, %v6740
    %v8731 = vpack.c.bf16 %v6751, %v6748
    %v8732 = vpack.c.bf16 %v6759, %v6756
    %v8733 = vpack.c.bf16 %v6767, %v6764
    %v8734 = vpack.c.bf16 %v6775, %v6772
    %v8735 = vpack.c.bf16 %v6783, %v6780
    %v8736 = vpack.c.bf16 %v6791, %v6788
    %v8737 = vpack.c.bf16 %v6799, %v6796
    %v8738 = vpack.c.bf16 %v6807, %v6804
    %v8739 = vpack.c.bf16 %v6815, %v6812
    %v8740 = vpack.c.bf16 %v6823, %v6820
    %v8741 = vpack.c.bf16 %v6831, %v6828
    %v8742 = vpack.c.bf16 %v6839, %v6836
    %v8743 = vpack.c.bf16 %v6847, %v6844
    %v8744 = vpack.c.bf16 %v6855, %v6852
    %v8745 = vpack.c.bf16 %v6863, %v6860
    %v8746 = vpack.c.bf16 %v6871, %v6868
    %v8747 = vpack.c.bf16 %v6879, %v6876
    %v8748 = vpack.c.bf16 %v6887, %v6884
    %v8749 = vpack.c.bf16 %v6895, %v6892
    %v8750 = vpack.c.bf16 %v6903, %v6900
    %v8751 = vpack.c.bf16 %v6911, %v6908
    %v8752 = vpack.c.bf16 %v6919, %v6916
    %v8753 = vpack.c.bf16 %v6927, %v6924
    %v8754 = vpack.c.bf16 %v6935, %v6932
    %v8755 = vpack.c.bf16 %v6943, %v6940
    %v8756 = vpack.c.bf16 %v6951, %v6948
    %v8757 = vpack.c.bf16 %v6959, %v6956
    %v8758 = vpack.c.bf16 %v6967, %v6964
    %v8759 = vpack.c.bf16 %v6975, %v6972
    %v8760 = vpack.c.bf16 %v6983, %v6980
    %v8761 = vpack.c.bf16 %v6991, %v6988
    %v8762 = vpack.c.bf16 %v6999, %v6996
    %v8763 = vpack.c.bf16 %v7007, %v7004
    %v8764 = vpack.c.bf16 %v7015, %v7012
    %v8765 = vpack.c.bf16 %v7023, %v7020
    %v8766 = vpack.c.bf16 %v7031, %v7028
    %v8767 = vpack.c.bf16 %v7039, %v7036
    %v8768 = vpack.c.bf16 %v7047, %v7044
    %v8769 = vpack.c.bf16 %v7055, %v7052
    %v8770 = vpack.c.bf16 %v7063, %v7060
    %v8771 = vpack.c.bf16 %v7071, %v7068
    %v8772 = vpack.c.bf16 %v7079, %v7076
    %v8773 = vpack.c.bf16 %v7087, %v7084
    %v8774 = vpack.c.bf16 %v7095, %v7092
    %v8775 = vpack.c.bf16 %v7103, %v7100
    %v8776 = vpack.c.bf16 %v7111, %v7108
    %v8777 = vpack.c.bf16 %v7119, %v7116
    %v8778 = vpack.c.bf16 %v7127, %v7124
    %v8779 = vpack.c.bf16 %v7135, %v7132
    %v8780 = vpack.c.bf16 %v7143, %v7140
    %v8781 = vpack.c.bf16 %v7151, %v7148
    %v8782 = vpack.c.bf16 %v7159, %v7156
    %v8783 = vpack.c.bf16 %v7167, %v7164
    %v8784 = vpack.c.bf16 %v7175, %v7172
    %v8785 = vpack.c.bf16 %v7183, %v7180
    %v8786 = vpack.c.bf16 %v7191, %v7188
    %v8787 = vpack.c.bf16 %v7199, %v7196
    %v8788 = vpack.c.bf16 %v7207, %v7204
    %v8789 = vpack.c.bf16 %v7215, %v7212
    %v8790 = vpack.c.bf16 %v7223, %v7220
    %v8791 = vpack.c.bf16 %v7231, %v7228
    %v8792 = vpack.c.bf16 %v7239, %v7236
    %v8793 = vpack.c.bf16 %v7247, %v7244
    %v8794 = vpack.c.bf16 %v7255, %v7252
    %v8795 = vpack.c.bf16 %v7263, %v7260
    %v8796 = vpack.c.bf16 %v7271, %v7268
    %v8797 = vpack.c.bf16 %v7279, %v7276
    %v8798 = vpack.c.bf16 %v7287, %v7284
    %v8799 = vpack.c.bf16 %v7295, %v7292
    %v8800 = vpack.c.bf16 %v7303, %v7300
    %v8801 = vpack.c.bf16 %v7311, %v7308
    %v8802 = vpack.c.bf16 %v7319, %v7316
    %v8803 = vpack.c.bf16 %v7327, %v7324
    %v8804 = vpack.c.bf16 %v7335, %v7332
    %v8805 = vpack.c.bf16 %v7343, %v7340
    %v8806 = vpack.c.bf16 %v7351, %v7348
    %v8807 = vpack.c.bf16 %v7359, %v7356
    %v8808 = vpack.c.bf16 %v7367, %v7364
    %v8809 = vpack.c.bf16 %v7375, %v7372
    %v8810 = vpack.c.bf16 %v7383, %v7380
    %v8811 = vpack.c.bf16 %v7391, %v7388
    %v8812 = vpack.c.bf16 %v7399, %v7396
    %v8813 = vpack.c.bf16 %v7407, %v7404
    %v8814 = vpack.c.bf16 %v7415, %v7412
    %v8815 = vpack.c.bf16 %v7423, %v7420
    %v8816 = vpack.c.bf16 %v7431, %v7428
    %v8817 = vpack.c.bf16 %v7439, %v7436
    %v8818 = vpack.c.bf16 %v7447, %v7444
    %v8819 = vpack.c.bf16 %v7455, %v7452
    %v8820 = vpack.c.bf16 %v7463, %v7460
    %v8821 = vpack.c.bf16 %v7471, %v7468
    %v8822 = vpack.c.bf16 %v7479, %v7476
    %v8823 = vpack.c.bf16 %v7487, %v7484
    %v8824 = vpack.c.bf16 %v7495, %v7492
    %v8825 = vpack.c.bf16 %v7503, %v7500
    %v8826 = vpack.c.bf16 %v7511, %v7508
    %v8827 = vpack.c.bf16 %v7519, %v7516
    %v8828 = vpack.c.bf16 %v7527, %v7524
    %v8829 = vpack.c.bf16 %v7535, %v7532
    %v8830 = vpack.c.bf16 %v7543, %v7540
    %v8831 = vpack.c.bf16 %v7551, %v7548
    %v8832 = vpack.c.bf16 %v7559, %v7556
    %v8833 = vpack.c.bf16 %v7567, %v7564
    %v8834 = vpack.c.bf16 %v7575, %v7572
    %v8835 = vpack.c.bf16 %v7583, %v7580
    %v8836 = vpack.c.bf16 %v7591, %v7588
    %v8837 = vpack.c.bf16 %v7599, %v7596
    %v8838 = vpack.c.bf16 %v7607, %v7604
    %v8839 = vpack.c.bf16 %v7615, %v7612
    %v8840 = vpack.c.bf16 %v7623, %v7620
    %v8841 = vpack.c.bf16 %v7631, %v7628
    %v8842 = vpack.c.bf16 %v7639, %v7636
    %v8843 = vpack.c.bf16 %v7647, %v7644
    %v8844 = vpack.c.bf16 %v7655, %v7652
    %v8845 = vpack.c.bf16 %v7663, %v7660
    %v8846 = vpack.c.bf16 %v7671, %v7668
    %v8847 = vpack.c.bf16 %v7679, %v7676
    %v8848 = vpack.c.bf16 %v7687, %v7684
    %v8849 = vpack.c.bf16 %v7695, %v7692
    %v8850 = vpack.c.bf16 %v7703, %v7700
    %v8851 = vpack.c.bf16 %v7711, %v7708
    %v8852 = vpack.c.bf16 %v7719, %v7716
    %v8853 = vpack.c.bf16 %v7727, %v7724
    %v8854 = vpack.c.bf16 %v7735, %v7732
    %v8855 = vpack.c.bf16 %v7743, %v7740
    %v8856 = vpack.c.bf16 %v7751, %v7748
    %v8857 = vpack.c.bf16 %v7759, %v7756
    %v8858 = vpack.c.bf16 %v7767, %v7764
    %v8859 = vpack.c.bf16 %v7775, %v7772
    %v8860 = vpack.c.bf16 %v7783, %v7780
    %v8861 = vpack.c.bf16 %v7791, %v7788
    %v8862 = vpack.c.bf16 %v7799, %v7796
    %v8863 = vpack.c.bf16 %v7807, %v7804
    %v8864 = vpack.c.bf16 %v7815, %v7812
    %v8865 = vpack.c.bf16 %v7823, %v7820
    %v8866 = vpack.c.bf16 %v7831, %v7828
    %v8867 = vpack.c.bf16 %v7839, %v7836
    %v8868 = vpack.c.bf16 %v7847, %v7844
    %v8869 = vpack.c.bf16 %v7855, %v7852
    %v8870 = vpack.c.bf16 %v7863, %v7860
    %v8871 = vpack.c.bf16 %v7871, %v7868
    %v8872 = vpack.c.bf16 %v7879, %v7876
    %v8873 = vpack.c.bf16 %v7887, %v7884
    %v8874 = vpack.c.bf16 %v7895, %v7892
    %v8875 = vpack.c.bf16 %v7903, %v7900
    %v8876 = vpack.c.bf16 %v7911, %v7908
    %v8877 = vpack.c.bf16 %v7919, %v7916
    %v8878 = vpack.c.bf16 %v7927, %v7924
    %v8879 = vpack.c.bf16 %v7935, %v7932
    %v8880 = vpack.c.bf16 %v7943, %v7940
    %v8881 = vpack.c.bf16 %v7951, %v7948
    %v8882 = vpack.c.bf16 %v7959, %v7956
    %v8883 = vpack.c.bf16 %v7967, %v7964
    %v8884 = vpack.c.bf16 %v7975, %v7972
    %v8885 = vpack.c.bf16 %v7983, %v7980
    %v8886 = vpack.c.bf16 %v7991, %v7988
    %v8887 = vpack.c.bf16 %v7999, %v7996
    %v8888 = vpack.c.bf16 %v8007, %v8004
    %v8889 = vpack.c.bf16 %v8015, %v8012
    %v8890 = vpack.c.bf16 %v8023, %v8020
    %v8891 = vpack.c.bf16 %v8031, %v8028
    %v8892 = vpack.c.bf16 %v8039, %v8036
    %v8893 = vpack.c.bf16 %v8047, %v8044
    %v8894 = vpack.c.bf16 %v8055, %v8052
    %v8895 = vpack.c.bf16 %v8063, %v8060
    %v8896 = vpack.c.bf16 %v8071, %v8068
    %v8897 = vpack.c.bf16 %v8079, %v8076
    %v8898 = vpack.c.bf16 %v8087, %v8084
    %v8899 = vpack.c.bf16 %v8095, %v8092
    %v8900 = vpack.c.bf16 %v8103, %v8100
    %v8901 = vpack.c.bf16 %v8111, %v8108
    %v8902 = vpack.c.bf16 %v8119, %v8116
    %v8903 = vpack.c.bf16 %v8127, %v8124
    %v8904 = vpack.c.bf16 %v8135, %v8132
    %v8905 = vpack.c.bf16 %v8143, %v8140
    %v8906 = vpack.c.bf16 %v8151, %v8148
    %v8907 = vpack.c.bf16 %v8159, %v8156
    %v8908 = vpack.c.bf16 %v8167, %v8164
    %v8909 = vpack.c.bf16 %v8175, %v8172
    %v8910 = vpack.c.bf16 %v8183, %v8180
    %v8911 = vpack.c.bf16 %v8191, %v8188
    %v8912 = vpack.c.bf16 %v8199, %v8196
    %v8913 = vpack.c.bf16 %v8207, %v8204
    %v8914 = vpack.c.bf16 %v8215, %v8212
    %v8915 = vpack.c.bf16 %v8223, %v8220
    %v8916 = vpack.c.bf16 %v8231, %v8228
    %v8917 = vpack.c.bf16 %v8239, %v8236
    %v8918 = vpack.c.bf16 %v8247, %v8244
    %v8919 = vpack.c.bf16 %v8255, %v8252
    %v8920 = vpack.c.bf16 %v8263, %v8260
    %v8921 = vpack.c.bf16 %v8271, %v8268
    %v8922 = vpack.c.bf16 %v8279, %v8276
    %v8923 = vpack.c.bf16 %v8287, %v8284
    %v8924 = vpack.c.bf16 %v8295, %v8292
    %v8925 = vpack.c.bf16 %v8303, %v8300
    %v8926 = vpack.c.bf16 %v8311, %v8308
    %v8927 = vpack.c.bf16 %v8319, %v8316
    %v8928 = vpack.c.bf16 %v8327, %v8324
    %v8929 = vpack.c.bf16 %v8335, %v8332
    %v8930 = vpack.c.bf16 %v8343, %v8340
    %v8931 = vpack.c.bf16 %v8351, %v8348
    %v8932 = vpack.c.bf16 %v8359, %v8356
    %v8933 = vpack.c.bf16 %v8367, %v8364
    %v8934 = vpack.c.bf16 %v8375, %v8372
    %v8935 = vpack.c.bf16 %v8383, %v8380
    %v8936 = vpack.c.bf16 %v8391, %v8388
    %v8937 = vpack.c.bf16 %v8399, %v8396
    %v8938 = vpack.c.bf16 %v8407, %v8404
    %v8939 = vpack.c.bf16 %v8415, %v8412
    %v8940 = vpack.c.bf16 %v8423, %v8420
    %v8941 = vpack.c.bf16 %v8431, %v8428
    %v8942 = vpack.c.bf16 %v8439, %v8436
    %v8943 = vpack.c.bf16 %v8447, %v8444
    %v8944 = vpack.c.bf16 %v8455, %v8452
    %v8945 = vpack.c.bf16 %v8463, %v8460
    %v8946 = vpack.c.bf16 %v8471, %v8468
    %v8947 = vpack.c.bf16 %v8479, %v8476
    %v8948 = vpack.c.bf16 %v8487, %v8484
    %v8949 = vpack.c.bf16 %v8495, %v8492
    %v8950 = vpack.c.bf16 %v8503, %v8500
    %v8951 = vpack.c.bf16 %v8511, %v8508
    %v8952 = vpack.c.bf16 %v8519, %v8516
    %v8953 = vpack.c.bf16 %v8527, %v8524
    %v8954 = vpack.c.bf16 %v8535, %v8532
    %v8955 = vpack.c.bf16 %v8543, %v8540
    %v8956 = vpack.c.bf16 %v8551, %v8548
    %v8957 = vpack.c.bf16 %v8559, %v8556
    %v8958 = vpack.c.bf16 %v8567, %v8564
    %v8959 = vpack.c.bf16 %v8575, %v8572
    %v8960 = vpack.c.bf16 %v8583, %v8580
    %v8961 = vpack.c.bf16 %v8591, %v8588
    %v8962 = vpack.c.bf16 %v8599, %v8596
    %v8963 = vpack.c.bf16 %v8607, %v8604
    %v8964 = vpack.c.bf16 %v8615, %v8612
    %v8965 = vpack.c.bf16 %v8623, %v8620
    %v8966 = vpack.c.bf16 %v8631, %v8628
    %v8967 = vpack.c.bf16 %v8639, %v8636
    %v8968 = vpack.c.bf16 %v8647, %v8644
    %v8969 = vpack.c.bf16 %v8655, %v8652
    %v8970 = vpack.c.bf16 %v8663, %v8660
    %v8971 = vpack.c.bf16 %v8671, %v8668
    %v8972 = vpack.c.bf16 %v8679, %v8676
    %v8973 = vpack.c.bf16 %v8687, %v8684
    %v8974 = vpack.c.bf16 %v8695, %v8692
    %v8975 = vpack.c.bf16 %v8703, %v8700
    %v8976 = vpack.c.bf16 %v8711, %v8708
    %v8977 = vpack.c.bf16 %v8719, %v8716
    %v8978 = vtanh.bf16.pop %v8722
    %v8979 = vtanh.bf16.pop %v8723
    %v8980 = vtanh.bf16.pop %v8724
    %v8981 = vtanh.bf16.pop %v8725
    %v8982 = vtanh.bf16.pop %v8726
    %v8983 = vtanh.bf16.pop %v8727
    %v8984 = vtanh.bf16.pop %v8728
    %v8985 = vtanh.bf16.pop %v8729
    %v8986 = vtanh.bf16.pop %v8730
    %v8987 = vtanh.bf16.pop %v8731
    %v8988 = vtanh.bf16.pop %v8732
    %v8989 = vtanh.bf16.pop %v8733
    %v8990 = vtanh.bf16.pop %v8734
    %v8991 = vtanh.bf16.pop %v8735
    %v8992 = vtanh.bf16.pop %v8736
    %v8993 = vtanh.bf16.pop %v8737
    %v8994 = vtanh.bf16.pop %v8738
    %v8995 = vtanh.bf16.pop %v8739
    %v8996 = vtanh.bf16.pop %v8740
    %v8997 = vtanh.bf16.pop %v8741
    %v8998 = vtanh.bf16.pop %v8742
    %v8999 = vtanh.bf16.pop %v8743
    %v9000 = vtanh.bf16.pop %v8744
    %v9001 = vtanh.bf16.pop %v8745
    %v9002 = vtanh.bf16.pop %v8746
    %v9003 = vtanh.bf16.pop %v8747
    %v9004 = vtanh.bf16.pop %v8748
    %v9005 = vtanh.bf16.pop %v8749
    %v9006 = vtanh.bf16.pop %v8750
    %v9007 = vtanh.bf16.pop %v8751
    %v9008 = vtanh.bf16.pop %v8752
    %v9009 = vtanh.bf16.pop %v8753
    %v9010 = vtanh.bf16.pop %v8754
    %v9011 = vtanh.bf16.pop %v8755
    %v9012 = vtanh.bf16.pop %v8756
    %v9013 = vtanh.bf16.pop %v8757
    %v9014 = vtanh.bf16.pop %v8758
    %v9015 = vtanh.bf16.pop %v8759
    %v9016 = vtanh.bf16.pop %v8760
    %v9017 = vtanh.bf16.pop %v8761
    %v9018 = vtanh.bf16.pop %v8762
    %v9019 = vtanh.bf16.pop %v8763
    %v9020 = vtanh.bf16.pop %v8764
    %v9021 = vtanh.bf16.pop %v8765
    %v9022 = vtanh.bf16.pop %v8766
    %v9023 = vtanh.bf16.pop %v8767
    %v9024 = vtanh.bf16.pop %v8768
    %v9025 = vtanh.bf16.pop %v8769
    %v9026 = vtanh.bf16.pop %v8770
    %v9027 = vtanh.bf16.pop %v8771
    %v9028 = vtanh.bf16.pop %v8772
    %v9029 = vtanh.bf16.pop %v8773
    %v9030 = vtanh.bf16.pop %v8774
    %v9031 = vtanh.bf16.pop %v8775
    %v9032 = vtanh.bf16.pop %v8776
    %v9033 = vtanh.bf16.pop %v8777
    %v9034 = vtanh.bf16.pop %v8778
    %v9035 = vtanh.bf16.pop %v8779
    %v9036 = vtanh.bf16.pop %v8780
    %v9037 = vtanh.bf16.pop %v8781
    %v9038 = vtanh.bf16.pop %v8782
    %v9039 = vtanh.bf16.pop %v8783
    %v9040 = vtanh.bf16.pop %v8784
    %v9041 = vtanh.bf16.pop %v8785
    %v9042 = vtanh.bf16.pop %v8786
    %v9043 = vtanh.bf16.pop %v8787
    %v9044 = vtanh.bf16.pop %v8788
    %v9045 = vtanh.bf16.pop %v8789
    %v9046 = vtanh.bf16.pop %v8790
    %v9047 = vtanh.bf16.pop %v8791
    %v9048 = vtanh.bf16.pop %v8792
    %v9049 = vtanh.bf16.pop %v8793
    %v9050 = vtanh.bf16.pop %v8794
    %v9051 = vtanh.bf16.pop %v8795
    %v9052 = vtanh.bf16.pop %v8796
    %v9053 = vtanh.bf16.pop %v8797
    %v9054 = vtanh.bf16.pop %v8798
    %v9055 = vtanh.bf16.pop %v8799
    %v9056 = vtanh.bf16.pop %v8800
    %v9057 = vtanh.bf16.pop %v8801
    %v9058 = vtanh.bf16.pop %v8802
    %v9059 = vtanh.bf16.pop %v8803
    %v9060 = vtanh.bf16.pop %v8804
    %v9061 = vtanh.bf16.pop %v8805
    %v9062 = vtanh.bf16.pop %v8806
    %v9063 = vtanh.bf16.pop %v8807
    %v9064 = vtanh.bf16.pop %v8808
    %v9065 = vtanh.bf16.pop %v8809
    %v9066 = vtanh.bf16.pop %v8810
    %v9067 = vtanh.bf16.pop %v8811
    %v9068 = vtanh.bf16.pop %v8812
    %v9069 = vtanh.bf16.pop %v8813
    %v9070 = vtanh.bf16.pop %v8814
    %v9071 = vtanh.bf16.pop %v8815
    %v9072 = vtanh.bf16.pop %v8816
    %v9073 = vtanh.bf16.pop %v8817
    %v9074 = vtanh.bf16.pop %v8818
    %v9075 = vtanh.bf16.pop %v8819
    %v9076 = vtanh.bf16.pop %v8820
    %v9077 = vtanh.bf16.pop %v8821
    %v9078 = vtanh.bf16.pop %v8822
    %v9079 = vtanh.bf16.pop %v8823
    %v9080 = vtanh.bf16.pop %v8824
    %v9081 = vtanh.bf16.pop %v8825
    %v9082 = vtanh.bf16.pop %v8826
    %v9083 = vtanh.bf16.pop %v8827
    %v9084 = vtanh.bf16.pop %v8828
    %v9085 = vtanh.bf16.pop %v8829
    %v9086 = vtanh.bf16.pop %v8830
    %v9087 = vtanh.bf16.pop %v8831
    %v9088 = vtanh.bf16.pop %v8832
    %v9089 = vtanh.bf16.pop %v8833
    %v9090 = vtanh.bf16.pop %v8834
    %v9091 = vtanh.bf16.pop %v8835
    %v9092 = vtanh.bf16.pop %v8836
    %v9093 = vtanh.bf16.pop %v8837
    %v9094 = vtanh.bf16.pop %v8838
    %v9095 = vtanh.bf16.pop %v8839
    %v9096 = vtanh.bf16.pop %v8840
    %v9097 = vtanh.bf16.pop %v8841
    %v9098 = vtanh.bf16.pop %v8842
    %v9099 = vtanh.bf16.pop %v8843
    %v9100 = vtanh.bf16.pop %v8844
    %v9101 = vtanh.bf16.pop %v8845
    %v9102 = vtanh.bf16.pop %v8846
    %v9103 = vtanh.bf16.pop %v8847
    %v9104 = vtanh.bf16.pop %v8848
    %v9105 = vtanh.bf16.pop %v8849
    %v9106 = vtanh.bf16.pop %v8850
    %v9107 = vtanh.bf16.pop %v8851
    %v9108 = vtanh.bf16.pop %v8852
    %v9109 = vtanh.bf16.pop %v8853
    %v9110 = vtanh.bf16.pop %v8854
    %v9111 = vtanh.bf16.pop %v8855
    %v9112 = vtanh.bf16.pop %v8856
    %v9113 = vtanh.bf16.pop %v8857
    %v9114 = vtanh.bf16.pop %v8858
    %v9115 = vtanh.bf16.pop %v8859
    %v9116 = vtanh.bf16.pop %v8860
    %v9117 = vtanh.bf16.pop %v8861
    %v9118 = vtanh.bf16.pop %v8862
    %v9119 = vtanh.bf16.pop %v8863
    %v9120 = vtanh.bf16.pop %v8864
    %v9121 = vtanh.bf16.pop %v8865
    %v9122 = vtanh.bf16.pop %v8866
    %v9123 = vtanh.bf16.pop %v8867
    %v9124 = vtanh.bf16.pop %v8868
    %v9125 = vtanh.bf16.pop %v8869
    %v9126 = vtanh.bf16.pop %v8870
    %v9127 = vtanh.bf16.pop %v8871
    %v9128 = vtanh.bf16.pop %v8872
    %v9129 = vtanh.bf16.pop %v8873
    %v9130 = vtanh.bf16.pop %v8874
    %v9131 = vtanh.bf16.pop %v8875
    %v9132 = vtanh.bf16.pop %v8876
    %v9133 = vtanh.bf16.pop %v8877
    %v9134 = vtanh.bf16.pop %v8878
    %v9135 = vtanh.bf16.pop %v8879
    %v9136 = vtanh.bf16.pop %v8880
    %v9137 = vtanh.bf16.pop %v8881
    %v9138 = vtanh.bf16.pop %v8882
    %v9139 = vtanh.bf16.pop %v8883
    %v9140 = vtanh.bf16.pop %v8884
    %v9141 = vtanh.bf16.pop %v8885
    %v9142 = vtanh.bf16.pop %v8886
    %v9143 = vtanh.bf16.pop %v8887
    %v9144 = vtanh.bf16.pop %v8888
    %v9145 = vtanh.bf16.pop %v8889
    %v9146 = vtanh.bf16.pop %v8890
    %v9147 = vtanh.bf16.pop %v8891
    %v9148 = vtanh.bf16.pop %v8892
    %v9149 = vtanh.bf16.pop %v8893
    %v9150 = vtanh.bf16.pop %v8894
    %v9151 = vtanh.bf16.pop %v8895
    %v9152 = vtanh.bf16.pop %v8896
    %v9153 = vtanh.bf16.pop %v8897
    %v9154 = vtanh.bf16.pop %v8898
    %v9155 = vtanh.bf16.pop %v8899
    %v9156 = vtanh.bf16.pop %v8900
    %v9157 = vtanh.bf16.pop %v8901
    %v9158 = vtanh.bf16.pop %v8902
    %v9159 = vtanh.bf16.pop %v8903
    %v9160 = vtanh.bf16.pop %v8904
    %v9161 = vtanh.bf16.pop %v8905
    %v9162 = vtanh.bf16.pop %v8906
    %v9163 = vtanh.bf16.pop %v8907
    %v9164 = vtanh.bf16.pop %v8908
    %v9165 = vtanh.bf16.pop %v8909
    %v9166 = vtanh.bf16.pop %v8910
    %v9167 = vtanh.bf16.pop %v8911
    %v9168 = vtanh.bf16.pop %v8912
    %v9169 = vtanh.bf16.pop %v8913
    %v9170 = vtanh.bf16.pop %v8914
    %v9171 = vtanh.bf16.pop %v8915
    %v9172 = vtanh.bf16.pop %v8916
    %v9173 = vtanh.bf16.pop %v8917
    %v9174 = vtanh.bf16.pop %v8918
    %v9175 = vtanh.bf16.pop %v8919
    %v9176 = vtanh.bf16.pop %v8920
    %v9177 = vtanh.bf16.pop %v8921
    %v9178 = vtanh.bf16.pop %v8922
    %v9179 = vtanh.bf16.pop %v8923
    %v9180 = vtanh.bf16.pop %v8924
    %v9181 = vtanh.bf16.pop %v8925
    %v9182 = vtanh.bf16.pop %v8926
    %v9183 = vtanh.bf16.pop %v8927
    %v9184 = vtanh.bf16.pop %v8928
    %v9185 = vtanh.bf16.pop %v8929
    %v9186 = vtanh.bf16.pop %v8930
    %v9187 = vtanh.bf16.pop %v8931
    %v9188 = vtanh.bf16.pop %v8932
    %v9189 = vtanh.bf16.pop %v8933
    %v9190 = vtanh.bf16.pop %v8934
    %v9191 = vtanh.bf16.pop %v8935
    %v9192 = vtanh.bf16.pop %v8936
    %v9193 = vtanh.bf16.pop %v8937
    %v9194 = vtanh.bf16.pop %v8938
    %v9195 = vtanh.bf16.pop %v8939
    %v9196 = vtanh.bf16.pop %v8940
    %v9197 = vtanh.bf16.pop %v8941
    %v9198 = vtanh.bf16.pop %v8942
    %v9199 = vtanh.bf16.pop %v8943
    %v9200 = vtanh.bf16.pop %v8944
    %v9201 = vtanh.bf16.pop %v8945
    %v9202 = vtanh.bf16.pop %v8946
    %v9203 = vtanh.bf16.pop %v8947
    %v9204 = vtanh.bf16.pop %v8948
    %v9205 = vtanh.bf16.pop %v8949
    %v9206 = vtanh.bf16.pop %v8950
    %v9207 = vtanh.bf16.pop %v8951
    %v9208 = vtanh.bf16.pop %v8952
    %v9209 = vtanh.bf16.pop %v8953
    %v9210 = vtanh.bf16.pop %v8954
    %v9211 = vtanh.bf16.pop %v8955
    %v9212 = vtanh.bf16.pop %v8956
    %v9213 = vtanh.bf16.pop %v8957
    %v9214 = vtanh.bf16.pop %v8958
    %v9215 = vtanh.bf16.pop %v8959
    %v9216 = vtanh.bf16.pop %v8960
    %v9217 = vtanh.bf16.pop %v8961
    %v9218 = vtanh.bf16.pop %v8962
    %v9219 = vtanh.bf16.pop %v8963
    %v9220 = vtanh.bf16.pop %v8964
    %v9221 = vtanh.bf16.pop %v8965
    %v9222 = vtanh.bf16.pop %v8966
    %v9223 = vtanh.bf16.pop %v8967
    %v9224 = vtanh.bf16.pop %v8968
    %v9225 = vtanh.bf16.pop %v8969
    %v9226 = vtanh.bf16.pop %v8970
    %v9227 = vtanh.bf16.pop %v8971
    %v9228 = vtanh.bf16.pop %v8972
    %v9229 = vtanh.bf16.pop %v8973
    %v9230 = vtanh.bf16.pop %v8974
    %v9231 = vtanh.bf16.pop %v8975
    %v9232 = vtanh.bf16.pop %v8976
    %v9233 = vtanh.bf16.pop %v8977
    %v9234 = vld [vmem:[%s9] sm:$0xff]
    %v9235 = vld [vmem:[%s9 + $0x8] sm:$0xff]
    %v9236 = vld [vmem:[%s9 + $0x10] sm:$0xff]
    %v9237 = vld [vmem:[%s9 + $0x18] sm:$0xff]
    %v9238 = vld [vmem:[%s9 + $0x20] sm:$0xff]
    %v9239 = vld [vmem:[%s9 + $0x28] sm:$0xff]
    %v9240 = vld [vmem:[%s9 + $0x30] sm:$0xff]
    %v9241 = vld [vmem:[%s9 + $0x38] sm:$0xff]
    %v9242 = vld [vmem:[%s9 + $0x40] sm:$0xff]
    %v9243 = vld [vmem:[%s9 + $0x48] sm:$0xff]
    %v9244 = vld [vmem:[%s9 + $0x50] sm:$0xff]
    %v9245 = vld [vmem:[%s9 + $0x58] sm:$0xff]
    %v9246 = vld [vmem:[%s9 + $0x60] sm:$0xff]
    %v9247 = vld [vmem:[%s9 + $0x68] sm:$0xff]
    %v9248 = vld [vmem:[%s9 + $0x70] sm:$0xff]
    %v9249 = vld [vmem:[%s9 + $0x78] sm:$0xff]
    %v9250 = vld [vmem:[%s9 + $0x80] sm:$0x11]
    %v9251 = vld [vmem:[%s9 + $0x88] sm:$0x11]
    %v9252 = vld [vmem:[%s9 + $0x90] sm:$0x11]
    %v9253 = vld [vmem:[%s9 + $0x98] sm:$0x11]
    %v9254 = vld [vmem:[%s9 + $0xa0] sm:$0x11]
    %v9255 = vld [vmem:[%s9 + $0xa8] sm:$0x11]
    %v9256 = vld [vmem:[%s9 + $0xb0] sm:$0x11]
    %v9257 = vld [vmem:[%s9 + $0xb8] sm:$0x11]
    %v9258 = vld [vmem:[%s9 + $0xc0] sm:$0x11]
    %v9259 = vld [vmem:[%s9 + $0xc8] sm:$0x11]
    %v9260 = vld [vmem:[%s9 + $0xd0] sm:$0x11]
    %v9261 = vld [vmem:[%s9 + $0xd8] sm:$0x11]
    %v9262 = vld [vmem:[%s9 + $0xe0] sm:$0x11]
    %v9263 = vld [vmem:[%s9 + $0xe8] sm:$0x11]
    %v9264 = vld [vmem:[%s9 + $0xf0] sm:$0x11]
    %v9265 = vld [vmem:[%s9 + $0xf8] sm:$0x11]
    %v9266 = vld [vmem:[%s10] sm:$0xff]
    %v9267 = vld [vmem:[%s10 + $0x8] sm:$0x3]
    %9269 = vset.pattern.permute.xlu0 0
    %9270 = vperm.xlu0 %9269, %v9266
    %v9271 = vpop.permute.xlu0 %9270
    %9274 = vset.pattern.permute.xlu0 0
    %9275 = vperm.xlu0 %9274, %v9267
    %v9276 = vpop.permute.xlu0 %9275
    %v9310 = vunpack.c.l.b16 %v9234
    %v9311 = vunpack.c.h.b16 %v9234
    %v9312 = vunpack.c.l.b16 %v9235
    %v9313 = vunpack.c.h.b16 %v9235
    %v9314 = vunpack.c.l.b16 %v9236
    %v9315 = vunpack.c.h.b16 %v9236
    %v9316 = vunpack.c.l.b16 %v9237
    %v9317 = vunpack.c.h.b16 %v9237
    %v9318 = vunpack.c.l.b16 %v9238
    %v9319 = vunpack.c.h.b16 %v9238
    %v9320 = vunpack.c.l.b16 %v9239
    %v9321 = vunpack.c.h.b16 %v9239
    %v9322 = vunpack.c.l.b16 %v9240
    %v9323 = vunpack.c.h.b16 %v9240
    %v9324 = vunpack.c.l.b16 %v9241
    %v9325 = vunpack.c.h.b16 %v9241
    %v9326 = vunpack.c.l.b16 %v9242
    %v9327 = vunpack.c.h.b16 %v9242
    %v9328 = vunpack.c.l.b16 %v9243
    %v9329 = vunpack.c.h.b16 %v9243
    %v9330 = vunpack.c.l.b16 %v9244
    %v9331 = vunpack.c.h.b16 %v9244
    %v9332 = vunpack.c.l.b16 %v9245
    %v9333 = vunpack.c.h.b16 %v9245
    %v9334 = vunpack.c.l.b16 %v9246
    %v9335 = vunpack.c.h.b16 %v9246
    %v9336 = vunpack.c.l.b16 %v9247
    %v9337 = vunpack.c.h.b16 %v9247
    %v9338 = vunpack.c.l.b16 %v9248
    %v9339 = vunpack.c.h.b16 %v9248
    %v9340 = vunpack.c.l.b16 %v9249
    %v9341 = vunpack.c.h.b16 %v9249
    %v9342 = vunpack.c.l.b16 %v9250
    %v9343 = vunpack.c.h.b16 %v9250
    %v9344 = vunpack.c.l.b16 %v9251
    %v9345 = vunpack.c.h.b16 %v9251
    %v9346 = vunpack.c.l.b16 %v9252
    %v9347 = vunpack.c.h.b16 %v9252
    %v9348 = vunpack.c.l.b16 %v9253
    %v9349 = vunpack.c.h.b16 %v9253
    %v9350 = vunpack.c.l.b16 %v9254
    %v9351 = vunpack.c.h.b16 %v9254
    %v9352 = vunpack.c.l.b16 %v9255
    %v9353 = vunpack.c.h.b16 %v9255
    %v9354 = vunpack.c.l.b16 %v9256
    %v9355 = vunpack.c.h.b16 %v9256
    %v9356 = vunpack.c.l.b16 %v9257
    %v9357 = vunpack.c.h.b16 %v9257
    %v9358 = vunpack.c.l.b16 %v9258
    %v9359 = vunpack.c.h.b16 %v9258
    %v9360 = vunpack.c.l.b16 %v9259
    %v9361 = vunpack.c.h.b16 %v9259
    %v9362 = vunpack.c.l.b16 %v9260
    %v9363 = vunpack.c.h.b16 %v9260
    %v9364 = vunpack.c.l.b16 %v9261
    %v9365 = vunpack.c.h.b16 %v9261
    %v9366 = vunpack.c.l.b16 %v9262
    %v9367 = vunpack.c.h.b16 %v9262
    %v9368 = vunpack.c.l.b16 %v9263
    %v9369 = vunpack.c.h.b16 %v9263
    %v9370 = vunpack.c.l.b16 %v9264
    %v9371 = vunpack.c.h.b16 %v9264
    %v9372 = vunpack.c.l.b16 %v9265
    %v9373 = vunpack.c.h.b16 %v9265
    %v9374 = vpack.c.b16 %v9342, %v9310
    %v9375 = vpack.c.b16 %v9343, %v9311
    %v9376 = vpack.c.b16 %v9344, %v9312
    %v9377 = vpack.c.b16 %v9345, %v9313
    %v9378 = vpack.c.b16 %v9346, %v9314
    %v9379 = vpack.c.b16 %v9347, %v9315
    %v9380 = vpack.c.b16 %v9348, %v9316
    %v9381 = vpack.c.b16 %v9349, %v9317
    %v9382 = vpack.c.b16 %v9350, %v9318
    %v9383 = vpack.c.b16 %v9351, %v9319
    %v9384 = vpack.c.b16 %v9352, %v9320
    %v9385 = vpack.c.b16 %v9353, %v9321
    %v9386 = vpack.c.b16 %v9354, %v9322
    %v9387 = vpack.c.b16 %v9355, %v9323
    %v9388 = vpack.c.b16 %v9356, %v9324
    %v9389 = vpack.c.b16 %v9357, %v9325
    %v9390 = vpack.c.b16 %v9358, %v9326
    %v9391 = vpack.c.b16 %v9359, %v9327
    %v9392 = vpack.c.b16 %v9360, %v9328
    %v9393 = vpack.c.b16 %v9361, %v9329
    %v9394 = vpack.c.b16 %v9362, %v9330
    %v9395 = vpack.c.b16 %v9363, %v9331
    %v9396 = vpack.c.b16 %v9364, %v9332
    %v9397 = vpack.c.b16 %v9365, %v9333
    %v9398 = vpack.c.b16 %v9366, %v9334
    %v9399 = vpack.c.b16 %v9367, %v9335
    %v9400 = vpack.c.b16 %v9368, %v9336
    %v9401 = vpack.c.b16 %v9369, %v9337
    %v9402 = vpack.c.b16 %v9370, %v9338
    %v9403 = vpack.c.b16 %v9371, %v9339
    %v9404 = vpack.c.b16 %v9372, %v9340
    %v9405 = vpack.c.b16 %v9373, %v9341
    %9438 = vmatprep.subr.bf16.mxu0 0
    %9439 = vmatpush1.bf16.msra.mxu0 %v8978
    %9440 = vmatprep.subr.bf16.mxu0 0
    %9441 = vmatpush1.bf16.msra.mxu0 %v8979
    %9442 = vmatprep.subr.bf16.mxu0 0
    %9443 = vmatpush1.bf16.msra.mxu0 %v8980
    %9444 = vmatprep.subr.bf16.mxu0 0
    %9445 = vmatpush1.bf16.msra.mxu0 %v8981
    %9446 = vmatprep.subr.bf16.mxu0 0
    %9447 = vmatpush1.bf16.msra.mxu0 %v8982
    %9448 = vmatprep.subr.bf16.mxu0 0
    %9449 = vmatpush1.bf16.msra.mxu0 %v8983
    %9450 = vmatprep.subr.bf16.mxu0 0
    %9451 = vmatpush1.bf16.msra.mxu0 %v8984
    %9452 = vmatprep.subr.bf16.mxu0 0
    %9453 = vmatpush1.bf16.msra.mxu0 %v8985
    %9454 = vmatprep.subr.bf16.mxu0 0
    %9455 = vmatpush1.bf16.msra.mxu0 %v8986
    %9456 = vmatprep.subr.bf16.mxu0 0
    %9457 = vmatpush1.bf16.msra.mxu0 %v8987
    %9458 = vmatprep.subr.bf16.mxu0 0
    %9459 = vmatpush1.bf16.msra.mxu0 %v8988
    %9460 = vmatprep.subr.bf16.mxu0 0
    %9461 = vmatpush1.bf16.msra.mxu0 %v8989
    %9462 = vmatprep.subr.bf16.mxu0 0
    %9463 = vmatpush1.bf16.msra.mxu0 %v8990
    %9464 = vmatprep.subr.bf16.mxu0 0
    %9465 = vmatpush1.bf16.msra.mxu0 %v8991
    %9466 = vmatprep.subr.bf16.mxu0 0
    %9467 = vmatpush1.bf16.msra.mxu0 %v8992
    %9468 = vmatprep.subr.bf16.mxu0 0
    %9469 = vmatpush1.bf16.msra.mxu0 %v8993
    %9470 = vmatprep.mubr.bf16.mxu0 %v9375
    %9471 = vmatmul.mubr.bf16.gmra.mrb[0].mxu0 %v9374
    %v9472 = vpop.f32.mrb[0].mxu0
    %v9473 = vadd.f32 %v9271, %v9472
    %v9474 = vpop.f32.mrb[0].mxu0
    %v9475 = vpop.f32.mrb[0].mxu0
    %v9476 = vadd.f32 %v9276, %v9475
    %v9477 = vpop.f32.mrb[0].mxu0
    %9478 = vdwg.mxu0
    %9479 = vmatprep.subr.bf16.mxu0 0
    %9480 = vmatpush1.bf16.msra.mxu0 %v8994
    %9481 = vmatprep.subr.bf16.mxu0 0
    %9482 = vmatpush1.bf16.msra.mxu0 %v8995
    %9483 = vmatprep.subr.bf16.mxu0 0
    %9484 = vmatpush1.bf16.msra.mxu0 %v8996
    %9485 = vmatprep.subr.bf16.mxu0 0
    %9486 = vmatpush1.bf16.msra.mxu0 %v8997
    %9487 = vmatprep.subr.bf16.mxu0 0
    %9488 = vmatpush1.bf16.msra.mxu0 %v8998
    %9489 = vmatprep.subr.bf16.mxu0 0
    %9490 = vmatpush1.bf16.msra.mxu0 %v8999
    %9491 = vmatprep.subr.bf16.mxu0 0
    %9492 = vmatpush1.bf16.msra.mxu0 %v9000
    %9493 = vmatprep.subr.bf16.mxu0 0
    %9494 = vmatpush1.bf16.msra.mxu0 %v9001
    %9495 = vmatprep.subr.bf16.mxu0 0
    %9496 = vmatpush1.bf16.msra.mxu0 %v9002
    %9497 = vmatprep.subr.bf16.mxu0 0
    %9498 = vmatpush1.bf16.msra.mxu0 %v9003
    %9499 = vmatprep.subr.bf16.mxu0 0
    %9500 = vmatpush1.bf16.msra.mxu0 %v9004
    %9501 = vmatprep.subr.bf16.mxu0 0
    %9502 = vmatpush1.bf16.msra.mxu0 %v9005
    %9503 = vmatprep.subr.bf16.mxu0 0
    %9504 = vmatpush1.bf16.msra.mxu0 %v9006
    %9505 = vmatprep.subr.bf16.mxu0 0
    %9506 = vmatpush1.bf16.msra.mxu0 %v9007
    %9507 = vmatprep.subr.bf16.mxu0 0
    %9508 = vmatpush1.bf16.msra.mxu0 %v9008
    %9509 = vmatprep.subr.bf16.mxu0 0
    %9510 = vmatpush1.bf16.msra.mxu0 %v9009
    %9511 = vmatprep.mubr.bf16.mxu0 %v9377
    %9512 = vmatmul.mubr.bf16.gmra.mrb[0].mxu0 %v9376
    %v9513 = vpop.f32.mrb[0].mxu0
    %v9514 = vadd.f32 %v9473, %v9513
    %v9515 = vpop.f32.mrb[0].mxu0
    %v9516 = vpop.f32.mrb[0].mxu0
    %v9517 = vadd.f32 %v9476, %v9516
    %v9518 = vpop.f32.mrb[0].mxu0
    %9519 = vdwg.mxu0
    %9520 = vmatprep.subr.bf16.mxu0 0
    %9521 = vmatpush1.bf16.msra.mxu0 %v9010
    %9522 = vmatprep.subr.bf16.mxu0 0
    %9523 = vmatpush1.bf16.msra.mxu0 %v9011
    %9524 = vmatprep.subr.bf16.mxu0 0
    %9525 = vmatpush1.bf16.msra.mxu0 %v9012
    %9526 = vmatprep.subr.bf16.mxu0 0
    %9527 = vmatpush1.bf16.msra.mxu0 %v9013
    %9528 = vmatprep.subr.bf16.mxu0 0
    %9529 = vmatpush1.bf16.msra.mxu0 %v9014
    %9530 = vmatprep.subr.bf16.mxu0 0
    %9531 = vmatpush1.bf16.msra.mxu0 %v9015
    %9532 = vmatprep.subr.bf16.mxu0 0
    %9533 = vmatpush1.bf16.msra.mxu0 %v9016
    %9534 = vmatprep.subr.bf16.mxu0 0
    %9535 = vmatpush1.bf16.msra.mxu0 %v9017
    %9536 = vmatprep.subr.bf16.mxu0 0
    %9537 = vmatpush1.bf16.msra.mxu0 %v9018
    %9538 = vmatprep.subr.bf16.mxu0 0
    %9539 = vmatpush1.bf16.msra.mxu0 %v9019
    %9540 = vmatprep.subr.bf16.mxu0 0
    %9541 = vmatpush1.bf16.msra.mxu0 %v9020
    %9542 = vmatprep.subr.bf16.mxu0 0
    %9543 = vmatpush1.bf16.msra.mxu0 %v9021
    %9544 = vmatprep.subr.bf16.mxu0 0
    %9545 = vmatpush1.bf16.msra.mxu0 %v9022
    %9546 = vmatprep.subr.bf16.mxu0 0
    %9547 = vmatpush1.bf16.msra.mxu0 %v9023
    %9548 = vmatprep.subr.bf16.mxu0 0
    %9549 = vmatpush1.bf16.msra.mxu0 %v9024
    %9550 = vmatprep.subr.bf16.mxu0 0
    %9551 = vmatpush1.bf16.msra.mxu0 %v9025
    %9552 = vmatprep.mubr.bf16.mxu0 %v9379
    %9553 = vmatmul.mubr.bf16.gmra.mrb[0].mxu0 %v9378
    %v9554 = vpop.f32.mrb[0].mxu0
    %v9555 = vadd.f32 %v9514, %v9554
    %v9556 = vpop.f32.mrb[0].mxu0
    %v9557 = vpop.f32.mrb[0].mxu0
    %v9558 = vadd.f32 %v9517, %v9557
    %v9559 = vpop.f32.mrb[0].mxu0
    %9560 = vdwg.mxu0
    %9561 = vmatprep.subr.bf16.mxu0 0
    %9562 = vmatpush1.bf16.msra.mxu0 %v9026
    %9563 = vmatprep.subr.bf16.mxu0 0
    %9564 = vmatpush1.bf16.msra.mxu0 %v9027
    %9565 = vmatprep.subr.bf16.mxu0 0
    %9566 = vmatpush1.bf16.msra.mxu0 %v9028
    %9567 = vmatprep.subr.bf16.mxu0 0
    %9568 = vmatpush1.bf16.msra.mxu0 %v9029
    %9569 = vmatprep.subr.bf16.mxu0 0
    %9570 = vmatpush1.bf16.msra.mxu0 %v9030
    %9571 = vmatprep.subr.bf16.mxu0 0
    %9572 = vmatpush1.bf16.msra.mxu0 %v9031
    %9573 = vmatprep.subr.bf16.mxu0 0
    %9574 = vmatpush1.bf16.msra.mxu0 %v9032
    %9575 = vmatprep.subr.bf16.mxu0 0
    %9576 = vmatpush1.bf16.msra.mxu0 %v9033
    %9577 = vmatprep.subr.bf16.mxu0 0
    %9578 = vmatpush1.bf16.msra.mxu0 %v9034
    %9579 = vmatprep.subr.bf16.mxu0 0
    %9580 = vmatpush1.bf16.msra.mxu0 %v9035
    %9581 = vmatprep.subr.bf16.mxu0 0
    %9582 = vmatpush1.bf16.msra.mxu0 %v9036
    %9583 = vmatprep.subr.bf16.mxu0 0
    %9584 = vmatpush1.bf16.msra.mxu0 %v9037
    %9585 = vmatprep.subr.bf16.mxu0 0
    %9586 = vmatpush1.bf16.msra.mxu0 %v9038
    %9587 = vmatprep.subr.bf16.mxu0 0
    %9588 = vmatpush1.bf16.msra.mxu0 %v9039
    %9589 = vmatprep.subr.bf16.mxu0 0
    %9590 = vmatpush1.bf16.msra.mxu0 %v9040
    %9591 = vmatprep.subr.bf16.mxu0 0
    %9592 = vmatpush1.bf16.msra.mxu0 %v9041
    %9593 = vmatprep.mubr.bf16.mxu0 %v9381
    %9594 = vmatmul.mubr.bf16.gmra.mrb[0].mxu0 %v9380
    %v9595 = vpop.f32.mrb[0].mxu0
    %v9596 = vadd.f32 %v9555, %v9595
    %v9597 = vpop.f32.mrb[0].mxu0
    %v9598 = vpop.f32.mrb[0].mxu0
    %v9599 = vadd.f32 %v9558, %v9598
    %v9600 = vpop.f32.mrb[0].mxu0
    %9601 = vdwg.mxu0
    %9602 = vmatprep.subr.bf16.mxu0 0
    %9603 = vmatpush1.bf16.msra.mxu0 %v9042
    %9604 = vmatprep.subr.bf16.mxu0 0
    %9605 = vmatpush1.bf16.msra.mxu0 %v9043
    %9606 = vmatprep.subr.bf16.mxu0 0
    %9607 = vmatpush1.bf16.msra.mxu0 %v9044
    %9608 = vmatprep.subr.bf16.mxu0 0
    %9609 = vmatpush1.bf16.msra.mxu0 %v9045
    %9610 = vmatprep.subr.bf16.mxu0 0
    %9611 = vmatpush1.bf16.msra.mxu0 %v9046
    %9612 = vmatprep.subr.bf16.mxu0 0
    %9613 = vmatpush1.bf16.msra.mxu0 %v9047
    %9614 = vmatprep.subr.bf16.mxu0 0
    %9615 = vmatpush1.bf16.msra.mxu0 %v9048
    %9616 = vmatprep.subr.bf16.mxu0 0
    %9617 = vmatpush1.bf16.msra.mxu0 %v9049
    %9618 = vmatprep.subr.bf16.mxu0 0
    %9619 = vmatpush1.bf16.msra.mxu0 %v9050
    %9620 = vmatprep.subr.bf16.mxu0 0
    %9621 = vmatpush1.bf16.msra.mxu0 %v9051
    %9622 = vmatprep.subr.bf16.mxu0 0
    %9623 = vmatpush1.bf16.msra.mxu0 %v9052
    %9624 = vmatprep.subr.bf16.mxu0 0
    %9625 = vmatpush1.bf16.msra.mxu0 %v9053
    %9626 = vmatprep.subr.bf16.mxu0 0
    %9627 = vmatpush1.bf16.msra.mxu0 %v9054
    %9628 = vmatprep.subr.bf16.mxu0 0
    %9629 = vmatpush1.bf16.msra.mxu0 %v9055
    %9630 = vmatprep.subr.bf16.mxu0 0
    %9631 = vmatpush1.bf16.msra.mxu0 %v9056
    %9632 = vmatprep.subr.bf16.mxu0 0
    %9633 = vmatpush1.bf16.msra.mxu0 %v9057
    %9634 = vmatprep.mubr.bf16.mxu0 %v9383
    %9635 = vmatmul.mubr.bf16.gmra.mrb[0].mxu0 %v9382
    %v9636 = vpop.f32.mrb[0].mxu0
    %v9637 = vadd.f32 %v9596, %v9636
    %v9638 = vpop.f32.mrb[0].mxu0
    %v9639 = vpop.f32.mrb[0].mxu0
    %v9640 = vadd.f32 %v9599, %v9639
    %v9641 = vpop.f32.mrb[0].mxu0
    %9642 = vdwg.mxu0
    %9643 = vmatprep.subr.bf16.mxu0 0
    %9644 = vmatpush1.bf16.msra.mxu0 %v9058
    %9645 = vmatprep.subr.bf16.mxu0 0
    %9646 = vmatpush1.bf16.msra.mxu0 %v9059
    %9647 = vmatprep.subr.bf16.mxu0 0
    %9648 = vmatpush1.bf16.msra.mxu0 %v9060
    %9649 = vmatprep.subr.bf16.mxu0 0
    %9650 = vmatpush1.bf16.msra.mxu0 %v9061
    %9651 = vmatprep.subr.bf16.mxu0 0
    %9652 = vmatpush1.bf16.msra.mxu0 %v9062
    %9653 = vmatprep.subr.bf16.mxu0 0
    %9654 = vmatpush1.bf16.msra.mxu0 %v9063
    %9655 = vmatprep.subr.bf16.mxu0 0
    %9656 = vmatpush1.bf16.msra.mxu0 %v9064
    %9657 = vmatprep.subr.bf16.mxu0 0
    %9658 = vmatpush1.bf16.msra.mxu0 %v9065
    %9659 = vmatprep.subr.bf16.mxu0 0
    %9660 = vmatpush1.bf16.msra.mxu0 %v9066
    %9661 = vmatprep.subr.bf16.mxu0 0
    %9662 = vmatpush1.bf16.msra.mxu0 %v9067
    %9663 = vmatprep.subr.bf16.mxu0 0
    %9664 = vmatpush1.bf16.msra.mxu0 %v9068
    %9665 = vmatprep.subr.bf16.mxu0 0
    %9666 = vmatpush1.bf16.msra.mxu0 %v9069
    %9667 = vmatprep.subr.bf16.mxu0 0
    %9668 = vmatpush1.bf16.msra.mxu0 %v9070
    %9669 = vmatprep.subr.bf16.mxu0 0
    %9670 = vmatpush1.bf16.msra.mxu0 %v9071
    %9671 = vmatprep.subr.bf16.mxu0 0
    %9672 = vmatpush1.bf16.msra.mxu0 %v9072
    %9673 = vmatprep.subr.bf16.mxu0 0
    %9674 = vmatpush1.bf16.msra.mxu0 %v9073
    %9675 = vmatprep.mubr.bf16.mxu0 %v9385
    %9676 = vmatmul.mubr.bf16.gmra.mrb[0].mxu0 %v9384
    %v9677 = vpop.f32.mrb[0].mxu0
    %v9678 = vadd.f32 %v9637, %v9677
    %v9679 = vpop.f32.mrb[0].mxu0
    %v9680 = vpop.f32.mrb[0].mxu0
    %v9681 = vadd.f32 %v9640, %v9680
    %v9682 = vpop.f32.mrb[0].mxu0
    %9683 = vdwg.mxu0
    %9684 = vmatprep.subr.bf16.mxu0 0
    %9685 = vmatpush1.bf16.msra.mxu0 %v9074
    %9686 = vmatprep.subr.bf16.mxu0 0
    %9687 = vmatpush1.bf16.msra.mxu0 %v9075
    %9688 = vmatprep.subr.bf16.mxu0 0
    %9689 = vmatpush1.bf16.msra.mxu0 %v9076
    %9690 = vmatprep.subr.bf16.mxu0 0
    %9691 = vmatpush1.bf16.msra.mxu0 %v9077
    %9692 = vmatprep.subr.bf16.mxu0 0
    %9693 = vmatpush1.bf16.msra.mxu0 %v9078
    %9694 = vmatprep.subr.bf16.mxu0 0
    %9695 = vmatpush1.bf16.msra.mxu0 %v9079
    %9696 = vmatprep.subr.bf16.mxu0 0
    %9697 = vmatpush1.bf16.msra.mxu0 %v9080
    %9698 = vmatprep.subr.bf16.mxu0 0
    %9699 = vmatpush1.bf16.msra.mxu0 %v9081
    %9700 = vmatprep.subr.bf16.mxu0 0
    %9701 = vmatpush1.bf16.msra.mxu0 %v9082
    %9702 = vmatprep.subr.bf16.mxu0 0
    %9703 = vmatpush1.bf16.msra.mxu0 %v9083
    %9704 = vmatprep.subr.bf16.mxu0 0
    %9705 = vmatpush1.bf16.msra.mxu0 %v9084
    %9706 = vmatprep.subr.bf16.mxu0 0
    %9707 = vmatpush1.bf16.msra.mxu0 %v9085
    %9708 = vmatprep.subr.bf16.mxu0 0
    %9709 = vmatpush1.bf16.msra.mxu0 %v9086
    %9710 = vmatprep.subr.bf16.mxu0 0
    %9711 = vmatpush1.bf16.msra.mxu0 %v9087
    %9712 = vmatprep.subr.bf16.mxu0 0
    %9713 = vmatpush1.bf16.msra.mxu0 %v9088
    %9714 = vmatprep.subr.bf16.mxu0 0
    %9715 = vmatpush1.bf16.msra.mxu0 %v9089
    %9716 = vmatprep.mubr.bf16.mxu0 %v9387
    %9717 = vmatmul.mubr.bf16.gmra.mrb[0].mxu0 %v9386
    %v9718 = vpop.f32.mrb[0].mxu0
    %v9719 = vadd.f32 %v9678, %v9718
    %v9720 = vpop.f32.mrb[0].mxu0
    %v9721 = vpop.f32.mrb[0].mxu0
    %v9722 = vadd.f32 %v9681, %v9721
    %v9723 = vpop.f32.mrb[0].mxu0
    %9724 = vdwg.mxu0
    %9725 = vmatprep.subr.bf16.mxu0 0
    %9726 = vmatpush1.bf16.msra.mxu0 %v9090
    %9727 = vmatprep.subr.bf16.mxu0 0
    %9728 = vmatpush1.bf16.msra.mxu0 %v9091
    %9729 = vmatprep.subr.bf16.mxu0 0
    %9730 = vmatpush1.bf16.msra.mxu0 %v9092
    %9731 = vmatprep.subr.bf16.mxu0 0
    %9732 = vmatpush1.bf16.msra.mxu0 %v9093
    %9733 = vmatprep.subr.bf16.mxu0 0
    %9734 = vmatpush1.bf16.msra.mxu0 %v9094
    %9735 = vmatprep.subr.bf16.mxu0 0
    %9736 = vmatpush1.bf16.msra.mxu0 %v9095
    %9737 = vmatprep.subr.bf16.mxu0 0
    %9738 = vmatpush1.bf16.msra.mxu0 %v9096
    %9739 = vmatprep.subr.bf16.mxu0 0
    %9740 = vmatpush1.bf16.msra.mxu0 %v9097
    %9741 = vmatprep.subr.bf16.mxu0 0
    %9742 = vmatpush1.bf16.msra.mxu0 %v9098
    %9743 = vmatprep.subr.bf16.mxu0 0
    %9744 = vmatpush1.bf16.msra.mxu0 %v9099
    %9745 = vmatprep.subr.bf16.mxu0 0
    %9746 = vmatpush1.bf16.msra.mxu0 %v9100
    %9747 = vmatprep.subr.bf16.mxu0 0
    %9748 = vmatpush1.bf16.msra.mxu0 %v9101
    %9749 = vmatprep.subr.bf16.mxu0 0
    %9750 = vmatpush1.bf16.msra.mxu0 %v9102
    %9751 = vmatprep.subr.bf16.mxu0 0
    %9752 = vmatpush1.bf16.msra.mxu0 %v9103
    %9753 = vmatprep.subr.bf16.mxu0 0
    %9754 = vmatpush1.bf16.msra.mxu0 %v9104
    %9755 = vmatprep.subr.bf16.mxu0 0
    %9756 = vmatpush1.bf16.msra.mxu0 %v9105
    %9757 = vmatprep.mubr.bf16.mxu0 %v9389
    %9758 = vmatmul.mubr.bf16.gmra.mrb[0].mxu0 %v9388
    %v9759 = vpop.f32.mrb[0].mxu0
    %v9760 = vadd.f32 %v9719, %v9759
    %v9761 = vpop.f32.mrb[0].mxu0
    %v9762 = vpop.f32.mrb[0].mxu0
    %v9763 = vadd.f32 %v9722, %v9762
    %v9764 = vpop.f32.mrb[0].mxu0
    %9765 = vdwg.mxu0
    %9766 = vmatprep.subr.bf16.mxu0 0
    %9767 = vmatpush1.bf16.msra.mxu0 %v9106
    %9768 = vmatprep.subr.bf16.mxu0 0
    %9769 = vmatpush1.bf16.msra.mxu0 %v9107
    %9770 = vmatprep.subr.bf16.mxu0 0
    %9771 = vmatpush1.bf16.msra.mxu0 %v9108
    %9772 = vmatprep.subr.bf16.mxu0 0
    %9773 = vmatpush1.bf16.msra.mxu0 %v9109
    %9774 = vmatprep.subr.bf16.mxu0 0
    %9775 = vmatpush1.bf16.msra.mxu0 %v9110
    %9776 = vmatprep.subr.bf16.mxu0 0
    %9777 = vmatpush1.bf16.msra.mxu0 %v9111
    %9778 = vmatprep.subr.bf16.mxu0 0
    %9779 = vmatpush1.bf16.msra.mxu0 %v9112
    %9780 = vmatprep.subr.bf16.mxu0 0
    %9781 = vmatpush1.bf16.msra.mxu0 %v9113
    %9782 = vmatprep.subr.bf16.mxu0 0
    %9783 = vmatpush1.bf16.msra.mxu0 %v9114
    %9784 = vmatprep.subr.bf16.mxu0 0
    %9785 = vmatpush1.bf16.msra.mxu0 %v9115
    %9786 = vmatprep.subr.bf16.mxu0 0
    %9787 = vmatpush1.bf16.msra.mxu0 %v9116
    %9788 = vmatprep.subr.bf16.mxu0 0
    %9789 = vmatpush1.bf16.msra.mxu0 %v9117
    %9790 = vmatprep.subr.bf16.mxu0 0
    %9791 = vmatpush1.bf16.msra.mxu0 %v9118
    %9792 = vmatprep.subr.bf16.mxu0 0
    %9793 = vmatpush1.bf16.msra.mxu0 %v9119
    %9794 = vmatprep.subr.bf16.mxu0 0
    %9795 = vmatpush1.bf16.msra.mxu0 %v9120
    %9796 = vmatprep.subr.bf16.mxu0 0
    %9797 = vmatpush1.bf16.msra.mxu0 %v9121
    %9798 = vmatprep.mubr.bf16.mxu0 %v9391
    %9799 = vmatmul.mubr.bf16.gmra.mrb[0].mxu0 %v9390
    %v9800 = vpop.f32.mrb[0].mxu0
    %v9801 = vadd.f32 %v9760, %v9800
    %v9802 = vpop.f32.mrb[0].mxu0
    %v9803 = vpop.f32.mrb[0].mxu0
    %v9804 = vadd.f32 %v9763, %v9803
    %v9805 = vpop.f32.mrb[0].mxu0
    %9806 = vdwg.mxu0
    %9807 = vmatprep.subr.bf16.mxu0 0
    %9808 = vmatpush1.bf16.msra.mxu0 %v9122
    %9809 = vmatprep.subr.bf16.mxu0 0
    %9810 = vmatpush1.bf16.msra.mxu0 %v9123
    %9811 = vmatprep.subr.bf16.mxu0 0
    %9812 = vmatpush1.bf16.msra.mxu0 %v9124
    %9813 = vmatprep.subr.bf16.mxu0 0
    %9814 = vmatpush1.bf16.msra.mxu0 %v9125
    %9815 = vmatprep.subr.bf16.mxu0 0
    %9816 = vmatpush1.bf16.msra.mxu0 %v9126
    %9817 = vmatprep.subr.bf16.mxu0 0
    %9818 = vmatpush1.bf16.msra.mxu0 %v9127
    %9819 = vmatprep.subr.bf16.mxu0 0
    %9820 = vmatpush1.bf16.msra.mxu0 %v9128
    %9821 = vmatprep.subr.bf16.mxu0 0
    %9822 = vmatpush1.bf16.msra.mxu0 %v9129
    %9823 = vmatprep.subr.bf16.mxu0 0
    %9824 = vmatpush1.bf16.msra.mxu0 %v9130
    %9825 = vmatprep.subr.bf16.mxu0 0
    %9826 = vmatpush1.bf16.msra.mxu0 %v9131
    %9827 = vmatprep.subr.bf16.mxu0 0
    %9828 = vmatpush1.bf16.msra.mxu0 %v9132
    %9829 = vmatprep.subr.bf16.mxu0 0
    %9830 = vmatpush1.bf16.msra.mxu0 %v9133
    %9831 = vmatprep.subr.bf16.mxu0 0
    %9832 = vmatpush1.bf16.msra.mxu0 %v9134
    %9833 = vmatprep.subr.bf16.mxu0 0
    %9834 = vmatpush1.bf16.msra.mxu0 %v9135
    %9835 = vmatprep.subr.bf16.mxu0 0
    %9836 = vmatpush1.bf16.msra.mxu0 %v9136
    %9837 = vmatprep.subr.bf16.mxu0 0
    %9838 = vmatpush1.bf16.msra.mxu0 %v9137
    %9839 = vmatprep.mubr.bf16.mxu0 %v9393
    %9840 = vmatmul.mubr.bf16.gmra.mrb[0].mxu0 %v9392
    %v9841 = vpop.f32.mrb[0].mxu0
    %v9842 = vadd.f32 %v9801, %v9841
    %v9843 = vpop.f32.mrb[0].mxu0
    %v9844 = vpop.f32.mrb[0].mxu0
    %v9845 = vadd.f32 %v9804, %v9844
    %v9846 = vpop.f32.mrb[0].mxu0
    %9847 = vdwg.mxu0
    %9848 = vmatprep.subr.bf16.mxu0 0
    %9849 = vmatpush1.bf16.msra.mxu0 %v9138
    %9850 = vmatprep.subr.bf16.mxu0 0
    %9851 = vmatpush1.bf16.msra.mxu0 %v9139
    %9852 = vmatprep.subr.bf16.mxu0 0
    %9853 = vmatpush1.bf16.msra.mxu0 %v9140
    %9854 = vmatprep.subr.bf16.mxu0 0
    %9855 = vmatpush1.bf16.msra.mxu0 %v9141
    %9856 = vmatprep.subr.bf16.mxu0 0
    %9857 = vmatpush1.bf16.msra.mxu0 %v9142
    %9858 = vmatprep.subr.bf16.mxu0 0
    %9859 = vmatpush1.bf16.msra.mxu0 %v9143
    %9860 = vmatprep.subr.bf16.mxu0 0
    %9861 = vmatpush1.bf16.msra.mxu0 %v9144
    %9862 = vmatprep.subr.bf16.mxu0 0
    %9863 = vmatpush1.bf16.msra.mxu0 %v9145
    %9864 = vmatprep.subr.bf16.mxu0 0
    %9865 = vmatpush1.bf16.msra.mxu0 %v9146
    %9866 = vmatprep.subr.bf16.mxu0 0
    %9867 = vmatpush1.bf16.msra.mxu0 %v9147
    %9868 = vmatprep.subr.bf16.mxu0 0
    %9869 = vmatpush1.bf16.msra.mxu0 %v9148
    %9870 = vmatprep.subr.bf16.mxu0 0
    %9871 = vmatpush1.bf16.msra.mxu0 %v9149
    %9872 = vmatprep.subr.bf16.mxu0 0
    %9873 = vmatpush1.bf16.msra.mxu0 %v9150
    %9874 = vmatprep.subr.bf16.mxu0 0
    %9875 = vmatpush1.bf16.msra.mxu0 %v9151
    %9876 = vmatprep.subr.bf16.mxu0 0
    %9877 = vmatpush1.bf16.msra.mxu0 %v9152
    %9878 = vmatprep.subr.bf16.mxu0 0
    %9879 = vmatpush1.bf16.msra.mxu0 %v9153
    %9880 = vmatprep.mubr.bf16.mxu0 %v9395
    %9881 = vmatmul.mubr.bf16.gmra.mrb[0].mxu0 %v9394
    %v9882 = vpop.f32.mrb[0].mxu0
    %v9883 = vadd.f32 %v9842, %v9882
    %v9884 = vpop.f32.mrb[0].mxu0
    %v9885 = vpop.f32.mrb[0].mxu0
    %v9886 = vadd.f32 %v9845, %v9885
    %v9887 = vpop.f32.mrb[0].mxu0
    %9888 = vdwg.mxu0
    %9889 = vmatprep.subr.bf16.mxu0 0
    %9890 = vmatpush1.bf16.msra.mxu0 %v9154
    %9891 = vmatprep.subr.bf16.mxu0 0
    %9892 = vmatpush1.bf16.msra.mxu0 %v9155
    %9893 = vmatprep.subr.bf16.mxu0 0
    %9894 = vmatpush1.bf16.msra.mxu0 %v9156
    %9895 = vmatprep.subr.bf16.mxu0 0
    %9896 = vmatpush1.bf16.msra.mxu0 %v9157
    %9897 = vmatprep.subr.bf16.mxu0 0
    %9898 = vmatpush1.bf16.msra.mxu0 %v9158
    %9899 = vmatprep.subr.bf16.mxu0 0
    %9900 = vmatpush1.bf16.msra.mxu0 %v9159
    %9901 = vmatprep.subr.bf16.mxu0 0
    %9902 = vmatpush1.bf16.msra.mxu0 %v9160
    %9903 = vmatprep.subr.bf16.mxu0 0
    %9904 = vmatpush1.bf16.msra.mxu0 %v9161
    %9905 = vmatprep.subr.bf16.mxu0 0
    %9906 = vmatpush1.bf16.msra.mxu0 %v9162
    %9907 = vmatprep.subr.bf16.mxu0 0
    %9908 = vmatpush1.bf16.msra.mxu0 %v9163
    %9909 = vmatprep.subr.bf16.mxu0 0
    %9910 = vmatpush1.bf16.msra.mxu0 %v9164
    %9911 = vmatprep.subr.bf16.mxu0 0
    %9912 = vmatpush1.bf16.msra.mxu0 %v9165
    %9913 = vmatprep.subr.bf16.mxu0 0
    %9914 = vmatpush1.bf16.msra.mxu0 %v9166
    %9915 = vmatprep.subr.bf16.mxu0 0
    %9916 = vmatpush1.bf16.msra.mxu0 %v9167
    %9917 = vmatprep.subr.bf16.mxu0 0
    %9918 = vmatpush1.bf16.msra.mxu0 %v9168
    %9919 = vmatprep.subr.bf16.mxu0 0
    %9920 = vmatpush1.bf16.msra.mxu0 %v9169
    %9921 = vmatprep.mubr.bf16.mxu0 %v9397
    %9922 = vmatmul.mubr.bf16.gmra.mrb[0].mxu0 %v9396
    %v9923 = vpop.f32.mrb[0].mxu0
    %v9924 = vadd.f32 %v9883, %v9923
    %v9925 = vpop.f32.mrb[0].mxu0
    %v9926 = vpop.f32.mrb[0].mxu0
    %v9927 = vadd.f32 %v9886, %v9926
    %v9928 = vpop.f32.mrb[0].mxu0
    %9929 = vdwg.mxu0
    %9930 = vmatprep.subr.bf16.mxu0 0
    %9931 = vmatpush1.bf16.msra.mxu0 %v9170
    %9932 = vmatprep.subr.bf16.mxu0 0
    %9933 = vmatpush1.bf16.msra.mxu0 %v9171
    %9934 = vmatprep.subr.bf16.mxu0 0
    %9935 = vmatpush1.bf16.msra.mxu0 %v9172
    %9936 = vmatprep.subr.bf16.mxu0 0
    %9937 = vmatpush1.bf16.msra.mxu0 %v9173
    %9938 = vmatprep.subr.bf16.mxu0 0
    %9939 = vmatpush1.bf16.msra.mxu0 %v9174
    %9940 = vmatprep.subr.bf16.mxu0 0
    %9941 = vmatpush1.bf16.msra.mxu0 %v9175
    %9942 = vmatprep.subr.bf16.mxu0 0
    %9943 = vmatpush1.bf16.msra.mxu0 %v9176
    %9944 = vmatprep.subr.bf16.mxu0 0
    %9945 = vmatpush1.bf16.msra.mxu0 %v9177
    %9946 = vmatprep.subr.bf16.mxu0 0
    %9947 = vmatpush1.bf16.msra.mxu0 %v9178
    %9948 = vmatprep.subr.bf16.mxu0 0
    %9949 = vmatpush1.bf16.msra.mxu0 %v9179
    %9950 = vmatprep.subr.bf16.mxu0 0
    %9951 = vmatpush1.bf16.msra.mxu0 %v9180
    %9952 = vmatprep.subr.bf16.mxu0 0
    %9953 = vmatpush1.bf16.msra.mxu0 %v9181
    %9954 = vmatprep.subr.bf16.mxu0 0
    %9955 = vmatpush1.bf16.msra.mxu0 %v9182
    %9956 = vmatprep.subr.bf16.mxu0 0
    %9957 = vmatpush1.bf16.msra.mxu0 %v9183
    %9958 = vmatprep.subr.bf16.mxu0 0
    %9959 = vmatpush1.bf16.msra.mxu0 %v9184
    %9960 = vmatprep.subr.bf16.mxu0 0
    %9961 = vmatpush1.bf16.msra.mxu0 %v9185
    %9962 = vmatprep.mubr.bf16.mxu0 %v9399
    %9963 = vmatmul.mubr.bf16.gmra.mrb[0].mxu0 %v9398
    %v9964 = vpop.f32.mrb[0].mxu0
    %v9965 = vadd.f32 %v9924, %v9964
    %v9966 = vpop.f32.mrb[0].mxu0
    %v9967 = vpop.f32.mrb[0].mxu0
    %v9968 = vadd.f32 %v9927, %v9967
    %v9969 = vpop.f32.mrb[0].mxu0
    %9970 = vdwg.mxu0
    %9971 = vmatprep.subr.bf16.mxu0 0
    %9972 = vmatpush1.bf16.msra.mxu0 %v9186
    %9973 = vmatprep.subr.bf16.mxu0 0
    %9974 = vmatpush1.bf16.msra.mxu0 %v9187
    %9975 = vmatprep.subr.bf16.mxu0 0
    %9976 = vmatpush1.bf16.msra.mxu0 %v9188
    %9977 = vmatprep.subr.bf16.mxu0 0
    %9978 = vmatpush1.bf16.msra.mxu0 %v9189
    %9979 = vmatprep.subr.bf16.mxu0 0
    %9980 = vmatpush1.bf16.msra.mxu0 %v9190
    %9981 = vmatprep.subr.bf16.mxu0 0
    %9982 = vmatpush1.bf16.msra.mxu0 %v9191
    %9983 = vmatprep.subr.bf16.mxu0 0
    %9984 = vmatpush1.bf16.msra.mxu0 %v9192
    %9985 = vmatprep.subr.bf16.mxu0 0
    %9986 = vmatpush1.bf16.msra.mxu0 %v9193
    %9987 = vmatprep.subr.bf16.mxu0 0
    %9988 = vmatpush1.bf16.msra.mxu0 %v9194
    %9989 = vmatprep.subr.bf16.mxu0 0
    %9990 = vmatpush1.bf16.msra.mxu0 %v9195
    %9991 = vmatprep.subr.bf16.mxu0 0
    %9992 = vmatpush1.bf16.msra.mxu0 %v9196
    %9993 = vmatprep.subr.bf16.mxu0 0
    %9994 = vmatpush1.bf16.msra.mxu0 %v9197
    %9995 = vmatprep.subr.bf16.mxu0 0
    %9996 = vmatpush1.bf16.msra.mxu0 %v9198
    %9997 = vmatprep.subr.bf16.mxu0 0
    %9998 = vmatpush1.bf16.msra.mxu0 %v9199
    %9999 = vmatprep.subr.bf16.mxu0 0
    %10000 = vmatpush1.bf16.msra.mxu0 %v9200
    %10001 = vmatprep.subr.bf16.mxu0 0
    %10002 = vmatpush1.bf16.msra.mxu0 %v9201
    %10003 = vmatprep.mubr.bf16.mxu0 %v9401
    %10004 = vmatmul.mubr.bf16.gmra.mrb[0].mxu0 %v9400
    %v10005 = vpop.f32.mrb[0].mxu0
    %v10006 = vadd.f32 %v9965, %v10005
    %v10007 = vpop.f32.mrb[0].mxu0
    %v10008 = vpop.f32.mrb[0].mxu0
    %v10009 = vadd.f32 %v9968, %v10008
    %v10010 = vpop.f32.mrb[0].mxu0
    %10011 = vdwg.mxu0
    %10012 = vmatprep.subr.bf16.mxu0 0
    %10013 = vmatpush1.bf16.msra.mxu0 %v9202
    %10014 = vmatprep.subr.bf16.mxu0 0
    %10015 = vmatpush1.bf16.msra.mxu0 %v9203
    %10016 = vmatprep.subr.bf16.mxu0 0
    %10017 = vmatpush1.bf16.msra.mxu0 %v9204
    %10018 = vmatprep.subr.bf16.mxu0 0
    %10019 = vmatpush1.bf16.msra.mxu0 %v9205
    %10020 = vmatprep.subr.bf16.mxu0 0
    %10021 = vmatpush1.bf16.msra.mxu0 %v9206
    %10022 = vmatprep.subr.bf16.mxu0 0
    %10023 = vmatpush1.bf16.msra.mxu0 %v9207
    %10024 = vmatprep.subr.bf16.mxu0 0
    %10025 = vmatpush1.bf16.msra.mxu0 %v9208
    %10026 = vmatprep.subr.bf16.mxu0 0
    %10027 = vmatpush1.bf16.msra.mxu0 %v9209
    %10028 = vmatprep.subr.bf16.mxu0 0
    %10029 = vmatpush1.bf16.msra.mxu0 %v9210
    %10030 = vmatprep.subr.bf16.mxu0 0
    %10031 = vmatpush1.bf16.msra.mxu0 %v9211
    %10032 = vmatprep.subr.bf16.mxu0 0
    %10033 = vmatpush1.bf16.msra.mxu0 %v9212
    %10034 = vmatprep.subr.bf16.mxu0 0
    %10035 = vmatpush1.bf16.msra.mxu0 %v9213
    %10036 = vmatprep.subr.bf16.mxu0 0
    %10037 = vmatpush1.bf16.msra.mxu0 %v9214
    %10038 = vmatprep.subr.bf16.mxu0 0
    %10039 = vmatpush1.bf16.msra.mxu0 %v9215
    %10040 = vmatprep.subr.bf16.mxu0 0
    %10041 = vmatpush1.bf16.msra.mxu0 %v9216
    %10042 = vmatprep.subr.bf16.mxu0 0
    %10043 = vmatpush1.bf16.msra.mxu0 %v9217
    %10044 = vmatprep.mubr.bf16.mxu0 %v9403
    %10045 = vmatmul.mubr.bf16.gmra.mrb[0].mxu0 %v9402
    %v10046 = vpop.f32.mrb[0].mxu0
    %v10047 = vadd.f32 %v10006, %v10046
    %v10048 = vpop.f32.mrb[0].mxu0
    %v10049 = vpop.f32.mrb[0].mxu0
    %v10050 = vadd.f32 %v10009, %v10049
    %v10051 = vpop.f32.mrb[0].mxu0
    %10052 = vdwg.mxu0
    %10053 = vmatprep.subr.bf16.mxu0 0
    %10054 = vmatpush1.bf16.msra.mxu0 %v9218
    %10055 = vmatprep.subr.bf16.mxu0 0
    %10056 = vmatpush1.bf16.msra.mxu0 %v9219
    %10057 = vmatprep.subr.bf16.mxu0 0
    %10058 = vmatpush1.bf16.msra.mxu0 %v9220
    %10059 = vmatprep.subr.bf16.mxu0 0
    %10060 = vmatpush1.bf16.msra.mxu0 %v9221
    %10061 = vmatprep.subr.bf16.mxu0 0
    %10062 = vmatpush1.bf16.msra.mxu0 %v9222
    %10063 = vmatprep.subr.bf16.mxu0 0
    %10064 = vmatpush1.bf16.msra.mxu0 %v9223
    %10065 = vmatprep.subr.bf16.mxu0 0
    %10066 = vmatpush1.bf16.msra.mxu0 %v9224
    %10067 = vmatprep.subr.bf16.mxu0 0
    %10068 = vmatpush1.bf16.msra.mxu0 %v9225
    %10069 = vmatprep.subr.bf16.mxu0 0
    %10070 = vmatpush1.bf16.msra.mxu0 %v9226
    %10071 = vmatprep.subr.bf16.mxu0 0
    %10072 = vmatpush1.bf16.msra.mxu0 %v9227
    %10073 = vmatprep.subr.bf16.mxu0 0
    %10074 = vmatpush1.bf16.msra.mxu0 %v9228
    %10075 = vmatprep.subr.bf16.mxu0 0
    %10076 = vmatpush1.bf16.msra.mxu0 %v9229
    %10077 = vmatprep.subr.bf16.mxu0 0
    %10078 = vmatpush1.bf16.msra.mxu0 %v9230
    %10079 = vmatprep.subr.bf16.mxu0 0
    %10080 = vmatpush1.bf16.msra.mxu0 %v9231
    %10081 = vmatprep.subr.bf16.mxu0 0
    %10082 = vmatpush1.bf16.msra.mxu0 %v9232
    %10083 = vmatprep.subr.bf16.mxu0 0
    %10084 = vmatpush1.bf16.msra.mxu0 %v9233
    %10085 = vmatprep.mubr.bf16.mxu0 %v9405
    %10086 = vmatmul.mubr.bf16.gmra.mrb[0].mxu0 %v9404
    %v10087 = vpop.f32.mrb[0].mxu0
    %v10088 = vadd.f32 %v10047, %v10087
    %v10089 = vpop.f32.mrb[0].mxu0
    %v10090 = vpop.f32.mrb[0].mxu0
    %v10091 = vadd.f32 %v10050, %v10090
    %v10092 = vpop.f32.mrb[0].mxu0
    %10093 = vdwg.mxu0
    %vm10094 = vcmask 64512
    %v10095 = vsel %vm10094, %v10088, -inf
    %vm10096 = vcmask 58368
    %v10097 = vsel %vm10096, %v10091, -inf
    %v10098 = vmax.f32 %v10095, %v10097
    %v10099 = vrot.slane %v10098, 4
    %v10100 = vmax.f32 %v10098, %v10099
    %v10101 = vrot.slane %v10100, 2
    %v10102 = vmax.f32 %v10100, %v10101
    %v10103 = vrot.slane %v10102, 1
    %v10104 = vmax.f32 %v10102, %v10103
    %v10105 = vsub.f32 %v10088, %v10104
    %v10106 = vsub.f32 %v10091, %v10104
    %v10107 = vmul.f32 %v10105, 1.442695
    %v10108 = vpow.pop %v10107
    %v10109 = vmul.f32 %v10106, 1.442695
    %v10110 = vpow.pop %v10109
    %v10111 = vsel %vm10094, %v10108, 0.0
    %v10112 = vsel %vm10096, %v10110, 0.0
    %v10113 = vadd.f32 %v10111, %v10112
    %v10114 = vrot.slane %v10113, 4
    %v10115 = vadd.f32 %v10113, %v10114
    %v10116 = vrot.slane %v10115, 2
    %v10117 = vadd.f32 %v10115, %v10116
    %v10118 = vrot.slane %v10117, 1
    %v10119 = vadd.f32 %v10117, %v10118
    %v10120 = vlog2.pop %v10119
    %v10121 = vmul.f32 %v10120, 0.6931472
    %v10122 = vsub.f32 %v10105, %v10121
    %v10123 = vsub.f32 %v10106, %v10121
    %10124 = vst.msk [vmem:[%s11] sm:$0xff] %vm10094, %v10122
    %10125 = vst.msk [vmem:[%s11 + $0x8] sm:$0x3] %vm10096, %v10123
    // Predicated region
    $region58: #{tpu_custom_call.1} parent=1 // pred_check
      _
    $region59: #{tpu_custom_call.1} parent=1 // pred_check_branch
      %10127 = sbr.rel (0) target = $region61
    $region60: #{tpu_custom_call.1} parent=1 // pred_region
      _
    $region61: #{tpu_custom_call.1} parent=1 // pred_fallthru
      _
    // Predicated region
    $region62: #{tpu_custom_call.1} parent=1 // pred_check
      _
    $region63: #{tpu_custom_call.1} parent=1 // pred_check_branch
      %10129 = sbr.rel (0) target = $region65
    $region64: #{tpu_custom_call.1} parent=1 // pred_region
      _
    $region65: #{tpu_custom_call.1} parent=1 // pred_fallthru
      _
    %10130 = vsyncpa [#allocation3], 1
    %10131 = vsyncpa [#allocation5], 1

</llo_original>
